<compile_context>
chip_gen: v6e
topology: v6e:2x2x1
jax: 0.10.0
libtpu: 0.0.40
codegen_flags: <defaults>
</compile_context>

<pallas_src>
import numpy as np

import jax
import jax.numpy as jnp
from jax import lax
from jax.experimental import pallas as pl
from jax.experimental.pallas import tpu as pltpu


# ----------------------------------------------------------------------------
# Geometry helpers (static Python / numpy, used at init & trace time)
# ----------------------------------------------------------------------------
GUARD = 128  # lane-aligned guard: covers max shift (hp+1) and keeps interior
             # stores / scatter targets 128-lane aligned.


def _geometry(h):
    """Flat padded-raster geometry for an h x h feature map with 1-pixel pad."""
    hp = h + 2                       # padded spatial extent
    mp = hp * hp                     # flattened padded raster length
    assert hp + 1 <= GUARD
    guard = GUARD
    length = mp + 2 * guard          # guarded buffer length
    deltas = tuple((dh - 1) * hp + (dw - 1) for dh in range(3) for dw in range(3))
    pool_shifts = (0, 1, hp, hp + 1)  # 2x2 window corners relative to top-left
    return dict(h=h, hp=hp, mp=mp, guard=guard, length=length,
                deltas=deltas, pool_shifts=pool_shifts)


def _valid_mask(geo):
    """(1, mp) f32 mask: 1 at interior (non-padding) raster positions."""
    hp, h = geo["hp"], geo["h"]
    m = np.arange(geo["mp"])
    row, col = m // hp, m % hp
    ok = (row >= 1) & (row <= h) & (col >= 1) & (col <= h)
    return ok.astype(np.float32).reshape(1, -1)


def _pool_select_matrix(geo_in, geo_out):
    """(mp_in, length_out) 0/1 matrix: picks every 2x2-window top-left corner of
    the input raster and scatters it into the interior of the next block's
    padded+guarded raster (zeros elsewhere => automatic zero padding)."""
    h_out = geo_in["h"] // 2
    assert h_out == geo_out["h"]
    s = np.zeros((geo_in["mp"], geo_out["length"]), np.float32)
    for ho in range(h_out):
        for wo in range(h_out):
            src = (2 * ho + 1) * geo_in["hp"] + (2 * wo + 1)
            dst = geo_out["guard"] + (ho + 1) * geo_out["hp"] + (wo + 1)
            s[src, dst] = 1.0
    return s


def _fc_gather_weights(fc_w, geo, hidden, out_dim):
    """(hidden, mp, out_dim): fc weight for channel c scattered onto the
    2x2-window top-left corner positions of the block-2 raster (bakes the final
    pool + torch NCHW flatten order into one set of matmul weights)."""
    h_out = geo["h"] // 2
    w_r = np.asarray(fc_w, np.float32).reshape(out_dim, hidden, h_out, h_out)
    g = np.zeros((hidden, geo["mp"], out_dim), np.float32)
    for ho in range(h_out):
        for wo in range(h_out):
            src = (2 * ho + 1) * geo["hp"] + (2 * wo + 1)
            g[:, src, :] = w_r[:, :, ho, wo].T
    return g


# ----------------------------------------------------------------------------
# Parameters (torch-like init) + one-time re-packing into kernel layouts
# ----------------------------------------------------------------------------
def init_params(key, input_shape, hidden_units, output_shape, spatial=28):
    ks = jax.random.split(key, 10)
    final_spatial = spatial // 4
    fc_in = hidden_units * final_spatial * final_spatial

    def u(k, shape, fan_in):
        bound = 1.0 / jnp.sqrt(jnp.float32(fan_in))
        return jax.random.uniform(k, shape, jnp.float32, -bound, bound)

    return {
        "conv1_w": u(ks[0], (hidden_units, input_shape, 3, 3), input_shape * 9),
        "conv1_b": u(ks[1], (hidden_units,), input_shape * 9),
        "conv2_w": u(ks[2], (hidden_units, hidden_units, 3, 3), hidden_units * 9),
        "conv2_b": u(ks[3], (hidden_units,), hidden_units * 9),
        "conv3_w": u(ks[4], (hidden_units, hidden_units, 3, 3), hidden_units * 9),
        "conv3_b": u(ks[5], (hidden_units,), hidden_units * 9),
        "conv4_w": u(ks[6], (hidden_units, hidden_units, 3, 3), hidden_units * 9),
        "conv4_b": u(ks[7], (hidden_units,), hidden_units * 9),
        "fc_w": u(ks[8], (output_shape, fc_in), fc_in),
        "fc_b": u(ks[9], (output_shape,), fc_in),
    }


def prepare_params(params, spatial):
    """Pre-transform torch-layout parameters into kernel layouts (once, outside
    the jitted forward): conv weights -> (9, Cout, Cin) bf16, biases -> (C,1)
    f32, plus the masks / pool-selection / fc-gather constant matrices."""
    assert spatial % 4 == 0
    geo1 = _geometry(spatial)
    geo2 = _geometry(spatial // 2)
    hidden = params["conv2_w"].shape[0]
    out_dim = params["fc_w"].shape[0]

    def conv_w(w):
        cout, cin = w.shape[0], w.shape[1]
        return (jnp.transpose(w, (2, 3, 0, 1)).reshape(9, cout, cin)
                .astype(jnp.bfloat16))

    def conv_b(b):
        return b.reshape(-1, 1).astype(jnp.float32)

    return {
        "w1": conv_w(params["conv1_w"]), "b1": conv_b(params["conv1_b"]),
        "w2": conv_w(params["conv2_w"]), "b2": conv_b(params["conv2_b"]),
        "w3": conv_w(params["conv3_w"]), "b3": conv_b(params["conv3_b"]),
        "w4": conv_w(params["conv4_w"]), "b4": conv_b(params["conv4_b"]),
        "mask1": jnp.asarray(_valid_mask(geo1)),
        "mask2": jnp.asarray(_valid_mask(geo2)),
        "s1": jnp.asarray(_pool_select_matrix(geo1, geo2), jnp.bfloat16),
        "g_fc": jnp.asarray(
            _fc_gather_weights(np.asarray(params["fc_w"]), geo2, hidden, out_dim),
            jnp.float32),
        "fc_b": params["fc_b"].reshape(1, -1).astype(jnp.float32),
    }


# ----------------------------------------------------------------------------
# Fused forward pass: one pallas_call, grid over batch
# ----------------------------------------------------------------------------
@jax.jit
def fashion_mnist_model_v2(prep, x_nchw):
    n, in_ch, spatial, spatial_w = x_nchw.shape
    assert spatial == spatial_w and spatial % 4 == 0
    hidden = prep["w2"].shape[1]
    out_dim = prep["fc_b"].shape[1]

    geo1 = _geometry(spatial)
    geo2 = _geometry(spatial // 2)
    g1, mp1, l1 = geo1["guard"], geo1["mp"], geo1["length"]
    g2, mp2, l2 = geo2["guard"], geo2["mp"], geo2["length"]
    d1, d2 = geo1["deltas"], geo2["deltas"]
    ps1, ps2 = geo1["pool_shifts"], geo2["pool_shifts"]

    def conv_acc(src_ref, w_ref, b_ref, guard, mp, deltas, cin):
        """3x3 conv = 9 statically shifted slabs x (Cout,Cin) matmuls, f32 acc."""
        acc = None
        for k, d in enumerate(deltas):
            lo = guard + d
            slab = src_ref[:, lo:lo + mp]                  # (cin, mp) bf16
            wk = w_ref[k]                                  # (cout, cin) bf16
            if cin == 1:   # outer-product broadcast on the VPU (avoids K=1 dot)
                term = wk.astype(jnp.float32) * slab.astype(jnp.float32)
            else:
                term = jnp.dot(wk, slab, preferred_element_type=jnp.float32)
            acc = term if acc is None else acc + term
        return acc + b_ref[...]                            # bias (cout,1) f32

    def pool_max(src_ref, guard, mp, shifts):
        def corner(s):
            return src_ref[:, guard + s:guard + s + mp]
        return jnp.maximum(jnp.maximum(corner(shifts[0]), corner(shifts[1])),
                           jnp.maximum(corner(shifts[2]), corner(shifts[3])))

    def kernel(x_ref, w1_ref, b1_ref, w2_ref, b2_ref, m1_ref, s1_ref,
               w3_ref, b3_ref, w4_ref, b4_ref, m2_ref, g_ref, fcb_ref,
               out_ref, fb1, xb2, fb2):
        # Guard columns must hold defined (zero) values; interiors are fully
        # overwritten below before any read, so a full cheap zero each grid
        # step keeps the kernel correct under megacore grid splitting.
        fb1[...] = jnp.zeros_like(fb1)
        fb2[...] = jnp.zeros_like(fb2)
        mask1 = m1_ref[...]
        mask2 = m2_ref[...]

        # ---- block 1: conv -> relu -> conv -> relu -> 2x2 max-pool ----
        a = conv_acc(x_ref, w1_ref, b1_ref, g1, mp1, d1, in_ch)
        a = jnp.maximum(a, 0.0) * mask1
        fb1[:, g1:g1 + mp1] = a.astype(fb1.dtype)          # 128-aligned store

        a = conv_acc(fb1, w2_ref, b2_ref, g1, mp1, d1, hidden)
        a = jnp.maximum(a, 0.0) * mask1
        fb1[:, g1:g1 + mp1] = a.astype(fb1.dtype)

        m4 = pool_max(fb1, g1, mp1, ps1)                   # (hidden, mp1) bf16
        # pool + re-embed into the padded block-2 raster in one MXU pass
        # (output width l2 is a multiple of 128 -> lane-dense writeback)
        xb2[...] = jnp.dot(m4, s1_ref[...],
                           preferred_element_type=jnp.float32).astype(xb2.dtype)

        # ---- block 2: conv -> relu -> conv -> relu -> 2x2 max-pool ----
        a = conv_acc(xb2, w3_ref, b3_ref, g2, mp2, d2, hidden)
        a = jnp.maximum(a, 0.0) * mask2
        fb2[:, g2:g2 + mp2] = a.astype(fb2.dtype)

        a = conv_acc(fb2, w4_ref, b4_ref, g2, mp2, d2, hidden)
        a = jnp.maximum(a, 0.0) * mask2
        fb2[:, g2:g2 + mp2] = a.astype(fb2.dtype)

        m4 = pool_max(fb2, g2, mp2, ps2).astype(jnp.float32)   # (hidden, mp2)

        # ---- classifier (final pool + torch NCHW flatten baked into g_ref) ----
        acc = fcb_ref[...]                                 # (1, out_dim) f32
        for c in range(hidden):
            acc = acc + jnp.dot(m4[c:c + 1, :], g_ref[c],
                                preferred_element_type=jnp.float32)
        out_ref[...] = acc

    # Layout prep (pure XLA, tiny, once per call): NCHW -> channel-major flat
    # padded raster with lane-aligned guard columns, bf16 for the MXU.
    xp = jnp.pad(x_nchw, ((0, 0), (0, 0), (1, 1), (1, 1)))
    xg = jnp.pad(xp.reshape(n, in_ch, mp1),
                 ((0, 0), (0, 0), (g1, g1))).astype(jnp.bfloat16)

    out = pl.pallas_call(
        kernel,
        out_shape=jax.ShapeDtypeStruct((n, 1, out_dim), jnp.float32),
        grid=(n,),
        in_specs=[
            pl.BlockSpec((None, in_ch, l1), lambda i: (i, 0, 0)),      # x
            pl.BlockSpec((9, hidden, in_ch), lambda i: (0, 0, 0)),     # w1
            pl.BlockSpec((hidden, 1), lambda i: (0, 0)),               # b1
            pl.BlockSpec((9, hidden, hidden), lambda i: (0, 0, 0)),    # w2
            pl.BlockSpec((hidden, 1), lambda i: (0, 0)),               # b2
            pl.BlockSpec((1, mp1), lambda i: (0, 0)),                  # mask1
            pl.BlockSpec((mp1, l2), lambda i: (0, 0)),                 # s1
            pl.BlockSpec((9, hidden, hidden), lambda i: (0, 0, 0)),    # w3
            pl.BlockSpec((hidden, 1), lambda i: (0, 0)),               # b3
            pl.BlockSpec((9, hidden, hidden), lambda i: (0, 0, 0)),    # w4
            pl.BlockSpec((hidden, 1), lambda i: (0, 0)),               # b4
            pl.BlockSpec((1, mp2), lambda i: (0, 0)),                  # mask2
            pl.BlockSpec((hidden, mp2, out_dim), lambda i: (0, 0, 0)), # g_fc
            pl.BlockSpec((1, out_dim), lambda i: (0, 0)),              # fc_b
        ],
        out_specs=pl.BlockSpec((None, 1, out_dim), lambda i: (i, 0, 0)),
        scratch_shapes=[
            pltpu.VMEM((hidden, l1), jnp.bfloat16),   # block-1 feature buffer
            pltpu.VMEM((hidden, l2), jnp.bfloat16),   # block-2 input buffer
            pltpu.VMEM((hidden, l2), jnp.bfloat16),   # block-2 feature buffer
        ],
        compiler_params=pltpu.CompilerParams(
            dimension_semantics=("parallel",),        # megacore split on v7x
            vmem_limit_bytes=32 * 1024 * 1024,        # safe on v5e/v6e/v7x
        ),
    )(xg, prep["w1"], prep["b1"], prep["w2"], prep["b2"], prep["mask1"],
      prep["s1"], prep["w3"], prep["b3"], prep["w4"], prep["b4"],
      prep["mask2"], prep["g_fc"], prep["fc_b"])

    return out.reshape(n, out_dim)


# ----------------------------------------------------------------------------
# Pure-JAX reference (torch semantics) for a correctness cross-check
# ----------------------------------------------------------------------------
def reference_forward(params, x):
    def conv_relu(y, w, b):
        y = lax.conv_general_dilated(
            y, w, window_strides=(1, 1), padding=((1, 1), (1, 1)),
            dimension_numbers=("NCHW", "OIHW", "NCHW"))
        return jax.nn.relu(y + b[None, :, None, None])

    def pool(y):
        b, c, h, w = y.shape
        return y.reshape(b, c, h // 2, 2, w // 2, 2).max(axis=(3, 5))

    y = conv_relu(x, params["conv1_w"], params["conv1_b"])
    y = conv_relu(y, params["conv2_w"], params["conv2_b"])
    y = pool(y)
    y = conv_relu(y, params["conv3_w"], params["conv3_b"])
    y = conv_relu(y, params["conv4_w"], params["conv4_b"])
    y = pool(y)
    y = y.reshape(y.shape[0], -1)
    return y @ params["fc_w"].T + params["fc_b"]


if __name__ == "__main__":
    # FashionMNIST-like shapes: batch=2, 1 channel, 28x28, hidden=8, 10 classes
    BATCH, IN_CH, SPATIAL, HIDDEN, OUT = 2, 1, 28, 8, 10

    key = jax.random.PRNGKey(0)
    pkey, xkey = jax.random.split(key)
    params = init_params(pkey, IN_CH, HIDDEN, OUT, SPATIAL)
    prep = prepare_params(params, SPATIAL)
    x = jax.random.normal(xkey, (BATCH, IN_CH, SPATIAL, SPATIAL), jnp.float32)

    logits = fashion_mnist_model_v2(prep, x)
    jax.block_until_ready(logits)
    assert logits.shape == (BATCH, OUT), logits.shape
    assert bool(jnp.all(jnp.isfinite(logits)))

    ref = reference_forward(params, x)
    err = float(jnp.max(jnp.abs(logits - ref)))
    assert err < 5e-2, f"max |pallas - reference| = {err}"
    print("KERNEL_OK")
</pallas_src>

<mosaic_0001>
module attributes {stable_mosaic.version = 11 : i64} {
  func.func @kernel(%arg0: i32, %arg1: memref<1x1x1156xbf16, #tpu.memory_space<vmem>>, %arg2: memref<9x8x1xbf16, #tpu.memory_space<vmem>>, %arg3: memref<8x1xf32, #tpu.memory_space<vmem>>, %arg4: memref<9x8x8xbf16, #tpu.memory_space<vmem>>, %arg5: memref<8x1xf32, #tpu.memory_space<vmem>>, %arg6: memref<1x900xf32, #tpu.memory_space<vmem>>, %arg7: memref<900x512xbf16, #tpu.memory_space<vmem>>, %arg8: memref<9x8x8xbf16, #tpu.memory_space<vmem>>, %arg9: memref<8x1xf32, #tpu.memory_space<vmem>>, %arg10: memref<9x8x8xbf16, #tpu.memory_space<vmem>>, %arg11: memref<8x1xf32, #tpu.memory_space<vmem>>, %arg12: memref<1x256xf32, #tpu.memory_space<vmem>>, %arg13: memref<8x256x10xf32, #tpu.memory_space<vmem>>, %arg14: memref<1x10xf32, #tpu.memory_space<vmem>>, %arg15: memref<1x1x10xf32, #tpu.memory_space<vmem>>, %arg16: memref<8x1156xbf16, #tpu.memory_space<vmem>>, %arg17: memref<8x512xbf16, #tpu.memory_space<vmem>>, %arg18: memref<8x512xbf16, #tpu.memory_space<vmem>>) attributes {dimension_semantics = [#tpu.dimension_semantics<parallel>], iteration_bounds = array<i64: 2>, scalar_prefetch = 0 : i64, scratch_operands = 3 : i64, tpu.core_type = #tpu.core_type<tc>, window_params = [{transform_indices = @transform_0, window_bounds = array<i64: 1, 1, 1156>}, {pipeline_mode = #tpu.pipeline_mode<synchronous>, transform_indices = @transform_1, window_bounds = array<i64: 9, 8, 1>}, {pipeline_mode = #tpu.pipeline_mode<synchronous>, transform_indices = @transform_2, window_bounds = array<i64: 8, 1>}, {pipeline_mode = #tpu.pipeline_mode<synchronous>, transform_indices = @transform_3, window_bounds = array<i64: 9, 8, 8>}, {pipeline_mode = #tpu.pipeline_mode<synchronous>, transform_indices = @transform_4, window_bounds = array<i64: 8, 1>}, {pipeline_mode = #tpu.pipeline_mode<synchronous>, transform_indices = @transform_5, window_bounds = array<i64: 1, 900>}, {pipeline_mode = #tpu.pipeline_mode<synchronous>, transform_indices = @transform_6, window_bounds = array<i64: 900, 512>}, {pipeline_mode = #tpu.pipeline_mode<synchronous>, transform_indices = @transform_7, window_bounds = array<i64: 9, 8, 8>}, {pipeline_mode = #tpu.pipeline_mode<synchronous>, transform_indices = @transform_8, window_bounds = array<i64: 8, 1>}, {pipeline_mode = #tpu.pipeline_mode<synchronous>, transform_indices = @transform_9, window_bounds = array<i64: 9, 8, 8>}, {pipeline_mode = #tpu.pipeline_mode<synchronous>, transform_indices = @transform_10, window_bounds = array<i64: 8, 1>}, {pipeline_mode = #tpu.pipeline_mode<synchronous>, transform_indices = @transform_11, window_bounds = array<i64: 1, 256>}, {pipeline_mode = #tpu.pipeline_mode<synchronous>, transform_indices = @transform_12, window_bounds = array<i64: 8, 256, 10>}, {pipeline_mode = #tpu.pipeline_mode<synchronous>, transform_indices = @transform_13, window_bounds = array<i64: 1, 10>}, {transform_indices = @transform_14, window_bounds = array<i64: 1, 1, 10>}]} {
    %cst = arith.constant 0.000000e+00 : bf16
    %0 = vector.broadcast %cst : bf16 to vector<8x1156xbf16>
    %c0 = arith.constant 0 : index
    %c0_0 = arith.constant 0 : index
    %1 = vector.load %arg16[%c0, %c0_0] : memref<8x1156xbf16, #tpu.memory_space<vmem>>, vector<8x1156xbf16>
    tpu.vector_store %arg16[%c0, %c0_0], %0 {strides = array<i32>} : memref<8x1156xbf16, #tpu.memory_space<vmem>>, vector<8x1156xbf16>,
    %cst_1 = arith.constant 0.000000e+00 : bf16
    %2 = vector.broadcast %cst_1 : bf16 to vector<8x512xbf16>
    %c0_2 = arith.constant 0 : index
    %c0_3 = arith.constant 0 : index
    %3 = vector.load %arg18[%c0_2, %c0_3] : memref<8x512xbf16, #tpu.memory_space<vmem>>, vector<8x512xbf16>
    tpu.vector_store %arg18[%c0_2, %c0_3], %2 {strides = array<i32>} : memref<8x512xbf16, #tpu.memory_space<vmem>>, vector<8x512xbf16>,
    %c0_4 = arith.constant 0 : index
    %c0_5 = arith.constant 0 : index
    %4 = vector.load %arg6[%c0_4, %c0_5] : memref<1x900xf32, #tpu.memory_space<vmem>>, vector<1x900xf32>
    %c0_6 = arith.constant 0 : index
    %c0_7 = arith.constant 0 : index
    %5 = vector.load %arg12[%c0_6, %c0_7] : memref<1x256xf32, #tpu.memory_space<vmem>>, vector<1x256xf32>
    %c0_8 = arith.constant 0 : index
    %c0_9 = arith.constant 0 : index
    %c97 = arith.constant 97 : index
    %6 = vector.load %arg1[%c0_8, %c0_9, %c97] : memref<1x1x1156xbf16, #tpu.memory_space<vmem>>, vector<1x1x900xbf16>
    %7 = vector.shape_cast %6 : vector<1x1x900xbf16> to vector<1x900xbf16>
    %c0_10 = arith.constant 0 : index
    %c0_11 = arith.constant 0 : index
    %c0_12 = arith.constant 0 : index
    %8 = vector.load %arg2[%c0_10, %c0_11, %c0_12] : memref<9x8x1xbf16, #tpu.memory_space<vmem>>, vector<1x8x1xbf16>
    %9 = vector.shape_cast %8 : vector<1x8x1xbf16> to vector<8x1xbf16>
    %10 = arith.extf %9 : vector<8x1xbf16> to vector<8x1xf32>
    %11 = arith.extf %7 : vector<1x900xbf16> to vector<1x900xf32>
    %12 = vector.broadcast %10 : vector<8x1xf32> to vector<8x900xf32>
    %13 = vector.broadcast %11 : vector<1x900xf32> to vector<8x900xf32>
    %14 = arith.mulf %12, %13 : vector<8x900xf32>
    %c0_13 = arith.constant 0 : index
    %c0_14 = arith.constant 0 : index
    %c98 = arith.constant 98 : index
    %15 = vector.load %arg1[%c0_13, %c0_14, %c98] : memref<1x1x1156xbf16, #tpu.memory_space<vmem>>, vector<1x1x900xbf16>
    %16 = vector.shape_cast %15 : vector<1x1x900xbf16> to vector<1x900xbf16>
    %c1 = arith.constant 1 : index
    %c0_15 = arith.constant 0 : index
    %c0_16 = arith.constant 0 : index
    %17 = vector.load %arg2[%c1, %c0_15, %c0_16] : memref<9x8x1xbf16, #tpu.memory_space<vmem>>, vector<1x8x1xbf16>
    %18 = vector.shape_cast %17 : vector<1x8x1xbf16> to vector<8x1xbf16>
    %19 = arith.extf %18 : vector<8x1xbf16> to vector<8x1xf32>
    %20 = arith.extf %16 : vector<1x900xbf16> to vector<1x900xf32>
    %21 = vector.broadcast %19 : vector<8x1xf32> to vector<8x900xf32>
    %22 = vector.broadcast %20 : vector<1x900xf32> to vector<8x900xf32>
    %23 = arith.mulf %21, %22 : vector<8x900xf32>
    %24 = arith.addf %14, %23 : vector<8x900xf32>
    %c0_17 = arith.constant 0 : index
    %c0_18 = arith.constant 0 : index
    %c99 = arith.constant 99 : index
    %25 = vector.load %arg1[%c0_17, %c0_18, %c99] : memref<1x1x1156xbf16, #tpu.memory_space<vmem>>, vector<1x1x900xbf16>
    %26 = vector.shape_cast %25 : vector<1x1x900xbf16> to vector<1x900xbf16>
    %c2 = arith.constant 2 : index
    %c0_19 = arith.constant 0 : index
    %c0_20 = arith.constant 0 : index
    %27 = vector.load %arg2[%c2, %c0_19, %c0_20] : memref<9x8x1xbf16, #tpu.memory_space<vmem>>, vector<1x8x1xbf16>
    %28 = vector.shape_cast %27 : vector<1x8x1xbf16> to vector<8x1xbf16>
    %29 = arith.extf %28 : vector<8x1xbf16> to vector<8x1xf32>
    %30 = arith.extf %26 : vector<1x900xbf16> to vector<1x900xf32>
    %31 = vector.broadcast %29 : vector<8x1xf32> to vector<8x900xf32>
    %32 = vector.broadcast %30 : vector<1x900xf32> to vector<8x900xf32>
    %33 = arith.mulf %31, %32 : vector<8x900xf32>
    %34 = arith.addf %24, %33 : vector<8x900xf32>
    %c0_21 = arith.constant 0 : index
    %c0_22 = arith.constant 0 : index
    %c127 = arith.constant 127 : index
    %35 = vector.load %arg1[%c0_21, %c0_22, %c127] : memref<1x1x1156xbf16, #tpu.memory_space<vmem>>, vector<1x1x900xbf16>
    %36 = vector.shape_cast %35 : vector<1x1x900xbf16> to vector<1x900xbf16>
    %c3 = arith.constant 3 : index
    %c0_23 = arith.constant 0 : index
    %c0_24 = arith.constant 0 : index
    %37 = vector.load %arg2[%c3, %c0_23, %c0_24] : memref<9x8x1xbf16, #tpu.memory_space<vmem>>, vector<1x8x1xbf16>
    %38 = vector.shape_cast %37 : vector<1x8x1xbf16> to vector<8x1xbf16>
    %39 = arith.extf %38 : vector<8x1xbf16> to vector<8x1xf32>
    %40 = arith.extf %36 : vector<1x900xbf16> to vector<1x900xf32>
    %41 = vector.broadcast %39 : vector<8x1xf32> to vector<8x900xf32>
    %42 = vector.broadcast %40 : vector<1x900xf32> to vector<8x900xf32>
    %43 = arith.mulf %41, %42 : vector<8x900xf32>
    %44 = arith.addf %34, %43 : vector<8x900xf32>
    %c0_25 = arith.constant 0 : index
    %c0_26 = arith.constant 0 : index
    %c128 = arith.constant 128 : index
    %45 = vector.load %arg1[%c0_25, %c0_26, %c128] : memref<1x1x1156xbf16, #tpu.memory_space<vmem>>, vector<1x1x900xbf16>
    %46 = vector.shape_cast %45 : vector<1x1x900xbf16> to vector<1x900xbf16>
    %c4 = arith.constant 4 : index
    %c0_27 = arith.constant 0 : index
    %c0_28 = arith.constant 0 : index
    %47 = vector.load %arg2[%c4, %c0_27, %c0_28] : memref<9x8x1xbf16, #tpu.memory_space<vmem>>, vector<1x8x1xbf16>
    %48 = vector.shape_cast %47 : vector<1x8x1xbf16> to vector<8x1xbf16>
    %49 = arith.extf %48 : vector<8x1xbf16> to vector<8x1xf32>
    %50 = arith.extf %46 : vector<1x900xbf16> to vector<1x900xf32>
    %51 = vector.broadcast %49 : vector<8x1xf32> to vector<8x900xf32>
    %52 = vector.broadcast %50 : vector<1x900xf32> to vector<8x900xf32>
    %53 = arith.mulf %51, %52 : vector<8x900xf32>
    %54 = arith.addf %44, %53 : vector<8x900xf32>
    %c0_29 = arith.constant 0 : index
    %c0_30 = arith.constant 0 : index
    %c129 = arith.constant 129 : index
    %55 = vector.load %arg1[%c0_29, %c0_30, %c129] : memref<1x1x1156xbf16, #tpu.memory_space<vmem>>, vector<1x1x900xbf16>
    %56 = vector.shape_cast %55 : vector<1x1x900xbf16> to vector<1x900xbf16>
    %c5 = arith.constant 5 : index
    %c0_31 = arith.constant 0 : index
    %c0_32 = arith.constant 0 : index
    %57 = vector.load %arg2[%c5, %c0_31, %c0_32] : memref<9x8x1xbf16, #tpu.memory_space<vmem>>, vector<1x8x1xbf16>
    %58 = vector.shape_cast %57 : vector<1x8x1xbf16> to vector<8x1xbf16>
    %59 = arith.extf %58 : vector<8x1xbf16> to vector<8x1xf32>
    %60 = arith.extf %56 : vector<1x900xbf16> to vector<1x900xf32>
    %61 = vector.broadcast %59 : vector<8x1xf32> to vector<8x900xf32>
    %62 = vector.broadcast %60 : vector<1x900xf32> to vector<8x900xf32>
    %63 = arith.mulf %61, %62 : vector<8x900xf32>
    %64 = arith.addf %54, %63 : vector<8x900xf32>
    %c0_33 = arith.constant 0 : index
    %c0_34 = arith.constant 0 : index
    %c157 = arith.constant 157 : index
    %65 = vector.load %arg1[%c0_33, %c0_34, %c157] : memref<1x1x1156xbf16, #tpu.memory_space<vmem>>, vector<1x1x900xbf16>
    %66 = vector.shape_cast %65 : vector<1x1x900xbf16> to vector<1x900xbf16>
    %c6 = arith.constant 6 : index
    %c0_35 = arith.constant 0 : index
    %c0_36 = arith.constant 0 : index
    %67 = vector.load %arg2[%c6, %c0_35, %c0_36] : memref<9x8x1xbf16, #tpu.memory_space<vmem>>, vector<1x8x1xbf16>
    %68 = vector.shape_cast %67 : vector<1x8x1xbf16> to vector<8x1xbf16>
    %69 = arith.extf %68 : vector<8x1xbf16> to vector<8x1xf32>
    %70 = arith.extf %66 : vector<1x900xbf16> to vector<1x900xf32>
    %71 = vector.broadcast %69 : vector<8x1xf32> to vector<8x900xf32>
    %72 = vector.broadcast %70 : vector<1x900xf32> to vector<8x900xf32>
    %73 = arith.mulf %71, %72 : vector<8x900xf32>
    %74 = arith.addf %64, %73 : vector<8x900xf32>
    %c0_37 = arith.constant 0 : index
    %c0_38 = arith.constant 0 : index
    %c158 = arith.constant 158 : index
    %75 = vector.load %arg1[%c0_37, %c0_38, %c158] : memref<1x1x1156xbf16, #tpu.memory_space<vmem>>, vector<1x1x900xbf16>
    %76 = vector.shape_cast %75 : vector<1x1x900xbf16> to vector<1x900xbf16>
    %c7 = arith.constant 7 : index
    %c0_39 = arith.constant 0 : index
    %c0_40 = arith.constant 0 : index
    %77 = vector.load %arg2[%c7, %c0_39, %c0_40] : memref<9x8x1xbf16, #tpu.memory_space<vmem>>, vector<1x8x1xbf16>
    %78 = vector.shape_cast %77 : vector<1x8x1xbf16> to vector<8x1xbf16>
    %79 = arith.extf %78 : vector<8x1xbf16> to vector<8x1xf32>
    %80 = arith.extf %76 : vector<1x900xbf16> to vector<1x900xf32>
    %81 = vector.broadcast %79 : vector<8x1xf32> to vector<8x900xf32>
    %82 = vector.broadcast %80 : vector<1x900xf32> to vector<8x900xf32>
    %83 = arith.mulf %81, %82 : vector<8x900xf32>
    %84 = arith.addf %74, %83 : vector<8x900xf32>
    %c0_41 = arith.constant 0 : index
    %c0_42 = arith.constant 0 : index
    %c159 = arith.constant 159 : index
    %85 = vector.load %arg1[%c0_41, %c0_42, %c159] : memref<1x1x1156xbf16, #tpu.memory_space<vmem>>, vector<1x1x900xbf16>
    %86 = vector.shape_cast %85 : vector<1x1x900xbf16> to vector<1x900xbf16>
    %c8 = arith.constant 8 : index
    %c0_43 = arith.constant 0 : index
    %c0_44 = arith.constant 0 : index
    %87 = vector.load %arg2[%c8, %c0_43, %c0_44] : memref<9x8x1xbf16, #tpu.memory_space<vmem>>, vector<1x8x1xbf16>
    %88 = vector.shape_cast %87 : vector<1x8x1xbf16> to vector<8x1xbf16>
    %89 = arith.extf %88 : vector<8x1xbf16> to vector<8x1xf32>
    %90 = arith.extf %86 : vector<1x900xbf16> to vector<1x900xf32>
    %91 = vector.broadcast %89 : vector<8x1xf32> to vector<8x900xf32>
    %92 = vector.broadcast %90 : vector<1x900xf32> to vector<8x900xf32>
    %93 = arith.mulf %91, %92 : vector<8x900xf32>
    %94 = arith.addf %84, %93 : vector<8x900xf32>
    %c0_45 = arith.constant 0 : index
    %c0_46 = arith.constant 0 : index
    %95 = vector.load %arg3[%c0_45, %c0_46] : memref<8x1xf32, #tpu.memory_space<vmem>>, vector<8x1xf32>
    %96 = vector.broadcast %95 : vector<8x1xf32> to vector<8x900xf32>
    %97 = arith.addf %94, %96 : vector<8x900xf32>
    %cst_47 = arith.constant 0.000000e+00 : f32
    %98 = vector.broadcast %cst_47 : f32 to vector<8x900xf32>
    %99 = arith.maximumf %97, %98 : vector<8x900xf32>
    %100 = vector.broadcast %4 : vector<1x900xf32> to vector<8x900xf32>
    %101 = arith.mulf %99, %100 : vector<8x900xf32>
    %102 = arith.truncf %101 : vector<8x900xf32> to vector<8x900xbf16>
    %c0_48 = arith.constant 0 : index
    %c128_49 = arith.constant 128 : index
    %103 = vector.load %arg16[%c0_48, %c128_49] : memref<8x1156xbf16, #tpu.memory_space<vmem>>, vector<8x900xbf16>
    tpu.vector_store %arg16[%c0_48, %c128_49], %102 {strides = array<i32>} : memref<8x1156xbf16, #tpu.memory_space<vmem>>, vector<8x900xbf16>,
    %c0_50 = arith.constant 0 : index
    %c97_51 = arith.constant 97 : index
    %104 = vector.load %arg16[%c0_50, %c97_51] : memref<8x1156xbf16, #tpu.memory_space<vmem>>, vector<8x900xbf16>
    %c0_52 = arith.constant 0 : index
    %c0_53 = arith.constant 0 : index
    %c0_54 = arith.constant 0 : index
    %105 = vector.load %arg4[%c0_52, %c0_53, %c0_54] : memref<9x8x8xbf16, #tpu.memory_space<vmem>>, vector<1x8x8xbf16>
    %106 = vector.shape_cast %105 : vector<1x8x8xbf16> to vector<8x8xbf16>
    %cst_55 = arith.constant dense<0.000000e+00> : vector<8x900xf32>
    %107 = tpu.matmul %106, %104, %cst_55 {dimension_numbers = #tpu.dot_dimension_numbers<[1], [0], [0], [1], [0, 0, 1, 1], [], []>} : vector<8x8xbf16>, vector<8x900xbf16>, vector<8x900xf32> -> vector<8x900xf32>
    %c0_56 = arith.constant 0 : index
    %c98_57 = arith.constant 98 : index
    %108 = vector.load %arg16[%c0_56, %c98_57] : memref<8x1156xbf16, #tpu.memory_space<vmem>>, vector<8x900xbf16>
    %c1_58 = arith.constant 1 : index
    %c0_59 = arith.constant 0 : index
    %c0_60 = arith.constant 0 : index
    %109 = vector.load %arg4[%c1_58, %c0_59, %c0_60] : memref<9x8x8xbf16, #tpu.memory_space<vmem>>, vector<1x8x8xbf16>
    %110 = vector.shape_cast %109 : vector<1x8x8xbf16> to vector<8x8xbf16>
    %cst_61 = arith.constant dense<0.000000e+00> : vector<8x900xf32>
    %111 = tpu.matmul %110, %108, %cst_61 {dimension_numbers = #tpu.dot_dimension_numbers<[1], [0], [0], [1], [0, 0, 1, 1], [], []>} : vector<8x8xbf16>, vector<8x900xbf16>, vector<8x900xf32> -> vector<8x900xf32>
    %112 = arith.addf %107, %111 : vector<8x900xf32>
    %c0_62 = arith.constant 0 : index
    %c99_63 = arith.constant 99 : index
    %113 = vector.load %arg16[%c0_62, %c99_63] : memref<8x1156xbf16, #tpu.memory_space<vmem>>, vector<8x900xbf16>
    %c2_64 = arith.constant 2 : index
    %c0_65 = arith.constant 0 : index
    %c0_66 = arith.constant 0 : index
    %114 = vector.load %arg4[%c2_64, %c0_65, %c0_66] : memref<9x8x8xbf16, #tpu.memory_space<vmem>>, vector<1x8x8xbf16>
    %115 = vector.shape_cast %114 : vector<1x8x8xbf16> to vector<8x8xbf16>
    %cst_67 = arith.constant dense<0.000000e+00> : vector<8x900xf32>
    %116 = tpu.matmul %115, %113, %cst_67 {dimension_numbers = #tpu.dot_dimension_numbers<[1], [0], [0], [1], [0, 0, 1, 1], [], []>} : vector<8x8xbf16>, vector<8x900xbf16>, vector<8x900xf32> -> vector<8x900xf32>
    %117 = arith.addf %112, %116 : vector<8x900xf32>
    %c0_68 = arith.constant 0 : index
    %c127_69 = arith.constant 127 : index
    %118 = vector.load %arg16[%c0_68, %c127_69] : memref<8x1156xbf16, #tpu.memory_space<vmem>>, vector<8x900xbf16>
    %c3_70 = arith.constant 3 : index
    %c0_71 = arith.constant 0 : index
    %c0_72 = arith.constant 0 : index
    %119 = vector.load %arg4[%c3_70, %c0_71, %c0_72] : memref<9x8x8xbf16, #tpu.memory_space<vmem>>, vector<1x8x8xbf16>
    %120 = vector.shape_cast %119 : vector<1x8x8xbf16> to vector<8x8xbf16>
    %cst_73 = arith.constant dense<0.000000e+00> : vector<8x900xf32>
    %121 = tpu.matmul %120, %118, %cst_73 {dimension_numbers = #tpu.dot_dimension_numbers<[1], [0], [0], [1], [0, 0, 1, 1], [], []>} : vector<8x8xbf16>, vector<8x900xbf16>, vector<8x900xf32> -> vector<8x900xf32>
    %122 = arith.addf %117, %121 : vector<8x900xf32>
    %c0_74 = arith.constant 0 : index
    %c128_75 = arith.constant 128 : index
    %123 = vector.load %arg16[%c0_74, %c128_75] : memref<8x1156xbf16, #tpu.memory_space<vmem>>, vector<8x900xbf16>
    %c4_76 = arith.constant 4 : index
    %c0_77 = arith.constant 0 : index
    %c0_78 = arith.constant 0 : index
    %124 = vector.load %arg4[%c4_76, %c0_77, %c0_78] : memref<9x8x8xbf16, #tpu.memory_space<vmem>>, vector<1x8x8xbf16>
    %125 = vector.shape_cast %124 : vector<1x8x8xbf16> to vector<8x8xbf16>
    %cst_79 = arith.constant dense<0.000000e+00> : vector<8x900xf32>
    %126 = tpu.matmul %125, %123, %cst_79 {dimension_numbers = #tpu.dot_dimension_numbers<[1], [0], [0], [1], [0, 0, 1, 1], [], []>} : vector<8x8xbf16>, vector<8x900xbf16>, vector<8x900xf32> -> vector<8x900xf32>
    %127 = arith.addf %122, %126 : vector<8x900xf32>
    %c0_80 = arith.constant 0 : index
    %c129_81 = arith.constant 129 : index
    %128 = vector.load %arg16[%c0_80, %c129_81] : memref<8x1156xbf16, #tpu.memory_space<vmem>>, vector<8x900xbf16>
    %c5_82 = arith.constant 5 : index
    %c0_83 = arith.constant 0 : index
    %c0_84 = arith.constant 0 : index
    %129 = vector.load %arg4[%c5_82, %c0_83, %c0_84] : memref<9x8x8xbf16, #tpu.memory_space<vmem>>, vector<1x8x8xbf16>
    %130 = vector.shape_cast %129 : vector<1x8x8xbf16> to vector<8x8xbf16>
    %cst_85 = arith.constant dense<0.000000e+00> : vector<8x900xf32>
    %131 = tpu.matmul %130, %128, %cst_85 {dimension_numbers = #tpu.dot_dimension_numbers<[1], [0], [0], [1], [0, 0, 1, 1], [], []>} : vector<8x8xbf16>, vector<8x900xbf16>, vector<8x900xf32> -> vector<8x900xf32>
    %132 = arith.addf %127, %131 : vector<8x900xf32>
    %c0_86 = arith.constant 0 : index
    %c157_87 = arith.constant 157 : index
    %133 = vector.load %arg16[%c0_86, %c157_87] : memref<8x1156xbf16, #tpu.memory_space<vmem>>, vector<8x900xbf16>
    %c6_88 = arith.constant 6 : index
    %c0_89 = arith.constant 0 : index
    %c0_90 = arith.constant 0 : index
    %134 = vector.load %arg4[%c6_88, %c0_89, %c0_90] : memref<9x8x8xbf16, #tpu.memory_space<vmem>>, vector<1x8x8xbf16>
    %135 = vector.shape_cast %134 : vector<1x8x8xbf16> to vector<8x8xbf16>
    %cst_91 = arith.constant dense<0.000000e+00> : vector<8x900xf32>
    %136 = tpu.matmul %135, %133, %cst_91 {dimension_numbers = #tpu.dot_dimension_numbers<[1], [0], [0], [1], [0, 0, 1, 1], [], []>} : vector<8x8xbf16>, vector<8x900xbf16>, vector<8x900xf32> -> vector<8x900xf32>
    %137 = arith.addf %132, %136 : vector<8x900xf32>
    %c0_92 = arith.constant 0 : index
    %c158_93 = arith.constant 158 : index
    %138 = vector.load %arg16[%c0_92, %c158_93] : memref<8x1156xbf16, #tpu.memory_space<vmem>>, vector<8x900xbf16>
    %c7_94 = arith.constant 7 : index
    %c0_95 = arith.constant 0 : index
    %c0_96 = arith.constant 0 : index
    %139 = vector.load %arg4[%c7_94, %c0_95, %c0_96] : memref<9x8x8xbf16, #tpu.memory_space<vmem>>, vector<1x8x8xbf16>
    %140 = vector.shape_cast %139 : vector<1x8x8xbf16> to vector<8x8xbf16>
    %cst_97 = arith.constant dense<0.000000e+00> : vector<8x900xf32>
    %141 = tpu.matmul %140, %138, %cst_97 {dimension_numbers = #tpu.dot_dimension_numbers<[1], [0], [0], [1], [0, 0, 1, 1], [], []>} : vector<8x8xbf16>, vector<8x900xbf16>, vector<8x900xf32> -> vector<8x900xf32>
    %142 = arith.addf %137, %141 : vector<8x900xf32>
    %c0_98 = arith.constant 0 : index
    %c159_99 = arith.constant 159 : index
    %143 = vector.load %arg16[%c0_98, %c159_99] : memref<8x1156xbf16, #tpu.memory_space<vmem>>, vector<8x900xbf16>
    %c8_100 = arith.constant 8 : index
    %c0_101 = arith.constant 0 : index
    %c0_102 = arith.constant 0 : index
    %144 = vector.load %arg4[%c8_100, %c0_101, %c0_102] : memref<9x8x8xbf16, #tpu.memory_space<vmem>>, vector<1x8x8xbf16>
    %145 = vector.shape_cast %144 : vector<1x8x8xbf16> to vector<8x8xbf16>
    %cst_103 = arith.constant dense<0.000000e+00> : vector<8x900xf32>
    %146 = tpu.matmul %145, %143, %cst_103 {dimension_numbers = #tpu.dot_dimension_numbers<[1], [0], [0], [1], [0, 0, 1, 1], [], []>} : vector<8x8xbf16>, vector<8x900xbf16>, vector<8x900xf32> -> vector<8x900xf32>
    %147 = arith.addf %142, %146 : vector<8x900xf32>
    %c0_104 = arith.constant 0 : index
    %c0_105 = arith.constant 0 : index
    %148 = vector.load %arg5[%c0_104, %c0_105] : memref<8x1xf32, #tpu.memory_space<vmem>>, vector<8x1xf32>
    %149 = vector.broadcast %148 : vector<8x1xf32> to vector<8x900xf32>
    %150 = arith.addf %147, %149 : vector<8x900xf32>
    %cst_106 = arith.constant 0.000000e+00 : f32
    %151 = vector.broadcast %cst_106 : f32 to vector<8x900xf32>
    %152 = arith.maximumf %150, %151 : vector<8x900xf32>
    %153 = vector.broadcast %4 : vector<1x900xf32> to vector<8x900xf32>
    %154 = arith.mulf %152, %153 : vector<8x900xf32>
    %155 = arith.truncf %154 : vector<8x900xf32> to vector<8x900xbf16>
    %c0_107 = arith.constant 0 : index
    %c128_108 = arith.constant 128 : index
    %156 = vector.load %arg16[%c0_107, %c128_108] : memref<8x1156xbf16, #tpu.memory_space<vmem>>, vector<8x900xbf16>
    tpu.vector_store %arg16[%c0_107, %c128_108], %155 {strides = array<i32>} : memref<8x1156xbf16, #tpu.memory_space<vmem>>, vector<8x900xbf16>,
    %c0_109 = arith.constant 0 : index
    %c128_110 = arith.constant 128 : index
    %157 = vector.load %arg16[%c0_109, %c128_110] : memref<8x1156xbf16, #tpu.memory_space<vmem>>, vector<8x900xbf16>
    %c0_111 = arith.constant 0 : index
    %c129_112 = arith.constant 129 : index
    %158 = vector.load %arg16[%c0_111, %c129_112] : memref<8x1156xbf16, #tpu.memory_space<vmem>>, vector<8x900xbf16>
    %159 = arith.maximumf %157, %158 : vector<8x900xbf16>
    %c0_113 = arith.constant 0 : index
    %c158_114 = arith.constant 158 : index
    %160 = vector.load %arg16[%c0_113, %c158_114] : memref<8x1156xbf16, #tpu.memory_space<vmem>>, vector<8x900xbf16>
    %c0_115 = arith.constant 0 : index
    %c159_116 = arith.constant 159 : index
    %161 = vector.load %arg16[%c0_115, %c159_116] : memref<8x1156xbf16, #tpu.memory_space<vmem>>, vector<8x900xbf16>
    %162 = arith.maximumf %160, %161 : vector<8x900xbf16>
    %163 = arith.maximumf %159, %162 : vector<8x900xbf16>
    %c0_117 = arith.constant 0 : index
    %c0_118 = arith.constant 0 : index
    %164 = vector.load %arg7[%c0_117, %c0_118] : memref<900x512xbf16, #tpu.memory_space<vmem>>, vector<900x512xbf16>
    %cst_119 = arith.constant dense<0.000000e+00> : vector<8x512xf32>
    %165 = tpu.matmul %163, %164, %cst_119 {dimension_numbers = #tpu.dot_dimension_numbers<[1], [0], [0], [1], [0, 0, 1, 1], [], []>} : vector<8x900xbf16>, vector<900x512xbf16>, vector<8x512xf32> -> vector<8x512xf32>
    %166 = arith.truncf %165 : vector<8x512xf32> to vector<8x512xbf16>
    %c0_120 = arith.constant 0 : index
    %c0_121 = arith.constant 0 : index
    %167 = vector.load %arg17[%c0_120, %c0_121] : memref<8x512xbf16, #tpu.memory_space<vmem>>, vector<8x512xbf16>
    tpu.vector_store %arg17[%c0_120, %c0_121], %166 {strides = array<i32>} : memref<8x512xbf16, #tpu.memory_space<vmem>>, vector<8x512xbf16>,
    %c0_122 = arith.constant 0 : index
    %c111 = arith.constant 111 : index
    %168 = vector.load %arg17[%c0_122, %c111] : memref<8x512xbf16, #tpu.memory_space<vmem>>, vector<8x256xbf16>
    %c0_123 = arith.constant 0 : index
    %c0_124 = arith.constant 0 : index
    %c0_125 = arith.constant 0 : index
    %169 = vector.load %arg8[%c0_123, %c0_124, %c0_125] : memref<9x8x8xbf16, #tpu.memory_space<vmem>>, vector<1x8x8xbf16>
    %170 = vector.shape_cast %169 : vector<1x8x8xbf16> to vector<8x8xbf16>
    %cst_126 = arith.constant dense<0.000000e+00> : vector<8x256xf32>
    %171 = tpu.matmul %170, %168, %cst_126 {dimension_numbers = #tpu.dot_dimension_numbers<[1], [0], [0], [1], [0, 0, 1, 1], [], []>} : vector<8x8xbf16>, vector<8x256xbf16>, vector<8x256xf32> -> vector<8x256xf32>
    %c0_127 = arith.constant 0 : index
    %c112 = arith.constant 112 : index
    %172 = vector.load %arg17[%c0_127, %c112] : memref<8x512xbf16, #tpu.memory_space<vmem>>, vector<8x256xbf16>
    %c1_128 = arith.constant 1 : index
    %c0_129 = arith.constant 0 : index
    %c0_130 = arith.constant 0 : index
    %173 = vector.load %arg8[%c1_128, %c0_129, %c0_130] : memref<9x8x8xbf16, #tpu.memory_space<vmem>>, vector<1x8x8xbf16>
    %174 = vector.shape_cast %173 : vector<1x8x8xbf16> to vector<8x8xbf16>
    %cst_131 = arith.constant dense<0.000000e+00> : vector<8x256xf32>
    %175 = tpu.matmul %174, %172, %cst_131 {dimension_numbers = #tpu.dot_dimension_numbers<[1], [0], [0], [1], [0, 0, 1, 1], [], []>} : vector<8x8xbf16>, vector<8x256xbf16>, vector<8x256xf32> -> vector<8x256xf32>
    %176 = arith.addf %171, %175 : vector<8x256xf32>
    %c0_132 = arith.constant 0 : index
    %c113 = arith.constant 113 : index
    %177 = vector.load %arg17[%c0_132, %c113] : memref<8x512xbf16, #tpu.memory_space<vmem>>, vector<8x256xbf16>
    %c2_133 = arith.constant 2 : index
    %c0_134 = arith.constant 0 : index
    %c0_135 = arith.constant 0 : index
    %178 = vector.load %arg8[%c2_133, %c0_134, %c0_135] : memref<9x8x8xbf16, #tpu.memory_space<vmem>>, vector<1x8x8xbf16>
    %179 = vector.shape_cast %178 : vector<1x8x8xbf16> to vector<8x8xbf16>
    %cst_136 = arith.constant dense<0.000000e+00> : vector<8x256xf32>
    %180 = tpu.matmul %179, %177, %cst_136 {dimension_numbers = #tpu.dot_dimension_numbers<[1], [0], [0], [1], [0, 0, 1, 1], [], []>} : vector<8x8xbf16>, vector<8x256xbf16>, vector<8x256xf32> -> vector<8x256xf32>
    %181 = arith.addf %176, %180 : vector<8x256xf32>
    %c0_137 = arith.constant 0 : index
    %c127_138 = arith.constant 127 : index
    %182 = vector.load %arg17[%c0_137, %c127_138] : memref<8x512xbf16, #tpu.memory_space<vmem>>, vector<8x256xbf16>
    %c3_139 = arith.constant 3 : index
    %c0_140 = arith.constant 0 : index
    %c0_141 = arith.constant 0 : index
    %183 = vector.load %arg8[%c3_139, %c0_140, %c0_141] : memref<9x8x8xbf16, #tpu.memory_space<vmem>>, vector<1x8x8xbf16>
    %184 = vector.shape_cast %183 : vector<1x8x8xbf16> to vector<8x8xbf16>
    %cst_142 = arith.constant dense<0.000000e+00> : vector<8x256xf32>
    %185 = tpu.matmul %184, %182, %cst_142 {dimension_numbers = #tpu.dot_dimension_numbers<[1], [0], [0], [1], [0, 0, 1, 1], [], []>} : vector<8x8xbf16>, vector<8x256xbf16>, vector<8x256xf32> -> vector<8x256xf32>
    %186 = arith.addf %181, %185 : vector<8x256xf32>
    %c0_143 = arith.constant 0 : index
    %c128_144 = arith.constant 128 : index
    %187 = vector.load %arg17[%c0_143, %c128_144] : memref<8x512xbf16, #tpu.memory_space<vmem>>, vector<8x256xbf16>
    %c4_145 = arith.constant 4 : index
    %c0_146 = arith.constant 0 : index
    %c0_147 = arith.constant 0 : index
    %188 = vector.load %arg8[%c4_145, %c0_146, %c0_147] : memref<9x8x8xbf16, #tpu.memory_space<vmem>>, vector<1x8x8xbf16>
    %189 = vector.shape_cast %188 : vector<1x8x8xbf16> to vector<8x8xbf16>
    %cst_148 = arith.constant dense<0.000000e+00> : vector<8x256xf32>
    %190 = tpu.matmul %189, %187, %cst_148 {dimension_numbers = #tpu.dot_dimension_numbers<[1], [0], [0], [1], [0, 0, 1, 1], [], []>} : vector<8x8xbf16>, vector<8x256xbf16>, vector<8x256xf32> -> vector<8x256xf32>
    %191 = arith.addf %186, %190 : vector<8x256xf32>
    %c0_149 = arith.constant 0 : index
    %c129_150 = arith.constant 129 : index
    %192 = vector.load %arg17[%c0_149, %c129_150] : memref<8x512xbf16, #tpu.memory_space<vmem>>, vector<8x256xbf16>
    %c5_151 = arith.constant 5 : index
    %c0_152 = arith.constant 0 : index
    %c0_153 = arith.constant 0 : index
    %193 = vector.load %arg8[%c5_151, %c0_152, %c0_153] : memref<9x8x8xbf16, #tpu.memory_space<vmem>>, vector<1x8x8xbf16>
    %194 = vector.shape_cast %193 : vector<1x8x8xbf16> to vector<8x8xbf16>
    %cst_154 = arith.constant dense<0.000000e+00> : vector<8x256xf32>
    %195 = tpu.matmul %194, %192, %cst_154 {dimension_numbers = #tpu.dot_dimension_numbers<[1], [0], [0], [1], [0, 0, 1, 1], [], []>} : vector<8x8xbf16>, vector<8x256xbf16>, vector<8x256xf32> -> vector<8x256xf32>
    %196 = arith.addf %191, %195 : vector<8x256xf32>
    %c0_155 = arith.constant 0 : index
    %c143 = arith.constant 143 : index
    %197 = vector.load %arg17[%c0_155, %c143] : memref<8x512xbf16, #tpu.memory_space<vmem>>, vector<8x256xbf16>
    %c6_156 = arith.constant 6 : index
    %c0_157 = arith.constant 0 : index
    %c0_158 = arith.constant 0 : index
    %198 = vector.load %arg8[%c6_156, %c0_157, %c0_158] : memref<9x8x8xbf16, #tpu.memory_space<vmem>>, vector<1x8x8xbf16>
    %199 = vector.shape_cast %198 : vector<1x8x8xbf16> to vector<8x8xbf16>
    %cst_159 = arith.constant dense<0.000000e+00> : vector<8x256xf32>
    %200 = tpu.matmul %199, %197, %cst_159 {dimension_numbers = #tpu.dot_dimension_numbers<[1], [0], [0], [1], [0, 0, 1, 1], [], []>} : vector<8x8xbf16>, vector<8x256xbf16>, vector<8x256xf32> -> vector<8x256xf32>
    %201 = arith.addf %196, %200 : vector<8x256xf32>
    %c0_160 = arith.constant 0 : index
    %c144 = arith.constant 144 : index
    %202 = vector.load %arg17[%c0_160, %c144] : memref<8x512xbf16, #tpu.memory_space<vmem>>, vector<8x256xbf16>
    %c7_161 = arith.constant 7 : index
    %c0_162 = arith.constant 0 : index
    %c0_163 = arith.constant 0 : index
    %203 = vector.load %arg8[%c7_161, %c0_162, %c0_163] : memref<9x8x8xbf16, #tpu.memory_space<vmem>>, vector<1x8x8xbf16>
    %204 = vector.shape_cast %203 : vector<1x8x8xbf16> to vector<8x8xbf16>
    %cst_164 = arith.constant dense<0.000000e+00> : vector<8x256xf32>
    %205 = tpu.matmul %204, %202, %cst_164 {dimension_numbers = #tpu.dot_dimension_numbers<[1], [0], [0], [1], [0, 0, 1, 1], [], []>} : vector<8x8xbf16>, vector<8x256xbf16>, vector<8x256xf32> -> vector<8x256xf32>
    %206 = arith.addf %201, %205 : vector<8x256xf32>
    %c0_165 = arith.constant 0 : index
    %c145 = arith.constant 145 : index
    %207 = vector.load %arg17[%c0_165, %c145] : memref<8x512xbf16, #tpu.memory_space<vmem>>, vector<8x256xbf16>
    %c8_166 = arith.constant 8 : index
    %c0_167 = arith.constant 0 : index
    %c0_168 = arith.constant 0 : index
    %208 = vector.load %arg8[%c8_166, %c0_167, %c0_168] : memref<9x8x8xbf16, #tpu.memory_space<vmem>>, vector<1x8x8xbf16>
    %209 = vector.shape_cast %208 : vector<1x8x8xbf16> to vector<8x8xbf16>
    %cst_169 = arith.constant dense<0.000000e+00> : vector<8x256xf32>
    %210 = tpu.matmul %209, %207, %cst_169 {dimension_numbers = #tpu.dot_dimension_numbers<[1], [0], [0], [1], [0, 0, 1, 1], [], []>} : vector<8x8xbf16>, vector<8x256xbf16>, vector<8x256xf32> -> vector<8x256xf32>
    %211 = arith.addf %206, %210 : vector<8x256xf32>
    %c0_170 = arith.constant 0 : index
    %c0_171 = arith.constant 0 : index
    %212 = vector.load %arg9[%c0_170, %c0_171] : memref<8x1xf32, #tpu.memory_space<vmem>>, vector<8x1xf32>
    %213 = vector.broadcast %212 : vector<8x1xf32> to vector<8x256xf32>
    %214 = arith.addf %211, %213 : vector<8x256xf32>
    %cst_172 = arith.constant 0.000000e+00 : f32
    %215 = vector.broadcast %cst_172 : f32 to vector<8x256xf32>
    %216 = arith.maximumf %214, %215 : vector<8x256xf32>
    %217 = vector.broadcast %5 : vector<1x256xf32> to vector<8x256xf32>
    %218 = arith.mulf %216, %217 : vector<8x256xf32>
    %219 = arith.truncf %218 : vector<8x256xf32> to vector<8x256xbf16>
    %c0_173 = arith.constant 0 : index
    %c128_174 = arith.constant 128 : index
    %220 = vector.load %arg18[%c0_173, %c128_174] : memref<8x512xbf16, #tpu.memory_space<vmem>>, vector<8x256xbf16>
    tpu.vector_store %arg18[%c0_173, %c128_174], %219 {strides = array<i32>} : memref<8x512xbf16, #tpu.memory_space<vmem>>, vector<8x256xbf16>,
    %c0_175 = arith.constant 0 : index
    %c111_176 = arith.constant 111 : index
    %221 = vector.load %arg18[%c0_175, %c111_176] : memref<8x512xbf16, #tpu.memory_space<vmem>>, vector<8x256xbf16>
    %c0_177 = arith.constant 0 : index
    %c0_178 = arith.constant 0 : index
    %c0_179 = arith.constant 0 : index
    %222 = vector.load %arg10[%c0_177, %c0_178, %c0_179] : memref<9x8x8xbf16, #tpu.memory_space<vmem>>, vector<1x8x8xbf16>
    %223 = vector.shape_cast %222 : vector<1x8x8xbf16> to vector<8x8xbf16>
    %cst_180 = arith.constant dense<0.000000e+00> : vector<8x256xf32>
    %224 = tpu.matmul %223, %221, %cst_180 {dimension_numbers = #tpu.dot_dimension_numbers<[1], [0], [0], [1], [0, 0, 1, 1], [], []>} : vector<8x8xbf16>, vector<8x256xbf16>, vector<8x256xf32> -> vector<8x256xf32>
    %c0_181 = arith.constant 0 : index
    %c112_182 = arith.constant 112 : index
    %225 = vector.load %arg18[%c0_181, %c112_182] : memref<8x512xbf16, #tpu.memory_space<vmem>>, vector<8x256xbf16>
    %c1_183 = arith.constant 1 : index
    %c0_184 = arith.constant 0 : index
    %c0_185 = arith.constant 0 : index
    %226 = vector.load %arg10[%c1_183, %c0_184, %c0_185] : memref<9x8x8xbf16, #tpu.memory_space<vmem>>, vector<1x8x8xbf16>
    %227 = vector.shape_cast %226 : vector<1x8x8xbf16> to vector<8x8xbf16>
    %cst_186 = arith.constant dense<0.000000e+00> : vector<8x256xf32>
    %228 = tpu.matmul %227, %225, %cst_186 {dimension_numbers = #tpu.dot_dimension_numbers<[1], [0], [0], [1], [0, 0, 1, 1], [], []>} : vector<8x8xbf16>, vector<8x256xbf16>, vector<8x256xf32> -> vector<8x256xf32>
    %229 = arith.addf %224, %228 : vector<8x256xf32>
    %c0_187 = arith.constant 0 : index
    %c113_188 = arith.constant 113 : index
    %230 = vector.load %arg18[%c0_187, %c113_188] : memref<8x512xbf16, #tpu.memory_space<vmem>>, vector<8x256xbf16>
    %c2_189 = arith.constant 2 : index
    %c0_190 = arith.constant 0 : index
    %c0_191 = arith.constant 0 : index
    %231 = vector.load %arg10[%c2_189, %c0_190, %c0_191] : memref<9x8x8xbf16, #tpu.memory_space<vmem>>, vector<1x8x8xbf16>
    %232 = vector.shape_cast %231 : vector<1x8x8xbf16> to vector<8x8xbf16>
    %cst_192 = arith.constant dense<0.000000e+00> : vector<8x256xf32>
    %233 = tpu.matmul %232, %230, %cst_192 {dimension_numbers = #tpu.dot_dimension_numbers<[1], [0], [0], [1], [0, 0, 1, 1], [], []>} : vector<8x8xbf16>, vector<8x256xbf16>, vector<8x256xf32> -> vector<8x256xf32>
    %234 = arith.addf %229, %233 : vector<8x256xf32>
    %c0_193 = arith.constant 0 : index
    %c127_194 = arith.constant 127 : index
    %235 = vector.load %arg18[%c0_193, %c127_194] : memref<8x512xbf16, #tpu.memory_space<vmem>>, vector<8x256xbf16>
    %c3_195 = arith.constant 3 : index
    %c0_196 = arith.constant 0 : index
    %c0_197 = arith.constant 0 : index
    %236 = vector.load %arg10[%c3_195, %c0_196, %c0_197] : memref<9x8x8xbf16, #tpu.memory_space<vmem>>, vector<1x8x8xbf16>
    %237 = vector.shape_cast %236 : vector<1x8x8xbf16> to vector<8x8xbf16>
    %cst_198 = arith.constant dense<0.000000e+00> : vector<8x256xf32>
    %238 = tpu.matmul %237, %235, %cst_198 {dimension_numbers = #tpu.dot_dimension_numbers<[1], [0], [0], [1], [0, 0, 1, 1], [], []>} : vector<8x8xbf16>, vector<8x256xbf16>, vector<8x256xf32> -> vector<8x256xf32>
    %239 = arith.addf %234, %238 : vector<8x256xf32>
    %c0_199 = arith.constant 0 : index
    %c128_200 = arith.constant 128 : index
    %240 = vector.load %arg18[%c0_199, %c128_200] : memref<8x512xbf16, #tpu.memory_space<vmem>>, vector<8x256xbf16>
    %c4_201 = arith.constant 4 : index
    %c0_202 = arith.constant 0 : index
    %c0_203 = arith.constant 0 : index
    %241 = vector.load %arg10[%c4_201, %c0_202, %c0_203] : memref<9x8x8xbf16, #tpu.memory_space<vmem>>, vector<1x8x8xbf16>
    %242 = vector.shape_cast %241 : vector<1x8x8xbf16> to vector<8x8xbf16>
    %cst_204 = arith.constant dense<0.000000e+00> : vector<8x256xf32>
    %243 = tpu.matmul %242, %240, %cst_204 {dimension_numbers = #tpu.dot_dimension_numbers<[1], [0], [0], [1], [0, 0, 1, 1], [], []>} : vector<8x8xbf16>, vector<8x256xbf16>, vector<8x256xf32> -> vector<8x256xf32>
    %244 = arith.addf %239, %243 : vector<8x256xf32>
    %c0_205 = arith.constant 0 : index
    %c129_206 = arith.constant 129 : index
    %245 = vector.load %arg18[%c0_205, %c129_206] : memref<8x512xbf16, #tpu.memory_space<vmem>>, vector<8x256xbf16>
    %c5_207 = arith.constant 5 : index
    %c0_208 = arith.constant 0 : index
    %c0_209 = arith.constant 0 : index
    %246 = vector.load %arg10[%c5_207, %c0_208, %c0_209] : memref<9x8x8xbf16, #tpu.memory_space<vmem>>, vector<1x8x8xbf16>
    %247 = vector.shape_cast %246 : vector<1x8x8xbf16> to vector<8x8xbf16>
    %cst_210 = arith.constant dense<0.000000e+00> : vector<8x256xf32>
    %248 = tpu.matmul %247, %245, %cst_210 {dimension_numbers = #tpu.dot_dimension_numbers<[1], [0], [0], [1], [0, 0, 1, 1], [], []>} : vector<8x8xbf16>, vector<8x256xbf16>, vector<8x256xf32> -> vector<8x256xf32>
    %249 = arith.addf %244, %248 : vector<8x256xf32>
    %c0_211 = arith.constant 0 : index
    %c143_212 = arith.constant 143 : index
    %250 = vector.load %arg18[%c0_211, %c143_212] : memref<8x512xbf16, #tpu.memory_space<vmem>>, vector<8x256xbf16>
    %c6_213 = arith.constant 6 : index
    %c0_214 = arith.constant 0 : index
    %c0_215 = arith.constant 0 : index
    %251 = vector.load %arg10[%c6_213, %c0_214, %c0_215] : memref<9x8x8xbf16, #tpu.memory_space<vmem>>, vector<1x8x8xbf16>
    %252 = vector.shape_cast %251 : vector<1x8x8xbf16> to vector<8x8xbf16>
    %cst_216 = arith.constant dense<0.000000e+00> : vector<8x256xf32>
    %253 = tpu.matmul %252, %250, %cst_216 {dimension_numbers = #tpu.dot_dimension_numbers<[1], [0], [0], [1], [0, 0, 1, 1], [], []>} : vector<8x8xbf16>, vector<8x256xbf16>, vector<8x256xf32> -> vector<8x256xf32>
    %254 = arith.addf %249, %253 : vector<8x256xf32>
    %c0_217 = arith.constant 0 : index
    %c144_218 = arith.constant 144 : index
    %255 = vector.load %arg18[%c0_217, %c144_218] : memref<8x512xbf16, #tpu.memory_space<vmem>>, vector<8x256xbf16>
    %c7_219 = arith.constant 7 : index
    %c0_220 = arith.constant 0 : index
    %c0_221 = arith.constant 0 : index
    %256 = vector.load %arg10[%c7_219, %c0_220, %c0_221] : memref<9x8x8xbf16, #tpu.memory_space<vmem>>, vector<1x8x8xbf16>
    %257 = vector.shape_cast %256 : vector<1x8x8xbf16> to vector<8x8xbf16>
    %cst_222 = arith.constant dense<0.000000e+00> : vector<8x256xf32>
    %258 = tpu.matmul %257, %255, %cst_222 {dimension_numbers = #tpu.dot_dimension_numbers<[1], [0], [0], [1], [0, 0, 1, 1], [], []>} : vector<8x8xbf16>, vector<8x256xbf16>, vector<8x256xf32> -> vector<8x256xf32>
    %259 = arith.addf %254, %258 : vector<8x256xf32>
    %c0_223 = arith.constant 0 : index
    %c145_224 = arith.constant 145 : index
    %260 = vector.load %arg18[%c0_223, %c145_224] : memref<8x512xbf16, #tpu.memory_space<vmem>>, vector<8x256xbf16>
    %c8_225 = arith.constant 8 : index
    %c0_226 = arith.constant 0 : index
    %c0_227 = arith.constant 0 : index
    %261 = vector.load %arg10[%c8_225, %c0_226, %c0_227] : memref<9x8x8xbf16, #tpu.memory_space<vmem>>, vector<1x8x8xbf16>
    %262 = vector.shape_cast %261 : vector<1x8x8xbf16> to vector<8x8xbf16>
    %cst_228 = arith.constant dense<0.000000e+00> : vector<8x256xf32>
    %263 = tpu.matmul %262, %260, %cst_228 {dimension_numbers = #tpu.dot_dimension_numbers<[1], [0], [0], [1], [0, 0, 1, 1], [], []>} : vector<8x8xbf16>, vector<8x256xbf16>, vector<8x256xf32> -> vector<8x256xf32>
    %264 = arith.addf %259, %263 : vector<8x256xf32>
    %c0_229 = arith.constant 0 : index
    %c0_230 = arith.constant 0 : index
    %265 = vector.load %arg11[%c0_229, %c0_230] : memref<8x1xf32, #tpu.memory_space<vmem>>, vector<8x1xf32>
    %266 = vector.broadcast %265 : vector<8x1xf32> to vector<8x256xf32>
    %267 = arith.addf %264, %266 : vector<8x256xf32>
    %cst_231 = arith.constant 0.000000e+00 : f32
    %268 = vector.broadcast %cst_231 : f32 to vector<8x256xf32>
    %269 = arith.maximumf %267, %268 : vector<8x256xf32>
    %270 = vector.broadcast %5 : vector<1x256xf32> to vector<8x256xf32>
    %271 = arith.mulf %269, %270 : vector<8x256xf32>
    %272 = arith.truncf %271 : vector<8x256xf32> to vector<8x256xbf16>
    %c0_232 = arith.constant 0 : index
    %c128_233 = arith.constant 128 : index
    %273 = vector.load %arg18[%c0_232, %c128_233] : memref<8x512xbf16, #tpu.memory_space<vmem>>, vector<8x256xbf16>
    tpu.vector_store %arg18[%c0_232, %c128_233], %272 {strides = array<i32>} : memref<8x512xbf16, #tpu.memory_space<vmem>>, vector<8x256xbf16>,
    %c0_234 = arith.constant 0 : index
    %c128_235 = arith.constant 128 : index
    %274 = vector.load %arg18[%c0_234, %c128_235] : memref<8x512xbf16, #tpu.memory_space<vmem>>, vector<8x256xbf16>
    %c0_236 = arith.constant 0 : index
    %c129_237 = arith.constant 129 : index
    %275 = vector.load %arg18[%c0_236, %c129_237] : memref<8x512xbf16, #tpu.memory_space<vmem>>, vector<8x256xbf16>
    %276 = arith.maximumf %274, %275 : vector<8x256xbf16>
    %c0_238 = arith.constant 0 : index
    %c144_239 = arith.constant 144 : index
    %277 = vector.load %arg18[%c0_238, %c144_239] : memref<8x512xbf16, #tpu.memory_space<vmem>>, vector<8x256xbf16>
    %c0_240 = arith.constant 0 : index
    %c145_241 = arith.constant 145 : index
    %278 = vector.load %arg18[%c0_240, %c145_241] : memref<8x512xbf16, #tpu.memory_space<vmem>>, vector<8x256xbf16>
    %279 = arith.maximumf %277, %278 : vector<8x256xbf16>
    %280 = arith.maximumf %276, %279 : vector<8x256xbf16>
    %281 = arith.extf %280 : vector<8x256xbf16> to vector<8x256xf32>
    %c0_242 = arith.constant 0 : index
    %c0_243 = arith.constant 0 : index
    %282 = vector.load %arg14[%c0_242, %c0_243] : memref<1x10xf32, #tpu.memory_space<vmem>>, vector<1x10xf32>
    %283 = vector.extract_strided_slice %281 {offsets = [0, 0], sizes = [1, 256], strides = [1, 1]} : vector<8x256xf32> to vector<1x256xf32>
    %c0_244 = arith.constant 0 : index
    %c0_245 = arith.constant 0 : index
    %c0_246 = arith.constant 0 : index
    %284 = vector.load %arg13[%c0_244, %c0_245, %c0_246] : memref<8x256x10xf32, #tpu.memory_space<vmem>>, vector<1x256x10xf32>
    %285 = vector.shape_cast %284 : vector<1x256x10xf32> to vector<256x10xf32>
    %cst_247 = arith.constant dense<0.000000e+00> : vector<1x10xf32>
    %286 = tpu.matmul %283, %285, %cst_247 {dimension_numbers = #tpu.dot_dimension_numbers<[1], [0], [0], [1], [0, 0, 1, 1], [], []>} : vector<1x256xf32>, vector<256x10xf32>, vector<1x10xf32> -> vector<1x10xf32>
    %287 = arith.addf %282, %286 : vector<1x10xf32>
    %288 = vector.extract_strided_slice %281 {offsets = [1, 0], sizes = [1, 256], strides = [1, 1]} : vector<8x256xf32> to vector<1x256xf32>
    %c1_248 = arith.constant 1 : index
    %c0_249 = arith.constant 0 : index
    %c0_250 = arith.constant 0 : index
    %289 = vector.load %arg13[%c1_248, %c0_249, %c0_250] : memref<8x256x10xf32, #tpu.memory_space<vmem>>, vector<1x256x10xf32>
    %290 = vector.shape_cast %289 : vector<1x256x10xf32> to vector<256x10xf32>
    %cst_251 = arith.constant dense<0.000000e+00> : vector<1x10xf32>
    %291 = tpu.matmul %288, %290, %cst_251 {dimension_numbers = #tpu.dot_dimension_numbers<[1], [0], [0], [1], [0, 0, 1, 1], [], []>} : vector<1x256xf32>, vector<256x10xf32>, vector<1x10xf32> -> vector<1x10xf32>
    %292 = arith.addf %287, %291 : vector<1x10xf32>
    %293 = vector.extract_strided_slice %281 {offsets = [2, 0], sizes = [1, 256], strides = [1, 1]} : vector<8x256xf32> to vector<1x256xf32>
    %c2_252 = arith.constant 2 : index
    %c0_253 = arith.constant 0 : index
    %c0_254 = arith.constant 0 : index
    %294 = vector.load %arg13[%c2_252, %c0_253, %c0_254] : memref<8x256x10xf32, #tpu.memory_space<vmem>>, vector<1x256x10xf32>
    %295 = vector.shape_cast %294 : vector<1x256x10xf32> to vector<256x10xf32>
    %cst_255 = arith.constant dense<0.000000e+00> : vector<1x10xf32>
    %296 = tpu.matmul %293, %295, %cst_255 {dimension_numbers = #tpu.dot_dimension_numbers<[1], [0], [0], [1], [0, 0, 1, 1], [], []>} : vector<1x256xf32>, vector<256x10xf32>, vector<1x10xf32> -> vector<1x10xf32>
    %297 = arith.addf %292, %296 : vector<1x10xf32>
    %298 = vector.extract_strided_slice %281 {offsets = [3, 0], sizes = [1, 256], strides = [1, 1]} : vector<8x256xf32> to vector<1x256xf32>
    %c3_256 = arith.constant 3 : index
    %c0_257 = arith.constant 0 : index
    %c0_258 = arith.constant 0 : index
    %299 = vector.load %arg13[%c3_256, %c0_257, %c0_258] : memref<8x256x10xf32, #tpu.memory_space<vmem>>, vector<1x256x10xf32>
    %300 = vector.shape_cast %299 : vector<1x256x10xf32> to vector<256x10xf32>
    %cst_259 = arith.constant dense<0.000000e+00> : vector<1x10xf32>
    %301 = tpu.matmul %298, %300, %cst_259 {dimension_numbers = #tpu.dot_dimension_numbers<[1], [0], [0], [1], [0, 0, 1, 1], [], []>} : vector<1x256xf32>, vector<256x10xf32>, vector<1x10xf32> -> vector<1x10xf32>
    %302 = arith.addf %297, %301 : vector<1x10xf32>
    %303 = vector.extract_strided_slice %281 {offsets = [4, 0], sizes = [1, 256], strides = [1, 1]} : vector<8x256xf32> to vector<1x256xf32>
    %c4_260 = arith.constant 4 : index
    %c0_261 = arith.constant 0 : index
    %c0_262 = arith.constant 0 : index
    %304 = vector.load %arg13[%c4_260, %c0_261, %c0_262] : memref<8x256x10xf32, #tpu.memory_space<vmem>>, vector<1x256x10xf32>
    %305 = vector.shape_cast %304 : vector<1x256x10xf32> to vector<256x10xf32>
    %cst_263 = arith.constant dense<0.000000e+00> : vector<1x10xf32>
    %306 = tpu.matmul %303, %305, %cst_263 {dimension_numbers = #tpu.dot_dimension_numbers<[1], [0], [0], [1], [0, 0, 1, 1], [], []>} : vector<1x256xf32>, vector<256x10xf32>, vector<1x10xf32> -> vector<1x10xf32>
    %307 = arith.addf %302, %306 : vector<1x10xf32>
    %308 = vector.extract_strided_slice %281 {offsets = [5, 0], sizes = [1, 256], strides = [1, 1]} : vector<8x256xf32> to vector<1x256xf32>
    %c5_264 = arith.constant 5 : index
    %c0_265 = arith.constant 0 : index
    %c0_266 = arith.constant 0 : index
    %309 = vector.load %arg13[%c5_264, %c0_265, %c0_266] : memref<8x256x10xf32, #tpu.memory_space<vmem>>, vector<1x256x10xf32>
    %310 = vector.shape_cast %309 : vector<1x256x10xf32> to vector<256x10xf32>
    %cst_267 = arith.constant dense<0.000000e+00> : vector<1x10xf32>
    %311 = tpu.matmul %308, %310, %cst_267 {dimension_numbers = #tpu.dot_dimension_numbers<[1], [0], [0], [1], [0, 0, 1, 1], [], []>} : vector<1x256xf32>, vector<256x10xf32>, vector<1x10xf32> -> vector<1x10xf32>
    %312 = arith.addf %307, %311 : vector<1x10xf32>
    %313 = vector.extract_strided_slice %281 {offsets = [6, 0], sizes = [1, 256], strides = [1, 1]} : vector<8x256xf32> to vector<1x256xf32>
    %c6_268 = arith.constant 6 : index
    %c0_269 = arith.constant 0 : index
    %c0_270 = arith.constant 0 : index
    %314 = vector.load %arg13[%c6_268, %c0_269, %c0_270] : memref<8x256x10xf32, #tpu.memory_space<vmem>>, vector<1x256x10xf32>
    %315 = vector.shape_cast %314 : vector<1x256x10xf32> to vector<256x10xf32>
    %cst_271 = arith.constant dense<0.000000e+00> : vector<1x10xf32>
    %316 = tpu.matmul %313, %315, %cst_271 {dimension_numbers = #tpu.dot_dimension_numbers<[1], [0], [0], [1], [0, 0, 1, 1], [], []>} : vector<1x256xf32>, vector<256x10xf32>, vector<1x10xf32> -> vector<1x10xf32>
    %317 = arith.addf %312, %316 : vector<1x10xf32>
    %318 = vector.extract_strided_slice %281 {offsets = [7, 0], sizes = [1, 256], strides = [1, 1]} : vector<8x256xf32> to vector<1x256xf32>
    %c7_272 = arith.constant 7 : index
    %c0_273 = arith.constant 0 : index
    %c0_274 = arith.constant 0 : index
    %319 = vector.load %arg13[%c7_272, %c0_273, %c0_274] : memref<8x256x10xf32, #tpu.memory_space<vmem>>, vector<1x256x10xf32>
    %320 = vector.shape_cast %319 : vector<1x256x10xf32> to vector<256x10xf32>
    %cst_275 = arith.constant dense<0.000000e+00> : vector<1x10xf32>
    %321 = tpu.matmul %318, %320, %cst_275 {dimension_numbers = #tpu.dot_dimension_numbers<[1], [0], [0], [1], [0, 0, 1, 1], [], []>} : vector<1x256xf32>, vector<256x10xf32>, vector<1x10xf32> -> vector<1x10xf32>
    %322 = arith.addf %317, %321 : vector<1x10xf32>
    %c0_276 = arith.constant 0 : index
    %c0_277 = arith.constant 0 : index
    %c0_278 = arith.constant 0 : index
    %323 = vector.load %arg15[%c0_276, %c0_277, %c0_278] : memref<1x1x10xf32, #tpu.memory_space<vmem>>, vector<1x1x10xf32>
    %324 = vector.shape_cast %323 : vector<1x1x10xf32> to vector<1x10xf32>
    %325 = vector.shape_cast %322 : vector<1x10xf32> to vector<1x1x10xf32>
    tpu.vector_store %arg15[%c0_276, %c0_277, %c0_278], %325 {strides = array<i32>} : memref<1x1x10xf32, #tpu.memory_space<vmem>>, vector<1x1x10xf32>,
    return
  }
  func.func @transform_0(%arg0: i32) -> (i32, i32, i32) {
    %c0_i32 = arith.constant 0 : i32
    %c0_i32_0 = arith.constant 0 : i32
    %c0_i32_1 = arith.constant 0 : i32
    return %arg0, %c0_i32, %c0_i32_0 : i32, i32, i32
  }
  func.func @transform_1(%arg0: i32) -> (i32, i32, i32) {
    %c0_i32 = arith.constant 0 : i32
    %c0_i32_0 = arith.constant 0 : i32
    %c0_i32_1 = arith.constant 0 : i32
    %c0_i32_2 = arith.constant 0 : i32
    return %c0_i32, %c0_i32_0, %c0_i32_1 : i32, i32, i32
  }
  func.func @transform_2(%arg0: i32) -> (i32, i32) {
    %c0_i32 = arith.constant 0 : i32
    %c0_i32_0 = arith.constant 0 : i32
    %c0_i32_1 = arith.constant 0 : i32
    return %c0_i32, %c0_i32_0 : i32, i32
  }
  func.func @transform_3(%arg0: i32) -> (i32, i32, i32) {
    %c0_i32 = arith.constant 0 : i32
    %c0_i32_0 = arith.constant 0 : i32
    %c0_i32_1 = arith.constant 0 : i32
    %c0_i32_2 = arith.constant 0 : i32
    return %c0_i32, %c0_i32_0, %c0_i32_1 : i32, i32, i32
  }
  func.func @transform_4(%arg0: i32) -> (i32, i32) {
    %c0_i32 = arith.constant 0 : i32
    %c0_i32_0 = arith.constant 0 : i32
    %c0_i32_1 = arith.constant 0 : i32
    return %c0_i32, %c0_i32_0 : i32, i32
  }
  func.func @transform_5(%arg0: i32) -> (i32, i32) {
    %c0_i32 = arith.constant 0 : i32
    %c0_i32_0 = arith.constant 0 : i32
    %c0_i32_1 = arith.constant 0 : i32
    return %c0_i32, %c0_i32_0 : i32, i32
  }
  func.func @transform_6(%arg0: i32) -> (i32, i32) {
    %c0_i32 = arith.constant 0 : i32
    %c0_i32_0 = arith.constant 0 : i32
    %c0_i32_1 = arith.constant 0 : i32
    return %c0_i32, %c0_i32_0 : i32, i32
  }
  func.func @transform_7(%arg0: i32) -> (i32, i32, i32) {
    %c0_i32 = arith.constant 0 : i32
    %c0_i32_0 = arith.constant 0 : i32
    %c0_i32_1 = arith.constant 0 : i32
    %c0_i32_2 = arith.constant 0 : i32
    return %c0_i32, %c0_i32_0, %c0_i32_1 : i32, i32, i32
  }
  func.func @transform_8(%arg0: i32) -> (i32, i32) {
    %c0_i32 = arith.constant 0 : i32
    %c0_i32_0 = arith.constant 0 : i32
    %c0_i32_1 = arith.constant 0 : i32
    return %c0_i32, %c0_i32_0 : i32, i32
  }
  func.func @transform_9(%arg0: i32) -> (i32, i32, i32) {
    %c0_i32 = arith.constant 0 : i32
    %c0_i32_0 = arith.constant 0 : i32
    %c0_i32_1 = arith.constant 0 : i32
    %c0_i32_2 = arith.constant 0 : i32
    return %c0_i32, %c0_i32_0, %c0_i32_1 : i32, i32, i32
  }
  func.func @transform_10(%arg0: i32) -> (i32, i32) {
    %c0_i32 = arith.constant 0 : i32
    %c0_i32_0 = arith.constant 0 : i32
    %c0_i32_1 = arith.constant 0 : i32
    return %c0_i32, %c0_i32_0 : i32, i32
  }
  func.func @transform_11(%arg0: i32) -> (i32, i32) {
    %c0_i32 = arith.constant 0 : i32
    %c0_i32_0 = arith.constant 0 : i32
    %c0_i32_1 = arith.constant 0 : i32
    return %c0_i32, %c0_i32_0 : i32, i32
  }
  func.func @transform_12(%arg0: i32) -> (i32, i32, i32) {
    %c0_i32 = arith.constant 0 : i32
    %c0_i32_0 = arith.constant 0 : i32
    %c0_i32_1 = arith.constant 0 : i32
    %c0_i32_2 = arith.constant 0 : i32
    return %c0_i32, %c0_i32_0, %c0_i32_1 : i32, i32, i32
  }
  func.func @transform_13(%arg0: i32) -> (i32, i32) {
    %c0_i32 = arith.constant 0 : i32
    %c0_i32_0 = arith.constant 0 : i32
    %c0_i32_1 = arith.constant 0 : i32
    return %c0_i32, %c0_i32_0 : i32, i32
  }
  func.func @transform_14(%arg0: i32) -> (i32, i32, i32) {
    %c0_i32 = arith.constant 0 : i32
    %c0_i32_0 = arith.constant 0 : i32
    %c0_i32_1 = arith.constant 0 : i32
    return %arg0, %c0_i32, %c0_i32_0 : i32, i32, i32
  }
}

</mosaic_0001>

<llo_original>
// kernel: fashion_mnist_model_v2.1
$region0: #{fashion_mnist_model_v2.1}
  #allocation0 [shape = 'u32[]', space=smem, size = 0x4, offset = 0x4, fixed_abs, tag = 'smem constant byte address 0x4 - core index']
  #allocation1 [shape = 'u32[144,128]{1,0:T(1,128)}', space=vmem, size = 0x12000, scoped, tag = 'internal scratch']
  #allocation2 [shape = 'bf16[8,1156]{1,0:T(8,128)(2,1)}', space=vmem, size = 0x5000, scoped, tag = 'scratch operand']
  #allocation3 [shape = 'bf16[8,512]{1,0:T(8,128)(2,1)}', space=vmem, size = 0x2000, scoped, tag = 'scratch operand']
  #allocation4 [shape = 'bf16[8,512]{1,0:T(8,128)(2,1)}', space=vmem, size = 0x2000, scoped, tag = 'scratch operand']
  %s0 = inlined_call_operand.vmem [shape: bf16[2,1,1156], index: 0, kind: input, shape index: {}]
  %s1 = inlined_call_operand.vmem [shape: bf16[9,8,1], index: 1, kind: input, shape index: {}]
  %s2 = inlined_call_operand.vmem [shape: f32[8,1], index: 2, kind: input, shape index: {}]
  %s3 = inlined_call_operand.vmem [shape: bf16[9,8,8], index: 3, kind: input, shape index: {}]
  %s4 = inlined_call_operand.vmem [shape: f32[8,1], index: 4, kind: input, shape index: {}]
  %s5 = inlined_call_operand.vmem [shape: f32[1,900], index: 5, kind: input, shape index: {}]
  %s6 = inlined_call_operand.vmem [shape: bf16[900,512], index: 6, kind: input, shape index: {}]
  %s7 = inlined_call_operand.vmem [shape: bf16[9,8,8], index: 7, kind: input, shape index: {}]
  %s8 = inlined_call_operand.vmem [shape: f32[8,1], index: 8, kind: input, shape index: {}]
  %s9 = inlined_call_operand.vmem [shape: bf16[9,8,8], index: 9, kind: input, shape index: {}]
  %s10 = inlined_call_operand.vmem [shape: f32[8,1], index: 10, kind: input, shape index: {}]
  %s11 = inlined_call_operand.vmem [shape: f32[1,256], index: 11, kind: input, shape index: {}]
  %s12 = inlined_call_operand.vmem [shape: f32[8,256,10], index: 12, kind: input, shape index: {}]
  %s13 = inlined_call_operand.vmem [shape: f32[1,10], index: 13, kind: input, shape index: {}]
  %s14 = inlined_call_operand.hbm [shape: f32[2,1,10], index: 14, kind: output, shape index: {}]
  %s15 = sld [smem:[#allocation0]]
  $region89: #{fashion_mnist_model_v2.1} parent=0
    _
  %s17 = ssub.s32 1, %s15
  %s18 = scalar_select 0, %s17, %s15
  $region1: #{fashion_mnist_model_v2.1} parent=0
    #allocation5 [shape = 'u8[1024]{0}', space=vmem, size = 0x400, scoped, tag = 'output window, operand 0']
    #allocation6 [shape = 's32[2]{0}', space=sflag, size = 0x8, scoped, tag = 'scoped memory for fashion_mnist_model_v2.1']
    %19 = vsyncpa [#allocation6], 0
    %s20 = scalar_lea.sflag [#allocation6], 1
    %21 = vsyncpa %s20, 0
    loop: start=0, step=1, limit=4
    $region2: #{fashion_mnist_model_v2.1} parent=1 // loop_pre_header
      _
    $region3: #{fashion_mnist_model_v2.1} parent=1 // loop_header
      %s23 = sphi 0, %s27
      %p24 = scmp.ge.s32.totalorder %s23, 4
      %s33 = sphi 0, %s35
      %s36 = sphi 0, %s33
      %s37 = sphi 0, %s36
      %s53 = sphi 0, %s37
      %s57 = sphi 0, %s57
      %s59 = sphi 0, %s57
      %s60 = sphi 0, %s59
      %s74 = sphi 0, %s60
      %s78 = sphi 0, %s78
      %s80 = sphi 0, %s78
      %s81 = sphi 0, %s80
      %s95 = sphi 0, %s81
      %s99 = sphi 0, %s99
      %s101 = sphi 0, %s99
      %s102 = sphi 0, %s101
      %s116 = sphi 0, %s102
      %s120 = sphi 0, %s120
      %s122 = sphi 0, %s120
      %s123 = sphi 0, %s122
      %s137 = sphi 0, %s123
      %s141 = sphi 0, %s141
      %s143 = sphi 0, %s141
      %s144 = sphi 0, %s143
      %s158 = sphi 0, %s144
      %s162 = sphi 0, %s162
      %s164 = sphi 0, %s162
      %s165 = sphi 0, %s164
      %s179 = sphi 0, %s165
      %s183 = sphi 0, %s183
      %s185 = sphi 0, %s183
      %s186 = sphi 0, %s185
      %s200 = sphi 0, %s186
      %s204 = sphi 0, %s204
      %s206 = sphi 0, %s204
      %s207 = sphi 0, %s206
      %s221 = sphi 0, %s207
      %s225 = sphi 0, %s225
      %s227 = sphi 0, %s225
      %s228 = sphi 0, %s227
      %s242 = sphi 0, %s228
      %s246 = sphi 0, %s246
      %s248 = sphi 0, %s246
      %s249 = sphi 0, %s248
      %s263 = sphi 0, %s249
      %s267 = sphi 0, %s267
      %s269 = sphi 0, %s267
      %s270 = sphi 0, %s269
      %s284 = sphi 0, %s270
      %s288 = sphi 0, %s288
      %s290 = sphi 0, %s288
      %s291 = sphi 0, %s290
      %s305 = sphi 0, %s291
      %s309 = sphi 0, %s309
      %s311 = sphi 0, %s309
      %s312 = sphi 0, %s311
      %s326 = sphi 0, %s312
      %s332 = sphi 0, %s334
      %s335 = sphi 0, %s332
      %s336 = sphi 0, %s335
      %s352 = sphi 0, %s336
    $region4: #{fashion_mnist_model_v2.1} parent=1 // loop_header_branch
      %26 = sbr.rel (%p24) target = $region8
    $region5: #{fashion_mnist_model_v2.1} parent=1 // loop_body
      %s28 = ssub.s32 %s23, 1
      %s29 = ssub.s32 %s23, 2
      %s30 = sadd.s32 %s23, 1
      %s31 = ssub.s32 %s23, %s30
      %p32 = scmp.eq.s32.totalorder %s31, 0
      %s34 = sadd.s32 %s33, 1
      %s35 = scalar_select %p32, %s33, %s34
      %p38 = pneg %p32
      %p39 = scmp.eq.s32.totalorder %s23, 1
      %p40 = por %p38, %p39
      %p41 = scmp.ne.s32.totalorder %s33, %s36
      %p42 = scmp.eq.s32.totalorder %s23, 0
      %p43 = por %p41, %p42
      %p44 = scmp.ne.s32.totalorder %s33, %s36
      %p45 = scmp.eq.s32.totalorder %s28, 1
      %p46 = por %p44, %p45
      %p47 = scmp.ne.s32.totalorder %s36, %s37
      %p48 = scmp.eq.s32.totalorder %s28, 0
      %p49 = por %p47, %p48
      %p50 = scmp.ne.s32.totalorder %s36, %s37
      %p51 = scmp.eq.s32.totalorder %s29, 1
      %p52 = por %p50, %p51
      %p54 = scmp.ne.s32.totalorder %s37, %s53
      %p55 = scmp.eq.s32.totalorder %s29, 0
      %p56 = por %p54, %p55
      %s58 = sadd.s32 %s57, 1
      %p61 = scmp.eq.s32.totalorder %s23, 1
      %p62 = scmp.ne.s32.totalorder %s57, %s59
      %p63 = scmp.eq.s32.totalorder %s23, 0
      %p64 = por %p62, %p63
      %p65 = scmp.ne.s32.totalorder %s57, %s59
      %p66 = scmp.eq.s32.totalorder %s28, 1
      %p67 = por %p65, %p66
      %p68 = scmp.ne.s32.totalorder %s59, %s60
      %p69 = scmp.eq.s32.totalorder %s28, 0
      %p70 = por %p68, %p69
      %p71 = scmp.ne.s32.totalorder %s59, %s60
      %p72 = scmp.eq.s32.totalorder %s29, 1
      %p73 = por %p71, %p72
      %p75 = scmp.ne.s32.totalorder %s60, %s74
      %p76 = scmp.eq.s32.totalorder %s29, 0
      %p77 = por %p75, %p76
      %s79 = sadd.s32 %s78, 1
      %p82 = scmp.eq.s32.totalorder %s23, 1
      %p83 = scmp.ne.s32.totalorder %s78, %s80
      %p84 = scmp.eq.s32.totalorder %s23, 0
      %p85 = por %p83, %p84
      %p86 = scmp.ne.s32.totalorder %s78, %s80
      %p87 = scmp.eq.s32.totalorder %s28, 1
      %p88 = por %p86, %p87
      %p89 = scmp.ne.s32.totalorder %s80, %s81
      %p90 = scmp.eq.s32.totalorder %s28, 0
      %p91 = por %p89, %p90
      %p92 = scmp.ne.s32.totalorder %s80, %s81
      %p93 = scmp.eq.s32.totalorder %s29, 1
      %p94 = por %p92, %p93
      %p96 = scmp.ne.s32.totalorder %s81, %s95
      %p97 = scmp.eq.s32.totalorder %s29, 0
      %p98 = por %p96, %p97
      %s100 = sadd.s32 %s99, 1
      %p103 = scmp.eq.s32.totalorder %s23, 1
      %p104 = scmp.ne.s32.totalorder %s99, %s101
      %p105 = scmp.eq.s32.totalorder %s23, 0
      %p106 = por %p104, %p105
      %p107 = scmp.ne.s32.totalorder %s99, %s101
      %p108 = scmp.eq.s32.totalorder %s28, 1
      %p109 = por %p107, %p108
      %p110 = scmp.ne.s32.totalorder %s101, %s102
      %p111 = scmp.eq.s32.totalorder %s28, 0
      %p112 = por %p110, %p111
      %p113 = scmp.ne.s32.totalorder %s101, %s102
      %p114 = scmp.eq.s32.totalorder %s29, 1
      %p115 = por %p113, %p114
      %p117 = scmp.ne.s32.totalorder %s102, %s116
      %p118 = scmp.eq.s32.totalorder %s29, 0
      %p119 = por %p117, %p118
      %s121 = sadd.s32 %s120, 1
      %p124 = scmp.eq.s32.totalorder %s23, 1
      %p125 = scmp.ne.s32.totalorder %s120, %s122
      %p126 = scmp.eq.s32.totalorder %s23, 0
      %p127 = por %p125, %p126
      %p128 = scmp.ne.s32.totalorder %s120, %s122
      %p129 = scmp.eq.s32.totalorder %s28, 1
      %p130 = por %p128, %p129
      %p131 = scmp.ne.s32.totalorder %s122, %s123
      %p132 = scmp.eq.s32.totalorder %s28, 0
      %p133 = por %p131, %p132
      %p134 = scmp.ne.s32.totalorder %s122, %s123
      %p135 = scmp.eq.s32.totalorder %s29, 1
      %p136 = por %p134, %p135
      %p138 = scmp.ne.s32.totalorder %s123, %s137
      %p139 = scmp.eq.s32.totalorder %s29, 0
      %p140 = por %p138, %p139
      %s142 = sadd.s32 %s141, 1
      %p145 = scmp.eq.s32.totalorder %s23, 1
      %p146 = scmp.ne.s32.totalorder %s141, %s143
      %p147 = scmp.eq.s32.totalorder %s23, 0
      %p148 = por %p146, %p147
      %p149 = scmp.ne.s32.totalorder %s141, %s143
      %p150 = scmp.eq.s32.totalorder %s28, 1
      %p151 = por %p149, %p150
      %p152 = scmp.ne.s32.totalorder %s143, %s144
      %p153 = scmp.eq.s32.totalorder %s28, 0
      %p154 = por %p152, %p153
      %p155 = scmp.ne.s32.totalorder %s143, %s144
      %p156 = scmp.eq.s32.totalorder %s29, 1
      %p157 = por %p155, %p156
      %p159 = scmp.ne.s32.totalorder %s144, %s158
      %p160 = scmp.eq.s32.totalorder %s29, 0
      %p161 = por %p159, %p160
      %s163 = sadd.s32 %s162, 1
      %p166 = scmp.eq.s32.totalorder %s23, 1
      %p167 = scmp.ne.s32.totalorder %s162, %s164
      %p168 = scmp.eq.s32.totalorder %s23, 0
      %p169 = por %p167, %p168
      %p170 = scmp.ne.s32.totalorder %s162, %s164
      %p171 = scmp.eq.s32.totalorder %s28, 1
      %p172 = por %p170, %p171
      %p173 = scmp.ne.s32.totalorder %s164, %s165
      %p174 = scmp.eq.s32.totalorder %s28, 0
      %p175 = por %p173, %p174
      %p176 = scmp.ne.s32.totalorder %s164, %s165
      %p177 = scmp.eq.s32.totalorder %s29, 1
      %p178 = por %p176, %p177
      %p180 = scmp.ne.s32.totalorder %s165, %s179
      %p181 = scmp.eq.s32.totalorder %s29, 0
      %p182 = por %p180, %p181
      %s184 = sadd.s32 %s183, 1
      %p187 = scmp.eq.s32.totalorder %s23, 1
      %p188 = scmp.ne.s32.totalorder %s183, %s185
      %p189 = scmp.eq.s32.totalorder %s23, 0
      %p190 = por %p188, %p189
      %p191 = scmp.ne.s32.totalorder %s183, %s185
      %p192 = scmp.eq.s32.totalorder %s28, 1
      %p193 = por %p191, %p192
      %p194 = scmp.ne.s32.totalorder %s185, %s186
      %p195 = scmp.eq.s32.totalorder %s28, 0
      %p196 = por %p194, %p195
      %p197 = scmp.ne.s32.totalorder %s185, %s186
      %p198 = scmp.eq.s32.totalorder %s29, 1
      %p199 = por %p197, %p198
      %p201 = scmp.ne.s32.totalorder %s186, %s200
      %p202 = scmp.eq.s32.totalorder %s29, 0
      %p203 = por %p201, %p202
      %s205 = sadd.s32 %s204, 1
      %p208 = scmp.eq.s32.totalorder %s23, 1
      %p209 = scmp.ne.s32.totalorder %s204, %s206
      %p210 = scmp.eq.s32.totalorder %s23, 0
      %p211 = por %p209, %p210
      %p212 = scmp.ne.s32.totalorder %s204, %s206
      %p213 = scmp.eq.s32.totalorder %s28, 1
      %p214 = por %p212, %p213
      %p215 = scmp.ne.s32.totalorder %s206, %s207
      %p216 = scmp.eq.s32.totalorder %s28, 0
      %p217 = por %p215, %p216
      %p218 = scmp.ne.s32.totalorder %s206, %s207
      %p219 = scmp.eq.s32.totalorder %s29, 1
      %p220 = por %p218, %p219
      %p222 = scmp.ne.s32.totalorder %s207, %s221
      %p223 = scmp.eq.s32.totalorder %s29, 0
      %p224 = por %p222, %p223
      %s226 = sadd.s32 %s225, 1
      %p229 = scmp.eq.s32.totalorder %s23, 1
      %p230 = scmp.ne.s32.totalorder %s225, %s227
      %p231 = scmp.eq.s32.totalorder %s23, 0
      %p232 = por %p230, %p231
      %p233 = scmp.ne.s32.totalorder %s225, %s227
      %p234 = scmp.eq.s32.totalorder %s28, 1
      %p235 = por %p233, %p234
      %p236 = scmp.ne.s32.totalorder %s227, %s228
      %p237 = scmp.eq.s32.totalorder %s28, 0
      %p238 = por %p236, %p237
      %p239 = scmp.ne.s32.totalorder %s227, %s228
      %p240 = scmp.eq.s32.totalorder %s29, 1
      %p241 = por %p239, %p240
      %p243 = scmp.ne.s32.totalorder %s228, %s242
      %p244 = scmp.eq.s32.totalorder %s29, 0
      %p245 = por %p243, %p244
      %s247 = sadd.s32 %s246, 1
      %p250 = scmp.eq.s32.totalorder %s23, 1
      %p251 = scmp.ne.s32.totalorder %s246, %s248
      %p252 = scmp.eq.s32.totalorder %s23, 0
      %p253 = por %p251, %p252
      %p254 = scmp.ne.s32.totalorder %s246, %s248
      %p255 = scmp.eq.s32.totalorder %s28, 1
      %p256 = por %p254, %p255
      %p257 = scmp.ne.s32.totalorder %s248, %s249
      %p258 = scmp.eq.s32.totalorder %s28, 0
      %p259 = por %p257, %p258
      %p260 = scmp.ne.s32.totalorder %s248, %s249
      %p261 = scmp.eq.s32.totalorder %s29, 1
      %p262 = por %p260, %p261
      %p264 = scmp.ne.s32.totalorder %s249, %s263
      %p265 = scmp.eq.s32.totalorder %s29, 0
      %p266 = por %p264, %p265
      %s268 = sadd.s32 %s267, 1
      %p271 = scmp.eq.s32.totalorder %s23, 1
      %p272 = scmp.ne.s32.totalorder %s267, %s269
      %p273 = scmp.eq.s32.totalorder %s23, 0
      %p274 = por %p272, %p273
      %p275 = scmp.ne.s32.totalorder %s267, %s269
      %p276 = scmp.eq.s32.totalorder %s28, 1
      %p277 = por %p275, %p276
      %p278 = scmp.ne.s32.totalorder %s269, %s270
      %p279 = scmp.eq.s32.totalorder %s28, 0
      %p280 = por %p278, %p279
      %p281 = scmp.ne.s32.totalorder %s269, %s270
      %p282 = scmp.eq.s32.totalorder %s29, 1
      %p283 = por %p281, %p282
      %p285 = scmp.ne.s32.totalorder %s270, %s284
      %p286 = scmp.eq.s32.totalorder %s29, 0
      %p287 = por %p285, %p286
      %s289 = sadd.s32 %s288, 1
      %p292 = scmp.eq.s32.totalorder %s23, 1
      %p293 = scmp.ne.s32.totalorder %s288, %s290
      %p294 = scmp.eq.s32.totalorder %s23, 0
      %p295 = por %p293, %p294
      %p296 = scmp.ne.s32.totalorder %s288, %s290
      %p297 = scmp.eq.s32.totalorder %s28, 1
      %p298 = por %p296, %p297
      %p299 = scmp.ne.s32.totalorder %s290, %s291
      %p300 = scmp.eq.s32.totalorder %s28, 0
      %p301 = por %p299, %p300
      %p302 = scmp.ne.s32.totalorder %s290, %s291
      %p303 = scmp.eq.s32.totalorder %s29, 1
      %p304 = por %p302, %p303
      %p306 = scmp.ne.s32.totalorder %s291, %s305
      %p307 = scmp.eq.s32.totalorder %s29, 0
      %p308 = por %p306, %p307
      %s310 = sadd.s32 %s309, 1
      %p313 = scmp.eq.s32.totalorder %s23, 1
      %p314 = scmp.ne.s32.totalorder %s309, %s311
      %p315 = scmp.eq.s32.totalorder %s23, 0
      %p316 = por %p314, %p315
      %p317 = scmp.ne.s32.totalorder %s309, %s311
      %p318 = scmp.eq.s32.totalorder %s28, 1
      %p319 = por %p317, %p318
      %p320 = scmp.ne.s32.totalorder %s311, %s312
      %p321 = scmp.eq.s32.totalorder %s28, 0
      %p322 = por %p320, %p321
      %p323 = scmp.ne.s32.totalorder %s311, %s312
      %p324 = scmp.eq.s32.totalorder %s29, 1
      %p325 = por %p323, %p324
      %p327 = scmp.ne.s32.totalorder %s312, %s326
      %p328 = scmp.eq.s32.totalorder %s29, 0
      %p329 = por %p327, %p328
      %s330 = ssub.s32 %s23, %s30
      %p331 = scmp.eq.s32.totalorder %s330, 0
      %s333 = sadd.s32 %s332, 1
      %s334 = scalar_select %p331, %s332, %s333
      %p337 = pneg %p331
      %p338 = scmp.eq.s32.totalorder %s23, 1
      %p339 = por %p337, %p338
      %p340 = scmp.ne.s32.totalorder %s332, %s335
      %p341 = scmp.eq.s32.totalorder %s23, 0
      %p342 = por %p340, %p341
      %p343 = scmp.ne.s32.totalorder %s332, %s335
      %p344 = scmp.eq.s32.totalorder %s28, 1
      %p345 = por %p343, %p344
      %p346 = scmp.ne.s32.totalorder %s335, %s336
      %p347 = scmp.eq.s32.totalorder %s28, 0
      %p348 = por %p346, %p347
      %p349 = scmp.ne.s32.totalorder %s335, %s336
      %p350 = scmp.eq.s32.totalorder %s29, 1
      %p351 = por %p349, %p350
      %p353 = scmp.ne.s32.totalorder %s336, %s352
      %p354 = scmp.eq.s32.totalorder %s29, 0
      %p355 = por %p353, %p354
      %p356 = scmp.le.s32.totalorder 1, %s23
      %p357 = scmp.lt.s32.totalorder %s23, 3
      %p358 = pnand %p356, %p357
      %p359 = pneg %p358
      // Predicated region
      $region9: #{fashion_mnist_model_v2.1} parent=5 // pred_check
        _
      $region10: #{fashion_mnist_model_v2.1} parent=5 // pred_check_branch
        %361 = sbr.rel (%p358) target = $region12
      $region11: #{fashion_mnist_model_v2.1} parent=5 // pred_region
        %s362 = ssub.s32 %s23, 1
        // Predicated region
        $region13: #{fashion_mnist_model_v2.1} parent=11 // pred_check
          %p363 = pneg %p70
        $region14: #{fashion_mnist_model_v2.1} parent=11 // pred_check_branch
          %365 = sbr.rel (%p363) target = $region16
        $region15: #{fashion_mnist_model_v2.1} parent=11 // pred_region
          _
        $region16: #{fashion_mnist_model_v2.1} parent=11 // pred_fallthru
          _
        // Predicated region
        $region17: #{fashion_mnist_model_v2.1} parent=11 // pred_check
          %p366 = pneg %p91
        $region18: #{fashion_mnist_model_v2.1} parent=11 // pred_check_branch
          %368 = sbr.rel (%p366) target = $region20
        $region19: #{fashion_mnist_model_v2.1} parent=11 // pred_region
          _
        $region20: #{fashion_mnist_model_v2.1} parent=11 // pred_fallthru
          _
        // Predicated region
        $region21: #{fashion_mnist_model_v2.1} parent=11 // pred_check
          %p369 = pneg %p112
        $region22: #{fashion_mnist_model_v2.1} parent=11 // pred_check_branch
          %371 = sbr.rel (%p369) target = $region24
        $region23: #{fashion_mnist_model_v2.1} parent=11 // pred_region
          _
        $region24: #{fashion_mnist_model_v2.1} parent=11 // pred_fallthru
          _
        // Predicated region
        $region25: #{fashion_mnist_model_v2.1} parent=11 // pred_check
          %p372 = pneg %p133
        $region26: #{fashion_mnist_model_v2.1} parent=11 // pred_check_branch
          %374 = sbr.rel (%p372) target = $region28
        $region27: #{fashion_mnist_model_v2.1} parent=11 // pred_region
          _
        $region28: #{fashion_mnist_model_v2.1} parent=11 // pred_fallthru
          _
        // Predicated region
        $region29: #{fashion_mnist_model_v2.1} parent=11 // pred_check
          %p375 = pneg %p154
        $region30: #{fashion_mnist_model_v2.1} parent=11 // pred_check_branch
          %377 = sbr.rel (%p375) target = $region32
        $region31: #{fashion_mnist_model_v2.1} parent=11 // pred_region
          _
        $region32: #{fashion_mnist_model_v2.1} parent=11 // pred_fallthru
          _
        // Predicated region
        $region33: #{fashion_mnist_model_v2.1} parent=11 // pred_check
          %p378 = pneg %p175
        $region34: #{fashion_mnist_model_v2.1} parent=11 // pred_check_branch
          %380 = sbr.rel (%p378) target = $region36
        $region35: #{fashion_mnist_model_v2.1} parent=11 // pred_region
          _
        $region36: #{fashion_mnist_model_v2.1} parent=11 // pred_fallthru
          _
        // Predicated region
        $region37: #{fashion_mnist_model_v2.1} parent=11 // pred_check
          %p381 = pneg %p196
        $region38: #{fashion_mnist_model_v2.1} parent=11 // pred_check_branch
          %383 = sbr.rel (%p381) target = $region40
        $region39: #{fashion_mnist_model_v2.1} parent=11 // pred_region
          _
        $region40: #{fashion_mnist_model_v2.1} parent=11 // pred_fallthru
          _
        // Predicated region
        $region41: #{fashion_mnist_model_v2.1} parent=11 // pred_check
          %p384 = pneg %p217
        $region42: #{fashion_mnist_model_v2.1} parent=11 // pred_check_branch
          %386 = sbr.rel (%p384) target = $region44
        $region43: #{fashion_mnist_model_v2.1} parent=11 // pred_region
          _
        $region44: #{fashion_mnist_model_v2.1} parent=11 // pred_fallthru
          _
        // Predicated region
        $region45: #{fashion_mnist_model_v2.1} parent=11 // pred_check
          %p387 = pneg %p238
        $region46: #{fashion_mnist_model_v2.1} parent=11 // pred_check_branch
          %389 = sbr.rel (%p387) target = $region48
        $region47: #{fashion_mnist_model_v2.1} parent=11 // pred_region
          _
        $region48: #{fashion_mnist_model_v2.1} parent=11 // pred_fallthru
          _
        // Predicated region
        $region49: #{fashion_mnist_model_v2.1} parent=11 // pred_check
          %p390 = pneg %p259
        $region50: #{fashion_mnist_model_v2.1} parent=11 // pred_check_branch
          %392 = sbr.rel (%p390) target = $region52
        $region51: #{fashion_mnist_model_v2.1} parent=11 // pred_region
          _
        $region52: #{fashion_mnist_model_v2.1} parent=11 // pred_fallthru
          _
        // Predicated region
        $region53: #{fashion_mnist_model_v2.1} parent=11 // pred_check
          %p393 = pneg %p280
        $region54: #{fashion_mnist_model_v2.1} parent=11 // pred_check_branch
          %395 = sbr.rel (%p393) target = $region56
        $region55: #{fashion_mnist_model_v2.1} parent=11 // pred_region
          _
        $region56: #{fashion_mnist_model_v2.1} parent=11 // pred_fallthru
          _
        // Predicated region
        $region57: #{fashion_mnist_model_v2.1} parent=11 // pred_check
          %p396 = pneg %p301
        $region58: #{fashion_mnist_model_v2.1} parent=11 // pred_check_branch
          %398 = sbr.rel (%p396) target = $region60
        $region59: #{fashion_mnist_model_v2.1} parent=11 // pred_region
          _
        $region60: #{fashion_mnist_model_v2.1} parent=11 // pred_fallthru
          _
        // Predicated region
        $region61: #{fashion_mnist_model_v2.1} parent=11 // pred_check
          %p399 = pneg %p322
        $region62: #{fashion_mnist_model_v2.1} parent=11 // pred_check_branch
          %401 = sbr.rel (%p399) target = $region64
        $region63: #{fashion_mnist_model_v2.1} parent=11 // pred_region
          _
        $region64: #{fashion_mnist_model_v2.1} parent=11 // pred_fallthru
          _
      $region12: #{fashion_mnist_model_v2.1} parent=5 // pred_fallthru
        _
      %p402 = scmp.lt.s32.totalorder %s23, 2
      // Predicated region
      $region65: #{fashion_mnist_model_v2.1} parent=5 // pred_check
        %p403 = pneg %p402
      $region66: #{fashion_mnist_model_v2.1} parent=5 // pred_check_branch
        %405 = sbr.rel (%p403) target = $region68
      $region67: #{fashion_mnist_model_v2.1} parent=5 // pred_region
        // Predicated region
        $region69: #{fashion_mnist_model_v2.1} parent=67 // pred_check
          %p406 = pneg %p43
        $region70: #{fashion_mnist_model_v2.1} parent=67 // pred_check_branch
          %408 = sbr.rel (%p406) target = $region72
        $region71: #{fashion_mnist_model_v2.1} parent=67 // pred_region
          %p409 = scmp.lt.s32.totalorder %s23, 1
          %s410 = scalar_select %p409, %s23, 1
          %s411 = smul.addr %s410, 10
          %s412 = scalar_lea.vmem %s0, %s411
        $region72: #{fashion_mnist_model_v2.1} parent=67 // pred_fallthru
          _
      $region68: #{fashion_mnist_model_v2.1} parent=5 // pred_fallthru
        _
      %p413 = scmp.le.s32.totalorder 1, %s23
      %p414 = scmp.lt.s32.totalorder %s23, 3
      %p415 = pnand %p413, %p414
      %p416 = pneg %p415
      // Predicated region
      $region73: #{fashion_mnist_model_v2.1} parent=5 // pred_check
        _
      $region74: #{fashion_mnist_model_v2.1} parent=5 // pred_check_branch
        %418 = sbr.rel (%p415) target = $region76
      $region75: #{fashion_mnist_model_v2.1} parent=5 // pred_region
        %s419 = ssub.s32 %s23, 1
        %p420 = scmp.lt.s32.totalorder %s28, 1
        %s421 = scalar_select %p420, %s28, 1
        %s422 = smul.addr %s421, 10
        %s423 = scalar_lea.vmem %s0, %s422
        %p424 = pneg %p49
        %p425 = pneg %p46
        %p426 = pneg %p70
        %p427 = pneg %p67
        %p428 = pneg %p91
        %p429 = pneg %p88
        %p430 = pneg %p112
        %p431 = pneg %p109
        %p432 = pneg %p133
        %p433 = pneg %p130
        %p434 = pneg %p154
        %p435 = pneg %p151
        %p436 = pneg %p175
        %p437 = pneg %p172
        %p438 = pneg %p196
        %p439 = pneg %p193
        %p440 = pneg %p217
        %p441 = pneg %p214
        %p442 = pneg %p238
        %p443 = pneg %p235
        %p444 = pneg %p259
        %p445 = pneg %p256
        %p446 = pneg %p280
        %p447 = pneg %p277
        %p448 = pneg %p301
        %p449 = pneg %p298
        %p450 = pneg %p322
        %p451 = pneg %p319
        %p452 = pneg %p348
        %p453 = pneg %p345
        %s454 = sand.u32 %s335, 1
        %s455 = scalar_lea.sflag [#allocation6], %s454
        %s456 = sand.u32 %s335, 1
        %s457 = scalar_lea.vmem [#allocation5], %s456
        %p458 = scmp.lt.s32.totalorder %s28, 1
        %s459 = scalar_select %p458, %s28, 1
        %s460 = smul.addr %s459, 10
        %s461 = scalar_lea.vmem %s0, %s460
        %463 = vst [vmem:[#allocation2] sm:$0xff] 0
        %464 = vst [vmem:[#allocation2 + $0x8] sm:$0xff] 0
        %465 = vst [vmem:[#allocation2 + $0x10] sm:$0xff] 0
        %466 = vst [vmem:[#allocation2 + $0x18] sm:$0xff] 0
        %vm467 = vcmask 1043456
        %vm468 = vcmask 31748
        %vm469 = vmor %vm468, %vm467
        %470 = vst.msk [vmem:[#allocation2 + $0x20] sm:$0xff] %vm469, 0
        %471 = vst [vmem:[#allocation4] sm:$0xff] 0
        %472 = vst [vmem:[#allocation4 + $0x8] sm:$0xff] 0
        %v473 = vld [vmem:[%s5] sm:$0xff]
        %v474 = vld [vmem:[%s11] sm:$0x3]
        %v475 = vld [vmem:[%s461] sm:$0xff]
        %v476 = vld [vmem:[%s1] sm:$0xf]
        %v477 = vunpack.c.l.bf16 %v476
        %v478 = vunpack.c.l.bf16 %v475
        %v479 = vunpack.c.h.bf16 %v475
        %481 = vset.pattern.permute.xlu0 0
        %482 = vperm.xlu0 %481, %v477
        %v483 = vpop.permute.xlu0 %482
        %v487 = vlaneseq
        %v488 = vshrl.u32 %v487, 7
        %v489 = vsub.s32 0, %v488
        %v490 = vrot.slane %v478, %v489
        %v491 = vlaneseq
        %v492 = vshrl.u32 %v491, 7
        %v493 = vsub.s32 2, %v492
        %v494 = vrot.slane %v478, %v493
        %v495 = vlaneseq
        %v496 = vshrl.u32 %v495, 7
        %v497 = vsub.s32 4, %v496
        %v498 = vrot.slane %v478, %v497
        %v499 = vlaneseq
        %v500 = vshrl.u32 %v499, 7
        %v501 = vsub.s32 6, %v500
        %v502 = vrot.slane %v478, %v501
        %v503 = vlaneseq
        %v504 = vshrl.u32 %v503, 7
        %v505 = vsub.s32 0, %v504
        %v506 = vrot.slane %v479, %v505
        %v507 = vlaneseq
        %v508 = vshrl.u32 %v507, 7
        %v509 = vsub.s32 2, %v508
        %v510 = vrot.slane %v479, %v509
        %v511 = vlaneseq
        %v512 = vshrl.u32 %v511, 7
        %v513 = vsub.s32 4, %v512
        %v514 = vrot.slane %v479, %v513
        %v515 = vlaneseq
        %v516 = vshrl.u32 %v515, 7
        %v517 = vsub.s32 6, %v516
        %v518 = vrot.slane %v479, %v517
        %v527 = vlaneseq
        %v528 = vshrl.u32 %v527, 7
        %v529 = vsub.s32 0, %v528
        %v530 = vrot.slane %v490, %v529
        %v531 = vlaneseq
        %v532 = vshrl.u32 %v531, 7
        %v533 = vsub.s32 0, %v532
        %v534 = vrot.slane %v494, %v533
        %v535 = vlaneseq
        %v536 = vshrl.u32 %v535, 7
        %v537 = vsub.s32 0, %v536
        %v538 = vrot.slane %v498, %v537
        %v539 = vlaneseq
        %v540 = vshrl.u32 %v539, 7
        %v541 = vsub.s32 0, %v540
        %v542 = vrot.slane %v502, %v541
        %v543 = vlaneseq
        %v544 = vshrl.u32 %v543, 7
        %v545 = vsub.s32 0, %v544
        %v546 = vrot.slane %v506, %v545
        %v547 = vlaneseq
        %v548 = vshrl.u32 %v547, 7
        %v549 = vsub.s32 0, %v548
        %v550 = vrot.slane %v510, %v549
        %v551 = vlaneseq
        %v552 = vshrl.u32 %v551, 7
        %v553 = vsub.s32 0, %v552
        %v554 = vrot.slane %v514, %v553
        %v555 = vlaneseq
        %v556 = vshrl.u32 %v555, 7
        %v557 = vsub.s32 0, %v556
        %v558 = vrot.slane %v518, %v557
        %v559 = vmul.f32 %v483, %v530
        %v560 = vmul.f32 %v483, %v534
        %v561 = vmul.f32 %v483, %v538
        %v562 = vmul.f32 %v483, %v542
        %v563 = vmul.f32 %v483, %v546
        %v564 = vmul.f32 %v483, %v550
        %v565 = vmul.f32 %v483, %v554
        %v566 = vmul.f32 %v483, %v558
        %s567 = scalar_lea.vmem %s1, 4
        %v568 = vld [vmem:[%s567] sm:$0xf]
        %v569 = vunpack.c.l.bf16 %v568
        %571 = vset.pattern.permute.xlu0 0
        %572 = vperm.xlu0 %571, %v569
        %v573 = vpop.permute.xlu0 %572
        %v575 = vmul.f32 %v573, %v530
        %v576 = vmul.f32 %v573, %v534
        %v577 = vmul.f32 %v573, %v538
        %v578 = vmul.f32 %v573, %v542
        %v579 = vmul.f32 %v573, %v546
        %v580 = vmul.f32 %v573, %v550
        %v581 = vmul.f32 %v573, %v554
        %v582 = vmul.f32 %v573, %v558
        %591 = vrot.lane.b32.xlu0 %v575, 127
        %v592 = vpop.permute.xlu0 %591
        %593 = vrot.lane.b32.xlu0 %v576, 127
        %v594 = vpop.permute.xlu0 %593
        %595 = vrot.lane.b32.xlu0 %v577, 127
        %v596 = vpop.permute.xlu0 %595
        %597 = vrot.lane.b32.xlu0 %v578, 127
        %v598 = vpop.permute.xlu0 %597
        %599 = vrot.lane.b32.xlu0 %v579, 127
        %v600 = vpop.permute.xlu0 %599
        %601 = vrot.lane.b32.xlu0 %v580, 127
        %v602 = vpop.permute.xlu0 %601
        %603 = vrot.lane.b32.xlu0 %v581, 127
        %v604 = vpop.permute.xlu0 %603
        %605 = vrot.lane.b32.xlu0 %v582, 127
        %v606 = vpop.permute.xlu0 %605
        %vm607 = vcmask 1039360
        %v608 = vsel %vm607, %v592, %v594
        %v609 = vsel %vm607, %v594, %v596
        %v610 = vsel %vm607, %v596, %v598
        %v611 = vsel %vm607, %v598, %v600
        %v612 = vsel %vm607, %v600, %v602
        %v613 = vsel %vm607, %v602, %v604
        %v614 = vsel %vm607, %v604, %v606
        %v623 = vadd.f32 %v559, %v608
        %v624 = vadd.f32 %v560, %v609
        %v625 = vadd.f32 %v561, %v610
        %v626 = vadd.f32 %v562, %v611
        %v627 = vadd.f32 %v563, %v612
        %v628 = vadd.f32 %v564, %v613
        %v629 = vadd.f32 %v565, %v614
        %v630 = vadd.f32 %v566, %v606
        %s631 = scalar_lea.vmem %s1, 8
        %v632 = vld [vmem:[%s631] sm:$0xf]
        %v633 = vunpack.c.l.bf16 %v632
        %635 = vset.pattern.permute.xlu0 0
        %636 = vperm.xlu0 %635, %v633
        %v637 = vpop.permute.xlu0 %636
        %v639 = vmul.f32 %v637, %v530
        %v640 = vmul.f32 %v637, %v534
        %v641 = vmul.f32 %v637, %v538
        %v642 = vmul.f32 %v637, %v542
        %v643 = vmul.f32 %v637, %v546
        %v644 = vmul.f32 %v637, %v550
        %v645 = vmul.f32 %v637, %v554
        %v646 = vmul.f32 %v637, %v558
        %655 = vrot.lane.b32.xlu0 %v639, 126
        %v656 = vpop.permute.xlu0 %655
        %657 = vrot.lane.b32.xlu0 %v640, 126
        %v658 = vpop.permute.xlu0 %657
        %659 = vrot.lane.b32.xlu0 %v641, 126
        %v660 = vpop.permute.xlu0 %659
        %661 = vrot.lane.b32.xlu0 %v642, 126
        %v662 = vpop.permute.xlu0 %661
        %663 = vrot.lane.b32.xlu0 %v643, 126
        %v664 = vpop.permute.xlu0 %663
        %665 = vrot.lane.b32.xlu0 %v644, 126
        %v666 = vpop.permute.xlu0 %665
        %667 = vrot.lane.b32.xlu0 %v645, 126
        %v668 = vpop.permute.xlu0 %667
        %669 = vrot.lane.b32.xlu0 %v646, 126
        %v670 = vpop.permute.xlu0 %669
        %vm671 = vcmask 1031168
        %v672 = vsel %vm671, %v656, %v658
        %v673 = vsel %vm671, %v658, %v660
        %v674 = vsel %vm671, %v660, %v662
        %v675 = vsel %vm671, %v662, %v664
        %v676 = vsel %vm671, %v664, %v666
        %v677 = vsel %vm671, %v666, %v668
        %v678 = vsel %vm671, %v668, %v670
        %v687 = vadd.f32 %v623, %v672
        %v688 = vadd.f32 %v624, %v673
        %v689 = vadd.f32 %v625, %v674
        %v690 = vadd.f32 %v626, %v675
        %v691 = vadd.f32 %v627, %v676
        %v692 = vadd.f32 %v628, %v677
        %v693 = vadd.f32 %v629, %v678
        %v694 = vadd.f32 %v630, %v670
        %v695 = vld [vmem:[%s461] sm:$0xff]
        %v696 = vld [vmem:[%s461 + $0x8] sm:$0x1]
        %s697 = scalar_lea.vmem %s1, 12
        %v698 = vld [vmem:[%s697] sm:$0xf]
        %v699 = vunpack.c.l.bf16 %v698
        %v700 = vunpack.c.l.bf16 %v695
        %v701 = vunpack.c.h.bf16 %v695
        %v702 = vunpack.c.l.bf16 %v696
        %704 = vset.pattern.permute.xlu0 0
        %705 = vperm.xlu0 %704, %v699
        %v706 = vpop.permute.xlu0 %705
        %v711 = vlaneseq
        %v712 = vshrl.u32 %v711, 7
        %v713 = vsub.s32 0, %v712
        %v714 = vrot.slane %v700, %v713
        %v715 = vlaneseq
        %v716 = vshrl.u32 %v715, 7
        %v717 = vsub.s32 2, %v716
        %v718 = vrot.slane %v700, %v717
        %v719 = vlaneseq
        %v720 = vshrl.u32 %v719, 7
        %v721 = vsub.s32 4, %v720
        %v722 = vrot.slane %v700, %v721
        %v723 = vlaneseq
        %v724 = vshrl.u32 %v723, 7
        %v725 = vsub.s32 6, %v724
        %v726 = vrot.slane %v700, %v725
        %v727 = vlaneseq
        %v728 = vshrl.u32 %v727, 7
        %v729 = vsub.s32 0, %v728
        %v730 = vrot.slane %v701, %v729
        %v731 = vlaneseq
        %v732 = vshrl.u32 %v731, 7
        %v733 = vsub.s32 2, %v732
        %v734 = vrot.slane %v701, %v733
        %v735 = vlaneseq
        %v736 = vshrl.u32 %v735, 7
        %v737 = vsub.s32 4, %v736
        %v738 = vrot.slane %v701, %v737
        %v739 = vlaneseq
        %v740 = vshrl.u32 %v739, 7
        %v741 = vsub.s32 6, %v740
        %v742 = vrot.slane %v701, %v741
        %v743 = vlaneseq
        %v744 = vshrl.u32 %v743, 7
        %v745 = vsub.s32 0, %v744
        %v746 = vrot.slane %v702, %v745
        %v756 = vlaneseq
        %v757 = vshrl.u32 %v756, 7
        %v758 = vsub.s32 0, %v757
        %v759 = vrot.slane %v714, %v758
        %v760 = vlaneseq
        %v761 = vshrl.u32 %v760, 7
        %v762 = vsub.s32 0, %v761
        %v763 = vrot.slane %v718, %v762
        %v764 = vlaneseq
        %v765 = vshrl.u32 %v764, 7
        %v766 = vsub.s32 0, %v765
        %v767 = vrot.slane %v722, %v766
        %v768 = vlaneseq
        %v769 = vshrl.u32 %v768, 7
        %v770 = vsub.s32 0, %v769
        %v771 = vrot.slane %v726, %v770
        %v772 = vlaneseq
        %v773 = vshrl.u32 %v772, 7
        %v774 = vsub.s32 0, %v773
        %v775 = vrot.slane %v730, %v774
        %v776 = vlaneseq
        %v777 = vshrl.u32 %v776, 7
        %v778 = vsub.s32 0, %v777
        %v779 = vrot.slane %v734, %v778
        %v780 = vlaneseq
        %v781 = vshrl.u32 %v780, 7
        %v782 = vsub.s32 0, %v781
        %v783 = vrot.slane %v738, %v782
        %v784 = vlaneseq
        %v785 = vshrl.u32 %v784, 7
        %v786 = vsub.s32 0, %v785
        %v787 = vrot.slane %v742, %v786
        %v788 = vlaneseq
        %v789 = vshrl.u32 %v788, 7
        %v790 = vsub.s32 0, %v789
        %v791 = vrot.slane %v746, %v790
        %v792 = vmul.f32 %v706, %v759
        %v793 = vmul.f32 %v706, %v763
        %v794 = vmul.f32 %v706, %v767
        %v795 = vmul.f32 %v706, %v771
        %v796 = vmul.f32 %v706, %v775
        %v797 = vmul.f32 %v706, %v779
        %v798 = vmul.f32 %v706, %v783
        %v799 = vmul.f32 %v706, %v787
        %v800 = vmul.f32 %v706, %v791
        %810 = vrot.lane.b32.xlu0 %v792, 98
        %v811 = vpop.permute.xlu0 %810
        %812 = vrot.lane.b32.xlu0 %v793, 98
        %v813 = vpop.permute.xlu0 %812
        %814 = vrot.lane.b32.xlu0 %v794, 98
        %v815 = vpop.permute.xlu0 %814
        %816 = vrot.lane.b32.xlu0 %v795, 98
        %v817 = vpop.permute.xlu0 %816
        %818 = vrot.lane.b32.xlu0 %v796, 98
        %v819 = vpop.permute.xlu0 %818
        %820 = vrot.lane.b32.xlu0 %v797, 98
        %v821 = vpop.permute.xlu0 %820
        %822 = vrot.lane.b32.xlu0 %v798, 98
        %v823 = vpop.permute.xlu0 %822
        %824 = vrot.lane.b32.xlu0 %v799, 98
        %v825 = vpop.permute.xlu0 %824
        %826 = vrot.lane.b32.xlu0 %v800, 98
        %v827 = vpop.permute.xlu0 %826
        %vm828 = vcmask 801792
        %v829 = vsel %vm828, %v811, %v813
        %v830 = vsel %vm828, %v813, %v815
        %v831 = vsel %vm828, %v815, %v817
        %v832 = vsel %vm828, %v817, %v819
        %v833 = vsel %vm828, %v819, %v821
        %v834 = vsel %vm828, %v821, %v823
        %v835 = vsel %vm828, %v823, %v825
        %v836 = vsel %vm828, %v825, %v827
        %v845 = vadd.f32 %v687, %v829
        %v846 = vadd.f32 %v688, %v830
        %v847 = vadd.f32 %v689, %v831
        %v848 = vadd.f32 %v690, %v832
        %v849 = vadd.f32 %v691, %v833
        %v850 = vadd.f32 %v692, %v834
        %v851 = vadd.f32 %v693, %v835
        %v852 = vadd.f32 %v694, %v836
        %v853 = vld [vmem:[%s461 + $0x1] sm:$0xff]
        %s854 = scalar_lea.vmem %s1, 16
        %v855 = vld [vmem:[%s854] sm:$0xf]
        %v856 = vunpack.c.l.bf16 %v855
        %v857 = vunpack.c.l.bf16 %v853
        %v858 = vunpack.c.h.bf16 %v853
        %860 = vset.pattern.permute.xlu0 0
        %861 = vperm.xlu0 %860, %v856
        %v862 = vpop.permute.xlu0 %861
        %v866 = vlaneseq
        %v867 = vshrl.u32 %v866, 7
        %v868 = vsub.s32 0, %v867
        %v869 = vrot.slane %v857, %v868
        %v870 = vlaneseq
        %v871 = vshrl.u32 %v870, 7
        %v872 = vsub.s32 2, %v871
        %v873 = vrot.slane %v857, %v872
        %v874 = vlaneseq
        %v875 = vshrl.u32 %v874, 7
        %v876 = vsub.s32 4, %v875
        %v877 = vrot.slane %v857, %v876
        %v878 = vlaneseq
        %v879 = vshrl.u32 %v878, 7
        %v880 = vsub.s32 6, %v879
        %v881 = vrot.slane %v857, %v880
        %v882 = vlaneseq
        %v883 = vshrl.u32 %v882, 7
        %v884 = vsub.s32 0, %v883
        %v885 = vrot.slane %v858, %v884
        %v886 = vlaneseq
        %v887 = vshrl.u32 %v886, 7
        %v888 = vsub.s32 2, %v887
        %v889 = vrot.slane %v858, %v888
        %v890 = vlaneseq
        %v891 = vshrl.u32 %v890, 7
        %v892 = vsub.s32 4, %v891
        %v893 = vrot.slane %v858, %v892
        %v894 = vlaneseq
        %v895 = vshrl.u32 %v894, 7
        %v896 = vsub.s32 6, %v895
        %v897 = vrot.slane %v858, %v896
        %v906 = vlaneseq
        %v907 = vshrl.u32 %v906, 7
        %v908 = vsub.s32 0, %v907
        %v909 = vrot.slane %v869, %v908
        %v910 = vlaneseq
        %v911 = vshrl.u32 %v910, 7
        %v912 = vsub.s32 0, %v911
        %v913 = vrot.slane %v873, %v912
        %v914 = vlaneseq
        %v915 = vshrl.u32 %v914, 7
        %v916 = vsub.s32 0, %v915
        %v917 = vrot.slane %v877, %v916
        %v918 = vlaneseq
        %v919 = vshrl.u32 %v918, 7
        %v920 = vsub.s32 0, %v919
        %v921 = vrot.slane %v881, %v920
        %v922 = vlaneseq
        %v923 = vshrl.u32 %v922, 7
        %v924 = vsub.s32 0, %v923
        %v925 = vrot.slane %v885, %v924
        %v926 = vlaneseq
        %v927 = vshrl.u32 %v926, 7
        %v928 = vsub.s32 0, %v927
        %v929 = vrot.slane %v889, %v928
        %v930 = vlaneseq
        %v931 = vshrl.u32 %v930, 7
        %v932 = vsub.s32 0, %v931
        %v933 = vrot.slane %v893, %v932
        %v934 = vlaneseq
        %v935 = vshrl.u32 %v934, 7
        %v936 = vsub.s32 0, %v935
        %v937 = vrot.slane %v897, %v936
        %v938 = vmul.f32 %v862, %v909
        %v939 = vmul.f32 %v862, %v913
        %v940 = vmul.f32 %v862, %v917
        %v941 = vmul.f32 %v862, %v921
        %v942 = vmul.f32 %v862, %v925
        %v943 = vmul.f32 %v862, %v929
        %v944 = vmul.f32 %v862, %v933
        %v945 = vmul.f32 %v862, %v937
        %954 = vrot.lane.b32.xlu0 %v938, 97
        %v955 = vpop.permute.xlu0 %954
        %956 = vrot.lane.b32.xlu0 %v939, 97
        %v957 = vpop.permute.xlu0 %956
        %958 = vrot.lane.b32.xlu0 %v940, 97
        %v959 = vpop.permute.xlu0 %958
        %960 = vrot.lane.b32.xlu0 %v941, 97
        %v961 = vpop.permute.xlu0 %960
        %962 = vrot.lane.b32.xlu0 %v942, 97
        %v963 = vpop.permute.xlu0 %962
        %964 = vrot.lane.b32.xlu0 %v943, 97
        %v965 = vpop.permute.xlu0 %964
        %966 = vrot.lane.b32.xlu0 %v944, 97
        %v967 = vpop.permute.xlu0 %966
        %968 = vrot.lane.b32.xlu0 %v945, 97
        %v969 = vpop.permute.xlu0 %968
        %vm970 = vcmask 793600
        %v971 = vsel %vm970, %v955, %v957
        %v972 = vsel %vm970, %v957, %v959
        %v973 = vsel %vm970, %v959, %v961
        %v974 = vsel %vm970, %v961, %v963
        %v975 = vsel %vm970, %v963, %v965
        %v976 = vsel %vm970, %v965, %v967
        %v977 = vsel %vm970, %v967, %v969
        %v986 = vadd.f32 %v845, %v955
        %v987 = vadd.f32 %v846, %v971
        %v988 = vadd.f32 %v847, %v972
        %v989 = vadd.f32 %v848, %v973
        %v990 = vadd.f32 %v849, %v974
        %v991 = vadd.f32 %v850, %v975
        %v992 = vadd.f32 %v851, %v976
        %v993 = vadd.f32 %v852, %v977
        %s994 = scalar_lea.vmem %s1, 20
        %v995 = vld [vmem:[%s994] sm:$0xf]
        %v996 = vunpack.c.l.bf16 %v995
        %998 = vset.pattern.permute.xlu0 0
        %999 = vperm.xlu0 %998, %v996
        %v1000 = vpop.permute.xlu0 %999
        %v1002 = vmul.f32 %v1000, %v909
        %v1003 = vmul.f32 %v1000, %v913
        %v1004 = vmul.f32 %v1000, %v917
        %v1005 = vmul.f32 %v1000, %v921
        %v1006 = vmul.f32 %v1000, %v925
        %v1007 = vmul.f32 %v1000, %v929
        %v1008 = vmul.f32 %v1000, %v933
        %v1009 = vmul.f32 %v1000, %v937
        %1018 = vrot.lane.b32.xlu0 %v1002, 96
        %v1019 = vpop.permute.xlu0 %1018
        %1020 = vrot.lane.b32.xlu0 %v1003, 96
        %v1021 = vpop.permute.xlu0 %1020
        %1022 = vrot.lane.b32.xlu0 %v1004, 96
        %v1023 = vpop.permute.xlu0 %1022
        %1024 = vrot.lane.b32.xlu0 %v1005, 96
        %v1025 = vpop.permute.xlu0 %1024
        %1026 = vrot.lane.b32.xlu0 %v1006, 96
        %v1027 = vpop.permute.xlu0 %1026
        %1028 = vrot.lane.b32.xlu0 %v1007, 96
        %v1029 = vpop.permute.xlu0 %1028
        %1030 = vrot.lane.b32.xlu0 %v1008, 96
        %v1031 = vpop.permute.xlu0 %1030
        %1032 = vrot.lane.b32.xlu0 %v1009, 96
        %v1033 = vpop.permute.xlu0 %1032
        %vm1034 = vcmask 785408
        %v1035 = vsel %vm1034, %v1019, %v1021
        %v1036 = vsel %vm1034, %v1021, %v1023
        %v1037 = vsel %vm1034, %v1023, %v1025
        %v1038 = vsel %vm1034, %v1025, %v1027
        %v1039 = vsel %vm1034, %v1027, %v1029
        %v1040 = vsel %vm1034, %v1029, %v1031
        %v1041 = vsel %vm1034, %v1031, %v1033
        %v1050 = vadd.f32 %v986, %v1019
        %v1051 = vadd.f32 %v987, %v1035
        %v1052 = vadd.f32 %v988, %v1036
        %v1053 = vadd.f32 %v989, %v1037
        %v1054 = vadd.f32 %v990, %v1038
        %v1055 = vadd.f32 %v991, %v1039
        %v1056 = vadd.f32 %v992, %v1040
        %v1057 = vadd.f32 %v993, %v1041
        %s1058 = scalar_lea.vmem %s1, 24
        %v1059 = vld [vmem:[%s1058] sm:$0xf]
        %v1060 = vunpack.c.l.bf16 %v1059
        %1062 = vset.pattern.permute.xlu0 0
        %1063 = vperm.xlu0 %1062, %v1060
        %v1064 = vpop.permute.xlu0 %1063
        %v1066 = vmul.f32 %v1064, %v909
        %v1067 = vmul.f32 %v1064, %v913
        %v1068 = vmul.f32 %v1064, %v917
        %v1069 = vmul.f32 %v1064, %v921
        %v1070 = vmul.f32 %v1064, %v925
        %v1071 = vmul.f32 %v1064, %v929
        %v1072 = vmul.f32 %v1064, %v933
        %v1073 = vmul.f32 %v1064, %v937
        %1082 = vrot.lane.b32.xlu0 %v1066, 68
        %v1083 = vpop.permute.xlu0 %1082
        %1084 = vrot.lane.b32.xlu0 %v1067, 68
        %v1085 = vpop.permute.xlu0 %1084
        %1086 = vrot.lane.b32.xlu0 %v1068, 68
        %v1087 = vpop.permute.xlu0 %1086
        %1088 = vrot.lane.b32.xlu0 %v1069, 68
        %v1089 = vpop.permute.xlu0 %1088
        %1090 = vrot.lane.b32.xlu0 %v1070, 68
        %v1091 = vpop.permute.xlu0 %1090
        %1092 = vrot.lane.b32.xlu0 %v1071, 68
        %v1093 = vpop.permute.xlu0 %1092
        %1094 = vrot.lane.b32.xlu0 %v1072, 68
        %v1095 = vpop.permute.xlu0 %1094
        %1096 = vrot.lane.b32.xlu0 %v1073, 68
        %v1097 = vpop.permute.xlu0 %1096
        %vm1098 = vcmask 556032
        %v1099 = vsel %vm1098, %v1083, %v1085
        %v1100 = vsel %vm1098, %v1085, %v1087
        %v1101 = vsel %vm1098, %v1087, %v1089
        %v1102 = vsel %vm1098, %v1089, %v1091
        %v1103 = vsel %vm1098, %v1091, %v1093
        %v1104 = vsel %vm1098, %v1093, %v1095
        %v1105 = vsel %vm1098, %v1095, %v1097
        %v1114 = vadd.f32 %v1050, %v1083
        %v1115 = vadd.f32 %v1051, %v1099
        %v1116 = vadd.f32 %v1052, %v1100
        %v1117 = vadd.f32 %v1053, %v1101
        %v1118 = vadd.f32 %v1054, %v1102
        %v1119 = vadd.f32 %v1055, %v1103
        %v1120 = vadd.f32 %v1056, %v1104
        %v1121 = vadd.f32 %v1057, %v1105
        %s1122 = scalar_lea.vmem %s1, 28
        %v1123 = vld [vmem:[%s1122] sm:$0xf]
        %v1124 = vunpack.c.l.bf16 %v1123
        %1126 = vset.pattern.permute.xlu0 0
        %1127 = vperm.xlu0 %1126, %v1124
        %v1128 = vpop.permute.xlu0 %1127
        %v1130 = vmul.f32 %v1128, %v909
        %v1131 = vmul.f32 %v1128, %v913
        %v1132 = vmul.f32 %v1128, %v917
        %v1133 = vmul.f32 %v1128, %v921
        %v1134 = vmul.f32 %v1128, %v925
        %v1135 = vmul.f32 %v1128, %v929
        %v1136 = vmul.f32 %v1128, %v933
        %v1137 = vmul.f32 %v1128, %v937
        %1146 = vrot.lane.b32.xlu0 %v1130, 67
        %v1147 = vpop.permute.xlu0 %1146
        %1148 = vrot.lane.b32.xlu0 %v1131, 67
        %v1149 = vpop.permute.xlu0 %1148
        %1150 = vrot.lane.b32.xlu0 %v1132, 67
        %v1151 = vpop.permute.xlu0 %1150
        %1152 = vrot.lane.b32.xlu0 %v1133, 67
        %v1153 = vpop.permute.xlu0 %1152
        %1154 = vrot.lane.b32.xlu0 %v1134, 67
        %v1155 = vpop.permute.xlu0 %1154
        %1156 = vrot.lane.b32.xlu0 %v1135, 67
        %v1157 = vpop.permute.xlu0 %1156
        %1158 = vrot.lane.b32.xlu0 %v1136, 67
        %v1159 = vpop.permute.xlu0 %1158
        %1160 = vrot.lane.b32.xlu0 %v1137, 67
        %v1161 = vpop.permute.xlu0 %1160
        %vm1162 = vcmask 547840
        %v1163 = vsel %vm1162, %v1147, %v1149
        %v1164 = vsel %vm1162, %v1149, %v1151
        %v1165 = vsel %vm1162, %v1151, %v1153
        %v1166 = vsel %vm1162, %v1153, %v1155
        %v1167 = vsel %vm1162, %v1155, %v1157
        %v1168 = vsel %vm1162, %v1157, %v1159
        %v1169 = vsel %vm1162, %v1159, %v1161
        %v1178 = vadd.f32 %v1114, %v1147
        %v1179 = vadd.f32 %v1115, %v1163
        %v1180 = vadd.f32 %v1116, %v1164
        %v1181 = vadd.f32 %v1117, %v1165
        %v1182 = vadd.f32 %v1118, %v1166
        %v1183 = vadd.f32 %v1119, %v1167
        %v1184 = vadd.f32 %v1120, %v1168
        %v1185 = vadd.f32 %v1121, %v1169
        %s1186 = scalar_lea.vmem %s1, 32
        %v1187 = vld [vmem:[%s1186] sm:$0xf]
        %v1188 = vunpack.c.l.bf16 %v1187
        %1190 = vset.pattern.permute.xlu0 0
        %1191 = vperm.xlu0 %1190, %v1188
        %v1192 = vpop.permute.xlu0 %1191
        %v1194 = vmul.f32 %v1192, %v909
        %v1195 = vmul.f32 %v1192, %v913
        %v1196 = vmul.f32 %v1192, %v917
        %v1197 = vmul.f32 %v1192, %v921
        %v1198 = vmul.f32 %v1192, %v925
        %v1199 = vmul.f32 %v1192, %v929
        %v1200 = vmul.f32 %v1192, %v933
        %v1201 = vmul.f32 %v1192, %v937
        %1210 = vrot.lane.b32.xlu0 %v1194, 66
        %v1211 = vpop.permute.xlu0 %1210
        %1212 = vrot.lane.b32.xlu0 %v1195, 66
        %v1213 = vpop.permute.xlu0 %1212
        %1214 = vrot.lane.b32.xlu0 %v1196, 66
        %v1215 = vpop.permute.xlu0 %1214
        %1216 = vrot.lane.b32.xlu0 %v1197, 66
        %v1217 = vpop.permute.xlu0 %1216
        %1218 = vrot.lane.b32.xlu0 %v1198, 66
        %v1219 = vpop.permute.xlu0 %1218
        %1220 = vrot.lane.b32.xlu0 %v1199, 66
        %v1221 = vpop.permute.xlu0 %1220
        %1222 = vrot.lane.b32.xlu0 %v1200, 66
        %v1223 = vpop.permute.xlu0 %1222
        %1224 = vrot.lane.b32.xlu0 %v1201, 66
        %v1225 = vpop.permute.xlu0 %1224
        %vm1226 = vcmask 539648
        %v1227 = vsel %vm1226, %v1211, %v1213
        %v1228 = vsel %vm1226, %v1213, %v1215
        %v1229 = vsel %vm1226, %v1215, %v1217
        %v1230 = vsel %vm1226, %v1217, %v1219
        %v1231 = vsel %vm1226, %v1219, %v1221
        %v1232 = vsel %vm1226, %v1221, %v1223
        %v1233 = vsel %vm1226, %v1223, %v1225
        %v1242 = vadd.f32 %v1178, %v1211
        %v1243 = vadd.f32 %v1179, %v1227
        %v1244 = vadd.f32 %v1180, %v1228
        %v1245 = vadd.f32 %v1181, %v1229
        %v1246 = vadd.f32 %v1182, %v1230
        %v1247 = vadd.f32 %v1183, %v1231
        %v1248 = vadd.f32 %v1184, %v1232
        %v1249 = vadd.f32 %v1185, %v1233
        %v1250 = vld [vmem:[%s2] sm:$0xff]
        %1252 = vset.pattern.permute.xlu0 0
        %1253 = vperm.xlu0 %1252, %v1250
        %v1254 = vpop.permute.xlu0 %1253
        %v1256 = vadd.f32 %v1242, %v1254
        %v1257 = vadd.f32 %v1243, %v1254
        %v1258 = vadd.f32 %v1244, %v1254
        %v1259 = vadd.f32 %v1245, %v1254
        %v1260 = vadd.f32 %v1246, %v1254
        %v1261 = vadd.f32 %v1247, %v1254
        %v1262 = vadd.f32 %v1248, %v1254
        %v1263 = vadd.f32 %v1249, %v1254
        %v1264 = vmax.f32 %v1256, 0.0
        %v1265 = vmax.f32 %v1257, 0.0
        %v1266 = vmax.f32 %v1258, 0.0
        %v1267 = vmax.f32 %v1259, 0.0
        %v1268 = vmax.f32 %v1260, 0.0
        %v1269 = vmax.f32 %v1261, 0.0
        %v1270 = vmax.f32 %v1262, 0.0
        %v1271 = vmax.f32 %v1263, 0.0
        %v1273 = vlaneseq
        %v1274 = vshrl.u32 %v1273, 7
        %v1275 = vsub.s32 0, %v1274
        %v1276 = vrot.slane %v473, %v1275
        %v1277 = vlaneseq
        %v1278 = vshrl.u32 %v1277, 7
        %v1279 = vsub.s32 1, %v1278
        %v1280 = vrot.slane %v473, %v1279
        %v1281 = vlaneseq
        %v1282 = vshrl.u32 %v1281, 7
        %v1283 = vsub.s32 2, %v1282
        %v1284 = vrot.slane %v473, %v1283
        %v1285 = vlaneseq
        %v1286 = vshrl.u32 %v1285, 7
        %v1287 = vsub.s32 3, %v1286
        %v1288 = vrot.slane %v473, %v1287
        %v1289 = vlaneseq
        %v1290 = vshrl.u32 %v1289, 7
        %v1291 = vsub.s32 4, %v1290
        %v1292 = vrot.slane %v473, %v1291
        %v1293 = vlaneseq
        %v1294 = vshrl.u32 %v1293, 7
        %v1295 = vsub.s32 5, %v1294
        %v1296 = vrot.slane %v473, %v1295
        %v1297 = vlaneseq
        %v1298 = vshrl.u32 %v1297, 7
        %v1299 = vsub.s32 6, %v1298
        %v1300 = vrot.slane %v473, %v1299
        %v1301 = vlaneseq
        %v1302 = vshrl.u32 %v1301, 7
        %v1303 = vsub.s32 7, %v1302
        %v1304 = vrot.slane %v473, %v1303
        %1313 = vrot.lane.b32.xlu0 %v1276, 97
        %v1314 = vpop.permute.xlu0 %1313
        %1315 = vrot.lane.b32.xlu0 %v1280, 97
        %v1316 = vpop.permute.xlu0 %1315
        %1317 = vrot.lane.b32.xlu0 %v1284, 97
        %v1318 = vpop.permute.xlu0 %1317
        %1319 = vrot.lane.b32.xlu0 %v1288, 97
        %v1320 = vpop.permute.xlu0 %1319
        %1321 = vrot.lane.b32.xlu0 %v1292, 97
        %v1322 = vpop.permute.xlu0 %1321
        %1323 = vrot.lane.b32.xlu0 %v1296, 97
        %v1324 = vpop.permute.xlu0 %1323
        %1325 = vrot.lane.b32.xlu0 %v1300, 97
        %v1326 = vpop.permute.xlu0 %1325
        %1327 = vrot.lane.b32.xlu0 %v1304, 97
        %v1328 = vpop.permute.xlu0 %1327
        %v1329 = vsel %vm970, %v1314, %v1316
        %v1330 = vsel %vm970, %v1316, %v1318
        %v1331 = vsel %vm970, %v1318, %v1320
        %v1332 = vsel %vm970, %v1320, %v1322
        %v1333 = vsel %vm970, %v1322, %v1324
        %v1334 = vsel %vm970, %v1324, %v1326
        %v1335 = vsel %vm970, %v1326, %v1328
        %v1344 = vmul.f32 %v1264, %v1314
        %v1345 = vmul.f32 %v1265, %v1329
        %v1346 = vmul.f32 %v1266, %v1330
        %v1347 = vmul.f32 %v1267, %v1331
        %v1348 = vmul.f32 %v1268, %v1332
        %v1349 = vmul.f32 %v1269, %v1333
        %v1350 = vmul.f32 %v1270, %v1334
        %v1351 = vmul.f32 %v1271, %v1335
        %v1352 = vpack.c.bf16 %v1344, %v1344
        %v1353 = vpack.c.bf16 %v1345, %v1345
        %v1354 = vpack.c.bf16 %v1346, %v1346
        %v1355 = vpack.c.bf16 %v1347, %v1347
        %v1356 = vpack.c.bf16 %v1348, %v1348
        %v1357 = vpack.c.bf16 %v1349, %v1349
        %v1358 = vpack.c.bf16 %v1350, %v1350
        %v1359 = vpack.c.bf16 %v1351, %v1351
        %v1368 = vunpack.c.l.b16 %v1352
        %v1369 = vunpack.c.l.b16 %v1353
        %v1370 = vunpack.c.l.b16 %v1354
        %v1371 = vunpack.c.l.b16 %v1355
        %v1372 = vunpack.c.l.b16 %v1356
        %v1373 = vunpack.c.l.b16 %v1357
        %v1374 = vunpack.c.l.b16 %v1358
        %v1375 = vunpack.c.l.b16 %v1359
        %v1376 = vpack.c.b16 %v1369, %v1368
        %v1377 = vpack.c.b16 %v1371, %v1370
        %v1378 = vpack.c.b16 %v1373, %v1372
        %v1379 = vpack.c.b16 %v1375, %v1374
        %1380 = vrot.lane.b32.xlu0 %v1376, 31
        %v1381 = vpop.permute.xlu0 %1380
        %1382 = vrot.lane.b32.xlu0 %v1377, 31
        %v1383 = vpop.permute.xlu0 %1382
        %1384 = vrot.lane.b32.xlu0 %v1378, 31
        %v1385 = vpop.permute.xlu0 %1384
        %1386 = vrot.lane.b32.xlu0 %v1379, 31
        %v1387 = vpop.permute.xlu0 %1386
        %v1388 = vrot.slane %v1381, 4
        %v1389 = vrot.slane %v1383, 4
        %v1390 = vrot.slane %v1385, 4
        %v1391 = vrot.slane %v1387, 4
        %vm1392 = vcmask 1043456
        %v1393 = vsel %vm1392, %v1388, %v1389
        %vm1394 = vcmask 252928
        %v1395 = vsel %vm1394, %v1381, %v1393
        %v1396 = vsel %vm1392, %v1389, %v1390
        %v1397 = vsel %vm1394, %v1383, %v1396
        %v1398 = vsel %vm1392, %v1390, %v1391
        %v1399 = vsel %vm1394, %v1385, %v1398
        %v1400 = vsel %vm1394, %v1387, %v1391
        %1405 = vst [vmem:[#allocation2 + $0x4] sm:$0xff] %v1395
        %1406 = vst [vmem:[#allocation2 + $0xc] sm:$0xff] %v1397
        %1407 = vst [vmem:[#allocation2 + $0x14] sm:$0xff] %v1399
        %1408 = vst.msk [vmem:[#allocation2 + $0x1c] sm:$0xff] %vm469, %v1400
        %v1409 = vld [vmem:[#allocation2] sm:$0xff]
        %v1410 = vld [vmem:[#allocation2 + $0x8] sm:$0xff]
        %v1411 = vld [vmem:[#allocation2 + $0x10] sm:$0xff]
        %v1412 = vld [vmem:[#allocation2 + $0x18] sm:$0xff]
        %v1413 = vld [vmem:[%s3] sm:$0xf]
        %s1414 = scalar_lea.vmem %s3, 4
        %v1415 = vld [vmem:[%s1414] sm:$0xf]
        %v1420 = vunpack.c.l.b16 %v1409
        %v1421 = vunpack.c.h.b16 %v1409
        %v1422 = vunpack.c.l.b16 %v1410
        %v1423 = vunpack.c.h.b16 %v1410
        %v1424 = vunpack.c.l.b16 %v1411
        %v1425 = vunpack.c.h.b16 %v1411
        %v1426 = vunpack.c.l.b16 %v1412
        %v1427 = vunpack.c.h.b16 %v1412
        %v1428 = vpack.c.b16 %v1420, %v1420
        %v1429 = vpack.c.b16 %v1421, %v1421
        %v1430 = vpack.c.b16 %v1422, %v1422
        %v1431 = vpack.c.b16 %v1423, %v1423
        %v1432 = vpack.c.b16 %v1424, %v1424
        %v1433 = vpack.c.b16 %v1425, %v1425
        %v1434 = vpack.c.b16 %v1426, %v1426
        %v1435 = vpack.c.b16 %v1427, %v1427
        %1436 = vrot.lane.b32.xlu0 %v1428, 30
        %v1437 = vpop.permute.xlu0 %1436
        %1438 = vrot.lane.b32.xlu0 %v1429, 30
        %v1439 = vpop.permute.xlu0 %1438
        %1440 = vrot.lane.b32.xlu0 %v1430, 30
        %v1441 = vpop.permute.xlu0 %1440
        %1442 = vrot.lane.b32.xlu0 %v1431, 30
        %v1443 = vpop.permute.xlu0 %1442
        %1444 = vrot.lane.b32.xlu0 %v1432, 30
        %v1445 = vpop.permute.xlu0 %1444
        %1446 = vrot.lane.b32.xlu0 %v1433, 30
        %v1447 = vpop.permute.xlu0 %1446
        %1448 = vrot.lane.b32.xlu0 %v1434, 30
        %v1449 = vpop.permute.xlu0 %1448
        %1450 = vrot.lane.b32.xlu0 %v1435, 30
        %v1451 = vpop.permute.xlu0 %1450
        %vm1452 = vcmask 244736
        %v1453 = vsel %vm1452, %v1437, %v1439
        %v1454 = vsel %vm1452, %v1439, %v1441
        %v1455 = vsel %vm1452, %v1441, %v1443
        %v1456 = vsel %vm1452, %v1443, %v1445
        %v1457 = vsel %vm1452, %v1445, %v1447
        %v1458 = vsel %vm1452, %v1447, %v1449
        %v1459 = vsel %vm1452, %v1449, %v1451
        %vm1460 = vcmask 64512
        %v1462 = vsel %vm1460, %v1415, 0
        %v1465 = vsel %vm467, %v1453, 0
        %v1468 = vsel %vm467, %v1454, 0
        %v1471 = vsel %vm467, %v1455, 0
        %v1474 = vsel %vm467, %v1456, 0
        %v1477 = vsel %vm467, %v1457, 0
        %v1480 = vsel %vm467, %v1458, 0
        %v1483 = vsel %vm467, %v1459, 0
        %v1486 = vsel %vm467, %v1451, 0
        %1488 = vmatprep.subr.bf16.mxu0 0
        %1489 = vmatpush1.bf16.msra.mxu0 0
        %1490 = vmatprep.subr.bf16.mxu0 0
        %1491 = vmatpush1.bf16.msra.mxu0 0
        %1492 = vmatprep.subr.bf16.mxu0 0
        %1493 = vmatpush1.bf16.msra.mxu0 0
        %1494 = vmatprep.subr.bf16.mxu0 0
        %1495 = vmatpush1.bf16.msra.mxu0 0
        %1496 = vmatprep.subr.bf16.mxu0 0
        %1497 = vmatpush1.bf16.msra.mxu0 0
        %1498 = vmatprep.subr.bf16.mxu0 0
        %1499 = vmatpush1.bf16.msra.mxu0 0
        %1500 = vmatprep.subr.bf16.mxu0 0
        %1501 = vmatpush1.bf16.msra.mxu0 0
        %1502 = vmatprep.subr.bf16.mxu0 %v1468
        %1503 = vmatpush1.bf16.msra.mxu0 %v1465
        %1504 = vmatprep.subr.bf16.mxu0 0
        %1505 = vmatpush2.bf16.msra.mxu0 0
        %1506 = vmatprep.subr.bf16.mxu0 0
        %1507 = vmatpush2.bf16.msra.mxu0 0
        %1508 = vmatprep.subr.bf16.mxu0 0
        %1509 = vmatpush2.bf16.msra.mxu0 0
        %1510 = vmatprep.subr.bf16.mxu0 0
        %1511 = vmatpush2.bf16.msra.mxu0 0
        %1512 = vmatprep.subr.bf16.mxu0 0
        %1513 = vmatpush2.bf16.msra.mxu0 0
        %1514 = vmatprep.subr.bf16.mxu0 0
        %1515 = vmatpush2.bf16.msra.mxu0 0
        %1516 = vmatprep.subr.bf16.mxu0 0
        %1517 = vmatpush2.bf16.msra.mxu0 0
        %1518 = vmatprep.subr.bf16.mxu0 0
        %1519 = vmatpush2.bf16.msra.mxu0 0
        %1520 = vmatprep.mubr.bf16.mxu0 0
        %1521 = vmatmul.mubr.bf16.gmra.mxu0 %v1462
        %v1522 = vpop.f32.mrf.mxu0
        %v1523 = vadd.f32 0.0, %v1522
        %v1524 = vpop.f32.mrf.mxu0
        %v1525 = vadd.f32 0.0, %v1524
        %v1526 = vpop.f32.mrf.mxu0
        %v1527 = vpop.f32.mrf.mxu0
        %1528 = vdwg.mxu0
        %1529 = vmatprep.subr.bf16.mxu0 0
        %1530 = vmatpush1.bf16.msra.mxu0 0
        %1531 = vmatprep.subr.bf16.mxu0 0
        %1532 = vmatpush1.bf16.msra.mxu0 0
        %1533 = vmatprep.subr.bf16.mxu0 0
        %1534 = vmatpush1.bf16.msra.mxu0 0
        %1535 = vmatprep.subr.bf16.mxu0 0
        %1536 = vmatpush1.bf16.msra.mxu0 0
        %1537 = vmatprep.subr.bf16.mxu0 0
        %1538 = vmatpush1.bf16.msra.mxu0 0
        %1539 = vmatprep.subr.bf16.mxu0 0
        %1540 = vmatpush1.bf16.msra.mxu0 0
        %1541 = vmatprep.subr.bf16.mxu0 0
        %1542 = vmatpush1.bf16.msra.mxu0 0
        %1543 = vmatprep.subr.bf16.mxu0 %v1474
        %1544 = vmatpush1.bf16.msra.mxu0 %v1471
        %1545 = vmatprep.subr.bf16.mxu0 0
        %1546 = vmatpush2.bf16.msra.mxu0 0
        %1547 = vmatprep.subr.bf16.mxu0 0
        %1548 = vmatpush2.bf16.msra.mxu0 0
        %1549 = vmatprep.subr.bf16.mxu0 0
        %1550 = vmatpush2.bf16.msra.mxu0 0
        %1551 = vmatprep.subr.bf16.mxu0 0
        %1552 = vmatpush2.bf16.msra.mxu0 0
        %1553 = vmatprep.subr.bf16.mxu0 0
        %1554 = vmatpush2.bf16.msra.mxu0 0
        %1555 = vmatprep.subr.bf16.mxu0 0
        %1556 = vmatpush2.bf16.msra.mxu0 0
        %1557 = vmatprep.subr.bf16.mxu0 0
        %1558 = vmatpush2.bf16.msra.mxu0 0
        %1559 = vmatprep.subr.bf16.mxu0 0
        %1560 = vmatpush2.bf16.msra.mxu0 0
        %1561 = vmatprep.mubr.bf16.mxu0 0
        %1562 = vmatmul.mubr.bf16.gmra.mxu0 %v1462
        %v1563 = vpop.f32.mrf.mxu0
        %v1564 = vadd.f32 0.0, %v1563
        %v1565 = vpop.f32.mrf.mxu0
        %v1566 = vadd.f32 0.0, %v1565
        %v1567 = vpop.f32.mrf.mxu0
        %v1568 = vpop.f32.mrf.mxu0
        %1569 = vdwg.mxu0
        %1570 = vmatprep.subr.bf16.mxu0 0
        %1571 = vmatpush1.bf16.msra.mxu0 0
        %1572 = vmatprep.subr.bf16.mxu0 0
        %1573 = vmatpush1.bf16.msra.mxu0 0
        %1574 = vmatprep.subr.bf16.mxu0 0
        %1575 = vmatpush1.bf16.msra.mxu0 0
        %1576 = vmatprep.subr.bf16.mxu0 0
        %1577 = vmatpush1.bf16.msra.mxu0 0
        %1578 = vmatprep.subr.bf16.mxu0 0
        %1579 = vmatpush1.bf16.msra.mxu0 0
        %1580 = vmatprep.subr.bf16.mxu0 0
        %1581 = vmatpush1.bf16.msra.mxu0 0
        %1582 = vmatprep.subr.bf16.mxu0 0
        %1583 = vmatpush1.bf16.msra.mxu0 0
        %1584 = vmatprep.subr.bf16.mxu0 %v1480
        %1585 = vmatpush1.bf16.msra.mxu0 %v1477
        %1586 = vmatprep.subr.bf16.mxu0 0
        %1587 = vmatpush2.bf16.msra.mxu0 0
        %1588 = vmatprep.subr.bf16.mxu0 0
        %1589 = vmatpush2.bf16.msra.mxu0 0
        %1590 = vmatprep.subr.bf16.mxu0 0
        %1591 = vmatpush2.bf16.msra.mxu0 0
        %1592 = vmatprep.subr.bf16.mxu0 0
        %1593 = vmatpush2.bf16.msra.mxu0 0
        %1594 = vmatprep.subr.bf16.mxu0 0
        %1595 = vmatpush2.bf16.msra.mxu0 0
        %1596 = vmatprep.subr.bf16.mxu0 0
        %1597 = vmatpush2.bf16.msra.mxu0 0
        %1598 = vmatprep.subr.bf16.mxu0 0
        %1599 = vmatpush2.bf16.msra.mxu0 0
        %1600 = vmatprep.subr.bf16.mxu0 0
        %1601 = vmatpush2.bf16.msra.mxu0 0
        %1602 = vmatprep.mubr.bf16.mxu0 0
        %1603 = vmatmul.mubr.bf16.gmra.mxu0 %v1462
        %v1604 = vpop.f32.mrf.mxu0
        %v1605 = vadd.f32 0.0, %v1604
        %v1606 = vpop.f32.mrf.mxu0
        %v1607 = vadd.f32 0.0, %v1606
        %v1608 = vpop.f32.mrf.mxu0
        %v1609 = vpop.f32.mrf.mxu0
        %1610 = vdwg.mxu0
        %1611 = vmatprep.subr.bf16.mxu0 0
        %1612 = vmatpush1.bf16.msra.mxu0 0
        %1613 = vmatprep.subr.bf16.mxu0 0
        %1614 = vmatpush1.bf16.msra.mxu0 0
        %1615 = vmatprep.subr.bf16.mxu0 0
        %1616 = vmatpush1.bf16.msra.mxu0 0
        %1617 = vmatprep.subr.bf16.mxu0 0
        %1618 = vmatpush1.bf16.msra.mxu0 0
        %1619 = vmatprep.subr.bf16.mxu0 0
        %1620 = vmatpush1.bf16.msra.mxu0 0
        %1621 = vmatprep.subr.bf16.mxu0 0
        %1622 = vmatpush1.bf16.msra.mxu0 0
        %1623 = vmatprep.subr.bf16.mxu0 0
        %1624 = vmatpush1.bf16.msra.mxu0 0
        %1625 = vmatprep.subr.bf16.mxu0 %v1486
        %1626 = vmatpush1.bf16.msra.mxu0 %v1483
        %1627 = vmatprep.subr.bf16.mxu0 0
        %1628 = vmatpush2.bf16.msra.mxu0 0
        %1629 = vmatprep.subr.bf16.mxu0 0
        %1630 = vmatpush2.bf16.msra.mxu0 0
        %1631 = vmatprep.subr.bf16.mxu0 0
        %1632 = vmatpush2.bf16.msra.mxu0 0
        %1633 = vmatprep.subr.bf16.mxu0 0
        %1634 = vmatpush2.bf16.msra.mxu0 0
        %1635 = vmatprep.subr.bf16.mxu0 0
        %1636 = vmatpush2.bf16.msra.mxu0 0
        %1637 = vmatprep.subr.bf16.mxu0 0
        %1638 = vmatpush2.bf16.msra.mxu0 0
        %1639 = vmatprep.subr.bf16.mxu0 0
        %1640 = vmatpush2.bf16.msra.mxu0 0
        %1641 = vmatprep.subr.bf16.mxu0 0
        %1642 = vmatpush2.bf16.msra.mxu0 0
        %1643 = vmatprep.mubr.bf16.mxu0 0
        %1644 = vmatmul.mubr.bf16.gmra.mxu0 %v1462
        %v1645 = vpop.f32.mrf.mxu0
        %v1646 = vadd.f32 0.0, %v1645
        %v1647 = vpop.f32.mrf.mxu0
        %v1648 = vadd.f32 0.0, %v1647
        %v1649 = vpop.f32.mrf.mxu0
        %v1650 = vpop.f32.mrf.mxu0
        %1651 = vdwg.mxu0
        %1652 = vrot.lane.b32.xlu0 %v1428, 31
        %v1653 = vpop.permute.xlu0 %1652
        %1654 = vrot.lane.b32.xlu0 %v1429, 31
        %v1655 = vpop.permute.xlu0 %1654
        %1656 = vrot.lane.b32.xlu0 %v1430, 31
        %v1657 = vpop.permute.xlu0 %1656
        %1658 = vrot.lane.b32.xlu0 %v1431, 31
        %v1659 = vpop.permute.xlu0 %1658
        %1660 = vrot.lane.b32.xlu0 %v1432, 31
        %v1661 = vpop.permute.xlu0 %1660
        %1662 = vrot.lane.b32.xlu0 %v1433, 31
        %v1663 = vpop.permute.xlu0 %1662
        %1664 = vrot.lane.b32.xlu0 %v1434, 31
        %v1665 = vpop.permute.xlu0 %1664
        %1666 = vrot.lane.b32.xlu0 %v1435, 31
        %v1667 = vpop.permute.xlu0 %1666
        %v1668 = vsel %vm1394, %v1653, %v1655
        %v1669 = vsel %vm1394, %v1655, %v1657
        %v1670 = vsel %vm1394, %v1657, %v1659
        %v1671 = vsel %vm1394, %v1659, %v1661
        %v1672 = vsel %vm1394, %v1661, %v1663
        %v1673 = vsel %vm1394, %v1663, %v1665
        %v1674 = vsel %vm1394, %v1665, %v1667
        %v1676 = vsel %vm1460, %v1413, 0
        %v1679 = vsel %vm467, %v1668, 0
        %v1682 = vsel %vm467, %v1669, 0
        %v1685 = vsel %vm467, %v1670, 0
        %v1688 = vsel %vm467, %v1671, 0
        %v1691 = vsel %vm467, %v1672, 0
        %v1694 = vsel %vm467, %v1673, 0
        %v1697 = vsel %vm467, %v1674, 0
        %v1700 = vsel %vm467, %v1667, 0
        %1702 = vmatprep.subr.bf16.mxu0 0
        %1703 = vmatpush1.bf16.msra.mxu0 0
        %1704 = vmatprep.subr.bf16.mxu0 0
        %1705 = vmatpush1.bf16.msra.mxu0 0
        %1706 = vmatprep.subr.bf16.mxu0 0
        %1707 = vmatpush1.bf16.msra.mxu0 0
        %1708 = vmatprep.subr.bf16.mxu0 0
        %1709 = vmatpush1.bf16.msra.mxu0 0
        %1710 = vmatprep.subr.bf16.mxu0 0
        %1711 = vmatpush1.bf16.msra.mxu0 0
        %1712 = vmatprep.subr.bf16.mxu0 0
        %1713 = vmatpush1.bf16.msra.mxu0 0
        %1714 = vmatprep.subr.bf16.mxu0 0
        %1715 = vmatpush1.bf16.msra.mxu0 0
        %1716 = vmatprep.subr.bf16.mxu0 %v1682
        %1717 = vmatpush1.bf16.msra.mxu0 %v1679
        %1718 = vmatprep.subr.bf16.mxu0 0
        %1719 = vmatpush2.bf16.msra.mxu0 0
        %1720 = vmatprep.subr.bf16.mxu0 0
        %1721 = vmatpush2.bf16.msra.mxu0 0
        %1722 = vmatprep.subr.bf16.mxu0 0
        %1723 = vmatpush2.bf16.msra.mxu0 0
        %1724 = vmatprep.subr.bf16.mxu0 0
        %1725 = vmatpush2.bf16.msra.mxu0 0
        %1726 = vmatprep.subr.bf16.mxu0 0
        %1727 = vmatpush2.bf16.msra.mxu0 0
        %1728 = vmatprep.subr.bf16.mxu0 0
        %1729 = vmatpush2.bf16.msra.mxu0 0
        %1730 = vmatprep.subr.bf16.mxu0 0
        %1731 = vmatpush2.bf16.msra.mxu0 0
        %1732 = vmatprep.subr.bf16.mxu0 0
        %1733 = vmatpush2.bf16.msra.mxu0 0
        %1734 = vmatprep.mubr.bf16.mxu0 0
        %1735 = vmatmul.mubr.bf16.gmra.mxu0 %v1676
        %v1736 = vpop.f32.mrf.mxu0
        %v1737 = vadd.f32 %v1523, %v1736
        %v1738 = vpop.f32.mrf.mxu0
        %v1739 = vadd.f32 %v1525, %v1738
        %v1740 = vpop.f32.mrf.mxu0
        %v1741 = vpop.f32.mrf.mxu0
        %1742 = vdwg.mxu0
        %1743 = vmatprep.subr.bf16.mxu0 0
        %1744 = vmatpush1.bf16.msra.mxu0 0
        %1745 = vmatprep.subr.bf16.mxu0 0
        %1746 = vmatpush1.bf16.msra.mxu0 0
        %1747 = vmatprep.subr.bf16.mxu0 0
        %1748 = vmatpush1.bf16.msra.mxu0 0
        %1749 = vmatprep.subr.bf16.mxu0 0
        %1750 = vmatpush1.bf16.msra.mxu0 0
        %1751 = vmatprep.subr.bf16.mxu0 0
        %1752 = vmatpush1.bf16.msra.mxu0 0
        %1753 = vmatprep.subr.bf16.mxu0 0
        %1754 = vmatpush1.bf16.msra.mxu0 0
        %1755 = vmatprep.subr.bf16.mxu0 0
        %1756 = vmatpush1.bf16.msra.mxu0 0
        %1757 = vmatprep.subr.bf16.mxu0 %v1688
        %1758 = vmatpush1.bf16.msra.mxu0 %v1685
        %1759 = vmatprep.subr.bf16.mxu0 0
        %1760 = vmatpush2.bf16.msra.mxu0 0
        %1761 = vmatprep.subr.bf16.mxu0 0
        %1762 = vmatpush2.bf16.msra.mxu0 0
        %1763 = vmatprep.subr.bf16.mxu0 0
        %1764 = vmatpush2.bf16.msra.mxu0 0
        %1765 = vmatprep.subr.bf16.mxu0 0
        %1766 = vmatpush2.bf16.msra.mxu0 0
        %1767 = vmatprep.subr.bf16.mxu0 0
        %1768 = vmatpush2.bf16.msra.mxu0 0
        %1769 = vmatprep.subr.bf16.mxu0 0
        %1770 = vmatpush2.bf16.msra.mxu0 0
        %1771 = vmatprep.subr.bf16.mxu0 0
        %1772 = vmatpush2.bf16.msra.mxu0 0
        %1773 = vmatprep.subr.bf16.mxu0 0
        %1774 = vmatpush2.bf16.msra.mxu0 0
        %1775 = vmatprep.mubr.bf16.mxu0 0
        %1776 = vmatmul.mubr.bf16.gmra.mxu0 %v1676
        %v1777 = vpop.f32.mrf.mxu0
        %v1778 = vadd.f32 %v1564, %v1777
        %v1779 = vpop.f32.mrf.mxu0
        %v1780 = vadd.f32 %v1566, %v1779
        %v1781 = vpop.f32.mrf.mxu0
        %v1782 = vpop.f32.mrf.mxu0
        %1783 = vdwg.mxu0
        %1784 = vmatprep.subr.bf16.mxu0 0
        %1785 = vmatpush1.bf16.msra.mxu0 0
        %1786 = vmatprep.subr.bf16.mxu0 0
        %1787 = vmatpush1.bf16.msra.mxu0 0
        %1788 = vmatprep.subr.bf16.mxu0 0
        %1789 = vmatpush1.bf16.msra.mxu0 0
        %1790 = vmatprep.subr.bf16.mxu0 0
        %1791 = vmatpush1.bf16.msra.mxu0 0
        %1792 = vmatprep.subr.bf16.mxu0 0
        %1793 = vmatpush1.bf16.msra.mxu0 0
        %1794 = vmatprep.subr.bf16.mxu0 0
        %1795 = vmatpush1.bf16.msra.mxu0 0
        %1796 = vmatprep.subr.bf16.mxu0 0
        %1797 = vmatpush1.bf16.msra.mxu0 0
        %1798 = vmatprep.subr.bf16.mxu0 %v1694
        %1799 = vmatpush1.bf16.msra.mxu0 %v1691
        %1800 = vmatprep.subr.bf16.mxu0 0
        %1801 = vmatpush2.bf16.msra.mxu0 0
        %1802 = vmatprep.subr.bf16.mxu0 0
        %1803 = vmatpush2.bf16.msra.mxu0 0
        %1804 = vmatprep.subr.bf16.mxu0 0
        %1805 = vmatpush2.bf16.msra.mxu0 0
        %1806 = vmatprep.subr.bf16.mxu0 0
        %1807 = vmatpush2.bf16.msra.mxu0 0
        %1808 = vmatprep.subr.bf16.mxu0 0
        %1809 = vmatpush2.bf16.msra.mxu0 0
        %1810 = vmatprep.subr.bf16.mxu0 0
        %1811 = vmatpush2.bf16.msra.mxu0 0
        %1812 = vmatprep.subr.bf16.mxu0 0
        %1813 = vmatpush2.bf16.msra.mxu0 0
        %1814 = vmatprep.subr.bf16.mxu0 0
        %1815 = vmatpush2.bf16.msra.mxu0 0
        %1816 = vmatprep.mubr.bf16.mxu0 0
        %1817 = vmatmul.mubr.bf16.gmra.mxu0 %v1676
        %v1818 = vpop.f32.mrf.mxu0
        %v1819 = vadd.f32 %v1605, %v1818
        %v1820 = vpop.f32.mrf.mxu0
        %v1821 = vadd.f32 %v1607, %v1820
        %v1822 = vpop.f32.mrf.mxu0
        %v1823 = vpop.f32.mrf.mxu0
        %1824 = vdwg.mxu0
        %1825 = vmatprep.subr.bf16.mxu0 0
        %1826 = vmatpush1.bf16.msra.mxu0 0
        %1827 = vmatprep.subr.bf16.mxu0 0
        %1828 = vmatpush1.bf16.msra.mxu0 0
        %1829 = vmatprep.subr.bf16.mxu0 0
        %1830 = vmatpush1.bf16.msra.mxu0 0
        %1831 = vmatprep.subr.bf16.mxu0 0
        %1832 = vmatpush1.bf16.msra.mxu0 0
        %1833 = vmatprep.subr.bf16.mxu0 0
        %1834 = vmatpush1.bf16.msra.mxu0 0
        %1835 = vmatprep.subr.bf16.mxu0 0
        %1836 = vmatpush1.bf16.msra.mxu0 0
        %1837 = vmatprep.subr.bf16.mxu0 0
        %1838 = vmatpush1.bf16.msra.mxu0 0
        %1839 = vmatprep.subr.bf16.mxu0 %v1700
        %1840 = vmatpush1.bf16.msra.mxu0 %v1697
        %1841 = vmatprep.subr.bf16.mxu0 0
        %1842 = vmatpush2.bf16.msra.mxu0 0
        %1843 = vmatprep.subr.bf16.mxu0 0
        %1844 = vmatpush2.bf16.msra.mxu0 0
        %1845 = vmatprep.subr.bf16.mxu0 0
        %1846 = vmatpush2.bf16.msra.mxu0 0
        %1847 = vmatprep.subr.bf16.mxu0 0
        %1848 = vmatpush2.bf16.msra.mxu0 0
        %1849 = vmatprep.subr.bf16.mxu0 0
        %1850 = vmatpush2.bf16.msra.mxu0 0
        %1851 = vmatprep.subr.bf16.mxu0 0
        %1852 = vmatpush2.bf16.msra.mxu0 0
        %1853 = vmatprep.subr.bf16.mxu0 0
        %1854 = vmatpush2.bf16.msra.mxu0 0
        %1855 = vmatprep.subr.bf16.mxu0 0
        %1856 = vmatpush2.bf16.msra.mxu0 0
        %1857 = vmatprep.mubr.bf16.mxu0 0
        %1858 = vmatmul.mubr.bf16.gmra.mxu0 %v1676
        %v1859 = vpop.f32.mrf.mxu0
        %v1860 = vadd.f32 %v1646, %v1859
        %v1861 = vpop.f32.mrf.mxu0
        %v1862 = vadd.f32 %v1648, %v1861
        %v1863 = vpop.f32.mrf.mxu0
        %v1864 = vpop.f32.mrf.mxu0
        %1865 = vdwg.mxu0
        %s1866 = scalar_lea.vmem %s3, 8
        %v1867 = vld [vmem:[%s1866] sm:$0xf]
        %1868 = vrot.lane.b32.xlu0 %v1428, 29
        %v1869 = vpop.permute.xlu0 %1868
        %1870 = vrot.lane.b32.xlu0 %v1429, 29
        %v1871 = vpop.permute.xlu0 %1870
        %1872 = vrot.lane.b32.xlu0 %v1430, 29
        %v1873 = vpop.permute.xlu0 %1872
        %1874 = vrot.lane.b32.xlu0 %v1431, 29
        %v1875 = vpop.permute.xlu0 %1874
        %1876 = vrot.lane.b32.xlu0 %v1432, 29
        %v1877 = vpop.permute.xlu0 %1876
        %1878 = vrot.lane.b32.xlu0 %v1433, 29
        %v1879 = vpop.permute.xlu0 %1878
        %1880 = vrot.lane.b32.xlu0 %v1434, 29
        %v1881 = vpop.permute.xlu0 %1880
        %1882 = vrot.lane.b32.xlu0 %v1435, 29
        %v1883 = vpop.permute.xlu0 %1882
        %vm1884 = vcmask 236544
        %v1885 = vsel %vm1884, %v1869, %v1871
        %v1886 = vsel %vm1884, %v1871, %v1873
        %v1887 = vsel %vm1884, %v1873, %v1875
        %v1888 = vsel %vm1884, %v1875, %v1877
        %v1889 = vsel %vm1884, %v1877, %v1879
        %v1890 = vsel %vm1884, %v1879, %v1881
        %v1891 = vsel %vm1884, %v1881, %v1883
        %v1893 = vsel %vm1460, %v1867, 0
        %v1896 = vsel %vm467, %v1885, 0
        %v1899 = vsel %vm467, %v1886, 0
        %v1902 = vsel %vm467, %v1887, 0
        %v1905 = vsel %vm467, %v1888, 0
        %v1908 = vsel %vm467, %v1889, 0
        %v1911 = vsel %vm467, %v1890, 0
        %v1914 = vsel %vm467, %v1891, 0
        %v1917 = vsel %vm467, %v1883, 0
        %1919 = vmatprep.subr.bf16.mxu0 0
        %1920 = vmatpush1.bf16.msra.mxu0 0
        %1921 = vmatprep.subr.bf16.mxu0 0
        %1922 = vmatpush1.bf16.msra.mxu0 0
        %1923 = vmatprep.subr.bf16.mxu0 0
        %1924 = vmatpush1.bf16.msra.mxu0 0
        %1925 = vmatprep.subr.bf16.mxu0 0
        %1926 = vmatpush1.bf16.msra.mxu0 0
        %1927 = vmatprep.subr.bf16.mxu0 0
        %1928 = vmatpush1.bf16.msra.mxu0 0
        %1929 = vmatprep.subr.bf16.mxu0 0
        %1930 = vmatpush1.bf16.msra.mxu0 0
        %1931 = vmatprep.subr.bf16.mxu0 0
        %1932 = vmatpush1.bf16.msra.mxu0 0
        %1933 = vmatprep.subr.bf16.mxu0 %v1899
        %1934 = vmatpush1.bf16.msra.mxu0 %v1896
        %1935 = vmatprep.subr.bf16.mxu0 0
        %1936 = vmatpush2.bf16.msra.mxu0 0
        %1937 = vmatprep.subr.bf16.mxu0 0
        %1938 = vmatpush2.bf16.msra.mxu0 0
        %1939 = vmatprep.subr.bf16.mxu0 0
        %1940 = vmatpush2.bf16.msra.mxu0 0
        %1941 = vmatprep.subr.bf16.mxu0 0
        %1942 = vmatpush2.bf16.msra.mxu0 0
        %1943 = vmatprep.subr.bf16.mxu0 0
        %1944 = vmatpush2.bf16.msra.mxu0 0
        %1945 = vmatprep.subr.bf16.mxu0 0
        %1946 = vmatpush2.bf16.msra.mxu0 0
        %1947 = vmatprep.subr.bf16.mxu0 0
        %1948 = vmatpush2.bf16.msra.mxu0 0
        %1949 = vmatprep.subr.bf16.mxu0 0
        %1950 = vmatpush2.bf16.msra.mxu0 0
        %1951 = vmatprep.mubr.bf16.mxu0 0
        %1952 = vmatmul.mubr.bf16.gmra.mxu0 %v1893
        %v1953 = vpop.f32.mrf.mxu0
        %v1954 = vadd.f32 0.0, %v1953
        %v1955 = vpop.f32.mrf.mxu0
        %v1956 = vadd.f32 0.0, %v1955
        %v1957 = vpop.f32.mrf.mxu0
        %v1958 = vpop.f32.mrf.mxu0
        %1959 = vdwg.mxu0
        %1960 = vmatprep.subr.bf16.mxu0 0
        %1961 = vmatpush1.bf16.msra.mxu0 0
        %1962 = vmatprep.subr.bf16.mxu0 0
        %1963 = vmatpush1.bf16.msra.mxu0 0
        %1964 = vmatprep.subr.bf16.mxu0 0
        %1965 = vmatpush1.bf16.msra.mxu0 0
        %1966 = vmatprep.subr.bf16.mxu0 0
        %1967 = vmatpush1.bf16.msra.mxu0 0
        %1968 = vmatprep.subr.bf16.mxu0 0
        %1969 = vmatpush1.bf16.msra.mxu0 0
        %1970 = vmatprep.subr.bf16.mxu0 0
        %1971 = vmatpush1.bf16.msra.mxu0 0
        %1972 = vmatprep.subr.bf16.mxu0 0
        %1973 = vmatpush1.bf16.msra.mxu0 0
        %1974 = vmatprep.subr.bf16.mxu0 %v1905
        %1975 = vmatpush1.bf16.msra.mxu0 %v1902
        %1976 = vmatprep.subr.bf16.mxu0 0
        %1977 = vmatpush2.bf16.msra.mxu0 0
        %1978 = vmatprep.subr.bf16.mxu0 0
        %1979 = vmatpush2.bf16.msra.mxu0 0
        %1980 = vmatprep.subr.bf16.mxu0 0
        %1981 = vmatpush2.bf16.msra.mxu0 0
        %1982 = vmatprep.subr.bf16.mxu0 0
        %1983 = vmatpush2.bf16.msra.mxu0 0
        %1984 = vmatprep.subr.bf16.mxu0 0
        %1985 = vmatpush2.bf16.msra.mxu0 0
        %1986 = vmatprep.subr.bf16.mxu0 0
        %1987 = vmatpush2.bf16.msra.mxu0 0
        %1988 = vmatprep.subr.bf16.mxu0 0
        %1989 = vmatpush2.bf16.msra.mxu0 0
        %1990 = vmatprep.subr.bf16.mxu0 0
        %1991 = vmatpush2.bf16.msra.mxu0 0
        %1992 = vmatprep.mubr.bf16.mxu0 0
        %1993 = vmatmul.mubr.bf16.gmra.mxu0 %v1893
        %v1994 = vpop.f32.mrf.mxu0
        %v1995 = vadd.f32 0.0, %v1994
        %v1996 = vpop.f32.mrf.mxu0
        %v1997 = vadd.f32 0.0, %v1996
        %v1998 = vpop.f32.mrf.mxu0
        %v1999 = vpop.f32.mrf.mxu0
        %2000 = vdwg.mxu0
        %2001 = vmatprep.subr.bf16.mxu0 0
        %2002 = vmatpush1.bf16.msra.mxu0 0
        %2003 = vmatprep.subr.bf16.mxu0 0
        %2004 = vmatpush1.bf16.msra.mxu0 0
        %2005 = vmatprep.subr.bf16.mxu0 0
        %2006 = vmatpush1.bf16.msra.mxu0 0
        %2007 = vmatprep.subr.bf16.mxu0 0
        %2008 = vmatpush1.bf16.msra.mxu0 0
        %2009 = vmatprep.subr.bf16.mxu0 0
        %2010 = vmatpush1.bf16.msra.mxu0 0
        %2011 = vmatprep.subr.bf16.mxu0 0
        %2012 = vmatpush1.bf16.msra.mxu0 0
        %2013 = vmatprep.subr.bf16.mxu0 0
        %2014 = vmatpush1.bf16.msra.mxu0 0
        %2015 = vmatprep.subr.bf16.mxu0 %v1911
        %2016 = vmatpush1.bf16.msra.mxu0 %v1908
        %2017 = vmatprep.subr.bf16.mxu0 0
        %2018 = vmatpush2.bf16.msra.mxu0 0
        %2019 = vmatprep.subr.bf16.mxu0 0
        %2020 = vmatpush2.bf16.msra.mxu0 0
        %2021 = vmatprep.subr.bf16.mxu0 0
        %2022 = vmatpush2.bf16.msra.mxu0 0
        %2023 = vmatprep.subr.bf16.mxu0 0
        %2024 = vmatpush2.bf16.msra.mxu0 0
        %2025 = vmatprep.subr.bf16.mxu0 0
        %2026 = vmatpush2.bf16.msra.mxu0 0
        %2027 = vmatprep.subr.bf16.mxu0 0
        %2028 = vmatpush2.bf16.msra.mxu0 0
        %2029 = vmatprep.subr.bf16.mxu0 0
        %2030 = vmatpush2.bf16.msra.mxu0 0
        %2031 = vmatprep.subr.bf16.mxu0 0
        %2032 = vmatpush2.bf16.msra.mxu0 0
        %2033 = vmatprep.mubr.bf16.mxu0 0
        %2034 = vmatmul.mubr.bf16.gmra.mxu0 %v1893
        %v2035 = vpop.f32.mrf.mxu0
        %v2036 = vadd.f32 0.0, %v2035
        %v2037 = vpop.f32.mrf.mxu0
        %v2038 = vadd.f32 0.0, %v2037
        %v2039 = vpop.f32.mrf.mxu0
        %v2040 = vpop.f32.mrf.mxu0
        %2041 = vdwg.mxu0
        %2042 = vmatprep.subr.bf16.mxu0 0
        %2043 = vmatpush1.bf16.msra.mxu0 0
        %2044 = vmatprep.subr.bf16.mxu0 0
        %2045 = vmatpush1.bf16.msra.mxu0 0
        %2046 = vmatprep.subr.bf16.mxu0 0
        %2047 = vmatpush1.bf16.msra.mxu0 0
        %2048 = vmatprep.subr.bf16.mxu0 0
        %2049 = vmatpush1.bf16.msra.mxu0 0
        %2050 = vmatprep.subr.bf16.mxu0 0
        %2051 = vmatpush1.bf16.msra.mxu0 0
        %2052 = vmatprep.subr.bf16.mxu0 0
        %2053 = vmatpush1.bf16.msra.mxu0 0
        %2054 = vmatprep.subr.bf16.mxu0 0
        %2055 = vmatpush1.bf16.msra.mxu0 0
        %2056 = vmatprep.subr.bf16.mxu0 %v1917
        %2057 = vmatpush1.bf16.msra.mxu0 %v1914
        %2058 = vmatprep.subr.bf16.mxu0 0
        %2059 = vmatpush2.bf16.msra.mxu0 0
        %2060 = vmatprep.subr.bf16.mxu0 0
        %2061 = vmatpush2.bf16.msra.mxu0 0
        %2062 = vmatprep.subr.bf16.mxu0 0
        %2063 = vmatpush2.bf16.msra.mxu0 0
        %2064 = vmatprep.subr.bf16.mxu0 0
        %2065 = vmatpush2.bf16.msra.mxu0 0
        %2066 = vmatprep.subr.bf16.mxu0 0
        %2067 = vmatpush2.bf16.msra.mxu0 0
        %2068 = vmatprep.subr.bf16.mxu0 0
        %2069 = vmatpush2.bf16.msra.mxu0 0
        %2070 = vmatprep.subr.bf16.mxu0 0
        %2071 = vmatpush2.bf16.msra.mxu0 0
        %2072 = vmatprep.subr.bf16.mxu0 0
        %2073 = vmatpush2.bf16.msra.mxu0 0
        %2074 = vmatprep.mubr.bf16.mxu0 0
        %2075 = vmatmul.mubr.bf16.gmra.mxu0 %v1893
        %v2076 = vpop.f32.mrf.mxu0
        %v2077 = vadd.f32 0.0, %v2076
        %v2078 = vpop.f32.mrf.mxu0
        %v2079 = vadd.f32 0.0, %v2078
        %v2080 = vpop.f32.mrf.mxu0
        %v2081 = vpop.f32.mrf.mxu0
        %2082 = vdwg.mxu0
        %v2083 = vadd.f32 %v1737, %v1954
        %v2084 = vadd.f32 %v1739, %v1956
        %v2085 = vadd.f32 %v1778, %v1995
        %v2086 = vadd.f32 %v1780, %v1997
        %v2087 = vadd.f32 %v1819, %v2036
        %v2088 = vadd.f32 %v1821, %v2038
        %v2089 = vadd.f32 %v1860, %v2077
        %v2090 = vadd.f32 %v1862, %v2079
        %v2091 = vld [vmem:[#allocation2] sm:$0xff]
        %v2092 = vld [vmem:[#allocation2 + $0x8] sm:$0xff]
        %v2093 = vld [vmem:[#allocation2 + $0x10] sm:$0xff]
        %v2094 = vld [vmem:[#allocation2 + $0x18] sm:$0xff]
        %v2095 = vld [vmem:[#allocation2 + $0x20] sm:$0xf]
        %s2096 = scalar_lea.vmem %s3, 12
        %v2097 = vld [vmem:[%s2096] sm:$0xf]
        %v2103 = vunpack.c.l.b16 %v2091
        %v2104 = vunpack.c.h.b16 %v2091
        %v2105 = vunpack.c.l.b16 %v2092
        %v2106 = vunpack.c.h.b16 %v2092
        %v2107 = vunpack.c.l.b16 %v2093
        %v2108 = vunpack.c.h.b16 %v2093
        %v2109 = vunpack.c.l.b16 %v2094
        %v2110 = vunpack.c.h.b16 %v2094
        %v2111 = vunpack.c.l.b16 %v2095
        %v2112 = vpack.c.b16 %v2103, %v2103
        %v2113 = vpack.c.b16 %v2104, %v2104
        %v2114 = vpack.c.b16 %v2105, %v2105
        %v2115 = vpack.c.b16 %v2106, %v2106
        %v2116 = vpack.c.b16 %v2107, %v2107
        %v2117 = vpack.c.b16 %v2108, %v2108
        %v2118 = vpack.c.b16 %v2109, %v2109
        %v2119 = vpack.c.b16 %v2110, %v2110
        %v2120 = vpack.c.b16 %v2111, %v2111
        %2121 = vrot.lane.b32.xlu0 %v2112, 1
        %v2122 = vpop.permute.xlu0 %2121
        %2123 = vrot.lane.b32.xlu0 %v2113, 1
        %v2124 = vpop.permute.xlu0 %2123
        %2125 = vrot.lane.b32.xlu0 %v2114, 1
        %v2126 = vpop.permute.xlu0 %2125
        %2127 = vrot.lane.b32.xlu0 %v2115, 1
        %v2128 = vpop.permute.xlu0 %2127
        %2129 = vrot.lane.b32.xlu0 %v2116, 1
        %v2130 = vpop.permute.xlu0 %2129
        %2131 = vrot.lane.b32.xlu0 %v2117, 1
        %v2132 = vpop.permute.xlu0 %2131
        %2133 = vrot.lane.b32.xlu0 %v2118, 1
        %v2134 = vpop.permute.xlu0 %2133
        %2135 = vrot.lane.b32.xlu0 %v2119, 1
        %v2136 = vpop.permute.xlu0 %2135
        %2137 = vrot.lane.b32.xlu0 %v2120, 1
        %v2138 = vpop.permute.xlu0 %2137
        %vm2139 = vcmask 7168
        %v2140 = vsel %vm2139, %v2122, %v2124
        %v2141 = vsel %vm2139, %v2124, %v2126
        %v2142 = vsel %vm2139, %v2126, %v2128
        %v2143 = vsel %vm2139, %v2128, %v2130
        %v2144 = vsel %vm2139, %v2130, %v2132
        %v2145 = vsel %vm2139, %v2132, %v2134
        %v2146 = vsel %vm2139, %v2134, %v2136
        %v2147 = vsel %vm2139, %v2136, %v2138
        %v2149 = vsel %vm1460, %v2097, 0
        %v2152 = vsel %vm467, %v2140, 0
        %v2155 = vsel %vm467, %v2141, 0
        %v2158 = vsel %vm467, %v2142, 0
        %v2161 = vsel %vm467, %v2143, 0
        %v2164 = vsel %vm467, %v2144, 0
        %v2167 = vsel %vm467, %v2145, 0
        %v2170 = vsel %vm467, %v2146, 0
        %v2173 = vsel %vm467, %v2147, 0
        %2175 = vmatprep.subr.bf16.mxu0 0
        %2176 = vmatpush1.bf16.msra.mxu0 0
        %2177 = vmatprep.subr.bf16.mxu0 0
        %2178 = vmatpush1.bf16.msra.mxu0 0
        %2179 = vmatprep.subr.bf16.mxu0 0
        %2180 = vmatpush1.bf16.msra.mxu0 0
        %2181 = vmatprep.subr.bf16.mxu0 0
        %2182 = vmatpush1.bf16.msra.mxu0 0
        %2183 = vmatprep.subr.bf16.mxu0 0
        %2184 = vmatpush1.bf16.msra.mxu0 0
        %2185 = vmatprep.subr.bf16.mxu0 0
        %2186 = vmatpush1.bf16.msra.mxu0 0
        %2187 = vmatprep.subr.bf16.mxu0 0
        %2188 = vmatpush1.bf16.msra.mxu0 0
        %2189 = vmatprep.subr.bf16.mxu0 %v2155
        %2190 = vmatpush1.bf16.msra.mxu0 %v2152
        %2191 = vmatprep.subr.bf16.mxu0 0
        %2192 = vmatpush2.bf16.msra.mxu0 0
        %2193 = vmatprep.subr.bf16.mxu0 0
        %2194 = vmatpush2.bf16.msra.mxu0 0
        %2195 = vmatprep.subr.bf16.mxu0 0
        %2196 = vmatpush2.bf16.msra.mxu0 0
        %2197 = vmatprep.subr.bf16.mxu0 0
        %2198 = vmatpush2.bf16.msra.mxu0 0
        %2199 = vmatprep.subr.bf16.mxu0 0
        %2200 = vmatpush2.bf16.msra.mxu0 0
        %2201 = vmatprep.subr.bf16.mxu0 0
        %2202 = vmatpush2.bf16.msra.mxu0 0
        %2203 = vmatprep.subr.bf16.mxu0 0
        %2204 = vmatpush2.bf16.msra.mxu0 0
        %2205 = vmatprep.subr.bf16.mxu0 0
        %2206 = vmatpush2.bf16.msra.mxu0 0
        %2207 = vmatprep.mubr.bf16.mxu0 0
        %2208 = vmatmul.mubr.bf16.gmra.mxu0 %v2149
        %v2209 = vpop.f32.mrf.mxu0
        %v2210 = vadd.f32 0.0, %v2209
        %v2211 = vpop.f32.mrf.mxu0
        %v2212 = vadd.f32 0.0, %v2211
        %v2213 = vpop.f32.mrf.mxu0
        %v2214 = vpop.f32.mrf.mxu0
        %2215 = vdwg.mxu0
        %2216 = vmatprep.subr.bf16.mxu0 0
        %2217 = vmatpush1.bf16.msra.mxu0 0
        %2218 = vmatprep.subr.bf16.mxu0 0
        %2219 = vmatpush1.bf16.msra.mxu0 0
        %2220 = vmatprep.subr.bf16.mxu0 0
        %2221 = vmatpush1.bf16.msra.mxu0 0
        %2222 = vmatprep.subr.bf16.mxu0 0
        %2223 = vmatpush1.bf16.msra.mxu0 0
        %2224 = vmatprep.subr.bf16.mxu0 0
        %2225 = vmatpush1.bf16.msra.mxu0 0
        %2226 = vmatprep.subr.bf16.mxu0 0
        %2227 = vmatpush1.bf16.msra.mxu0 0
        %2228 = vmatprep.subr.bf16.mxu0 0
        %2229 = vmatpush1.bf16.msra.mxu0 0
        %2230 = vmatprep.subr.bf16.mxu0 %v2161
        %2231 = vmatpush1.bf16.msra.mxu0 %v2158
        %2232 = vmatprep.subr.bf16.mxu0 0
        %2233 = vmatpush2.bf16.msra.mxu0 0
        %2234 = vmatprep.subr.bf16.mxu0 0
        %2235 = vmatpush2.bf16.msra.mxu0 0
        %2236 = vmatprep.subr.bf16.mxu0 0
        %2237 = vmatpush2.bf16.msra.mxu0 0
        %2238 = vmatprep.subr.bf16.mxu0 0
        %2239 = vmatpush2.bf16.msra.mxu0 0
        %2240 = vmatprep.subr.bf16.mxu0 0
        %2241 = vmatpush2.bf16.msra.mxu0 0
        %2242 = vmatprep.subr.bf16.mxu0 0
        %2243 = vmatpush2.bf16.msra.mxu0 0
        %2244 = vmatprep.subr.bf16.mxu0 0
        %2245 = vmatpush2.bf16.msra.mxu0 0
        %2246 = vmatprep.subr.bf16.mxu0 0
        %2247 = vmatpush2.bf16.msra.mxu0 0
        %2248 = vmatprep.mubr.bf16.mxu0 0
        %2249 = vmatmul.mubr.bf16.gmra.mxu0 %v2149
        %v2250 = vpop.f32.mrf.mxu0
        %v2251 = vadd.f32 0.0, %v2250
        %v2252 = vpop.f32.mrf.mxu0
        %v2253 = vadd.f32 0.0, %v2252
        %v2254 = vpop.f32.mrf.mxu0
        %v2255 = vpop.f32.mrf.mxu0
        %2256 = vdwg.mxu0
        %2257 = vmatprep.subr.bf16.mxu0 0
        %2258 = vmatpush1.bf16.msra.mxu0 0
        %2259 = vmatprep.subr.bf16.mxu0 0
        %2260 = vmatpush1.bf16.msra.mxu0 0
        %2261 = vmatprep.subr.bf16.mxu0 0
        %2262 = vmatpush1.bf16.msra.mxu0 0
        %2263 = vmatprep.subr.bf16.mxu0 0
        %2264 = vmatpush1.bf16.msra.mxu0 0
        %2265 = vmatprep.subr.bf16.mxu0 0
        %2266 = vmatpush1.bf16.msra.mxu0 0
        %2267 = vmatprep.subr.bf16.mxu0 0
        %2268 = vmatpush1.bf16.msra.mxu0 0
        %2269 = vmatprep.subr.bf16.mxu0 0
        %2270 = vmatpush1.bf16.msra.mxu0 0
        %2271 = vmatprep.subr.bf16.mxu0 %v2167
        %2272 = vmatpush1.bf16.msra.mxu0 %v2164
        %2273 = vmatprep.subr.bf16.mxu0 0
        %2274 = vmatpush2.bf16.msra.mxu0 0
        %2275 = vmatprep.subr.bf16.mxu0 0
        %2276 = vmatpush2.bf16.msra.mxu0 0
        %2277 = vmatprep.subr.bf16.mxu0 0
        %2278 = vmatpush2.bf16.msra.mxu0 0
        %2279 = vmatprep.subr.bf16.mxu0 0
        %2280 = vmatpush2.bf16.msra.mxu0 0
        %2281 = vmatprep.subr.bf16.mxu0 0
        %2282 = vmatpush2.bf16.msra.mxu0 0
        %2283 = vmatprep.subr.bf16.mxu0 0
        %2284 = vmatpush2.bf16.msra.mxu0 0
        %2285 = vmatprep.subr.bf16.mxu0 0
        %2286 = vmatpush2.bf16.msra.mxu0 0
        %2287 = vmatprep.subr.bf16.mxu0 0
        %2288 = vmatpush2.bf16.msra.mxu0 0
        %2289 = vmatprep.mubr.bf16.mxu0 0
        %2290 = vmatmul.mubr.bf16.gmra.mxu0 %v2149
        %v2291 = vpop.f32.mrf.mxu0
        %v2292 = vadd.f32 0.0, %v2291
        %v2293 = vpop.f32.mrf.mxu0
        %v2294 = vadd.f32 0.0, %v2293
        %v2295 = vpop.f32.mrf.mxu0
        %v2296 = vpop.f32.mrf.mxu0
        %2297 = vdwg.mxu0
        %2298 = vmatprep.subr.bf16.mxu0 0
        %2299 = vmatpush1.bf16.msra.mxu0 0
        %2300 = vmatprep.subr.bf16.mxu0 0
        %2301 = vmatpush1.bf16.msra.mxu0 0
        %2302 = vmatprep.subr.bf16.mxu0 0
        %2303 = vmatpush1.bf16.msra.mxu0 0
        %2304 = vmatprep.subr.bf16.mxu0 0
        %2305 = vmatpush1.bf16.msra.mxu0 0
        %2306 = vmatprep.subr.bf16.mxu0 0
        %2307 = vmatpush1.bf16.msra.mxu0 0
        %2308 = vmatprep.subr.bf16.mxu0 0
        %2309 = vmatpush1.bf16.msra.mxu0 0
        %2310 = vmatprep.subr.bf16.mxu0 0
        %2311 = vmatpush1.bf16.msra.mxu0 0
        %2312 = vmatprep.subr.bf16.mxu0 %v2173
        %2313 = vmatpush1.bf16.msra.mxu0 %v2170
        %2314 = vmatprep.subr.bf16.mxu0 0
        %2315 = vmatpush2.bf16.msra.mxu0 0
        %2316 = vmatprep.subr.bf16.mxu0 0
        %2317 = vmatpush2.bf16.msra.mxu0 0
        %2318 = vmatprep.subr.bf16.mxu0 0
        %2319 = vmatpush2.bf16.msra.mxu0 0
        %2320 = vmatprep.subr.bf16.mxu0 0
        %2321 = vmatpush2.bf16.msra.mxu0 0
        %2322 = vmatprep.subr.bf16.mxu0 0
        %2323 = vmatpush2.bf16.msra.mxu0 0
        %2324 = vmatprep.subr.bf16.mxu0 0
        %2325 = vmatpush2.bf16.msra.mxu0 0
        %2326 = vmatprep.subr.bf16.mxu0 0
        %2327 = vmatpush2.bf16.msra.mxu0 0
        %2328 = vmatprep.subr.bf16.mxu0 0
        %2329 = vmatpush2.bf16.msra.mxu0 0
        %2330 = vmatprep.mubr.bf16.mxu0 0
        %2331 = vmatmul.mubr.bf16.gmra.mxu0 %v2149
        %v2332 = vpop.f32.mrf.mxu0
        %v2333 = vadd.f32 0.0, %v2332
        %v2334 = vpop.f32.mrf.mxu0
        %v2335 = vadd.f32 0.0, %v2334
        %v2336 = vpop.f32.mrf.mxu0
        %v2337 = vpop.f32.mrf.mxu0
        %2338 = vdwg.mxu0
        %v2339 = vadd.f32 %v2083, %v2210
        %v2340 = vadd.f32 %v2084, %v2212
        %v2341 = vadd.f32 %v2085, %v2251
        %v2342 = vadd.f32 %v2086, %v2253
        %v2343 = vadd.f32 %v2087, %v2292
        %v2344 = vadd.f32 %v2088, %v2294
        %v2345 = vadd.f32 %v2089, %v2333
        %v2346 = vadd.f32 %v2090, %v2335
        %v2347 = vld [vmem:[#allocation2 + $0x4] sm:$0xff]
        %v2348 = vld [vmem:[#allocation2 + $0xc] sm:$0xff]
        %v2349 = vld [vmem:[#allocation2 + $0x14] sm:$0xff]
        %v2350 = vld [vmem:[#allocation2 + $0x1c] sm:$0xff]
        %s2351 = scalar_lea.vmem %s3, 16
        %v2352 = vld [vmem:[%s2351] sm:$0xf]
        %v2357 = vunpack.c.l.b16 %v2347
        %v2358 = vunpack.c.h.b16 %v2347
        %v2359 = vunpack.c.l.b16 %v2348
        %v2360 = vunpack.c.h.b16 %v2348
        %v2361 = vunpack.c.l.b16 %v2349
        %v2362 = vunpack.c.h.b16 %v2349
        %v2363 = vunpack.c.l.b16 %v2350
        %v2364 = vunpack.c.h.b16 %v2350
        %v2365 = vpack.c.b16 %v2357, %v2357
        %v2366 = vpack.c.b16 %v2358, %v2358
        %v2367 = vpack.c.b16 %v2359, %v2359
        %v2368 = vpack.c.b16 %v2360, %v2360
        %v2369 = vpack.c.b16 %v2361, %v2361
        %v2370 = vpack.c.b16 %v2362, %v2362
        %v2371 = vpack.c.b16 %v2363, %v2363
        %v2372 = vpack.c.b16 %v2364, %v2364
        %v2374 = vsel %vm1460, %v2352, 0
        %v2377 = vsel %vm467, %v2365, 0
        %v2380 = vsel %vm467, %v2366, 0
        %v2383 = vsel %vm467, %v2367, 0
        %v2386 = vsel %vm467, %v2368, 0
        %v2389 = vsel %vm467, %v2369, 0
        %v2392 = vsel %vm467, %v2370, 0
        %v2395 = vsel %vm467, %v2371, 0
        %v2398 = vsel %vm467, %v2372, 0
        %2400 = vmatprep.subr.bf16.mxu0 0
        %2401 = vmatpush1.bf16.msra.mxu0 0
        %2402 = vmatprep.subr.bf16.mxu0 0
        %2403 = vmatpush1.bf16.msra.mxu0 0
        %2404 = vmatprep.subr.bf16.mxu0 0
        %2405 = vmatpush1.bf16.msra.mxu0 0
        %2406 = vmatprep.subr.bf16.mxu0 0
        %2407 = vmatpush1.bf16.msra.mxu0 0
        %2408 = vmatprep.subr.bf16.mxu0 0
        %2409 = vmatpush1.bf16.msra.mxu0 0
        %2410 = vmatprep.subr.bf16.mxu0 0
        %2411 = vmatpush1.bf16.msra.mxu0 0
        %2412 = vmatprep.subr.bf16.mxu0 0
        %2413 = vmatpush1.bf16.msra.mxu0 0
        %2414 = vmatprep.subr.bf16.mxu0 %v2380
        %2415 = vmatpush1.bf16.msra.mxu0 %v2377
        %2416 = vmatprep.subr.bf16.mxu0 0
        %2417 = vmatpush2.bf16.msra.mxu0 0
        %2418 = vmatprep.subr.bf16.mxu0 0
        %2419 = vmatpush2.bf16.msra.mxu0 0
        %2420 = vmatprep.subr.bf16.mxu0 0
        %2421 = vmatpush2.bf16.msra.mxu0 0
        %2422 = vmatprep.subr.bf16.mxu0 0
        %2423 = vmatpush2.bf16.msra.mxu0 0
        %2424 = vmatprep.subr.bf16.mxu0 0
        %2425 = vmatpush2.bf16.msra.mxu0 0
        %2426 = vmatprep.subr.bf16.mxu0 0
        %2427 = vmatpush2.bf16.msra.mxu0 0
        %2428 = vmatprep.subr.bf16.mxu0 0
        %2429 = vmatpush2.bf16.msra.mxu0 0
        %2430 = vmatprep.subr.bf16.mxu0 0
        %2431 = vmatpush2.bf16.msra.mxu0 0
        %2432 = vmatprep.mubr.bf16.mxu0 0
        %2433 = vmatmul.mubr.bf16.gmra.mxu0 %v2374
        %v2434 = vpop.f32.mrf.mxu0
        %v2435 = vadd.f32 0.0, %v2434
        %v2436 = vpop.f32.mrf.mxu0
        %v2437 = vadd.f32 0.0, %v2436
        %v2438 = vpop.f32.mrf.mxu0
        %v2439 = vpop.f32.mrf.mxu0
        %2440 = vdwg.mxu0
        %2441 = vmatprep.subr.bf16.mxu0 0
        %2442 = vmatpush1.bf16.msra.mxu0 0
        %2443 = vmatprep.subr.bf16.mxu0 0
        %2444 = vmatpush1.bf16.msra.mxu0 0
        %2445 = vmatprep.subr.bf16.mxu0 0
        %2446 = vmatpush1.bf16.msra.mxu0 0
        %2447 = vmatprep.subr.bf16.mxu0 0
        %2448 = vmatpush1.bf16.msra.mxu0 0
        %2449 = vmatprep.subr.bf16.mxu0 0
        %2450 = vmatpush1.bf16.msra.mxu0 0
        %2451 = vmatprep.subr.bf16.mxu0 0
        %2452 = vmatpush1.bf16.msra.mxu0 0
        %2453 = vmatprep.subr.bf16.mxu0 0
        %2454 = vmatpush1.bf16.msra.mxu0 0
        %2455 = vmatprep.subr.bf16.mxu0 %v2386
        %2456 = vmatpush1.bf16.msra.mxu0 %v2383
        %2457 = vmatprep.subr.bf16.mxu0 0
        %2458 = vmatpush2.bf16.msra.mxu0 0
        %2459 = vmatprep.subr.bf16.mxu0 0
        %2460 = vmatpush2.bf16.msra.mxu0 0
        %2461 = vmatprep.subr.bf16.mxu0 0
        %2462 = vmatpush2.bf16.msra.mxu0 0
        %2463 = vmatprep.subr.bf16.mxu0 0
        %2464 = vmatpush2.bf16.msra.mxu0 0
        %2465 = vmatprep.subr.bf16.mxu0 0
        %2466 = vmatpush2.bf16.msra.mxu0 0
        %2467 = vmatprep.subr.bf16.mxu0 0
        %2468 = vmatpush2.bf16.msra.mxu0 0
        %2469 = vmatprep.subr.bf16.mxu0 0
        %2470 = vmatpush2.bf16.msra.mxu0 0
        %2471 = vmatprep.subr.bf16.mxu0 0
        %2472 = vmatpush2.bf16.msra.mxu0 0
        %2473 = vmatprep.mubr.bf16.mxu0 0
        %2474 = vmatmul.mubr.bf16.gmra.mxu0 %v2374
        %v2475 = vpop.f32.mrf.mxu0
        %v2476 = vadd.f32 0.0, %v2475
        %v2477 = vpop.f32.mrf.mxu0
        %v2478 = vadd.f32 0.0, %v2477
        %v2479 = vpop.f32.mrf.mxu0
        %v2480 = vpop.f32.mrf.mxu0
        %2481 = vdwg.mxu0
        %2482 = vmatprep.subr.bf16.mxu0 0
        %2483 = vmatpush1.bf16.msra.mxu0 0
        %2484 = vmatprep.subr.bf16.mxu0 0
        %2485 = vmatpush1.bf16.msra.mxu0 0
        %2486 = vmatprep.subr.bf16.mxu0 0
        %2487 = vmatpush1.bf16.msra.mxu0 0
        %2488 = vmatprep.subr.bf16.mxu0 0
        %2489 = vmatpush1.bf16.msra.mxu0 0
        %2490 = vmatprep.subr.bf16.mxu0 0
        %2491 = vmatpush1.bf16.msra.mxu0 0
        %2492 = vmatprep.subr.bf16.mxu0 0
        %2493 = vmatpush1.bf16.msra.mxu0 0
        %2494 = vmatprep.subr.bf16.mxu0 0
        %2495 = vmatpush1.bf16.msra.mxu0 0
        %2496 = vmatprep.subr.bf16.mxu0 %v2392
        %2497 = vmatpush1.bf16.msra.mxu0 %v2389
        %2498 = vmatprep.subr.bf16.mxu0 0
        %2499 = vmatpush2.bf16.msra.mxu0 0
        %2500 = vmatprep.subr.bf16.mxu0 0
        %2501 = vmatpush2.bf16.msra.mxu0 0
        %2502 = vmatprep.subr.bf16.mxu0 0
        %2503 = vmatpush2.bf16.msra.mxu0 0
        %2504 = vmatprep.subr.bf16.mxu0 0
        %2505 = vmatpush2.bf16.msra.mxu0 0
        %2506 = vmatprep.subr.bf16.mxu0 0
        %2507 = vmatpush2.bf16.msra.mxu0 0
        %2508 = vmatprep.subr.bf16.mxu0 0
        %2509 = vmatpush2.bf16.msra.mxu0 0
        %2510 = vmatprep.subr.bf16.mxu0 0
        %2511 = vmatpush2.bf16.msra.mxu0 0
        %2512 = vmatprep.subr.bf16.mxu0 0
        %2513 = vmatpush2.bf16.msra.mxu0 0
        %2514 = vmatprep.mubr.bf16.mxu0 0
        %2515 = vmatmul.mubr.bf16.gmra.mxu0 %v2374
        %v2516 = vpop.f32.mrf.mxu0
        %v2517 = vadd.f32 0.0, %v2516
        %v2518 = vpop.f32.mrf.mxu0
        %v2519 = vadd.f32 0.0, %v2518
        %v2520 = vpop.f32.mrf.mxu0
        %v2521 = vpop.f32.mrf.mxu0
        %2522 = vdwg.mxu0
        %2523 = vmatprep.subr.bf16.mxu0 0
        %2524 = vmatpush1.bf16.msra.mxu0 0
        %2525 = vmatprep.subr.bf16.mxu0 0
        %2526 = vmatpush1.bf16.msra.mxu0 0
        %2527 = vmatprep.subr.bf16.mxu0 0
        %2528 = vmatpush1.bf16.msra.mxu0 0
        %2529 = vmatprep.subr.bf16.mxu0 0
        %2530 = vmatpush1.bf16.msra.mxu0 0
        %2531 = vmatprep.subr.bf16.mxu0 0
        %2532 = vmatpush1.bf16.msra.mxu0 0
        %2533 = vmatprep.subr.bf16.mxu0 0
        %2534 = vmatpush1.bf16.msra.mxu0 0
        %2535 = vmatprep.subr.bf16.mxu0 0
        %2536 = vmatpush1.bf16.msra.mxu0 0
        %2537 = vmatprep.subr.bf16.mxu0 %v2398
        %2538 = vmatpush1.bf16.msra.mxu0 %v2395
        %2539 = vmatprep.subr.bf16.mxu0 0
        %2540 = vmatpush2.bf16.msra.mxu0 0
        %2541 = vmatprep.subr.bf16.mxu0 0
        %2542 = vmatpush2.bf16.msra.mxu0 0
        %2543 = vmatprep.subr.bf16.mxu0 0
        %2544 = vmatpush2.bf16.msra.mxu0 0
        %2545 = vmatprep.subr.bf16.mxu0 0
        %2546 = vmatpush2.bf16.msra.mxu0 0
        %2547 = vmatprep.subr.bf16.mxu0 0
        %2548 = vmatpush2.bf16.msra.mxu0 0
        %2549 = vmatprep.subr.bf16.mxu0 0
        %2550 = vmatpush2.bf16.msra.mxu0 0
        %2551 = vmatprep.subr.bf16.mxu0 0
        %2552 = vmatpush2.bf16.msra.mxu0 0
        %2553 = vmatprep.subr.bf16.mxu0 0
        %2554 = vmatpush2.bf16.msra.mxu0 0
        %2555 = vmatprep.mubr.bf16.mxu0 0
        %2556 = vmatmul.mubr.bf16.gmra.mxu0 %v2374
        %v2557 = vpop.f32.mrf.mxu0
        %v2558 = vadd.f32 0.0, %v2557
        %v2559 = vpop.f32.mrf.mxu0
        %v2560 = vadd.f32 0.0, %v2559
        %v2561 = vpop.f32.mrf.mxu0
        %v2562 = vpop.f32.mrf.mxu0
        %2563 = vdwg.mxu0
        %v2564 = vadd.f32 %v2339, %v2435
        %v2565 = vadd.f32 %v2340, %v2437
        %v2566 = vadd.f32 %v2341, %v2476
        %v2567 = vadd.f32 %v2342, %v2478
        %v2568 = vadd.f32 %v2343, %v2517
        %v2569 = vadd.f32 %v2344, %v2519
        %v2570 = vadd.f32 %v2345, %v2558
        %v2571 = vadd.f32 %v2346, %v2560
        %s2572 = scalar_lea.vmem %s3, 20
        %v2573 = vld [vmem:[%s2572] sm:$0xf]
        %2574 = vrot.lane.b32.xlu0 %v2365, 127
        %v2575 = vpop.permute.xlu0 %2574
        %2576 = vrot.lane.b32.xlu0 %v2366, 127
        %v2577 = vpop.permute.xlu0 %2576
        %2578 = vrot.lane.b32.xlu0 %v2367, 127
        %v2579 = vpop.permute.xlu0 %2578
        %2580 = vrot.lane.b32.xlu0 %v2368, 127
        %v2581 = vpop.permute.xlu0 %2580
        %2582 = vrot.lane.b32.xlu0 %v2369, 127
        %v2583 = vpop.permute.xlu0 %2582
        %2584 = vrot.lane.b32.xlu0 %v2370, 127
        %v2585 = vpop.permute.xlu0 %2584
        %2586 = vrot.lane.b32.xlu0 %v2371, 127
        %v2587 = vpop.permute.xlu0 %2586
        %2588 = vrot.lane.b32.xlu0 %v2372, 127
        %v2589 = vpop.permute.xlu0 %2588
        %vm2590 = vcmask 1039360
        %v2591 = vsel %vm2590, %v2575, %v2577
        %v2592 = vsel %vm2590, %v2577, %v2579
        %v2593 = vsel %vm2590, %v2579, %v2581
        %v2594 = vsel %vm2590, %v2581, %v2583
        %v2595 = vsel %vm2590, %v2583, %v2585
        %v2596 = vsel %vm2590, %v2585, %v2587
        %v2597 = vsel %vm2590, %v2587, %v2589
        %v2599 = vsel %vm1460, %v2573, 0
        %v2602 = vsel %vm467, %v2591, 0
        %v2605 = vsel %vm467, %v2592, 0
        %v2608 = vsel %vm467, %v2593, 0
        %v2611 = vsel %vm467, %v2594, 0
        %v2614 = vsel %vm467, %v2595, 0
        %v2617 = vsel %vm467, %v2596, 0
        %v2620 = vsel %vm467, %v2597, 0
        %v2623 = vsel %vm467, %v2589, 0
        %2625 = vmatprep.subr.bf16.mxu0 0
        %2626 = vmatpush1.bf16.msra.mxu0 0
        %2627 = vmatprep.subr.bf16.mxu0 0
        %2628 = vmatpush1.bf16.msra.mxu0 0
        %2629 = vmatprep.subr.bf16.mxu0 0
        %2630 = vmatpush1.bf16.msra.mxu0 0
        %2631 = vmatprep.subr.bf16.mxu0 0
        %2632 = vmatpush1.bf16.msra.mxu0 0
        %2633 = vmatprep.subr.bf16.mxu0 0
        %2634 = vmatpush1.bf16.msra.mxu0 0
        %2635 = vmatprep.subr.bf16.mxu0 0
        %2636 = vmatpush1.bf16.msra.mxu0 0
        %2637 = vmatprep.subr.bf16.mxu0 0
        %2638 = vmatpush1.bf16.msra.mxu0 0
        %2639 = vmatprep.subr.bf16.mxu0 %v2605
        %2640 = vmatpush1.bf16.msra.mxu0 %v2602
        %2641 = vmatprep.subr.bf16.mxu0 0
        %2642 = vmatpush2.bf16.msra.mxu0 0
        %2643 = vmatprep.subr.bf16.mxu0 0
        %2644 = vmatpush2.bf16.msra.mxu0 0
        %2645 = vmatprep.subr.bf16.mxu0 0
        %2646 = vmatpush2.bf16.msra.mxu0 0
        %2647 = vmatprep.subr.bf16.mxu0 0
        %2648 = vmatpush2.bf16.msra.mxu0 0
        %2649 = vmatprep.subr.bf16.mxu0 0
        %2650 = vmatpush2.bf16.msra.mxu0 0
        %2651 = vmatprep.subr.bf16.mxu0 0
        %2652 = vmatpush2.bf16.msra.mxu0 0
        %2653 = vmatprep.subr.bf16.mxu0 0
        %2654 = vmatpush2.bf16.msra.mxu0 0
        %2655 = vmatprep.subr.bf16.mxu0 0
        %2656 = vmatpush2.bf16.msra.mxu0 0
        %2657 = vmatprep.mubr.bf16.mxu0 0
        %2658 = vmatmul.mubr.bf16.gmra.mxu0 %v2599
        %v2659 = vpop.f32.mrf.mxu0
        %v2660 = vadd.f32 0.0, %v2659
        %v2661 = vpop.f32.mrf.mxu0
        %v2662 = vadd.f32 0.0, %v2661
        %v2663 = vpop.f32.mrf.mxu0
        %v2664 = vpop.f32.mrf.mxu0
        %2665 = vdwg.mxu0
        %2666 = vmatprep.subr.bf16.mxu0 0
        %2667 = vmatpush1.bf16.msra.mxu0 0
        %2668 = vmatprep.subr.bf16.mxu0 0
        %2669 = vmatpush1.bf16.msra.mxu0 0
        %2670 = vmatprep.subr.bf16.mxu0 0
        %2671 = vmatpush1.bf16.msra.mxu0 0
        %2672 = vmatprep.subr.bf16.mxu0 0
        %2673 = vmatpush1.bf16.msra.mxu0 0
        %2674 = vmatprep.subr.bf16.mxu0 0
        %2675 = vmatpush1.bf16.msra.mxu0 0
        %2676 = vmatprep.subr.bf16.mxu0 0
        %2677 = vmatpush1.bf16.msra.mxu0 0
        %2678 = vmatprep.subr.bf16.mxu0 0
        %2679 = vmatpush1.bf16.msra.mxu0 0
        %2680 = vmatprep.subr.bf16.mxu0 %v2611
        %2681 = vmatpush1.bf16.msra.mxu0 %v2608
        %2682 = vmatprep.subr.bf16.mxu0 0
        %2683 = vmatpush2.bf16.msra.mxu0 0
        %2684 = vmatprep.subr.bf16.mxu0 0
        %2685 = vmatpush2.bf16.msra.mxu0 0
        %2686 = vmatprep.subr.bf16.mxu0 0
        %2687 = vmatpush2.bf16.msra.mxu0 0
        %2688 = vmatprep.subr.bf16.mxu0 0
        %2689 = vmatpush2.bf16.msra.mxu0 0
        %2690 = vmatprep.subr.bf16.mxu0 0
        %2691 = vmatpush2.bf16.msra.mxu0 0
        %2692 = vmatprep.subr.bf16.mxu0 0
        %2693 = vmatpush2.bf16.msra.mxu0 0
        %2694 = vmatprep.subr.bf16.mxu0 0
        %2695 = vmatpush2.bf16.msra.mxu0 0
        %2696 = vmatprep.subr.bf16.mxu0 0
        %2697 = vmatpush2.bf16.msra.mxu0 0
        %2698 = vmatprep.mubr.bf16.mxu0 0
        %2699 = vmatmul.mubr.bf16.gmra.mxu0 %v2599
        %v2700 = vpop.f32.mrf.mxu0
        %v2701 = vadd.f32 0.0, %v2700
        %v2702 = vpop.f32.mrf.mxu0
        %v2703 = vadd.f32 0.0, %v2702
        %v2704 = vpop.f32.mrf.mxu0
        %v2705 = vpop.f32.mrf.mxu0
        %2706 = vdwg.mxu0
        %2707 = vmatprep.subr.bf16.mxu0 0
        %2708 = vmatpush1.bf16.msra.mxu0 0
        %2709 = vmatprep.subr.bf16.mxu0 0
        %2710 = vmatpush1.bf16.msra.mxu0 0
        %2711 = vmatprep.subr.bf16.mxu0 0
        %2712 = vmatpush1.bf16.msra.mxu0 0
        %2713 = vmatprep.subr.bf16.mxu0 0
        %2714 = vmatpush1.bf16.msra.mxu0 0
        %2715 = vmatprep.subr.bf16.mxu0 0
        %2716 = vmatpush1.bf16.msra.mxu0 0
        %2717 = vmatprep.subr.bf16.mxu0 0
        %2718 = vmatpush1.bf16.msra.mxu0 0
        %2719 = vmatprep.subr.bf16.mxu0 0
        %2720 = vmatpush1.bf16.msra.mxu0 0
        %2721 = vmatprep.subr.bf16.mxu0 %v2617
        %2722 = vmatpush1.bf16.msra.mxu0 %v2614
        %2723 = vmatprep.subr.bf16.mxu0 0
        %2724 = vmatpush2.bf16.msra.mxu0 0
        %2725 = vmatprep.subr.bf16.mxu0 0
        %2726 = vmatpush2.bf16.msra.mxu0 0
        %2727 = vmatprep.subr.bf16.mxu0 0
        %2728 = vmatpush2.bf16.msra.mxu0 0
        %2729 = vmatprep.subr.bf16.mxu0 0
        %2730 = vmatpush2.bf16.msra.mxu0 0
        %2731 = vmatprep.subr.bf16.mxu0 0
        %2732 = vmatpush2.bf16.msra.mxu0 0
        %2733 = vmatprep.subr.bf16.mxu0 0
        %2734 = vmatpush2.bf16.msra.mxu0 0
        %2735 = vmatprep.subr.bf16.mxu0 0
        %2736 = vmatpush2.bf16.msra.mxu0 0
        %2737 = vmatprep.subr.bf16.mxu0 0
        %2738 = vmatpush2.bf16.msra.mxu0 0
        %2739 = vmatprep.mubr.bf16.mxu0 0
        %2740 = vmatmul.mubr.bf16.gmra.mxu0 %v2599
        %v2741 = vpop.f32.mrf.mxu0
        %v2742 = vadd.f32 0.0, %v2741
        %v2743 = vpop.f32.mrf.mxu0
        %v2744 = vadd.f32 0.0, %v2743
        %v2745 = vpop.f32.mrf.mxu0
        %v2746 = vpop.f32.mrf.mxu0
        %2747 = vdwg.mxu0
        %2748 = vmatprep.subr.bf16.mxu0 0
        %2749 = vmatpush1.bf16.msra.mxu0 0
        %2750 = vmatprep.subr.bf16.mxu0 0
        %2751 = vmatpush1.bf16.msra.mxu0 0
        %2752 = vmatprep.subr.bf16.mxu0 0
        %2753 = vmatpush1.bf16.msra.mxu0 0
        %2754 = vmatprep.subr.bf16.mxu0 0
        %2755 = vmatpush1.bf16.msra.mxu0 0
        %2756 = vmatprep.subr.bf16.mxu0 0
        %2757 = vmatpush1.bf16.msra.mxu0 0
        %2758 = vmatprep.subr.bf16.mxu0 0
        %2759 = vmatpush1.bf16.msra.mxu0 0
        %2760 = vmatprep.subr.bf16.mxu0 0
        %2761 = vmatpush1.bf16.msra.mxu0 0
        %2762 = vmatprep.subr.bf16.mxu0 %v2623
        %2763 = vmatpush1.bf16.msra.mxu0 %v2620
        %2764 = vmatprep.subr.bf16.mxu0 0
        %2765 = vmatpush2.bf16.msra.mxu0 0
        %2766 = vmatprep.subr.bf16.mxu0 0
        %2767 = vmatpush2.bf16.msra.mxu0 0
        %2768 = vmatprep.subr.bf16.mxu0 0
        %2769 = vmatpush2.bf16.msra.mxu0 0
        %2770 = vmatprep.subr.bf16.mxu0 0
        %2771 = vmatpush2.bf16.msra.mxu0 0
        %2772 = vmatprep.subr.bf16.mxu0 0
        %2773 = vmatpush2.bf16.msra.mxu0 0
        %2774 = vmatprep.subr.bf16.mxu0 0
        %2775 = vmatpush2.bf16.msra.mxu0 0
        %2776 = vmatprep.subr.bf16.mxu0 0
        %2777 = vmatpush2.bf16.msra.mxu0 0
        %2778 = vmatprep.subr.bf16.mxu0 0
        %2779 = vmatpush2.bf16.msra.mxu0 0
        %2780 = vmatprep.mubr.bf16.mxu0 0
        %2781 = vmatmul.mubr.bf16.gmra.mxu0 %v2599
        %v2782 = vpop.f32.mrf.mxu0
        %v2783 = vadd.f32 0.0, %v2782
        %v2784 = vpop.f32.mrf.mxu0
        %v2785 = vadd.f32 0.0, %v2784
        %v2786 = vpop.f32.mrf.mxu0
        %v2787 = vpop.f32.mrf.mxu0
        %2788 = vdwg.mxu0
        %v2789 = vadd.f32 %v2564, %v2660
        %v2790 = vadd.f32 %v2565, %v2662
        %v2791 = vadd.f32 %v2566, %v2701
        %v2792 = vadd.f32 %v2567, %v2703
        %v2793 = vadd.f32 %v2568, %v2742
        %v2794 = vadd.f32 %v2569, %v2744
        %v2795 = vadd.f32 %v2570, %v2783
        %v2796 = vadd.f32 %v2571, %v2785
        %s2797 = scalar_lea.vmem %s3, 24
        %v2798 = vld [vmem:[%s2797] sm:$0xf]
        %2799 = vrot.lane.b32.xlu0 %v2365, 99
        %v2800 = vpop.permute.xlu0 %2799
        %2801 = vrot.lane.b32.xlu0 %v2366, 99
        %v2802 = vpop.permute.xlu0 %2801
        %2803 = vrot.lane.b32.xlu0 %v2367, 99
        %v2804 = vpop.permute.xlu0 %2803
        %2805 = vrot.lane.b32.xlu0 %v2368, 99
        %v2806 = vpop.permute.xlu0 %2805
        %2807 = vrot.lane.b32.xlu0 %v2369, 99
        %v2808 = vpop.permute.xlu0 %2807
        %2809 = vrot.lane.b32.xlu0 %v2370, 99
        %v2810 = vpop.permute.xlu0 %2809
        %2811 = vrot.lane.b32.xlu0 %v2371, 99
        %v2812 = vpop.permute.xlu0 %2811
        %2813 = vrot.lane.b32.xlu0 %v2372, 99
        %v2814 = vpop.permute.xlu0 %2813
        %vm2815 = vcmask 809984
        %v2816 = vsel %vm2815, %v2800, %v2802
        %v2817 = vsel %vm2815, %v2802, %v2804
        %v2818 = vsel %vm2815, %v2804, %v2806
        %v2819 = vsel %vm2815, %v2806, %v2808
        %v2820 = vsel %vm2815, %v2808, %v2810
        %v2821 = vsel %vm2815, %v2810, %v2812
        %v2822 = vsel %vm2815, %v2812, %v2814
        %v2824 = vsel %vm1460, %v2798, 0
        %v2827 = vsel %vm467, %v2816, 0
        %v2830 = vsel %vm467, %v2817, 0
        %v2833 = vsel %vm467, %v2818, 0
        %v2836 = vsel %vm467, %v2819, 0
        %v2839 = vsel %vm467, %v2820, 0
        %v2842 = vsel %vm467, %v2821, 0
        %v2845 = vsel %vm467, %v2822, 0
        %v2848 = vsel %vm467, %v2814, 0
        %2850 = vmatprep.subr.bf16.mxu0 0
        %2851 = vmatpush1.bf16.msra.mxu0 0
        %2852 = vmatprep.subr.bf16.mxu0 0
        %2853 = vmatpush1.bf16.msra.mxu0 0
        %2854 = vmatprep.subr.bf16.mxu0 0
        %2855 = vmatpush1.bf16.msra.mxu0 0
        %2856 = vmatprep.subr.bf16.mxu0 0
        %2857 = vmatpush1.bf16.msra.mxu0 0
        %2858 = vmatprep.subr.bf16.mxu0 0
        %2859 = vmatpush1.bf16.msra.mxu0 0
        %2860 = vmatprep.subr.bf16.mxu0 0
        %2861 = vmatpush1.bf16.msra.mxu0 0
        %2862 = vmatprep.subr.bf16.mxu0 0
        %2863 = vmatpush1.bf16.msra.mxu0 0
        %2864 = vmatprep.subr.bf16.mxu0 %v2830
        %2865 = vmatpush1.bf16.msra.mxu0 %v2827
        %2866 = vmatprep.subr.bf16.mxu0 0
        %2867 = vmatpush2.bf16.msra.mxu0 0
        %2868 = vmatprep.subr.bf16.mxu0 0
        %2869 = vmatpush2.bf16.msra.mxu0 0
        %2870 = vmatprep.subr.bf16.mxu0 0
        %2871 = vmatpush2.bf16.msra.mxu0 0
        %2872 = vmatprep.subr.bf16.mxu0 0
        %2873 = vmatpush2.bf16.msra.mxu0 0
        %2874 = vmatprep.subr.bf16.mxu0 0
        %2875 = vmatpush2.bf16.msra.mxu0 0
        %2876 = vmatprep.subr.bf16.mxu0 0
        %2877 = vmatpush2.bf16.msra.mxu0 0
        %2878 = vmatprep.subr.bf16.mxu0 0
        %2879 = vmatpush2.bf16.msra.mxu0 0
        %2880 = vmatprep.subr.bf16.mxu0 0
        %2881 = vmatpush2.bf16.msra.mxu0 0
        %2882 = vmatprep.mubr.bf16.mxu0 0
        %2883 = vmatmul.mubr.bf16.gmra.mxu0 %v2824
        %v2884 = vpop.f32.mrf.mxu0
        %v2885 = vadd.f32 0.0, %v2884
        %v2886 = vpop.f32.mrf.mxu0
        %v2887 = vadd.f32 0.0, %v2886
        %v2888 = vpop.f32.mrf.mxu0
        %v2889 = vpop.f32.mrf.mxu0
        %2890 = vdwg.mxu0
        %2891 = vmatprep.subr.bf16.mxu0 0
        %2892 = vmatpush1.bf16.msra.mxu0 0
        %2893 = vmatprep.subr.bf16.mxu0 0
        %2894 = vmatpush1.bf16.msra.mxu0 0
        %2895 = vmatprep.subr.bf16.mxu0 0
        %2896 = vmatpush1.bf16.msra.mxu0 0
        %2897 = vmatprep.subr.bf16.mxu0 0
        %2898 = vmatpush1.bf16.msra.mxu0 0
        %2899 = vmatprep.subr.bf16.mxu0 0
        %2900 = vmatpush1.bf16.msra.mxu0 0
        %2901 = vmatprep.subr.bf16.mxu0 0
        %2902 = vmatpush1.bf16.msra.mxu0 0
        %2903 = vmatprep.subr.bf16.mxu0 0
        %2904 = vmatpush1.bf16.msra.mxu0 0
        %2905 = vmatprep.subr.bf16.mxu0 %v2836
        %2906 = vmatpush1.bf16.msra.mxu0 %v2833
        %2907 = vmatprep.subr.bf16.mxu0 0
        %2908 = vmatpush2.bf16.msra.mxu0 0
        %2909 = vmatprep.subr.bf16.mxu0 0
        %2910 = vmatpush2.bf16.msra.mxu0 0
        %2911 = vmatprep.subr.bf16.mxu0 0
        %2912 = vmatpush2.bf16.msra.mxu0 0
        %2913 = vmatprep.subr.bf16.mxu0 0
        %2914 = vmatpush2.bf16.msra.mxu0 0
        %2915 = vmatprep.subr.bf16.mxu0 0
        %2916 = vmatpush2.bf16.msra.mxu0 0
        %2917 = vmatprep.subr.bf16.mxu0 0
        %2918 = vmatpush2.bf16.msra.mxu0 0
        %2919 = vmatprep.subr.bf16.mxu0 0
        %2920 = vmatpush2.bf16.msra.mxu0 0
        %2921 = vmatprep.subr.bf16.mxu0 0
        %2922 = vmatpush2.bf16.msra.mxu0 0
        %2923 = vmatprep.mubr.bf16.mxu0 0
        %2924 = vmatmul.mubr.bf16.gmra.mxu0 %v2824
        %v2925 = vpop.f32.mrf.mxu0
        %v2926 = vadd.f32 0.0, %v2925
        %v2927 = vpop.f32.mrf.mxu0
        %v2928 = vadd.f32 0.0, %v2927
        %v2929 = vpop.f32.mrf.mxu0
        %v2930 = vpop.f32.mrf.mxu0
        %2931 = vdwg.mxu0
        %2932 = vmatprep.subr.bf16.mxu0 0
        %2933 = vmatpush1.bf16.msra.mxu0 0
        %2934 = vmatprep.subr.bf16.mxu0 0
        %2935 = vmatpush1.bf16.msra.mxu0 0
        %2936 = vmatprep.subr.bf16.mxu0 0
        %2937 = vmatpush1.bf16.msra.mxu0 0
        %2938 = vmatprep.subr.bf16.mxu0 0
        %2939 = vmatpush1.bf16.msra.mxu0 0
        %2940 = vmatprep.subr.bf16.mxu0 0
        %2941 = vmatpush1.bf16.msra.mxu0 0
        %2942 = vmatprep.subr.bf16.mxu0 0
        %2943 = vmatpush1.bf16.msra.mxu0 0
        %2944 = vmatprep.subr.bf16.mxu0 0
        %2945 = vmatpush1.bf16.msra.mxu0 0
        %2946 = vmatprep.subr.bf16.mxu0 %v2842
        %2947 = vmatpush1.bf16.msra.mxu0 %v2839
        %2948 = vmatprep.subr.bf16.mxu0 0
        %2949 = vmatpush2.bf16.msra.mxu0 0
        %2950 = vmatprep.subr.bf16.mxu0 0
        %2951 = vmatpush2.bf16.msra.mxu0 0
        %2952 = vmatprep.subr.bf16.mxu0 0
        %2953 = vmatpush2.bf16.msra.mxu0 0
        %2954 = vmatprep.subr.bf16.mxu0 0
        %2955 = vmatpush2.bf16.msra.mxu0 0
        %2956 = vmatprep.subr.bf16.mxu0 0
        %2957 = vmatpush2.bf16.msra.mxu0 0
        %2958 = vmatprep.subr.bf16.mxu0 0
        %2959 = vmatpush2.bf16.msra.mxu0 0
        %2960 = vmatprep.subr.bf16.mxu0 0
        %2961 = vmatpush2.bf16.msra.mxu0 0
        %2962 = vmatprep.subr.bf16.mxu0 0
        %2963 = vmatpush2.bf16.msra.mxu0 0
        %2964 = vmatprep.mubr.bf16.mxu0 0
        %2965 = vmatmul.mubr.bf16.gmra.mxu0 %v2824
        %v2966 = vpop.f32.mrf.mxu0
        %v2967 = vadd.f32 0.0, %v2966
        %v2968 = vpop.f32.mrf.mxu0
        %v2969 = vadd.f32 0.0, %v2968
        %v2970 = vpop.f32.mrf.mxu0
        %v2971 = vpop.f32.mrf.mxu0
        %2972 = vdwg.mxu0
        %2973 = vmatprep.subr.bf16.mxu0 0
        %2974 = vmatpush1.bf16.msra.mxu0 0
        %2975 = vmatprep.subr.bf16.mxu0 0
        %2976 = vmatpush1.bf16.msra.mxu0 0
        %2977 = vmatprep.subr.bf16.mxu0 0
        %2978 = vmatpush1.bf16.msra.mxu0 0
        %2979 = vmatprep.subr.bf16.mxu0 0
        %2980 = vmatpush1.bf16.msra.mxu0 0
        %2981 = vmatprep.subr.bf16.mxu0 0
        %2982 = vmatpush1.bf16.msra.mxu0 0
        %2983 = vmatprep.subr.bf16.mxu0 0
        %2984 = vmatpush1.bf16.msra.mxu0 0
        %2985 = vmatprep.subr.bf16.mxu0 0
        %2986 = vmatpush1.bf16.msra.mxu0 0
        %2987 = vmatprep.subr.bf16.mxu0 %v2848
        %2988 = vmatpush1.bf16.msra.mxu0 %v2845
        %2989 = vmatprep.subr.bf16.mxu0 0
        %2990 = vmatpush2.bf16.msra.mxu0 0
        %2991 = vmatprep.subr.bf16.mxu0 0
        %2992 = vmatpush2.bf16.msra.mxu0 0
        %2993 = vmatprep.subr.bf16.mxu0 0
        %2994 = vmatpush2.bf16.msra.mxu0 0
        %2995 = vmatprep.subr.bf16.mxu0 0
        %2996 = vmatpush2.bf16.msra.mxu0 0
        %2997 = vmatprep.subr.bf16.mxu0 0
        %2998 = vmatpush2.bf16.msra.mxu0 0
        %2999 = vmatprep.subr.bf16.mxu0 0
        %3000 = vmatpush2.bf16.msra.mxu0 0
        %3001 = vmatprep.subr.bf16.mxu0 0
        %3002 = vmatpush2.bf16.msra.mxu0 0
        %3003 = vmatprep.subr.bf16.mxu0 0
        %3004 = vmatpush2.bf16.msra.mxu0 0
        %3005 = vmatprep.mubr.bf16.mxu0 0
        %3006 = vmatmul.mubr.bf16.gmra.mxu0 %v2824
        %v3007 = vpop.f32.mrf.mxu0
        %v3008 = vadd.f32 0.0, %v3007
        %v3009 = vpop.f32.mrf.mxu0
        %v3010 = vadd.f32 0.0, %v3009
        %v3011 = vpop.f32.mrf.mxu0
        %v3012 = vpop.f32.mrf.mxu0
        %3013 = vdwg.mxu0
        %v3014 = vadd.f32 %v2789, %v2885
        %v3015 = vadd.f32 %v2790, %v2887
        %v3016 = vadd.f32 %v2791, %v2926
        %v3017 = vadd.f32 %v2792, %v2928
        %v3018 = vadd.f32 %v2793, %v2967
        %v3019 = vadd.f32 %v2794, %v2969
        %v3020 = vadd.f32 %v2795, %v3008
        %v3021 = vadd.f32 %v2796, %v3010
        %s3022 = scalar_lea.vmem %s3, 28
        %v3023 = vld [vmem:[%s3022] sm:$0xf]
        %3024 = vrot.lane.b32.xlu0 %v2365, 98
        %v3025 = vpop.permute.xlu0 %3024
        %3026 = vrot.lane.b32.xlu0 %v2366, 98
        %v3027 = vpop.permute.xlu0 %3026
        %3028 = vrot.lane.b32.xlu0 %v2367, 98
        %v3029 = vpop.permute.xlu0 %3028
        %3030 = vrot.lane.b32.xlu0 %v2368, 98
        %v3031 = vpop.permute.xlu0 %3030
        %3032 = vrot.lane.b32.xlu0 %v2369, 98
        %v3033 = vpop.permute.xlu0 %3032
        %3034 = vrot.lane.b32.xlu0 %v2370, 98
        %v3035 = vpop.permute.xlu0 %3034
        %3036 = vrot.lane.b32.xlu0 %v2371, 98
        %v3037 = vpop.permute.xlu0 %3036
        %3038 = vrot.lane.b32.xlu0 %v2372, 98
        %v3039 = vpop.permute.xlu0 %3038
        %vm3040 = vcmask 801792
        %v3041 = vsel %vm3040, %v3025, %v3027
        %v3042 = vsel %vm3040, %v3027, %v3029
        %v3043 = vsel %vm3040, %v3029, %v3031
        %v3044 = vsel %vm3040, %v3031, %v3033
        %v3045 = vsel %vm3040, %v3033, %v3035
        %v3046 = vsel %vm3040, %v3035, %v3037
        %v3047 = vsel %vm3040, %v3037, %v3039
        %v3049 = vsel %vm1460, %v3023, 0
        %v3052 = vsel %vm467, %v3041, 0
        %v3055 = vsel %vm467, %v3042, 0
        %v3058 = vsel %vm467, %v3043, 0
        %v3061 = vsel %vm467, %v3044, 0
        %v3064 = vsel %vm467, %v3045, 0
        %v3067 = vsel %vm467, %v3046, 0
        %v3070 = vsel %vm467, %v3047, 0
        %v3073 = vsel %vm467, %v3039, 0
        %3075 = vmatprep.subr.bf16.mxu0 0
        %3076 = vmatpush1.bf16.msra.mxu0 0
        %3077 = vmatprep.subr.bf16.mxu0 0
        %3078 = vmatpush1.bf16.msra.mxu0 0
        %3079 = vmatprep.subr.bf16.mxu0 0
        %3080 = vmatpush1.bf16.msra.mxu0 0
        %3081 = vmatprep.subr.bf16.mxu0 0
        %3082 = vmatpush1.bf16.msra.mxu0 0
        %3083 = vmatprep.subr.bf16.mxu0 0
        %3084 = vmatpush1.bf16.msra.mxu0 0
        %3085 = vmatprep.subr.bf16.mxu0 0
        %3086 = vmatpush1.bf16.msra.mxu0 0
        %3087 = vmatprep.subr.bf16.mxu0 0
        %3088 = vmatpush1.bf16.msra.mxu0 0
        %3089 = vmatprep.subr.bf16.mxu0 %v3055
        %3090 = vmatpush1.bf16.msra.mxu0 %v3052
        %3091 = vmatprep.subr.bf16.mxu0 0
        %3092 = vmatpush2.bf16.msra.mxu0 0
        %3093 = vmatprep.subr.bf16.mxu0 0
        %3094 = vmatpush2.bf16.msra.mxu0 0
        %3095 = vmatprep.subr.bf16.mxu0 0
        %3096 = vmatpush2.bf16.msra.mxu0 0
        %3097 = vmatprep.subr.bf16.mxu0 0
        %3098 = vmatpush2.bf16.msra.mxu0 0
        %3099 = vmatprep.subr.bf16.mxu0 0
        %3100 = vmatpush2.bf16.msra.mxu0 0
        %3101 = vmatprep.subr.bf16.mxu0 0
        %3102 = vmatpush2.bf16.msra.mxu0 0
        %3103 = vmatprep.subr.bf16.mxu0 0
        %3104 = vmatpush2.bf16.msra.mxu0 0
        %3105 = vmatprep.subr.bf16.mxu0 0
        %3106 = vmatpush2.bf16.msra.mxu0 0
        %3107 = vmatprep.mubr.bf16.mxu0 0
        %3108 = vmatmul.mubr.bf16.gmra.mxu0 %v3049
        %v3109 = vpop.f32.mrf.mxu0
        %v3110 = vadd.f32 0.0, %v3109
        %v3111 = vpop.f32.mrf.mxu0
        %v3112 = vadd.f32 0.0, %v3111
        %v3113 = vpop.f32.mrf.mxu0
        %v3114 = vpop.f32.mrf.mxu0
        %3115 = vdwg.mxu0
        %3116 = vmatprep.subr.bf16.mxu0 0
        %3117 = vmatpush1.bf16.msra.mxu0 0
        %3118 = vmatprep.subr.bf16.mxu0 0
        %3119 = vmatpush1.bf16.msra.mxu0 0
        %3120 = vmatprep.subr.bf16.mxu0 0
        %3121 = vmatpush1.bf16.msra.mxu0 0
        %3122 = vmatprep.subr.bf16.mxu0 0
        %3123 = vmatpush1.bf16.msra.mxu0 0
        %3124 = vmatprep.subr.bf16.mxu0 0
        %3125 = vmatpush1.bf16.msra.mxu0 0
        %3126 = vmatprep.subr.bf16.mxu0 0
        %3127 = vmatpush1.bf16.msra.mxu0 0
        %3128 = vmatprep.subr.bf16.mxu0 0
        %3129 = vmatpush1.bf16.msra.mxu0 0
        %3130 = vmatprep.subr.bf16.mxu0 %v3061
        %3131 = vmatpush1.bf16.msra.mxu0 %v3058
        %3132 = vmatprep.subr.bf16.mxu0 0
        %3133 = vmatpush2.bf16.msra.mxu0 0
        %3134 = vmatprep.subr.bf16.mxu0 0
        %3135 = vmatpush2.bf16.msra.mxu0 0
        %3136 = vmatprep.subr.bf16.mxu0 0
        %3137 = vmatpush2.bf16.msra.mxu0 0
        %3138 = vmatprep.subr.bf16.mxu0 0
        %3139 = vmatpush2.bf16.msra.mxu0 0
        %3140 = vmatprep.subr.bf16.mxu0 0
        %3141 = vmatpush2.bf16.msra.mxu0 0
        %3142 = vmatprep.subr.bf16.mxu0 0
        %3143 = vmatpush2.bf16.msra.mxu0 0
        %3144 = vmatprep.subr.bf16.mxu0 0
        %3145 = vmatpush2.bf16.msra.mxu0 0
        %3146 = vmatprep.subr.bf16.mxu0 0
        %3147 = vmatpush2.bf16.msra.mxu0 0
        %3148 = vmatprep.mubr.bf16.mxu0 0
        %3149 = vmatmul.mubr.bf16.gmra.mxu0 %v3049
        %v3150 = vpop.f32.mrf.mxu0
        %v3151 = vadd.f32 0.0, %v3150
        %v3152 = vpop.f32.mrf.mxu0
        %v3153 = vadd.f32 0.0, %v3152
        %v3154 = vpop.f32.mrf.mxu0
        %v3155 = vpop.f32.mrf.mxu0
        %3156 = vdwg.mxu0
        %3157 = vmatprep.subr.bf16.mxu0 0
        %3158 = vmatpush1.bf16.msra.mxu0 0
        %3159 = vmatprep.subr.bf16.mxu0 0
        %3160 = vmatpush1.bf16.msra.mxu0 0
        %3161 = vmatprep.subr.bf16.mxu0 0
        %3162 = vmatpush1.bf16.msra.mxu0 0
        %3163 = vmatprep.subr.bf16.mxu0 0
        %3164 = vmatpush1.bf16.msra.mxu0 0
        %3165 = vmatprep.subr.bf16.mxu0 0
        %3166 = vmatpush1.bf16.msra.mxu0 0
        %3167 = vmatprep.subr.bf16.mxu0 0
        %3168 = vmatpush1.bf16.msra.mxu0 0
        %3169 = vmatprep.subr.bf16.mxu0 0
        %3170 = vmatpush1.bf16.msra.mxu0 0
        %3171 = vmatprep.subr.bf16.mxu0 %v3067
        %3172 = vmatpush1.bf16.msra.mxu0 %v3064
        %3173 = vmatprep.subr.bf16.mxu0 0
        %3174 = vmatpush2.bf16.msra.mxu0 0
        %3175 = vmatprep.subr.bf16.mxu0 0
        %3176 = vmatpush2.bf16.msra.mxu0 0
        %3177 = vmatprep.subr.bf16.mxu0 0
        %3178 = vmatpush2.bf16.msra.mxu0 0
        %3179 = vmatprep.subr.bf16.mxu0 0
        %3180 = vmatpush2.bf16.msra.mxu0 0
        %3181 = vmatprep.subr.bf16.mxu0 0
        %3182 = vmatpush2.bf16.msra.mxu0 0
        %3183 = vmatprep.subr.bf16.mxu0 0
        %3184 = vmatpush2.bf16.msra.mxu0 0
        %3185 = vmatprep.subr.bf16.mxu0 0
        %3186 = vmatpush2.bf16.msra.mxu0 0
        %3187 = vmatprep.subr.bf16.mxu0 0
        %3188 = vmatpush2.bf16.msra.mxu0 0
        %3189 = vmatprep.mubr.bf16.mxu0 0
        %3190 = vmatmul.mubr.bf16.gmra.mxu0 %v3049
        %v3191 = vpop.f32.mrf.mxu0
        %v3192 = vadd.f32 0.0, %v3191
        %v3193 = vpop.f32.mrf.mxu0
        %v3194 = vadd.f32 0.0, %v3193
        %v3195 = vpop.f32.mrf.mxu0
        %v3196 = vpop.f32.mrf.mxu0
        %3197 = vdwg.mxu0
        %3198 = vmatprep.subr.bf16.mxu0 0
        %3199 = vmatpush1.bf16.msra.mxu0 0
        %3200 = vmatprep.subr.bf16.mxu0 0
        %3201 = vmatpush1.bf16.msra.mxu0 0
        %3202 = vmatprep.subr.bf16.mxu0 0
        %3203 = vmatpush1.bf16.msra.mxu0 0
        %3204 = vmatprep.subr.bf16.mxu0 0
        %3205 = vmatpush1.bf16.msra.mxu0 0
        %3206 = vmatprep.subr.bf16.mxu0 0
        %3207 = vmatpush1.bf16.msra.mxu0 0
        %3208 = vmatprep.subr.bf16.mxu0 0
        %3209 = vmatpush1.bf16.msra.mxu0 0
        %3210 = vmatprep.subr.bf16.mxu0 0
        %3211 = vmatpush1.bf16.msra.mxu0 0
        %3212 = vmatprep.subr.bf16.mxu0 %v3073
        %3213 = vmatpush1.bf16.msra.mxu0 %v3070
        %3214 = vmatprep.subr.bf16.mxu0 0
        %3215 = vmatpush2.bf16.msra.mxu0 0
        %3216 = vmatprep.subr.bf16.mxu0 0
        %3217 = vmatpush2.bf16.msra.mxu0 0
        %3218 = vmatprep.subr.bf16.mxu0 0
        %3219 = vmatpush2.bf16.msra.mxu0 0
        %3220 = vmatprep.subr.bf16.mxu0 0
        %3221 = vmatpush2.bf16.msra.mxu0 0
        %3222 = vmatprep.subr.bf16.mxu0 0
        %3223 = vmatpush2.bf16.msra.mxu0 0
        %3224 = vmatprep.subr.bf16.mxu0 0
        %3225 = vmatpush2.bf16.msra.mxu0 0
        %3226 = vmatprep.subr.bf16.mxu0 0
        %3227 = vmatpush2.bf16.msra.mxu0 0
        %3228 = vmatprep.subr.bf16.mxu0 0
        %3229 = vmatpush2.bf16.msra.mxu0 0
        %3230 = vmatprep.mubr.bf16.mxu0 0
        %3231 = vmatmul.mubr.bf16.gmra.mxu0 %v3049
        %v3232 = vpop.f32.mrf.mxu0
        %v3233 = vadd.f32 0.0, %v3232
        %v3234 = vpop.f32.mrf.mxu0
        %v3235 = vadd.f32 0.0, %v3234
        %v3236 = vpop.f32.mrf.mxu0
        %v3237 = vpop.f32.mrf.mxu0
        %3238 = vdwg.mxu0
        %v3239 = vadd.f32 %v3014, %v3110
        %v3240 = vadd.f32 %v3015, %v3112
        %v3241 = vadd.f32 %v3016, %v3151
        %v3242 = vadd.f32 %v3017, %v3153
        %v3243 = vadd.f32 %v3018, %v3192
        %v3244 = vadd.f32 %v3019, %v3194
        %v3245 = vadd.f32 %v3020, %v3233
        %v3246 = vadd.f32 %v3021, %v3235
        %s3247 = scalar_lea.vmem %s3, 32
        %v3248 = vld [vmem:[%s3247] sm:$0xf]
        %3249 = vrot.lane.b32.xlu0 %v2365, 97
        %v3250 = vpop.permute.xlu0 %3249
        %3251 = vrot.lane.b32.xlu0 %v2366, 97
        %v3252 = vpop.permute.xlu0 %3251
        %3253 = vrot.lane.b32.xlu0 %v2367, 97
        %v3254 = vpop.permute.xlu0 %3253
        %3255 = vrot.lane.b32.xlu0 %v2368, 97
        %v3256 = vpop.permute.xlu0 %3255
        %3257 = vrot.lane.b32.xlu0 %v2369, 97
        %v3258 = vpop.permute.xlu0 %3257
        %3259 = vrot.lane.b32.xlu0 %v2370, 97
        %v3260 = vpop.permute.xlu0 %3259
        %3261 = vrot.lane.b32.xlu0 %v2371, 97
        %v3262 = vpop.permute.xlu0 %3261
        %3263 = vrot.lane.b32.xlu0 %v2372, 97
        %v3264 = vpop.permute.xlu0 %3263
        %vm3265 = vcmask 793600
        %v3266 = vsel %vm3265, %v3250, %v3252
        %v3267 = vsel %vm3265, %v3252, %v3254
        %v3268 = vsel %vm3265, %v3254, %v3256
        %v3269 = vsel %vm3265, %v3256, %v3258
        %v3270 = vsel %vm3265, %v3258, %v3260
        %v3271 = vsel %vm3265, %v3260, %v3262
        %v3272 = vsel %vm3265, %v3262, %v3264
        %v3274 = vsel %vm1460, %v3248, 0
        %v3277 = vsel %vm467, %v3266, 0
        %v3280 = vsel %vm467, %v3267, 0
        %v3283 = vsel %vm467, %v3268, 0
        %v3286 = vsel %vm467, %v3269, 0
        %v3289 = vsel %vm467, %v3270, 0
        %v3292 = vsel %vm467, %v3271, 0
        %v3295 = vsel %vm467, %v3272, 0
        %v3298 = vsel %vm467, %v3264, 0
        %3300 = vmatprep.subr.bf16.mxu0 0
        %3301 = vmatpush1.bf16.msra.mxu0 0
        %3302 = vmatprep.subr.bf16.mxu0 0
        %3303 = vmatpush1.bf16.msra.mxu0 0
        %3304 = vmatprep.subr.bf16.mxu0 0
        %3305 = vmatpush1.bf16.msra.mxu0 0
        %3306 = vmatprep.subr.bf16.mxu0 0
        %3307 = vmatpush1.bf16.msra.mxu0 0
        %3308 = vmatprep.subr.bf16.mxu0 0
        %3309 = vmatpush1.bf16.msra.mxu0 0
        %3310 = vmatprep.subr.bf16.mxu0 0
        %3311 = vmatpush1.bf16.msra.mxu0 0
        %3312 = vmatprep.subr.bf16.mxu0 0
        %3313 = vmatpush1.bf16.msra.mxu0 0
        %3314 = vmatprep.subr.bf16.mxu0 %v3280
        %3315 = vmatpush1.bf16.msra.mxu0 %v3277
        %3316 = vmatprep.subr.bf16.mxu0 0
        %3317 = vmatpush2.bf16.msra.mxu0 0
        %3318 = vmatprep.subr.bf16.mxu0 0
        %3319 = vmatpush2.bf16.msra.mxu0 0
        %3320 = vmatprep.subr.bf16.mxu0 0
        %3321 = vmatpush2.bf16.msra.mxu0 0
        %3322 = vmatprep.subr.bf16.mxu0 0
        %3323 = vmatpush2.bf16.msra.mxu0 0
        %3324 = vmatprep.subr.bf16.mxu0 0
        %3325 = vmatpush2.bf16.msra.mxu0 0
        %3326 = vmatprep.subr.bf16.mxu0 0
        %3327 = vmatpush2.bf16.msra.mxu0 0
        %3328 = vmatprep.subr.bf16.mxu0 0
        %3329 = vmatpush2.bf16.msra.mxu0 0
        %3330 = vmatprep.subr.bf16.mxu0 0
        %3331 = vmatpush2.bf16.msra.mxu0 0
        %3332 = vmatprep.mubr.bf16.mxu0 0
        %3333 = vmatmul.mubr.bf16.gmra.mxu0 %v3274
        %v3334 = vpop.f32.mrf.mxu0
        %v3335 = vadd.f32 0.0, %v3334
        %v3336 = vpop.f32.mrf.mxu0
        %v3337 = vadd.f32 0.0, %v3336
        %v3338 = vpop.f32.mrf.mxu0
        %v3339 = vpop.f32.mrf.mxu0
        %3340 = vdwg.mxu0
        %3341 = vmatprep.subr.bf16.mxu0 0
        %3342 = vmatpush1.bf16.msra.mxu0 0
        %3343 = vmatprep.subr.bf16.mxu0 0
        %3344 = vmatpush1.bf16.msra.mxu0 0
        %3345 = vmatprep.subr.bf16.mxu0 0
        %3346 = vmatpush1.bf16.msra.mxu0 0
        %3347 = vmatprep.subr.bf16.mxu0 0
        %3348 = vmatpush1.bf16.msra.mxu0 0
        %3349 = vmatprep.subr.bf16.mxu0 0
        %3350 = vmatpush1.bf16.msra.mxu0 0
        %3351 = vmatprep.subr.bf16.mxu0 0
        %3352 = vmatpush1.bf16.msra.mxu0 0
        %3353 = vmatprep.subr.bf16.mxu0 0
        %3354 = vmatpush1.bf16.msra.mxu0 0
        %3355 = vmatprep.subr.bf16.mxu0 %v3286
        %3356 = vmatpush1.bf16.msra.mxu0 %v3283
        %3357 = vmatprep.subr.bf16.mxu0 0
        %3358 = vmatpush2.bf16.msra.mxu0 0
        %3359 = vmatprep.subr.bf16.mxu0 0
        %3360 = vmatpush2.bf16.msra.mxu0 0
        %3361 = vmatprep.subr.bf16.mxu0 0
        %3362 = vmatpush2.bf16.msra.mxu0 0
        %3363 = vmatprep.subr.bf16.mxu0 0
        %3364 = vmatpush2.bf16.msra.mxu0 0
        %3365 = vmatprep.subr.bf16.mxu0 0
        %3366 = vmatpush2.bf16.msra.mxu0 0
        %3367 = vmatprep.subr.bf16.mxu0 0
        %3368 = vmatpush2.bf16.msra.mxu0 0
        %3369 = vmatprep.subr.bf16.mxu0 0
        %3370 = vmatpush2.bf16.msra.mxu0 0
        %3371 = vmatprep.subr.bf16.mxu0 0
        %3372 = vmatpush2.bf16.msra.mxu0 0
        %3373 = vmatprep.mubr.bf16.mxu0 0
        %3374 = vmatmul.mubr.bf16.gmra.mxu0 %v3274
        %v3375 = vpop.f32.mrf.mxu0
        %v3376 = vadd.f32 0.0, %v3375
        %v3377 = vpop.f32.mrf.mxu0
        %v3378 = vadd.f32 0.0, %v3377
        %v3379 = vpop.f32.mrf.mxu0
        %v3380 = vpop.f32.mrf.mxu0
        %3381 = vdwg.mxu0
        %3382 = vmatprep.subr.bf16.mxu0 0
        %3383 = vmatpush1.bf16.msra.mxu0 0
        %3384 = vmatprep.subr.bf16.mxu0 0
        %3385 = vmatpush1.bf16.msra.mxu0 0
        %3386 = vmatprep.subr.bf16.mxu0 0
        %3387 = vmatpush1.bf16.msra.mxu0 0
        %3388 = vmatprep.subr.bf16.mxu0 0
        %3389 = vmatpush1.bf16.msra.mxu0 0
        %3390 = vmatprep.subr.bf16.mxu0 0
        %3391 = vmatpush1.bf16.msra.mxu0 0
        %3392 = vmatprep.subr.bf16.mxu0 0
        %3393 = vmatpush1.bf16.msra.mxu0 0
        %3394 = vmatprep.subr.bf16.mxu0 0
        %3395 = vmatpush1.bf16.msra.mxu0 0
        %3396 = vmatprep.subr.bf16.mxu0 %v3292
        %3397 = vmatpush1.bf16.msra.mxu0 %v3289
        %3398 = vmatprep.subr.bf16.mxu0 0
        %3399 = vmatpush2.bf16.msra.mxu0 0
        %3400 = vmatprep.subr.bf16.mxu0 0
        %3401 = vmatpush2.bf16.msra.mxu0 0
        %3402 = vmatprep.subr.bf16.mxu0 0
        %3403 = vmatpush2.bf16.msra.mxu0 0
        %3404 = vmatprep.subr.bf16.mxu0 0
        %3405 = vmatpush2.bf16.msra.mxu0 0
        %3406 = vmatprep.subr.bf16.mxu0 0
        %3407 = vmatpush2.bf16.msra.mxu0 0
        %3408 = vmatprep.subr.bf16.mxu0 0
        %3409 = vmatpush2.bf16.msra.mxu0 0
        %3410 = vmatprep.subr.bf16.mxu0 0
        %3411 = vmatpush2.bf16.msra.mxu0 0
        %3412 = vmatprep.subr.bf16.mxu0 0
        %3413 = vmatpush2.bf16.msra.mxu0 0
        %3414 = vmatprep.mubr.bf16.mxu0 0
        %3415 = vmatmul.mubr.bf16.gmra.mxu0 %v3274
        %v3416 = vpop.f32.mrf.mxu0
        %v3417 = vadd.f32 0.0, %v3416
        %v3418 = vpop.f32.mrf.mxu0
        %v3419 = vadd.f32 0.0, %v3418
        %v3420 = vpop.f32.mrf.mxu0
        %v3421 = vpop.f32.mrf.mxu0
        %3422 = vdwg.mxu0
        %3423 = vmatprep.subr.bf16.mxu0 0
        %3424 = vmatpush1.bf16.msra.mxu0 0
        %3425 = vmatprep.subr.bf16.mxu0 0
        %3426 = vmatpush1.bf16.msra.mxu0 0
        %3427 = vmatprep.subr.bf16.mxu0 0
        %3428 = vmatpush1.bf16.msra.mxu0 0
        %3429 = vmatprep.subr.bf16.mxu0 0
        %3430 = vmatpush1.bf16.msra.mxu0 0
        %3431 = vmatprep.subr.bf16.mxu0 0
        %3432 = vmatpush1.bf16.msra.mxu0 0
        %3433 = vmatprep.subr.bf16.mxu0 0
        %3434 = vmatpush1.bf16.msra.mxu0 0
        %3435 = vmatprep.subr.bf16.mxu0 0
        %3436 = vmatpush1.bf16.msra.mxu0 0
        %3437 = vmatprep.subr.bf16.mxu0 %v3298
        %3438 = vmatpush1.bf16.msra.mxu0 %v3295
        %3439 = vmatprep.subr.bf16.mxu0 0
        %3440 = vmatpush2.bf16.msra.mxu0 0
        %3441 = vmatprep.subr.bf16.mxu0 0
        %3442 = vmatpush2.bf16.msra.mxu0 0
        %3443 = vmatprep.subr.bf16.mxu0 0
        %3444 = vmatpush2.bf16.msra.mxu0 0
        %3445 = vmatprep.subr.bf16.mxu0 0
        %3446 = vmatpush2.bf16.msra.mxu0 0
        %3447 = vmatprep.subr.bf16.mxu0 0
        %3448 = vmatpush2.bf16.msra.mxu0 0
        %3449 = vmatprep.subr.bf16.mxu0 0
        %3450 = vmatpush2.bf16.msra.mxu0 0
        %3451 = vmatprep.subr.bf16.mxu0 0
        %3452 = vmatpush2.bf16.msra.mxu0 0
        %3453 = vmatprep.subr.bf16.mxu0 0
        %3454 = vmatpush2.bf16.msra.mxu0 0
        %3455 = vmatprep.mubr.bf16.mxu0 0
        %3456 = vmatmul.mubr.bf16.gmra.mxu0 %v3274
        %v3457 = vpop.f32.mrf.mxu0
        %v3458 = vadd.f32 0.0, %v3457
        %v3459 = vpop.f32.mrf.mxu0
        %v3460 = vadd.f32 0.0, %v3459
        %v3461 = vpop.f32.mrf.mxu0
        %v3462 = vpop.f32.mrf.mxu0
        %3463 = vdwg.mxu0
        %v3464 = vadd.f32 %v3239, %v3335
        %v3465 = vadd.f32 %v3240, %v3337
        %v3466 = vadd.f32 %v3241, %v3376
        %v3467 = vadd.f32 %v3242, %v3378
        %v3468 = vadd.f32 %v3243, %v3417
        %v3469 = vadd.f32 %v3244, %v3419
        %v3470 = vadd.f32 %v3245, %v3458
        %v3471 = vadd.f32 %v3246, %v3460
        %v3472 = vld [vmem:[%s4] sm:$0xff]
        %3474 = vset.pattern.permute.xlu0 0
        %3475 = vperm.xlu0 %3474, %v3472
        %v3476 = vpop.permute.xlu0 %3475
        %v3478 = vadd.f32 %v3464, %v3476
        %v3479 = vadd.f32 %v3465, %v3476
        %v3480 = vadd.f32 %v3466, %v3476
        %v3481 = vadd.f32 %v3467, %v3476
        %v3482 = vadd.f32 %v3468, %v3476
        %v3483 = vadd.f32 %v3469, %v3476
        %v3484 = vadd.f32 %v3470, %v3476
        %v3485 = vadd.f32 %v3471, %v3476
        %v3486 = vmax.f32 %v3478, 0.0
        %v3487 = vmax.f32 %v3479, 0.0
        %v3488 = vmax.f32 %v3480, 0.0
        %v3489 = vmax.f32 %v3481, 0.0
        %v3490 = vmax.f32 %v3482, 0.0
        %v3491 = vmax.f32 %v3483, 0.0
        %v3492 = vmax.f32 %v3484, 0.0
        %v3493 = vmax.f32 %v3485, 0.0
        %v3494 = vmul.f32 %v3486, %v1276
        %v3495 = vmul.f32 %v3487, %v1280
        %v3496 = vmul.f32 %v3488, %v1284
        %v3497 = vmul.f32 %v3489, %v1288
        %v3498 = vmul.f32 %v3490, %v1292
        %v3499 = vmul.f32 %v3491, %v1296
        %v3500 = vmul.f32 %v3492, %v1300
        %v3501 = vmul.f32 %v3493, %v1304
        %v3502 = vpack.c.bf16 %v3494, %v3494
        %v3503 = vpack.c.bf16 %v3495, %v3495
        %v3504 = vpack.c.bf16 %v3496, %v3496
        %v3505 = vpack.c.bf16 %v3497, %v3497
        %v3506 = vpack.c.bf16 %v3498, %v3498
        %v3507 = vpack.c.bf16 %v3499, %v3499
        %v3508 = vpack.c.bf16 %v3500, %v3500
        %v3509 = vpack.c.bf16 %v3501, %v3501
        %v3518 = vunpack.c.l.b16 %v3502
        %v3519 = vunpack.c.l.b16 %v3503
        %v3520 = vunpack.c.l.b16 %v3504
        %v3521 = vunpack.c.l.b16 %v3505
        %v3522 = vunpack.c.l.b16 %v3506
        %v3523 = vunpack.c.l.b16 %v3507
        %v3524 = vunpack.c.l.b16 %v3508
        %v3525 = vunpack.c.l.b16 %v3509
        %v3526 = vpack.c.b16 %v3519, %v3518
        %v3527 = vpack.c.b16 %v3521, %v3520
        %v3528 = vpack.c.b16 %v3523, %v3522
        %v3529 = vpack.c.b16 %v3525, %v3524
        %3534 = vst [vmem:[#allocation2 + $0x4] sm:$0xff] %v3526
        %3535 = vst [vmem:[#allocation2 + $0xc] sm:$0xff] %v3527
        %3536 = vst [vmem:[#allocation2 + $0x14] sm:$0xff] %v3528
        %3537 = vst.msk [vmem:[#allocation2 + $0x1c] sm:$0xff] %vm469, %v3529
        %v3538 = vld [vmem:[#allocation2 + $0x4] sm:$0xff]
        %v3539 = vld [vmem:[#allocation2 + $0xc] sm:$0xff]
        %v3540 = vld [vmem:[#allocation2 + $0x14] sm:$0xff]
        %v3541 = vld [vmem:[#allocation2 + $0x1c] sm:$0xff]
        %3546 = vrot.lane.b32.xlu0 %v3538, 127
        %v3547 = vpop.permute.xlu0 %3546
        %3548 = vrot.lane.b32.xlu0 %v3539, 127
        %v3549 = vpop.permute.xlu0 %3548
        %3550 = vrot.lane.b32.xlu0 %v3540, 127
        %v3551 = vpop.permute.xlu0 %3550
        %3552 = vrot.lane.b32.xlu0 %v3541, 127
        %v3553 = vpop.permute.xlu0 %3552
        %v3554 = vrot.slane %v3547, 4
        %v3555 = vrot.slane %v3549, 4
        %v3556 = vrot.slane %v3551, 4
        %v3557 = vrot.slane %v3553, 4
        %v3558 = vsel %vm1392, %v3554, %v3555
        %v3559 = vsel %vm2590, %v3547, %v3558
        %v3560 = vsel %vm1392, %v3555, %v3556
        %v3561 = vsel %vm2590, %v3549, %v3560
        %v3562 = vsel %vm1392, %v3556, %v3557
        %v3563 = vsel %vm2590, %v3551, %v3562
        %v3564 = vsel %vm2590, %v3553, %v3557
        %v3569 = vmax.bf16 %v3538, %v3559
        %v3570 = vmax.bf16 %v3539, %v3561
        %v3571 = vmax.bf16 %v3540, %v3563
        %v3572 = vmax.bf16 %v3541, %v3564
        %3577 = vrot.lane.b32.xlu0 %v3569, 98
        %v3578 = vpop.permute.xlu0 %3577
        %3579 = vrot.lane.b32.xlu0 %v3570, 98
        %v3580 = vpop.permute.xlu0 %3579
        %3581 = vrot.lane.b32.xlu0 %v3571, 98
        %v3582 = vpop.permute.xlu0 %3581
        %3583 = vrot.lane.b32.xlu0 %v3572, 98
        %v3584 = vpop.permute.xlu0 %3583
        %v3585 = vrot.slane %v3578, 4
        %v3586 = vrot.slane %v3580, 4
        %v3587 = vrot.slane %v3582, 4
        %v3588 = vrot.slane %v3584, 4
        %v3589 = vsel %vm1392, %v3585, %v3586
        %v3590 = vsel %vm3040, %v3578, %v3589
        %v3591 = vsel %vm1392, %v3586, %v3587
        %v3592 = vsel %vm3040, %v3580, %v3591
        %v3593 = vsel %vm1392, %v3587, %v3588
        %v3594 = vsel %vm3040, %v3582, %v3593
        %v3595 = vsel %vm3040, %v3584, %v3588
        %v3600 = vmax.bf16 %v3569, %v3590
        %v3601 = vmax.bf16 %v3570, %v3592
        %v3602 = vmax.bf16 %v3571, %v3594
        %v3603 = vmax.bf16 %v3572, %v3595
        %v3604 = vld [vmem:[%s6] sm:$0xff]
        %v3605 = vld [vmem:[%s6 + $0x8] sm:$0xff]
        %v3606 = vld [vmem:[%s6 + $0x10] sm:$0xff]
        %v3607 = vld [vmem:[%s6 + $0x18] sm:$0xff]
        %v3608 = vld [vmem:[%s6 + $0x20] sm:$0xff]
        %v3609 = vld [vmem:[%s6 + $0x28] sm:$0xff]
        %v3610 = vld [vmem:[%s6 + $0x30] sm:$0xff]
        %v3611 = vld [vmem:[%s6 + $0x38] sm:$0xff]
        %v3612 = vld [vmem:[%s6 + $0x40] sm:$0xff]
        %v3613 = vld [vmem:[%s6 + $0x48] sm:$0xff]
        %v3614 = vld [vmem:[%s6 + $0x50] sm:$0xff]
        %v3615 = vld [vmem:[%s6 + $0x58] sm:$0xff]
        %v3616 = vld [vmem:[%s6 + $0x60] sm:$0xff]
        %v3617 = vld [vmem:[%s6 + $0x68] sm:$0xff]
        %v3618 = vld [vmem:[%s6 + $0x70] sm:$0xff]
        %v3619 = vld [vmem:[%s6 + $0x78] sm:$0xff]
        %v3620 = vld [vmem:[%s6 + $0x80] sm:$0xff]
        %v3621 = vld [vmem:[%s6 + $0x88] sm:$0xff]
        %v3622 = vld [vmem:[%s6 + $0x90] sm:$0xff]
        %v3623 = vld [vmem:[%s6 + $0x98] sm:$0xff]
        %v3624 = vld [vmem:[%s6 + $0xa0] sm:$0xff]
        %v3625 = vld [vmem:[%s6 + $0xa8] sm:$0xff]
        %v3626 = vld [vmem:[%s6 + $0xb0] sm:$0xff]
        %v3627 = vld [vmem:[%s6 + $0xb8] sm:$0xff]
        %v3628 = vld [vmem:[%s6 + $0xc0] sm:$0xff]
        %v3629 = vld [vmem:[%s6 + $0xc8] sm:$0xff]
        %v3630 = vld [vmem:[%s6 + $0xd0] sm:$0xff]
        %v3631 = vld [vmem:[%s6 + $0xd8] sm:$0xff]
        %v3632 = vld [vmem:[%s6 + $0xe0] sm:$0xff]
        %v3633 = vld [vmem:[%s6 + $0xe8] sm:$0xff]
        %v3634 = vld [vmem:[%s6 + $0xf0] sm:$0xff]
        %v3635 = vld [vmem:[%s6 + $0xf8] sm:$0xff]
        %v3636 = vld [vmem:[%s6 + $0x100] sm:$0xff]
        %v3637 = vld [vmem:[%s6 + $0x108] sm:$0xff]
        %v3638 = vld [vmem:[%s6 + $0x110] sm:$0xff]
        %v3639 = vld [vmem:[%s6 + $0x118] sm:$0xff]
        %v3640 = vld [vmem:[%s6 + $0x120] sm:$0xff]
        %v3641 = vld [vmem:[%s6 + $0x128] sm:$0xff]
        %v3642 = vld [vmem:[%s6 + $0x130] sm:$0xff]
        %v3643 = vld [vmem:[%s6 + $0x138] sm:$0xff]
        %v3644 = vld [vmem:[%s6 + $0x140] sm:$0xff]
        %v3645 = vld [vmem:[%s6 + $0x148] sm:$0xff]
        %v3646 = vld [vmem:[%s6 + $0x150] sm:$0xff]
        %v3647 = vld [vmem:[%s6 + $0x158] sm:$0xff]
        %v3648 = vld [vmem:[%s6 + $0x160] sm:$0xff]
        %v3649 = vld [vmem:[%s6 + $0x168] sm:$0xff]
        %v3650 = vld [vmem:[%s6 + $0x170] sm:$0xff]
        %v3651 = vld [vmem:[%s6 + $0x178] sm:$0xff]
        %v3652 = vld [vmem:[%s6 + $0x180] sm:$0xff]
        %v3653 = vld [vmem:[%s6 + $0x188] sm:$0xff]
        %v3654 = vld [vmem:[%s6 + $0x190] sm:$0xff]
        %v3655 = vld [vmem:[%s6 + $0x198] sm:$0xff]
        %v3656 = vld [vmem:[%s6 + $0x1a0] sm:$0xff]
        %v3657 = vld [vmem:[%s6 + $0x1a8] sm:$0xff]
        %v3658 = vld [vmem:[%s6 + $0x1b0] sm:$0xff]
        %v3659 = vld [vmem:[%s6 + $0x1b8] sm:$0xff]
        %v3660 = vld [vmem:[%s6 + $0x1c0] sm:$0xff]
        %v3661 = vld [vmem:[%s6 + $0x1c8] sm:$0xff]
        %v3662 = vld [vmem:[%s6 + $0x1d0] sm:$0xff]
        %v3663 = vld [vmem:[%s6 + $0x1d8] sm:$0xff]
        %v3664 = vld [vmem:[%s6 + $0x1e0] sm:$0xff]
        %v3665 = vld [vmem:[%s6 + $0x1e8] sm:$0xff]
        %v3666 = vld [vmem:[%s6 + $0x1f0] sm:$0xff]
        %v3667 = vld [vmem:[%s6 + $0x1f8] sm:$0xff]
        %v3668 = vld [vmem:[%s6 + $0x200] sm:$0xff]
        %v3669 = vld [vmem:[%s6 + $0x208] sm:$0xff]
        %v3670 = vld [vmem:[%s6 + $0x210] sm:$0xff]
        %v3671 = vld [vmem:[%s6 + $0x218] sm:$0xff]
        %v3672 = vld [vmem:[%s6 + $0x220] sm:$0xff]
        %v3673 = vld [vmem:[%s6 + $0x228] sm:$0xff]
        %v3674 = vld [vmem:[%s6 + $0x230] sm:$0xff]
        %v3675 = vld [vmem:[%s6 + $0x238] sm:$0xff]
        %v3676 = vld [vmem:[%s6 + $0x240] sm:$0xff]
        %v3677 = vld [vmem:[%s6 + $0x248] sm:$0xff]
        %v3678 = vld [vmem:[%s6 + $0x250] sm:$0xff]
        %v3679 = vld [vmem:[%s6 + $0x258] sm:$0xff]
        %v3680 = vld [vmem:[%s6 + $0x260] sm:$0xff]
        %v3681 = vld [vmem:[%s6 + $0x268] sm:$0xff]
        %v3682 = vld [vmem:[%s6 + $0x270] sm:$0xff]
        %v3683 = vld [vmem:[%s6 + $0x278] sm:$0xff]
        %v3684 = vld [vmem:[%s6 + $0x280] sm:$0xff]
        %v3685 = vld [vmem:[%s6 + $0x288] sm:$0xff]
        %v3686 = vld [vmem:[%s6 + $0x290] sm:$0xff]
        %v3687 = vld [vmem:[%s6 + $0x298] sm:$0xff]
        %v3688 = vld [vmem:[%s6 + $0x2a0] sm:$0xff]
        %v3689 = vld [vmem:[%s6 + $0x2a8] sm:$0xff]
        %v3690 = vld [vmem:[%s6 + $0x2b0] sm:$0xff]
        %v3691 = vld [vmem:[%s6 + $0x2b8] sm:$0xff]
        %v3692 = vld [vmem:[%s6 + $0x2c0] sm:$0xff]
        %v3693 = vld [vmem:[%s6 + $0x2c8] sm:$0xff]
        %v3694 = vld [vmem:[%s6 + $0x2d0] sm:$0xff]
        %v3695 = vld [vmem:[%s6 + $0x2d8] sm:$0xff]
        %v3696 = vld [vmem:[%s6 + $0x2e0] sm:$0xff]
        %v3697 = vld [vmem:[%s6 + $0x2e8] sm:$0xff]
        %v3698 = vld [vmem:[%s6 + $0x2f0] sm:$0xff]
        %v3699 = vld [vmem:[%s6 + $0x2f8] sm:$0xff]
        %v3700 = vld [vmem:[%s6 + $0x300] sm:$0xff]
        %v3701 = vld [vmem:[%s6 + $0x308] sm:$0xff]
        %v3702 = vld [vmem:[%s6 + $0x310] sm:$0xff]
        %v3703 = vld [vmem:[%s6 + $0x318] sm:$0xff]
        %v3704 = vld [vmem:[%s6 + $0x320] sm:$0xff]
        %v3705 = vld [vmem:[%s6 + $0x328] sm:$0xff]
        %v3706 = vld [vmem:[%s6 + $0x330] sm:$0xff]
        %v3707 = vld [vmem:[%s6 + $0x338] sm:$0xff]
        %v3708 = vld [vmem:[%s6 + $0x340] sm:$0xff]
        %v3709 = vld [vmem:[%s6 + $0x348] sm:$0xff]
        %v3710 = vld [vmem:[%s6 + $0x350] sm:$0xff]
        %v3711 = vld [vmem:[%s6 + $0x358] sm:$0xff]
        %v3712 = vld [vmem:[%s6 + $0x360] sm:$0xff]
        %v3713 = vld [vmem:[%s6 + $0x368] sm:$0xff]
        %v3714 = vld [vmem:[%s6 + $0x370] sm:$0xff]
        %v3715 = vld [vmem:[%s6 + $0x378] sm:$0xff]
        %v3716 = vld [vmem:[%s6 + $0x380] sm:$0xff]
        %v3717 = vld [vmem:[%s6 + $0x388] sm:$0xff]
        %v3718 = vld [vmem:[%s6 + $0x390] sm:$0xff]
        %v3719 = vld [vmem:[%s6 + $0x398] sm:$0xff]
        %v3720 = vld [vmem:[%s6 + $0x3a0] sm:$0xff]
        %v3721 = vld [vmem:[%s6 + $0x3a8] sm:$0xff]
        %v3722 = vld [vmem:[%s6 + $0x3b0] sm:$0xff]
        %v3723 = vld [vmem:[%s6 + $0x3b8] sm:$0xff]
        %v3724 = vld [vmem:[%s6 + $0x3c0] sm:$0xff]
        %v3725 = vld [vmem:[%s6 + $0x3c8] sm:$0xff]
        %v3726 = vld [vmem:[%s6 + $0x3d0] sm:$0xff]
        %v3727 = vld [vmem:[%s6 + $0x3d8] sm:$0xff]
        %v3728 = vld [vmem:[%s6 + $0x3e0] sm:$0xff]
        %v3729 = vld [vmem:[%s6 + $0x3e8] sm:$0xff]
        %v3730 = vld [vmem:[%s6 + $0x3f0] sm:$0xff]
        %v3731 = vld [vmem:[%s6 + $0x3f8] sm:$0xff]
        %v3732 = vld [vmem:[%s6 + $0x400] sm:$0xff]
        %v3733 = vld [vmem:[%s6 + $0x408] sm:$0xff]
        %v3734 = vld [vmem:[%s6 + $0x410] sm:$0xff]
        %v3735 = vld [vmem:[%s6 + $0x418] sm:$0xff]
        %v3736 = vld [vmem:[%s6 + $0x420] sm:$0xff]
        %v3737 = vld [vmem:[%s6 + $0x428] sm:$0xff]
        %v3738 = vld [vmem:[%s6 + $0x430] sm:$0xff]
        %v3739 = vld [vmem:[%s6 + $0x438] sm:$0xff]
        %v3740 = vld [vmem:[%s6 + $0x440] sm:$0xff]
        %v3741 = vld [vmem:[%s6 + $0x448] sm:$0xff]
        %v3742 = vld [vmem:[%s6 + $0x450] sm:$0xff]
        %v3743 = vld [vmem:[%s6 + $0x458] sm:$0xff]
        %v3744 = vld [vmem:[%s6 + $0x460] sm:$0xff]
        %v3745 = vld [vmem:[%s6 + $0x468] sm:$0xff]
        %v3746 = vld [vmem:[%s6 + $0x470] sm:$0xff]
        %v3747 = vld [vmem:[%s6 + $0x478] sm:$0xff]
        %v3748 = vld [vmem:[%s6 + $0x480] sm:$0xff]
        %v3749 = vld [vmem:[%s6 + $0x488] sm:$0xff]
        %v3750 = vld [vmem:[%s6 + $0x490] sm:$0xff]
        %v3751 = vld [vmem:[%s6 + $0x498] sm:$0xff]
        %v3752 = vld [vmem:[%s6 + $0x4a0] sm:$0xff]
        %v3753 = vld [vmem:[%s6 + $0x4a8] sm:$0xff]
        %v3754 = vld [vmem:[%s6 + $0x4b0] sm:$0xff]
        %v3755 = vld [vmem:[%s6 + $0x4b8] sm:$0xff]
        %v3756 = vld [vmem:[%s6 + $0x4c0] sm:$0xff]
        %v3757 = vld [vmem:[%s6 + $0x4c8] sm:$0xff]
        %v3758 = vld [vmem:[%s6 + $0x4d0] sm:$0xff]
        %v3759 = vld [vmem:[%s6 + $0x4d8] sm:$0xff]
        %v3760 = vld [vmem:[%s6 + $0x4e0] sm:$0xff]
        %v3761 = vld [vmem:[%s6 + $0x4e8] sm:$0xff]
        %v3762 = vld [vmem:[%s6 + $0x4f0] sm:$0xff]
        %v3763 = vld [vmem:[%s6 + $0x4f8] sm:$0xff]
        %v3764 = vld [vmem:[%s6 + $0x500] sm:$0xff]
        %v3765 = vld [vmem:[%s6 + $0x508] sm:$0xff]
        %v3766 = vld [vmem:[%s6 + $0x510] sm:$0xff]
        %v3767 = vld [vmem:[%s6 + $0x518] sm:$0xff]
        %v3768 = vld [vmem:[%s6 + $0x520] sm:$0xff]
        %v3769 = vld [vmem:[%s6 + $0x528] sm:$0xff]
        %v3770 = vld [vmem:[%s6 + $0x530] sm:$0xff]
        %v3771 = vld [vmem:[%s6 + $0x538] sm:$0xff]
        %v3772 = vld [vmem:[%s6 + $0x540] sm:$0xff]
        %v3773 = vld [vmem:[%s6 + $0x548] sm:$0xff]
        %v3774 = vld [vmem:[%s6 + $0x550] sm:$0xff]
        %v3775 = vld [vmem:[%s6 + $0x558] sm:$0xff]
        %v3776 = vld [vmem:[%s6 + $0x560] sm:$0xff]
        %v3777 = vld [vmem:[%s6 + $0x568] sm:$0xff]
        %v3778 = vld [vmem:[%s6 + $0x570] sm:$0xff]
        %v3779 = vld [vmem:[%s6 + $0x578] sm:$0xff]
        %v3780 = vld [vmem:[%s6 + $0x580] sm:$0xff]
        %v3781 = vld [vmem:[%s6 + $0x588] sm:$0xff]
        %v3782 = vld [vmem:[%s6 + $0x590] sm:$0xff]
        %v3783 = vld [vmem:[%s6 + $0x598] sm:$0xff]
        %v3784 = vld [vmem:[%s6 + $0x5a0] sm:$0xff]
        %v3785 = vld [vmem:[%s6 + $0x5a8] sm:$0xff]
        %v3786 = vld [vmem:[%s6 + $0x5b0] sm:$0xff]
        %v3787 = vld [vmem:[%s6 + $0x5b8] sm:$0xff]
        %v3788 = vld [vmem:[%s6 + $0x5c0] sm:$0xff]
        %v3789 = vld [vmem:[%s6 + $0x5c8] sm:$0xff]
        %v3790 = vld [vmem:[%s6 + $0x5d0] sm:$0xff]
        %v3791 = vld [vmem:[%s6 + $0x5d8] sm:$0xff]
        %v3792 = vld [vmem:[%s6 + $0x5e0] sm:$0xff]
        %v3793 = vld [vmem:[%s6 + $0x5e8] sm:$0xff]
        %v3794 = vld [vmem:[%s6 + $0x5f0] sm:$0xff]
        %v3795 = vld [vmem:[%s6 + $0x5f8] sm:$0xff]
        %v3796 = vld [vmem:[%s6 + $0x600] sm:$0xff]
        %v3797 = vld [vmem:[%s6 + $0x608] sm:$0xff]
        %v3798 = vld [vmem:[%s6 + $0x610] sm:$0xff]
        %v3799 = vld [vmem:[%s6 + $0x618] sm:$0xff]
        %v3800 = vld [vmem:[%s6 + $0x620] sm:$0xff]
        %v3801 = vld [vmem:[%s6 + $0x628] sm:$0xff]
        %v3802 = vld [vmem:[%s6 + $0x630] sm:$0xff]
        %v3803 = vld [vmem:[%s6 + $0x638] sm:$0xff]
        %v3804 = vld [vmem:[%s6 + $0x640] sm:$0xff]
        %v3805 = vld [vmem:[%s6 + $0x648] sm:$0xff]
        %v3806 = vld [vmem:[%s6 + $0x650] sm:$0xff]
        %v3807 = vld [vmem:[%s6 + $0x658] sm:$0xff]
        %v3808 = vld [vmem:[%s6 + $0x660] sm:$0xff]
        %v3809 = vld [vmem:[%s6 + $0x668] sm:$0xff]
        %v3810 = vld [vmem:[%s6 + $0x670] sm:$0xff]
        %v3811 = vld [vmem:[%s6 + $0x678] sm:$0xff]
        %v3812 = vld [vmem:[%s6 + $0x680] sm:$0xff]
        %v3813 = vld [vmem:[%s6 + $0x688] sm:$0xff]
        %v3814 = vld [vmem:[%s6 + $0x690] sm:$0xff]
        %v3815 = vld [vmem:[%s6 + $0x698] sm:$0xff]
        %v3816 = vld [vmem:[%s6 + $0x6a0] sm:$0xff]
        %v3817 = vld [vmem:[%s6 + $0x6a8] sm:$0xff]
        %v3818 = vld [vmem:[%s6 + $0x6b0] sm:$0xff]
        %v3819 = vld [vmem:[%s6 + $0x6b8] sm:$0xff]
        %v3820 = vld [vmem:[%s6 + $0x6c0] sm:$0xff]
        %v3821 = vld [vmem:[%s6 + $0x6c8] sm:$0xff]
        %v3822 = vld [vmem:[%s6 + $0x6d0] sm:$0xff]
        %v3823 = vld [vmem:[%s6 + $0x6d8] sm:$0xff]
        %v3824 = vld [vmem:[%s6 + $0x6e0] sm:$0xff]
        %v3825 = vld [vmem:[%s6 + $0x6e8] sm:$0xff]
        %v3826 = vld [vmem:[%s6 + $0x6f0] sm:$0xff]
        %v3827 = vld [vmem:[%s6 + $0x6f8] sm:$0xff]
        %v3828 = vld [vmem:[%s6 + $0x700] sm:$0x33]
        %v3829 = vld [vmem:[%s6 + $0x708] sm:$0x33]
        %v3834 = vunpack.c.l.b16 %v3600
        %v3835 = vunpack.c.h.b16 %v3600
        %v3836 = vunpack.c.l.b16 %v3601
        %v3837 = vunpack.c.h.b16 %v3601
        %v3838 = vunpack.c.l.b16 %v3602
        %v3839 = vunpack.c.h.b16 %v3602
        %v3840 = vunpack.c.l.b16 %v3603
        %v3841 = vunpack.c.h.b16 %v3603
        %v3842 = vpack.c.b16 %v3834, %v3834
        %v3843 = vpack.c.b16 %v3835, %v3835
        %v3844 = vpack.c.b16 %v3836, %v3836
        %v3845 = vpack.c.b16 %v3837, %v3837
        %v3846 = vpack.c.b16 %v3838, %v3838
        %v3847 = vpack.c.b16 %v3839, %v3839
        %v3848 = vpack.c.b16 %v3840, %v3840
        %v3849 = vpack.c.b16 %v3841, %v3841
        %v4083 = vunpack.c.l.b16 %v3604
        %v4084 = vunpack.c.h.b16 %v3604
        %v4085 = vunpack.c.l.b16 %v3605
        %v4086 = vunpack.c.h.b16 %v3605
        %v4087 = vunpack.c.l.b16 %v3606
        %v4088 = vunpack.c.h.b16 %v3606
        %v4089 = vunpack.c.l.b16 %v3607
        %v4090 = vunpack.c.h.b16 %v3607
        %v4091 = vunpack.c.l.b16 %v3608
        %v4092 = vunpack.c.h.b16 %v3608
        %v4093 = vunpack.c.l.b16 %v3609
        %v4094 = vunpack.c.h.b16 %v3609
        %v4095 = vunpack.c.l.b16 %v3610
        %v4096 = vunpack.c.h.b16 %v3610
        %v4097 = vunpack.c.l.b16 %v3611
        %v4098 = vunpack.c.h.b16 %v3611
        %v4099 = vunpack.c.l.b16 %v3612
        %v4100 = vunpack.c.h.b16 %v3612
        %v4101 = vunpack.c.l.b16 %v3613
        %v4102 = vunpack.c.h.b16 %v3613
        %v4103 = vunpack.c.l.b16 %v3614
        %v4104 = vunpack.c.h.b16 %v3614
        %v4105 = vunpack.c.l.b16 %v3615
        %v4106 = vunpack.c.h.b16 %v3615
        %v4107 = vunpack.c.l.b16 %v3616
        %v4108 = vunpack.c.h.b16 %v3616
        %v4109 = vunpack.c.l.b16 %v3617
        %v4110 = vunpack.c.h.b16 %v3617
        %v4111 = vunpack.c.l.b16 %v3618
        %v4112 = vunpack.c.h.b16 %v3618
        %v4113 = vunpack.c.l.b16 %v3619
        %v4114 = vunpack.c.h.b16 %v3619
        %v4115 = vunpack.c.l.b16 %v3620
        %v4116 = vunpack.c.h.b16 %v3620
        %v4117 = vunpack.c.l.b16 %v3621
        %v4118 = vunpack.c.h.b16 %v3621
        %v4119 = vunpack.c.l.b16 %v3622
        %v4120 = vunpack.c.h.b16 %v3622
        %v4121 = vunpack.c.l.b16 %v3623
        %v4122 = vunpack.c.h.b16 %v3623
        %v4123 = vunpack.c.l.b16 %v3624
        %v4124 = vunpack.c.h.b16 %v3624
        %v4125 = vunpack.c.l.b16 %v3625
        %v4126 = vunpack.c.h.b16 %v3625
        %v4127 = vunpack.c.l.b16 %v3626
        %v4128 = vunpack.c.h.b16 %v3626
        %v4129 = vunpack.c.l.b16 %v3627
        %v4130 = vunpack.c.h.b16 %v3627
        %v4131 = vunpack.c.l.b16 %v3628
        %v4132 = vunpack.c.h.b16 %v3628
        %v4133 = vunpack.c.l.b16 %v3629
        %v4134 = vunpack.c.h.b16 %v3629
        %v4135 = vunpack.c.l.b16 %v3630
        %v4136 = vunpack.c.h.b16 %v3630
        %v4137 = vunpack.c.l.b16 %v3631
        %v4138 = vunpack.c.h.b16 %v3631
        %v4139 = vunpack.c.l.b16 %v3632
        %v4140 = vunpack.c.h.b16 %v3632
        %v4141 = vunpack.c.l.b16 %v3633
        %v4142 = vunpack.c.h.b16 %v3633
        %v4143 = vunpack.c.l.b16 %v3634
        %v4144 = vunpack.c.h.b16 %v3634
        %v4145 = vunpack.c.l.b16 %v3635
        %v4146 = vunpack.c.h.b16 %v3635
        %v4147 = vunpack.c.l.b16 %v3636
        %v4148 = vunpack.c.h.b16 %v3636
        %v4149 = vunpack.c.l.b16 %v3637
        %v4150 = vunpack.c.h.b16 %v3637
        %v4151 = vunpack.c.l.b16 %v3638
        %v4152 = vunpack.c.h.b16 %v3638
        %v4153 = vunpack.c.l.b16 %v3639
        %v4154 = vunpack.c.h.b16 %v3639
        %v4155 = vunpack.c.l.b16 %v3640
        %v4156 = vunpack.c.h.b16 %v3640
        %v4157 = vunpack.c.l.b16 %v3641
        %v4158 = vunpack.c.h.b16 %v3641
        %v4159 = vunpack.c.l.b16 %v3642
        %v4160 = vunpack.c.h.b16 %v3642
        %v4161 = vunpack.c.l.b16 %v3643
        %v4162 = vunpack.c.h.b16 %v3643
        %v4163 = vunpack.c.l.b16 %v3644
        %v4164 = vunpack.c.h.b16 %v3644
        %v4165 = vunpack.c.l.b16 %v3645
        %v4166 = vunpack.c.h.b16 %v3645
        %v4167 = vunpack.c.l.b16 %v3646
        %v4168 = vunpack.c.h.b16 %v3646
        %v4169 = vunpack.c.l.b16 %v3647
        %v4170 = vunpack.c.h.b16 %v3647
        %v4171 = vunpack.c.l.b16 %v3648
        %v4172 = vunpack.c.h.b16 %v3648
        %v4173 = vunpack.c.l.b16 %v3649
        %v4174 = vunpack.c.h.b16 %v3649
        %v4175 = vunpack.c.l.b16 %v3650
        %v4176 = vunpack.c.h.b16 %v3650
        %v4177 = vunpack.c.l.b16 %v3651
        %v4178 = vunpack.c.h.b16 %v3651
        %v4179 = vunpack.c.l.b16 %v3652
        %v4180 = vunpack.c.h.b16 %v3652
        %v4181 = vunpack.c.l.b16 %v3653
        %v4182 = vunpack.c.h.b16 %v3653
        %v4183 = vunpack.c.l.b16 %v3654
        %v4184 = vunpack.c.h.b16 %v3654
        %v4185 = vunpack.c.l.b16 %v3655
        %v4186 = vunpack.c.h.b16 %v3655
        %v4187 = vunpack.c.l.b16 %v3656
        %v4188 = vunpack.c.h.b16 %v3656
        %v4189 = vunpack.c.l.b16 %v3657
        %v4190 = vunpack.c.h.b16 %v3657
        %v4191 = vunpack.c.l.b16 %v3658
        %v4192 = vunpack.c.h.b16 %v3658
        %v4193 = vunpack.c.l.b16 %v3659
        %v4194 = vunpack.c.h.b16 %v3659
        %v4195 = vunpack.c.l.b16 %v3660
        %v4196 = vunpack.c.h.b16 %v3660
        %v4197 = vunpack.c.l.b16 %v3661
        %v4198 = vunpack.c.h.b16 %v3661
        %v4199 = vunpack.c.l.b16 %v3662
        %v4200 = vunpack.c.h.b16 %v3662
        %v4201 = vunpack.c.l.b16 %v3663
        %v4202 = vunpack.c.h.b16 %v3663
        %v4203 = vunpack.c.l.b16 %v3664
        %v4204 = vunpack.c.h.b16 %v3664
        %v4205 = vunpack.c.l.b16 %v3665
        %v4206 = vunpack.c.h.b16 %v3665
        %v4207 = vunpack.c.l.b16 %v3666
        %v4208 = vunpack.c.h.b16 %v3666
        %v4209 = vunpack.c.l.b16 %v3667
        %v4210 = vunpack.c.h.b16 %v3667
        %v4211 = vunpack.c.l.b16 %v3668
        %v4212 = vunpack.c.h.b16 %v3668
        %v4213 = vunpack.c.l.b16 %v3669
        %v4214 = vunpack.c.h.b16 %v3669
        %v4215 = vunpack.c.l.b16 %v3670
        %v4216 = vunpack.c.h.b16 %v3670
        %v4217 = vunpack.c.l.b16 %v3671
        %v4218 = vunpack.c.h.b16 %v3671
        %v4219 = vunpack.c.l.b16 %v3672
        %v4220 = vunpack.c.h.b16 %v3672
        %v4221 = vunpack.c.l.b16 %v3673
        %v4222 = vunpack.c.h.b16 %v3673
        %v4223 = vunpack.c.l.b16 %v3674
        %v4224 = vunpack.c.h.b16 %v3674
        %v4225 = vunpack.c.l.b16 %v3675
        %v4226 = vunpack.c.h.b16 %v3675
        %v4227 = vunpack.c.l.b16 %v3676
        %v4228 = vunpack.c.h.b16 %v3676
        %v4229 = vunpack.c.l.b16 %v3677
        %v4230 = vunpack.c.h.b16 %v3677
        %v4231 = vunpack.c.l.b16 %v3678
        %v4232 = vunpack.c.h.b16 %v3678
        %v4233 = vunpack.c.l.b16 %v3679
        %v4234 = vunpack.c.h.b16 %v3679
        %v4235 = vunpack.c.l.b16 %v3680
        %v4236 = vunpack.c.h.b16 %v3680
        %v4237 = vunpack.c.l.b16 %v3681
        %v4238 = vunpack.c.h.b16 %v3681
        %v4239 = vunpack.c.l.b16 %v3682
        %v4240 = vunpack.c.h.b16 %v3682
        %v4241 = vunpack.c.l.b16 %v3683
        %v4242 = vunpack.c.h.b16 %v3683
        %v4243 = vunpack.c.l.b16 %v3684
        %v4244 = vunpack.c.h.b16 %v3684
        %v4245 = vunpack.c.l.b16 %v3685
        %v4246 = vunpack.c.h.b16 %v3685
        %v4247 = vunpack.c.l.b16 %v3686
        %v4248 = vunpack.c.h.b16 %v3686
        %v4249 = vunpack.c.l.b16 %v3687
        %v4250 = vunpack.c.h.b16 %v3687
        %v4251 = vunpack.c.l.b16 %v3688
        %v4252 = vunpack.c.h.b16 %v3688
        %v4253 = vunpack.c.l.b16 %v3689
        %v4254 = vunpack.c.h.b16 %v3689
        %v4255 = vunpack.c.l.b16 %v3690
        %v4256 = vunpack.c.h.b16 %v3690
        %v4257 = vunpack.c.l.b16 %v3691
        %v4258 = vunpack.c.h.b16 %v3691
        %v4259 = vunpack.c.l.b16 %v3692
        %v4260 = vunpack.c.h.b16 %v3692
        %v4261 = vunpack.c.l.b16 %v3693
        %v4262 = vunpack.c.h.b16 %v3693
        %v4263 = vunpack.c.l.b16 %v3694
        %v4264 = vunpack.c.h.b16 %v3694
        %v4265 = vunpack.c.l.b16 %v3695
        %v4266 = vunpack.c.h.b16 %v3695
        %v4267 = vunpack.c.l.b16 %v3696
        %v4268 = vunpack.c.h.b16 %v3696
        %v4269 = vunpack.c.l.b16 %v3697
        %v4270 = vunpack.c.h.b16 %v3697
        %v4271 = vunpack.c.l.b16 %v3698
        %v4272 = vunpack.c.h.b16 %v3698
        %v4273 = vunpack.c.l.b16 %v3699
        %v4274 = vunpack.c.h.b16 %v3699
        %v4275 = vunpack.c.l.b16 %v3700
        %v4276 = vunpack.c.h.b16 %v3700
        %v4277 = vunpack.c.l.b16 %v3701
        %v4278 = vunpack.c.h.b16 %v3701
        %v4279 = vunpack.c.l.b16 %v3702
        %v4280 = vunpack.c.h.b16 %v3702
        %v4281 = vunpack.c.l.b16 %v3703
        %v4282 = vunpack.c.h.b16 %v3703
        %v4283 = vunpack.c.l.b16 %v3704
        %v4284 = vunpack.c.h.b16 %v3704
        %v4285 = vunpack.c.l.b16 %v3705
        %v4286 = vunpack.c.h.b16 %v3705
        %v4287 = vunpack.c.l.b16 %v3706
        %v4288 = vunpack.c.h.b16 %v3706
        %v4289 = vunpack.c.l.b16 %v3707
        %v4290 = vunpack.c.h.b16 %v3707
        %v4291 = vunpack.c.l.b16 %v3708
        %v4292 = vunpack.c.h.b16 %v3708
        %v4293 = vunpack.c.l.b16 %v3709
        %v4294 = vunpack.c.h.b16 %v3709
        %v4295 = vunpack.c.l.b16 %v3710
        %v4296 = vunpack.c.h.b16 %v3710
        %v4297 = vunpack.c.l.b16 %v3711
        %v4298 = vunpack.c.h.b16 %v3711
        %v4299 = vunpack.c.l.b16 %v3712
        %v4300 = vunpack.c.h.b16 %v3712
        %v4301 = vunpack.c.l.b16 %v3713
        %v4302 = vunpack.c.h.b16 %v3713
        %v4303 = vunpack.c.l.b16 %v3714
        %v4304 = vunpack.c.h.b16 %v3714
        %v4305 = vunpack.c.l.b16 %v3715
        %v4306 = vunpack.c.h.b16 %v3715
        %v4307 = vunpack.c.l.b16 %v3716
        %v4308 = vunpack.c.h.b16 %v3716
        %v4309 = vunpack.c.l.b16 %v3717
        %v4310 = vunpack.c.h.b16 %v3717
        %v4311 = vunpack.c.l.b16 %v3718
        %v4312 = vunpack.c.h.b16 %v3718
        %v4313 = vunpack.c.l.b16 %v3719
        %v4314 = vunpack.c.h.b16 %v3719
        %v4315 = vunpack.c.l.b16 %v3720
        %v4316 = vunpack.c.h.b16 %v3720
        %v4317 = vunpack.c.l.b16 %v3721
        %v4318 = vunpack.c.h.b16 %v3721
        %v4319 = vunpack.c.l.b16 %v3722
        %v4320 = vunpack.c.h.b16 %v3722
        %v4321 = vunpack.c.l.b16 %v3723
        %v4322 = vunpack.c.h.b16 %v3723
        %v4323 = vunpack.c.l.b16 %v3724
        %v4324 = vunpack.c.h.b16 %v3724
        %v4325 = vunpack.c.l.b16 %v3725
        %v4326 = vunpack.c.h.b16 %v3725
        %v4327 = vunpack.c.l.b16 %v3726
        %v4328 = vunpack.c.h.b16 %v3726
        %v4329 = vunpack.c.l.b16 %v3727
        %v4330 = vunpack.c.h.b16 %v3727
        %v4331 = vunpack.c.l.b16 %v3728
        %v4332 = vunpack.c.h.b16 %v3728
        %v4333 = vunpack.c.l.b16 %v3729
        %v4334 = vunpack.c.h.b16 %v3729
        %v4335 = vunpack.c.l.b16 %v3730
        %v4336 = vunpack.c.h.b16 %v3730
        %v4337 = vunpack.c.l.b16 %v3731
        %v4338 = vunpack.c.h.b16 %v3731
        %v4339 = vunpack.c.l.b16 %v3732
        %v4340 = vunpack.c.h.b16 %v3732
        %v4341 = vunpack.c.l.b16 %v3733
        %v4342 = vunpack.c.h.b16 %v3733
        %v4343 = vunpack.c.l.b16 %v3734
        %v4344 = vunpack.c.h.b16 %v3734
        %v4345 = vunpack.c.l.b16 %v3735
        %v4346 = vunpack.c.h.b16 %v3735
        %v4347 = vunpack.c.l.b16 %v3736
        %v4348 = vunpack.c.h.b16 %v3736
        %v4349 = vunpack.c.l.b16 %v3737
        %v4350 = vunpack.c.h.b16 %v3737
        %v4351 = vunpack.c.l.b16 %v3738
        %v4352 = vunpack.c.h.b16 %v3738
        %v4353 = vunpack.c.l.b16 %v3739
        %v4354 = vunpack.c.h.b16 %v3739
        %v4355 = vunpack.c.l.b16 %v3740
        %v4356 = vunpack.c.h.b16 %v3740
        %v4357 = vunpack.c.l.b16 %v3741
        %v4358 = vunpack.c.h.b16 %v3741
        %v4359 = vunpack.c.l.b16 %v3742
        %v4360 = vunpack.c.h.b16 %v3742
        %v4361 = vunpack.c.l.b16 %v3743
        %v4362 = vunpack.c.h.b16 %v3743
        %v4363 = vunpack.c.l.b16 %v3744
        %v4364 = vunpack.c.h.b16 %v3744
        %v4365 = vunpack.c.l.b16 %v3745
        %v4366 = vunpack.c.h.b16 %v3745
        %v4367 = vunpack.c.l.b16 %v3746
        %v4368 = vunpack.c.h.b16 %v3746
        %v4369 = vunpack.c.l.b16 %v3747
        %v4370 = vunpack.c.h.b16 %v3747
        %v4371 = vunpack.c.l.b16 %v3748
        %v4372 = vunpack.c.h.b16 %v3748
        %v4373 = vunpack.c.l.b16 %v3749
        %v4374 = vunpack.c.h.b16 %v3749
        %v4375 = vunpack.c.l.b16 %v3750
        %v4376 = vunpack.c.h.b16 %v3750
        %v4377 = vunpack.c.l.b16 %v3751
        %v4378 = vunpack.c.h.b16 %v3751
        %v4379 = vunpack.c.l.b16 %v3752
        %v4380 = vunpack.c.h.b16 %v3752
        %v4381 = vunpack.c.l.b16 %v3753
        %v4382 = vunpack.c.h.b16 %v3753
        %v4383 = vunpack.c.l.b16 %v3754
        %v4384 = vunpack.c.h.b16 %v3754
        %v4385 = vunpack.c.l.b16 %v3755
        %v4386 = vunpack.c.h.b16 %v3755
        %v4387 = vunpack.c.l.b16 %v3756
        %v4388 = vunpack.c.h.b16 %v3756
        %v4389 = vunpack.c.l.b16 %v3757
        %v4390 = vunpack.c.h.b16 %v3757
        %v4391 = vunpack.c.l.b16 %v3758
        %v4392 = vunpack.c.h.b16 %v3758
        %v4393 = vunpack.c.l.b16 %v3759
        %v4394 = vunpack.c.h.b16 %v3759
        %v4395 = vunpack.c.l.b16 %v3760
        %v4396 = vunpack.c.h.b16 %v3760
        %v4397 = vunpack.c.l.b16 %v3761
        %v4398 = vunpack.c.h.b16 %v3761
        %v4399 = vunpack.c.l.b16 %v3762
        %v4400 = vunpack.c.h.b16 %v3762
        %v4401 = vunpack.c.l.b16 %v3763
        %v4402 = vunpack.c.h.b16 %v3763
        %v4403 = vunpack.c.l.b16 %v3764
        %v4404 = vunpack.c.h.b16 %v3764
        %v4405 = vunpack.c.l.b16 %v3765
        %v4406 = vunpack.c.h.b16 %v3765
        %v4407 = vunpack.c.l.b16 %v3766
        %v4408 = vunpack.c.h.b16 %v3766
        %v4409 = vunpack.c.l.b16 %v3767
        %v4410 = vunpack.c.h.b16 %v3767
        %v4411 = vunpack.c.l.b16 %v3768
        %v4412 = vunpack.c.h.b16 %v3768
        %v4413 = vunpack.c.l.b16 %v3769
        %v4414 = vunpack.c.h.b16 %v3769
        %v4415 = vunpack.c.l.b16 %v3770
        %v4416 = vunpack.c.h.b16 %v3770
        %v4417 = vunpack.c.l.b16 %v3771
        %v4418 = vunpack.c.h.b16 %v3771
        %v4419 = vunpack.c.l.b16 %v3772
        %v4420 = vunpack.c.h.b16 %v3772
        %v4421 = vunpack.c.l.b16 %v3773
        %v4422 = vunpack.c.h.b16 %v3773
        %v4423 = vunpack.c.l.b16 %v3774
        %v4424 = vunpack.c.h.b16 %v3774
        %v4425 = vunpack.c.l.b16 %v3775
        %v4426 = vunpack.c.h.b16 %v3775
        %v4427 = vunpack.c.l.b16 %v3776
        %v4428 = vunpack.c.h.b16 %v3776
        %v4429 = vunpack.c.l.b16 %v3777
        %v4430 = vunpack.c.h.b16 %v3777
        %v4431 = vunpack.c.l.b16 %v3778
        %v4432 = vunpack.c.h.b16 %v3778
        %v4433 = vunpack.c.l.b16 %v3779
        %v4434 = vunpack.c.h.b16 %v3779
        %v4435 = vunpack.c.l.b16 %v3780
        %v4436 = vunpack.c.h.b16 %v3780
        %v4437 = vunpack.c.l.b16 %v3781
        %v4438 = vunpack.c.h.b16 %v3781
        %v4439 = vunpack.c.l.b16 %v3782
        %v4440 = vunpack.c.h.b16 %v3782
        %v4441 = vunpack.c.l.b16 %v3783
        %v4442 = vunpack.c.h.b16 %v3783
        %v4443 = vunpack.c.l.b16 %v3784
        %v4444 = vunpack.c.h.b16 %v3784
        %v4445 = vunpack.c.l.b16 %v3785
        %v4446 = vunpack.c.h.b16 %v3785
        %v4447 = vunpack.c.l.b16 %v3786
        %v4448 = vunpack.c.h.b16 %v3786
        %v4449 = vunpack.c.l.b16 %v3787
        %v4450 = vunpack.c.h.b16 %v3787
        %v4451 = vunpack.c.l.b16 %v3788
        %v4452 = vunpack.c.h.b16 %v3788
        %v4453 = vunpack.c.l.b16 %v3789
        %v4454 = vunpack.c.h.b16 %v3789
        %v4455 = vunpack.c.l.b16 %v3790
        %v4456 = vunpack.c.h.b16 %v3790
        %v4457 = vunpack.c.l.b16 %v3791
        %v4458 = vunpack.c.h.b16 %v3791
        %v4459 = vunpack.c.l.b16 %v3792
        %v4460 = vunpack.c.h.b16 %v3792
        %v4461 = vunpack.c.l.b16 %v3793
        %v4462 = vunpack.c.h.b16 %v3793
        %v4463 = vunpack.c.l.b16 %v3794
        %v4464 = vunpack.c.h.b16 %v3794
        %v4465 = vunpack.c.l.b16 %v3795
        %v4466 = vunpack.c.h.b16 %v3795
        %v4467 = vunpack.c.l.b16 %v3796
        %v4468 = vunpack.c.h.b16 %v3796
        %v4469 = vunpack.c.l.b16 %v3797
        %v4470 = vunpack.c.h.b16 %v3797
        %v4471 = vunpack.c.l.b16 %v3798
        %v4472 = vunpack.c.h.b16 %v3798
        %v4473 = vunpack.c.l.b16 %v3799
        %v4474 = vunpack.c.h.b16 %v3799
        %v4475 = vunpack.c.l.b16 %v3800
        %v4476 = vunpack.c.h.b16 %v3800
        %v4477 = vunpack.c.l.b16 %v3801
        %v4478 = vunpack.c.h.b16 %v3801
        %v4479 = vunpack.c.l.b16 %v3802
        %v4480 = vunpack.c.h.b16 %v3802
        %v4481 = vunpack.c.l.b16 %v3803
        %v4482 = vunpack.c.h.b16 %v3803
        %v4483 = vunpack.c.l.b16 %v3804
        %v4484 = vunpack.c.h.b16 %v3804
        %v4485 = vunpack.c.l.b16 %v3805
        %v4486 = vunpack.c.h.b16 %v3805
        %v4487 = vunpack.c.l.b16 %v3806
        %v4488 = vunpack.c.h.b16 %v3806
        %v4489 = vunpack.c.l.b16 %v3807
        %v4490 = vunpack.c.h.b16 %v3807
        %v4491 = vunpack.c.l.b16 %v3808
        %v4492 = vunpack.c.h.b16 %v3808
        %v4493 = vunpack.c.l.b16 %v3809
        %v4494 = vunpack.c.h.b16 %v3809
        %v4495 = vunpack.c.l.b16 %v3810
        %v4496 = vunpack.c.h.b16 %v3810
        %v4497 = vunpack.c.l.b16 %v3811
        %v4498 = vunpack.c.h.b16 %v3811
        %v4499 = vunpack.c.l.b16 %v3812
        %v4500 = vunpack.c.h.b16 %v3812
        %v4501 = vunpack.c.l.b16 %v3813
        %v4502 = vunpack.c.h.b16 %v3813
        %v4503 = vunpack.c.l.b16 %v3814
        %v4504 = vunpack.c.h.b16 %v3814
        %v4505 = vunpack.c.l.b16 %v3815
        %v4506 = vunpack.c.h.b16 %v3815
        %v4507 = vunpack.c.l.b16 %v3816
        %v4508 = vunpack.c.h.b16 %v3816
        %v4509 = vunpack.c.l.b16 %v3817
        %v4510 = vunpack.c.h.b16 %v3817
        %v4511 = vunpack.c.l.b16 %v3818
        %v4512 = vunpack.c.h.b16 %v3818
        %v4513 = vunpack.c.l.b16 %v3819
        %v4514 = vunpack.c.h.b16 %v3819
        %v4515 = vunpack.c.l.b16 %v3820
        %v4516 = vunpack.c.h.b16 %v3820
        %v4517 = vunpack.c.l.b16 %v3821
        %v4518 = vunpack.c.h.b16 %v3821
        %v4519 = vunpack.c.l.b16 %v3822
        %v4520 = vunpack.c.h.b16 %v3822
        %v4521 = vunpack.c.l.b16 %v3823
        %v4522 = vunpack.c.h.b16 %v3823
        %v4523 = vunpack.c.l.b16 %v3824
        %v4524 = vunpack.c.h.b16 %v3824
        %v4525 = vunpack.c.l.b16 %v3825
        %v4526 = vunpack.c.h.b16 %v3825
        %v4527 = vunpack.c.l.b16 %v3826
        %v4528 = vunpack.c.h.b16 %v3826
        %v4529 = vunpack.c.l.b16 %v3827
        %v4530 = vunpack.c.h.b16 %v3827
        %v4531 = vunpack.c.l.b16 %v3828
        %v4532 = vunpack.c.h.b16 %v3828
        %v4533 = vunpack.c.l.b16 %v3829
        %v4534 = vunpack.c.h.b16 %v3829
        %v4535 = vpack.c.b16 %v4087, %v4083
        %v4536 = vpack.c.b16 %v4088, %v4084
        %v4537 = vpack.c.b16 %v4089, %v4085
        %v4538 = vpack.c.b16 %v4090, %v4086
        %v4539 = vpack.c.b16 %v4095, %v4091
        %v4540 = vpack.c.b16 %v4096, %v4092
        %v4541 = vpack.c.b16 %v4097, %v4093
        %v4542 = vpack.c.b16 %v4098, %v4094
        %v4543 = vpack.c.b16 %v4103, %v4099
        %v4544 = vpack.c.b16 %v4104, %v4100
        %v4545 = vpack.c.b16 %v4105, %v4101
        %v4546 = vpack.c.b16 %v4106, %v4102
        %v4547 = vpack.c.b16 %v4111, %v4107
        %v4548 = vpack.c.b16 %v4112, %v4108
        %v4549 = vpack.c.b16 %v4113, %v4109
        %v4550 = vpack.c.b16 %v4114, %v4110
        %v4551 = vpack.c.b16 %v4119, %v4115
        %v4552 = vpack.c.b16 %v4120, %v4116
        %v4553 = vpack.c.b16 %v4121, %v4117
        %v4554 = vpack.c.b16 %v4122, %v4118
        %v4555 = vpack.c.b16 %v4127, %v4123
        %v4556 = vpack.c.b16 %v4128, %v4124
        %v4557 = vpack.c.b16 %v4129, %v4125
        %v4558 = vpack.c.b16 %v4130, %v4126
        %v4559 = vpack.c.b16 %v4135, %v4131
        %v4560 = vpack.c.b16 %v4136, %v4132
        %v4561 = vpack.c.b16 %v4137, %v4133
        %v4562 = vpack.c.b16 %v4138, %v4134
        %v4563 = vpack.c.b16 %v4143, %v4139
        %v4564 = vpack.c.b16 %v4144, %v4140
        %v4565 = vpack.c.b16 %v4145, %v4141
        %v4566 = vpack.c.b16 %v4146, %v4142
        %v4567 = vpack.c.b16 %v4151, %v4147
        %v4568 = vpack.c.b16 %v4152, %v4148
        %v4569 = vpack.c.b16 %v4153, %v4149
        %v4570 = vpack.c.b16 %v4154, %v4150
        %v4571 = vpack.c.b16 %v4159, %v4155
        %v4572 = vpack.c.b16 %v4160, %v4156
        %v4573 = vpack.c.b16 %v4161, %v4157
        %v4574 = vpack.c.b16 %v4162, %v4158
        %v4575 = vpack.c.b16 %v4167, %v4163
        %v4576 = vpack.c.b16 %v4168, %v4164
        %v4577 = vpack.c.b16 %v4169, %v4165
        %v4578 = vpack.c.b16 %v4170, %v4166
        %v4579 = vpack.c.b16 %v4175, %v4171
        %v4580 = vpack.c.b16 %v4176, %v4172
        %v4581 = vpack.c.b16 %v4177, %v4173
        %v4582 = vpack.c.b16 %v4178, %v4174
        %v4583 = vpack.c.b16 %v4183, %v4179
        %v4584 = vpack.c.b16 %v4184, %v4180
        %v4585 = vpack.c.b16 %v4185, %v4181
        %v4586 = vpack.c.b16 %v4186, %v4182
        %v4587 = vpack.c.b16 %v4191, %v4187
        %v4588 = vpack.c.b16 %v4192, %v4188
        %v4589 = vpack.c.b16 %v4193, %v4189
        %v4590 = vpack.c.b16 %v4194, %v4190
        %v4591 = vpack.c.b16 %v4199, %v4195
        %v4592 = vpack.c.b16 %v4200, %v4196
        %v4593 = vpack.c.b16 %v4201, %v4197
        %v4594 = vpack.c.b16 %v4202, %v4198
        %v4595 = vpack.c.b16 %v4207, %v4203
        %v4596 = vpack.c.b16 %v4208, %v4204
        %v4597 = vpack.c.b16 %v4209, %v4205
        %v4598 = vpack.c.b16 %v4210, %v4206
        %v4599 = vpack.c.b16 %v4215, %v4211
        %v4600 = vpack.c.b16 %v4216, %v4212
        %v4601 = vpack.c.b16 %v4217, %v4213
        %v4602 = vpack.c.b16 %v4218, %v4214
        %v4603 = vpack.c.b16 %v4223, %v4219
        %v4604 = vpack.c.b16 %v4224, %v4220
        %v4605 = vpack.c.b16 %v4225, %v4221
        %v4606 = vpack.c.b16 %v4226, %v4222
        %v4607 = vpack.c.b16 %v4231, %v4227
        %v4608 = vpack.c.b16 %v4232, %v4228
        %v4609 = vpack.c.b16 %v4233, %v4229
        %v4610 = vpack.c.b16 %v4234, %v4230
        %v4611 = vpack.c.b16 %v4239, %v4235
        %v4612 = vpack.c.b16 %v4240, %v4236
        %v4613 = vpack.c.b16 %v4241, %v4237
        %v4614 = vpack.c.b16 %v4242, %v4238
        %v4615 = vpack.c.b16 %v4247, %v4243
        %v4616 = vpack.c.b16 %v4248, %v4244
        %v4617 = vpack.c.b16 %v4249, %v4245
        %v4618 = vpack.c.b16 %v4250, %v4246
        %v4619 = vpack.c.b16 %v4255, %v4251
        %v4620 = vpack.c.b16 %v4256, %v4252
        %v4621 = vpack.c.b16 %v4257, %v4253
        %v4622 = vpack.c.b16 %v4258, %v4254
        %v4623 = vpack.c.b16 %v4263, %v4259
        %v4624 = vpack.c.b16 %v4264, %v4260
        %v4625 = vpack.c.b16 %v4265, %v4261
        %v4626 = vpack.c.b16 %v4266, %v4262
        %v4627 = vpack.c.b16 %v4271, %v4267
        %v4628 = vpack.c.b16 %v4272, %v4268
        %v4629 = vpack.c.b16 %v4273, %v4269
        %v4630 = vpack.c.b16 %v4274, %v4270
        %v4631 = vpack.c.b16 %v4279, %v4275
        %v4632 = vpack.c.b16 %v4280, %v4276
        %v4633 = vpack.c.b16 %v4281, %v4277
        %v4634 = vpack.c.b16 %v4282, %v4278
        %v4635 = vpack.c.b16 %v4287, %v4283
        %v4636 = vpack.c.b16 %v4288, %v4284
        %v4637 = vpack.c.b16 %v4289, %v4285
        %v4638 = vpack.c.b16 %v4290, %v4286
        %v4639 = vpack.c.b16 %v4295, %v4291
        %v4640 = vpack.c.b16 %v4296, %v4292
        %v4641 = vpack.c.b16 %v4297, %v4293
        %v4642 = vpack.c.b16 %v4298, %v4294
        %v4643 = vpack.c.b16 %v4303, %v4299
        %v4644 = vpack.c.b16 %v4304, %v4300
        %v4645 = vpack.c.b16 %v4305, %v4301
        %v4646 = vpack.c.b16 %v4306, %v4302
        %v4647 = vpack.c.b16 %v4311, %v4307
        %v4648 = vpack.c.b16 %v4312, %v4308
        %v4649 = vpack.c.b16 %v4313, %v4309
        %v4650 = vpack.c.b16 %v4314, %v4310
        %v4651 = vpack.c.b16 %v4319, %v4315
        %v4652 = vpack.c.b16 %v4320, %v4316
        %v4653 = vpack.c.b16 %v4321, %v4317
        %v4654 = vpack.c.b16 %v4322, %v4318
        %v4655 = vpack.c.b16 %v4327, %v4323
        %v4656 = vpack.c.b16 %v4328, %v4324
        %v4657 = vpack.c.b16 %v4329, %v4325
        %v4658 = vpack.c.b16 %v4330, %v4326
        %v4659 = vpack.c.b16 %v4335, %v4331
        %v4660 = vpack.c.b16 %v4336, %v4332
        %v4661 = vpack.c.b16 %v4337, %v4333
        %v4662 = vpack.c.b16 %v4338, %v4334
        %v4663 = vpack.c.b16 %v4343, %v4339
        %v4664 = vpack.c.b16 %v4344, %v4340
        %v4665 = vpack.c.b16 %v4345, %v4341
        %v4666 = vpack.c.b16 %v4346, %v4342
        %v4667 = vpack.c.b16 %v4351, %v4347
        %v4668 = vpack.c.b16 %v4352, %v4348
        %v4669 = vpack.c.b16 %v4353, %v4349
        %v4670 = vpack.c.b16 %v4354, %v4350
        %v4671 = vpack.c.b16 %v4359, %v4355
        %v4672 = vpack.c.b16 %v4360, %v4356
        %v4673 = vpack.c.b16 %v4361, %v4357
        %v4674 = vpack.c.b16 %v4362, %v4358
        %v4675 = vpack.c.b16 %v4367, %v4363
        %v4676 = vpack.c.b16 %v4368, %v4364
        %v4677 = vpack.c.b16 %v4369, %v4365
        %v4678 = vpack.c.b16 %v4370, %v4366
        %v4679 = vpack.c.b16 %v4375, %v4371
        %v4680 = vpack.c.b16 %v4376, %v4372
        %v4681 = vpack.c.b16 %v4377, %v4373
        %v4682 = vpack.c.b16 %v4378, %v4374
        %v4683 = vpack.c.b16 %v4383, %v4379
        %v4684 = vpack.c.b16 %v4384, %v4380
        %v4685 = vpack.c.b16 %v4385, %v4381
        %v4686 = vpack.c.b16 %v4386, %v4382
        %v4687 = vpack.c.b16 %v4391, %v4387
        %v4688 = vpack.c.b16 %v4392, %v4388
        %v4689 = vpack.c.b16 %v4393, %v4389
        %v4690 = vpack.c.b16 %v4394, %v4390
        %v4691 = vpack.c.b16 %v4399, %v4395
        %v4692 = vpack.c.b16 %v4400, %v4396
        %v4693 = vpack.c.b16 %v4401, %v4397
        %v4694 = vpack.c.b16 %v4402, %v4398
        %v4695 = vpack.c.b16 %v4407, %v4403
        %v4696 = vpack.c.b16 %v4408, %v4404
        %v4697 = vpack.c.b16 %v4409, %v4405
        %v4698 = vpack.c.b16 %v4410, %v4406
        %v4699 = vpack.c.b16 %v4415, %v4411
        %v4700 = vpack.c.b16 %v4416, %v4412
        %v4701 = vpack.c.b16 %v4417, %v4413
        %v4702 = vpack.c.b16 %v4418, %v4414
        %v4703 = vpack.c.b16 %v4423, %v4419
        %v4704 = vpack.c.b16 %v4424, %v4420
        %v4705 = vpack.c.b16 %v4425, %v4421
        %v4706 = vpack.c.b16 %v4426, %v4422
        %v4707 = vpack.c.b16 %v4431, %v4427
        %v4708 = vpack.c.b16 %v4432, %v4428
        %v4709 = vpack.c.b16 %v4433, %v4429
        %v4710 = vpack.c.b16 %v4434, %v4430
        %v4711 = vpack.c.b16 %v4439, %v4435
        %v4712 = vpack.c.b16 %v4440, %v4436
        %v4713 = vpack.c.b16 %v4441, %v4437
        %v4714 = vpack.c.b16 %v4442, %v4438
        %v4715 = vpack.c.b16 %v4447, %v4443
        %v4716 = vpack.c.b16 %v4448, %v4444
        %v4717 = vpack.c.b16 %v4449, %v4445
        %v4718 = vpack.c.b16 %v4450, %v4446
        %v4719 = vpack.c.b16 %v4455, %v4451
        %v4720 = vpack.c.b16 %v4456, %v4452
        %v4721 = vpack.c.b16 %v4457, %v4453
        %v4722 = vpack.c.b16 %v4458, %v4454
        %v4723 = vpack.c.b16 %v4463, %v4459
        %v4724 = vpack.c.b16 %v4464, %v4460
        %v4725 = vpack.c.b16 %v4465, %v4461
        %v4726 = vpack.c.b16 %v4466, %v4462
        %v4727 = vpack.c.b16 %v4471, %v4467
        %v4728 = vpack.c.b16 %v4472, %v4468
        %v4729 = vpack.c.b16 %v4473, %v4469
        %v4730 = vpack.c.b16 %v4474, %v4470
        %v4731 = vpack.c.b16 %v4479, %v4475
        %v4732 = vpack.c.b16 %v4480, %v4476
        %v4733 = vpack.c.b16 %v4481, %v4477
        %v4734 = vpack.c.b16 %v4482, %v4478
        %v4735 = vpack.c.b16 %v4487, %v4483
        %v4736 = vpack.c.b16 %v4488, %v4484
        %v4737 = vpack.c.b16 %v4489, %v4485
        %v4738 = vpack.c.b16 %v4490, %v4486
        %v4739 = vpack.c.b16 %v4495, %v4491
        %v4740 = vpack.c.b16 %v4496, %v4492
        %v4741 = vpack.c.b16 %v4497, %v4493
        %v4742 = vpack.c.b16 %v4498, %v4494
        %v4743 = vpack.c.b16 %v4503, %v4499
        %v4744 = vpack.c.b16 %v4504, %v4500
        %v4745 = vpack.c.b16 %v4505, %v4501
        %v4746 = vpack.c.b16 %v4506, %v4502
        %v4747 = vpack.c.b16 %v4511, %v4507
        %v4748 = vpack.c.b16 %v4512, %v4508
        %v4749 = vpack.c.b16 %v4513, %v4509
        %v4750 = vpack.c.b16 %v4514, %v4510
        %v4751 = vpack.c.b16 %v4519, %v4515
        %v4752 = vpack.c.b16 %v4520, %v4516
        %v4753 = vpack.c.b16 %v4521, %v4517
        %v4754 = vpack.c.b16 %v4522, %v4518
        %v4755 = vpack.c.b16 %v4527, %v4523
        %v4756 = vpack.c.b16 %v4528, %v4524
        %v4757 = vpack.c.b16 %v4529, %v4525
        %v4758 = vpack.c.b16 %v4530, %v4526
        %v4759 = vpack.c.b16 %v4531, %v4531
        %v4760 = vpack.c.b16 %v4532, %v4532
        %v4761 = vpack.c.b16 %v4533, %v4533
        %v4762 = vpack.c.b16 %v4534, %v4534
        %vm4987 = vcmask 31744
        %v4989 = vsel %vm4987, %v3849, 0
        %vm4991 = vcmask 1041408
        %v4993 = vsel %vm4991, %v4759, 0
        %v4996 = vsel %vm4991, %v4760, 0
        %v4999 = vsel %vm4991, %v4761, 0
        %v5002 = vsel %vm4991, %v4762, 0
        %5004 = vmatprep.subr.bf16.mxu0 %v4564
        %5005 = vmatpush1.bf16.msra.mxu0 %v4563
        %5006 = vmatprep.subr.bf16.mxu0 %v4560
        %5007 = vmatpush1.bf16.msra.mxu0 %v4559
        %5008 = vmatprep.subr.bf16.mxu0 %v4556
        %5009 = vmatpush1.bf16.msra.mxu0 %v4555
        %5010 = vmatprep.subr.bf16.mxu0 %v4552
        %5011 = vmatpush1.bf16.msra.mxu0 %v4551
        %5012 = vmatprep.subr.bf16.mxu0 %v4548
        %5013 = vmatpush1.bf16.msra.mxu0 %v4547
        %5014 = vmatprep.subr.bf16.mxu0 %v4544
        %5015 = vmatpush1.bf16.msra.mxu0 %v4543
        %5016 = vmatprep.subr.bf16.mxu0 %v4540
        %5017 = vmatpush1.bf16.msra.mxu0 %v4539
        %5018 = vmatprep.subr.bf16.mxu0 %v4536
        %5019 = vmatpush1.bf16.msra.mxu0 %v4535
        %5020 = vmatprep.subr.bf16.mxu0 %v4596
        %5021 = vmatpush2.bf16.msra.mxu0 %v4595
        %5022 = vmatprep.subr.bf16.mxu0 %v4592
        %5023 = vmatpush2.bf16.msra.mxu0 %v4591
        %5024 = vmatprep.subr.bf16.mxu0 %v4588
        %5025 = vmatpush2.bf16.msra.mxu0 %v4587
        %5026 = vmatprep.subr.bf16.mxu0 %v4584
        %5027 = vmatpush2.bf16.msra.mxu0 %v4583
        %5028 = vmatprep.subr.bf16.mxu0 %v4580
        %5029 = vmatpush2.bf16.msra.mxu0 %v4579
        %5030 = vmatprep.subr.bf16.mxu0 %v4576
        %5031 = vmatpush2.bf16.msra.mxu0 %v4575
        %5032 = vmatprep.subr.bf16.mxu0 %v4572
        %5033 = vmatpush2.bf16.msra.mxu0 %v4571
        %5034 = vmatprep.subr.bf16.mxu0 %v4568
        %5035 = vmatpush2.bf16.msra.mxu0 %v4567
        %5036 = vmatprep.mubr.bf16.mxu0 %v3843
        %5037 = vmatmul.mubr.bf16.gmra.mxu0 %v3842
        %v5038 = vpop.f32.mrf.mxu0
        %v5039 = vadd.f32 0.0, %v5038
        %v5040 = vpop.f32.mrf.mxu0
        %v5041 = vadd.f32 0.0, %v5040
        %v5042 = vpop.f32.mrf.mxu0
        %v5043 = vpop.f32.mrf.mxu0
        %5044 = vdwg.mxu0
        %5045 = vmatprep.subr.bf16.mxu0 %v4628
        %5046 = vmatpush1.bf16.msra.mxu0 %v4627
        %5047 = vmatprep.subr.bf16.mxu0 %v4624
        %5048 = vmatpush1.bf16.msra.mxu0 %v4623
        %5049 = vmatprep.subr.bf16.mxu0 %v4620
        %5050 = vmatpush1.bf16.msra.mxu0 %v4619
        %5051 = vmatprep.subr.bf16.mxu0 %v4616
        %5052 = vmatpush1.bf16.msra.mxu0 %v4615
        %5053 = vmatprep.subr.bf16.mxu0 %v4612
        %5054 = vmatpush1.bf16.msra.mxu0 %v4611
        %5055 = vmatprep.subr.bf16.mxu0 %v4608
        %5056 = vmatpush1.bf16.msra.mxu0 %v4607
        %5057 = vmatprep.subr.bf16.mxu0 %v4604
        %5058 = vmatpush1.bf16.msra.mxu0 %v4603
        %5059 = vmatprep.subr.bf16.mxu0 %v4600
        %5060 = vmatpush1.bf16.msra.mxu0 %v4599
        %5061 = vmatprep.subr.bf16.mxu0 %v4660
        %5062 = vmatpush2.bf16.msra.mxu0 %v4659
        %5063 = vmatprep.subr.bf16.mxu0 %v4656
        %5064 = vmatpush2.bf16.msra.mxu0 %v4655
        %5065 = vmatprep.subr.bf16.mxu0 %v4652
        %5066 = vmatpush2.bf16.msra.mxu0 %v4651
        %5067 = vmatprep.subr.bf16.mxu0 %v4648
        %5068 = vmatpush2.bf16.msra.mxu0 %v4647
        %5069 = vmatprep.subr.bf16.mxu0 %v4644
        %5070 = vmatpush2.bf16.msra.mxu0 %v4643
        %5071 = vmatprep.subr.bf16.mxu0 %v4640
        %5072 = vmatpush2.bf16.msra.mxu0 %v4639
        %5073 = vmatprep.subr.bf16.mxu0 %v4636
        %5074 = vmatpush2.bf16.msra.mxu0 %v4635
        %5075 = vmatprep.subr.bf16.mxu0 %v4632
        %5076 = vmatpush2.bf16.msra.mxu0 %v4631
        %5077 = vmatprep.mubr.bf16.mxu0 %v3845
        %5078 = vmatmul.mubr.bf16.gmra.mxu0 %v3844
        %v5079 = vpop.f32.mrf.mxu0
        %v5080 = vadd.f32 %v5039, %v5079
        %v5081 = vpop.f32.mrf.mxu0
        %v5082 = vadd.f32 %v5041, %v5081
        %v5083 = vpop.f32.mrf.mxu0
        %v5084 = vpop.f32.mrf.mxu0
        %5085 = vdwg.mxu0
        %5086 = vmatprep.subr.bf16.mxu0 %v4692
        %5087 = vmatpush1.bf16.msra.mxu0 %v4691
        %5088 = vmatprep.subr.bf16.mxu0 %v4688
        %5089 = vmatpush1.bf16.msra.mxu0 %v4687
        %5090 = vmatprep.subr.bf16.mxu0 %v4684
        %5091 = vmatpush1.bf16.msra.mxu0 %v4683
        %5092 = vmatprep.subr.bf16.mxu0 %v4680
        %5093 = vmatpush1.bf16.msra.mxu0 %v4679
        %5094 = vmatprep.subr.bf16.mxu0 %v4676
        %5095 = vmatpush1.bf16.msra.mxu0 %v4675
        %5096 = vmatprep.subr.bf16.mxu0 %v4672
        %5097 = vmatpush1.bf16.msra.mxu0 %v4671
        %5098 = vmatprep.subr.bf16.mxu0 %v4668
        %5099 = vmatpush1.bf16.msra.mxu0 %v4667
        %5100 = vmatprep.subr.bf16.mxu0 %v4664
        %5101 = vmatpush1.bf16.msra.mxu0 %v4663
        %5102 = vmatprep.subr.bf16.mxu0 %v4724
        %5103 = vmatpush2.bf16.msra.mxu0 %v4723
        %5104 = vmatprep.subr.bf16.mxu0 %v4720
        %5105 = vmatpush2.bf16.msra.mxu0 %v4719
        %5106 = vmatprep.subr.bf16.mxu0 %v4716
        %5107 = vmatpush2.bf16.msra.mxu0 %v4715
        %5108 = vmatprep.subr.bf16.mxu0 %v4712
        %5109 = vmatpush2.bf16.msra.mxu0 %v4711
        %5110 = vmatprep.subr.bf16.mxu0 %v4708
        %5111 = vmatpush2.bf16.msra.mxu0 %v4707
        %5112 = vmatprep.subr.bf16.mxu0 %v4704
        %5113 = vmatpush2.bf16.msra.mxu0 %v4703
        %5114 = vmatprep.subr.bf16.mxu0 %v4700
        %5115 = vmatpush2.bf16.msra.mxu0 %v4699
        %5116 = vmatprep.subr.bf16.mxu0 %v4696
        %5117 = vmatpush2.bf16.msra.mxu0 %v4695
        %5118 = vmatprep.mubr.bf16.mxu0 %v3847
        %5119 = vmatmul.mubr.bf16.gmra.mxu0 %v3846
        %v5120 = vpop.f32.mrf.mxu0
        %v5121 = vadd.f32 %v5080, %v5120
        %v5122 = vpop.f32.mrf.mxu0
        %v5123 = vadd.f32 %v5082, %v5122
        %v5124 = vpop.f32.mrf.mxu0
        %v5125 = vpop.f32.mrf.mxu0
        %5126 = vdwg.mxu0
        %5127 = vmatprep.subr.bf16.mxu0 %v4756
        %5128 = vmatpush1.bf16.msra.mxu0 %v4755
        %5129 = vmatprep.subr.bf16.mxu0 %v4752
        %5130 = vmatpush1.bf16.msra.mxu0 %v4751
        %5131 = vmatprep.subr.bf16.mxu0 %v4748
        %5132 = vmatpush1.bf16.msra.mxu0 %v4747
        %5133 = vmatprep.subr.bf16.mxu0 %v4744
        %5134 = vmatpush1.bf16.msra.mxu0 %v4743
        %5135 = vmatprep.subr.bf16.mxu0 %v4740
        %5136 = vmatpush1.bf16.msra.mxu0 %v4739
        %5137 = vmatprep.subr.bf16.mxu0 %v4736
        %5138 = vmatpush1.bf16.msra.mxu0 %v4735
        %5139 = vmatprep.subr.bf16.mxu0 %v4732
        %5140 = vmatpush1.bf16.msra.mxu0 %v4731
        %5141 = vmatprep.subr.bf16.mxu0 %v4728
        %5142 = vmatpush1.bf16.msra.mxu0 %v4727
        %5143 = vmatprep.subr.bf16.mxu0 0
        %5144 = vmatpush2.bf16.msra.mxu0 0
        %5145 = vmatprep.subr.bf16.mxu0 0
        %5146 = vmatpush2.bf16.msra.mxu0 0
        %5147 = vmatprep.subr.bf16.mxu0 0
        %5148 = vmatpush2.bf16.msra.mxu0 0
        %5149 = vmatprep.subr.bf16.mxu0 0
        %5150 = vmatpush2.bf16.msra.mxu0 0
        %5151 = vmatprep.subr.bf16.mxu0 0
        %5152 = vmatpush2.bf16.msra.mxu0 0
        %5153 = vmatprep.subr.bf16.mxu0 0
        %5154 = vmatpush2.bf16.msra.mxu0 0
        %5155 = vmatprep.subr.bf16.mxu0 0
        %5156 = vmatpush2.bf16.msra.mxu0 0
        %5157 = vmatprep.subr.bf16.mxu0 %v4996
        %5158 = vmatpush2.bf16.msra.mxu0 %v4993
        %5159 = vmatprep.mubr.bf16.mxu0 %v4989
        %5160 = vmatmul.mubr.bf16.gmra.mxu0 %v3848
        %v5161 = vpop.f32.mrf.mxu0
        %v5162 = vadd.f32 %v5121, %v5161
        %v5163 = vpop.f32.mrf.mxu0
        %v5164 = vadd.f32 %v5123, %v5163
        %v5165 = vpop.f32.mrf.mxu0
        %v5166 = vpop.f32.mrf.mxu0
        %5167 = vdwg.mxu0
        %5168 = vmatprep.subr.bf16.mxu0 %v4566
        %5169 = vmatpush1.bf16.msra.mxu0 %v4565
        %5170 = vmatprep.subr.bf16.mxu0 %v4562
        %5171 = vmatpush1.bf16.msra.mxu0 %v4561
        %5172 = vmatprep.subr.bf16.mxu0 %v4558
        %5173 = vmatpush1.bf16.msra.mxu0 %v4557
        %5174 = vmatprep.subr.bf16.mxu0 %v4554
        %5175 = vmatpush1.bf16.msra.mxu0 %v4553
        %5176 = vmatprep.subr.bf16.mxu0 %v4550
        %5177 = vmatpush1.bf16.msra.mxu0 %v4549
        %5178 = vmatprep.subr.bf16.mxu0 %v4546
        %5179 = vmatpush1.bf16.msra.mxu0 %v4545
        %5180 = vmatprep.subr.bf16.mxu0 %v4542
        %5181 = vmatpush1.bf16.msra.mxu0 %v4541
        %5182 = vmatprep.subr.bf16.mxu0 %v4538
        %5183 = vmatpush1.bf16.msra.mxu0 %v4537
        %5184 = vmatprep.subr.bf16.mxu0 %v4598
        %5185 = vmatpush2.bf16.msra.mxu0 %v4597
        %5186 = vmatprep.subr.bf16.mxu0 %v4594
        %5187 = vmatpush2.bf16.msra.mxu0 %v4593
        %5188 = vmatprep.subr.bf16.mxu0 %v4590
        %5189 = vmatpush2.bf16.msra.mxu0 %v4589
        %5190 = vmatprep.subr.bf16.mxu0 %v4586
        %5191 = vmatpush2.bf16.msra.mxu0 %v4585
        %5192 = vmatprep.subr.bf16.mxu0 %v4582
        %5193 = vmatpush2.bf16.msra.mxu0 %v4581
        %5194 = vmatprep.subr.bf16.mxu0 %v4578
        %5195 = vmatpush2.bf16.msra.mxu0 %v4577
        %5196 = vmatprep.subr.bf16.mxu0 %v4574
        %5197 = vmatpush2.bf16.msra.mxu0 %v4573
        %5198 = vmatprep.subr.bf16.mxu0 %v4570
        %5199 = vmatpush2.bf16.msra.mxu0 %v4569
        %5200 = vmatprep.mubr.bf16.mxu0 %v3843
        %5201 = vmatmul.mubr.bf16.gmra.mxu0 %v3842
        %v5202 = vpop.f32.mrf.mxu0
        %v5203 = vadd.f32 0.0, %v5202
        %v5204 = vpop.f32.mrf.mxu0
        %v5205 = vadd.f32 0.0, %v5204
        %v5206 = vpop.f32.mrf.mxu0
        %v5207 = vpop.f32.mrf.mxu0
        %5208 = vdwg.mxu0
        %5209 = vmatprep.subr.bf16.mxu0 %v4630
        %5210 = vmatpush1.bf16.msra.mxu0 %v4629
        %5211 = vmatprep.subr.bf16.mxu0 %v4626
        %5212 = vmatpush1.bf16.msra.mxu0 %v4625
        %5213 = vmatprep.subr.bf16.mxu0 %v4622
        %5214 = vmatpush1.bf16.msra.mxu0 %v4621
        %5215 = vmatprep.subr.bf16.mxu0 %v4618
        %5216 = vmatpush1.bf16.msra.mxu0 %v4617
        %5217 = vmatprep.subr.bf16.mxu0 %v4614
        %5218 = vmatpush1.bf16.msra.mxu0 %v4613
        %5219 = vmatprep.subr.bf16.mxu0 %v4610
        %5220 = vmatpush1.bf16.msra.mxu0 %v4609
        %5221 = vmatprep.subr.bf16.mxu0 %v4606
        %5222 = vmatpush1.bf16.msra.mxu0 %v4605
        %5223 = vmatprep.subr.bf16.mxu0 %v4602
        %5224 = vmatpush1.bf16.msra.mxu0 %v4601
        %5225 = vmatprep.subr.bf16.mxu0 %v4662
        %5226 = vmatpush2.bf16.msra.mxu0 %v4661
        %5227 = vmatprep.subr.bf16.mxu0 %v4658
        %5228 = vmatpush2.bf16.msra.mxu0 %v4657
        %5229 = vmatprep.subr.bf16.mxu0 %v4654
        %5230 = vmatpush2.bf16.msra.mxu0 %v4653
        %5231 = vmatprep.subr.bf16.mxu0 %v4650
        %5232 = vmatpush2.bf16.msra.mxu0 %v4649
        %5233 = vmatprep.subr.bf16.mxu0 %v4646
        %5234 = vmatpush2.bf16.msra.mxu0 %v4645
        %5235 = vmatprep.subr.bf16.mxu0 %v4642
        %5236 = vmatpush2.bf16.msra.mxu0 %v4641
        %5237 = vmatprep.subr.bf16.mxu0 %v4638
        %5238 = vmatpush2.bf16.msra.mxu0 %v4637
        %5239 = vmatprep.subr.bf16.mxu0 %v4634
        %5240 = vmatpush2.bf16.msra.mxu0 %v4633
        %5241 = vmatprep.mubr.bf16.mxu0 %v3845
        %5242 = vmatmul.mubr.bf16.gmra.mxu0 %v3844
        %v5243 = vpop.f32.mrf.mxu0
        %v5244 = vadd.f32 %v5203, %v5243
        %v5245 = vpop.f32.mrf.mxu0
        %v5246 = vadd.f32 %v5205, %v5245
        %v5247 = vpop.f32.mrf.mxu0
        %v5248 = vpop.f32.mrf.mxu0
        %5249 = vdwg.mxu0
        %5250 = vmatprep.subr.bf16.mxu0 %v4694
        %5251 = vmatpush1.bf16.msra.mxu0 %v4693
        %5252 = vmatprep.subr.bf16.mxu0 %v4690
        %5253 = vmatpush1.bf16.msra.mxu0 %v4689
        %5254 = vmatprep.subr.bf16.mxu0 %v4686
        %5255 = vmatpush1.bf16.msra.mxu0 %v4685
        %5256 = vmatprep.subr.bf16.mxu0 %v4682
        %5257 = vmatpush1.bf16.msra.mxu0 %v4681
        %5258 = vmatprep.subr.bf16.mxu0 %v4678
        %5259 = vmatpush1.bf16.msra.mxu0 %v4677
        %5260 = vmatprep.subr.bf16.mxu0 %v4674
        %5261 = vmatpush1.bf16.msra.mxu0 %v4673
        %5262 = vmatprep.subr.bf16.mxu0 %v4670
        %5263 = vmatpush1.bf16.msra.mxu0 %v4669
        %5264 = vmatprep.subr.bf16.mxu0 %v4666
        %5265 = vmatpush1.bf16.msra.mxu0 %v4665
        %5266 = vmatprep.subr.bf16.mxu0 %v4726
        %5267 = vmatpush2.bf16.msra.mxu0 %v4725
        %5268 = vmatprep.subr.bf16.mxu0 %v4722
        %5269 = vmatpush2.bf16.msra.mxu0 %v4721
        %5270 = vmatprep.subr.bf16.mxu0 %v4718
        %5271 = vmatpush2.bf16.msra.mxu0 %v4717
        %5272 = vmatprep.subr.bf16.mxu0 %v4714
        %5273 = vmatpush2.bf16.msra.mxu0 %v4713
        %5274 = vmatprep.subr.bf16.mxu0 %v4710
        %5275 = vmatpush2.bf16.msra.mxu0 %v4709
        %5276 = vmatprep.subr.bf16.mxu0 %v4706
        %5277 = vmatpush2.bf16.msra.mxu0 %v4705
        %5278 = vmatprep.subr.bf16.mxu0 %v4702
        %5279 = vmatpush2.bf16.msra.mxu0 %v4701
        %5280 = vmatprep.subr.bf16.mxu0 %v4698
        %5281 = vmatpush2.bf16.msra.mxu0 %v4697
        %5282 = vmatprep.mubr.bf16.mxu0 %v3847
        %5283 = vmatmul.mubr.bf16.gmra.mxu0 %v3846
        %v5284 = vpop.f32.mrf.mxu0
        %v5285 = vadd.f32 %v5244, %v5284
        %v5286 = vpop.f32.mrf.mxu0
        %v5287 = vadd.f32 %v5246, %v5286
        %v5288 = vpop.f32.mrf.mxu0
        %v5289 = vpop.f32.mrf.mxu0
        %5290 = vdwg.mxu0
        %5291 = vmatprep.subr.bf16.mxu0 %v4758
        %5292 = vmatpush1.bf16.msra.mxu0 %v4757
        %5293 = vmatprep.subr.bf16.mxu0 %v4754
        %5294 = vmatpush1.bf16.msra.mxu0 %v4753
        %5295 = vmatprep.subr.bf16.mxu0 %v4750
        %5296 = vmatpush1.bf16.msra.mxu0 %v4749
        %5297 = vmatprep.subr.bf16.mxu0 %v4746
        %5298 = vmatpush1.bf16.msra.mxu0 %v4745
        %5299 = vmatprep.subr.bf16.mxu0 %v4742
        %5300 = vmatpush1.bf16.msra.mxu0 %v4741
        %5301 = vmatprep.subr.bf16.mxu0 %v4738
        %5302 = vmatpush1.bf16.msra.mxu0 %v4737
        %5303 = vmatprep.subr.bf16.mxu0 %v4734
        %5304 = vmatpush1.bf16.msra.mxu0 %v4733
        %5305 = vmatprep.subr.bf16.mxu0 %v4730
        %5306 = vmatpush1.bf16.msra.mxu0 %v4729
        %5307 = vmatprep.subr.bf16.mxu0 0
        %5308 = vmatpush2.bf16.msra.mxu0 0
        %5309 = vmatprep.subr.bf16.mxu0 0
        %5310 = vmatpush2.bf16.msra.mxu0 0
        %5311 = vmatprep.subr.bf16.mxu0 0
        %5312 = vmatpush2.bf16.msra.mxu0 0
        %5313 = vmatprep.subr.bf16.mxu0 0
        %5314 = vmatpush2.bf16.msra.mxu0 0
        %5315 = vmatprep.subr.bf16.mxu0 0
        %5316 = vmatpush2.bf16.msra.mxu0 0
        %5317 = vmatprep.subr.bf16.mxu0 0
        %5318 = vmatpush2.bf16.msra.mxu0 0
        %5319 = vmatprep.subr.bf16.mxu0 0
        %5320 = vmatpush2.bf16.msra.mxu0 0
        %5321 = vmatprep.subr.bf16.mxu0 %v5002
        %5322 = vmatpush2.bf16.msra.mxu0 %v4999
        %5323 = vmatprep.mubr.bf16.mxu0 %v4989
        %5324 = vmatmul.mubr.bf16.gmra.mxu0 %v3848
        %v5325 = vpop.f32.mrf.mxu0
        %v5326 = vadd.f32 %v5285, %v5325
        %v5327 = vpop.f32.mrf.mxu0
        %v5328 = vadd.f32 %v5287, %v5327
        %v5329 = vpop.f32.mrf.mxu0
        %v5330 = vpop.f32.mrf.mxu0
        %5331 = vdwg.mxu0
        %v5332 = vpack.c.bf16 %v5162, %v5162
        %v5333 = vpack.c.bf16 %v5164, %v5164
        %v5334 = vpack.c.bf16 %v5326, %v5326
        %v5335 = vpack.c.bf16 %v5328, %v5328
        %v5340 = vunpack.c.l.b16 %v5332
        %v5341 = vunpack.c.l.b16 %v5333
        %v5342 = vunpack.c.l.b16 %v5334
        %v5343 = vunpack.c.l.b16 %v5335
        %v5344 = vpack.c.b16 %v5341, %v5340
        %v5345 = vpack.c.b16 %v5343, %v5342
        %5348 = vst [vmem:[#allocation3] sm:$0xff] %v5344
        %5349 = vst [vmem:[#allocation3 + $0x8] sm:$0xff] %v5345
        %v5350 = vld [vmem:[#allocation3] sm:$0xff]
        %v5351 = vld [vmem:[#allocation3 + $0x8] sm:$0xf]
        %v5352 = vld [vmem:[%s7] sm:$0xf]
        %s5353 = scalar_lea.vmem %s7, 4
        %v5354 = vld [vmem:[%s5353] sm:$0xf]
        %v5357 = vunpack.c.l.b16 %v5350
        %v5358 = vunpack.c.h.b16 %v5350
        %v5359 = vunpack.c.l.b16 %v5351
        %v5360 = vpack.c.b16 %v5357, %v5357
        %v5361 = vpack.c.b16 %v5358, %v5358
        %v5362 = vpack.c.b16 %v5359, %v5359
        %5363 = vrot.lane.b32.xlu0 %v5360, 16
        %v5364 = vpop.permute.xlu0 %5363
        %5365 = vrot.lane.b32.xlu0 %v5361, 16
        %v5366 = vpop.permute.xlu0 %5365
        %5367 = vrot.lane.b32.xlu0 %v5362, 16
        %v5368 = vpop.permute.xlu0 %5367
        %vm5369 = vcmask 130048
        %v5370 = vsel %vm5369, %v5364, %v5366
        %v5371 = vsel %vm5369, %v5366, %v5368
        %v5373 = vsel %vm1460, %v5354, 0
        %v5376 = vsel %vm467, %v5370, 0
        %v5379 = vsel %vm467, %v5371, 0
        %5381 = vmatprep.subr.bf16.mxu0 0
        %5382 = vmatpush1.bf16.msra.mxu0 0
        %5383 = vmatprep.subr.bf16.mxu0 0
        %5384 = vmatpush1.bf16.msra.mxu0 0
        %5385 = vmatprep.subr.bf16.mxu0 0
        %5386 = vmatpush1.bf16.msra.mxu0 0
        %5387 = vmatprep.subr.bf16.mxu0 0
        %5388 = vmatpush1.bf16.msra.mxu0 0
        %5389 = vmatprep.subr.bf16.mxu0 0
        %5390 = vmatpush1.bf16.msra.mxu0 0
        %5391 = vmatprep.subr.bf16.mxu0 0
        %5392 = vmatpush1.bf16.msra.mxu0 0
        %5393 = vmatprep.subr.bf16.mxu0 0
        %5394 = vmatpush1.bf16.msra.mxu0 0
        %5395 = vmatprep.subr.bf16.mxu0 %v5379
        %5396 = vmatpush1.bf16.msra.mxu0 %v5376
        %5397 = vmatprep.subr.bf16.mxu0 0
        %5398 = vmatpush2.bf16.msra.mxu0 0
        %5399 = vmatprep.subr.bf16.mxu0 0
        %5400 = vmatpush2.bf16.msra.mxu0 0
        %5401 = vmatprep.subr.bf16.mxu0 0
        %5402 = vmatpush2.bf16.msra.mxu0 0
        %5403 = vmatprep.subr.bf16.mxu0 0
        %5404 = vmatpush2.bf16.msra.mxu0 0
        %5405 = vmatprep.subr.bf16.mxu0 0
        %5406 = vmatpush2.bf16.msra.mxu0 0
        %5407 = vmatprep.subr.bf16.mxu0 0
        %5408 = vmatpush2.bf16.msra.mxu0 0
        %5409 = vmatprep.subr.bf16.mxu0 0
        %5410 = vmatpush2.bf16.msra.mxu0 0
        %5411 = vmatprep.subr.bf16.mxu0 0
        %5412 = vmatpush2.bf16.msra.mxu0 0
        %5413 = vmatprep.mubr.bf16.mxu0 0
        %5414 = vmatmul.mubr.bf16.gmra.mxu0 %v5373
        %v5415 = vpop.f32.mrf.mxu0
        %v5416 = vadd.f32 0.0, %v5415
        %v5417 = vpop.f32.mrf.mxu0
        %v5418 = vadd.f32 0.0, %v5417
        %v5419 = vpop.f32.mrf.mxu0
        %v5420 = vpop.f32.mrf.mxu0
        %5421 = vdwg.mxu0
        %5422 = vrot.lane.b32.xlu0 %v5360, 17
        %v5423 = vpop.permute.xlu0 %5422
        %5424 = vrot.lane.b32.xlu0 %v5361, 17
        %v5425 = vpop.permute.xlu0 %5424
        %5426 = vrot.lane.b32.xlu0 %v5362, 17
        %v5427 = vpop.permute.xlu0 %5426
        %vm5428 = vcmask 138240
        %v5429 = vsel %vm5428, %v5423, %v5425
        %v5430 = vsel %vm5428, %v5425, %v5427
        %v5432 = vsel %vm1460, %v5352, 0
        %v5435 = vsel %vm467, %v5429, 0
        %v5438 = vsel %vm467, %v5430, 0
        %5440 = vmatprep.subr.bf16.mxu0 0
        %5441 = vmatpush1.bf16.msra.mxu0 0
        %5442 = vmatprep.subr.bf16.mxu0 0
        %5443 = vmatpush1.bf16.msra.mxu0 0
        %5444 = vmatprep.subr.bf16.mxu0 0
        %5445 = vmatpush1.bf16.msra.mxu0 0
        %5446 = vmatprep.subr.bf16.mxu0 0
        %5447 = vmatpush1.bf16.msra.mxu0 0
        %5448 = vmatprep.subr.bf16.mxu0 0
        %5449 = vmatpush1.bf16.msra.mxu0 0
        %5450 = vmatprep.subr.bf16.mxu0 0
        %5451 = vmatpush1.bf16.msra.mxu0 0
        %5452 = vmatprep.subr.bf16.mxu0 0
        %5453 = vmatpush1.bf16.msra.mxu0 0
        %5454 = vmatprep.subr.bf16.mxu0 %v5438
        %5455 = vmatpush1.bf16.msra.mxu0 %v5435
        %5456 = vmatprep.subr.bf16.mxu0 0
        %5457 = vmatpush2.bf16.msra.mxu0 0
        %5458 = vmatprep.subr.bf16.mxu0 0
        %5459 = vmatpush2.bf16.msra.mxu0 0
        %5460 = vmatprep.subr.bf16.mxu0 0
        %5461 = vmatpush2.bf16.msra.mxu0 0
        %5462 = vmatprep.subr.bf16.mxu0 0
        %5463 = vmatpush2.bf16.msra.mxu0 0
        %5464 = vmatprep.subr.bf16.mxu0 0
        %5465 = vmatpush2.bf16.msra.mxu0 0
        %5466 = vmatprep.subr.bf16.mxu0 0
        %5467 = vmatpush2.bf16.msra.mxu0 0
        %5468 = vmatprep.subr.bf16.mxu0 0
        %5469 = vmatpush2.bf16.msra.mxu0 0
        %5470 = vmatprep.subr.bf16.mxu0 0
        %5471 = vmatpush2.bf16.msra.mxu0 0
        %5472 = vmatprep.mubr.bf16.mxu0 0
        %5473 = vmatmul.mubr.bf16.gmra.mxu0 %v5432
        %v5474 = vpop.f32.mrf.mxu0
        %v5475 = vadd.f32 %v5416, %v5474
        %v5476 = vpop.f32.mrf.mxu0
        %v5477 = vadd.f32 %v5418, %v5476
        %v5478 = vpop.f32.mrf.mxu0
        %v5479 = vpop.f32.mrf.mxu0
        %5480 = vdwg.mxu0
        %s5481 = scalar_lea.vmem %s7, 8
        %v5482 = vld [vmem:[%s5481] sm:$0xf]
        %5483 = vrot.lane.b32.xlu0 %v5360, 15
        %v5484 = vpop.permute.xlu0 %5483
        %5485 = vrot.lane.b32.xlu0 %v5361, 15
        %v5486 = vpop.permute.xlu0 %5485
        %5487 = vrot.lane.b32.xlu0 %v5362, 15
        %v5488 = vpop.permute.xlu0 %5487
        %vm5489 = vcmask 121856
        %v5490 = vsel %vm5489, %v5484, %v5486
        %v5491 = vsel %vm5489, %v5486, %v5488
        %v5493 = vsel %vm1460, %v5482, 0
        %v5496 = vsel %vm467, %v5490, 0
        %v5499 = vsel %vm467, %v5491, 0
        %5501 = vmatprep.subr.bf16.mxu0 0
        %5502 = vmatpush1.bf16.msra.mxu0 0
        %5503 = vmatprep.subr.bf16.mxu0 0
        %5504 = vmatpush1.bf16.msra.mxu0 0
        %5505 = vmatprep.subr.bf16.mxu0 0
        %5506 = vmatpush1.bf16.msra.mxu0 0
        %5507 = vmatprep.subr.bf16.mxu0 0
        %5508 = vmatpush1.bf16.msra.mxu0 0
        %5509 = vmatprep.subr.bf16.mxu0 0
        %5510 = vmatpush1.bf16.msra.mxu0 0
        %5511 = vmatprep.subr.bf16.mxu0 0
        %5512 = vmatpush1.bf16.msra.mxu0 0
        %5513 = vmatprep.subr.bf16.mxu0 0
        %5514 = vmatpush1.bf16.msra.mxu0 0
        %5515 = vmatprep.subr.bf16.mxu0 %v5499
        %5516 = vmatpush1.bf16.msra.mxu0 %v5496
        %5517 = vmatprep.subr.bf16.mxu0 0
        %5518 = vmatpush2.bf16.msra.mxu0 0
        %5519 = vmatprep.subr.bf16.mxu0 0
        %5520 = vmatpush2.bf16.msra.mxu0 0
        %5521 = vmatprep.subr.bf16.mxu0 0
        %5522 = vmatpush2.bf16.msra.mxu0 0
        %5523 = vmatprep.subr.bf16.mxu0 0
        %5524 = vmatpush2.bf16.msra.mxu0 0
        %5525 = vmatprep.subr.bf16.mxu0 0
        %5526 = vmatpush2.bf16.msra.mxu0 0
        %5527 = vmatprep.subr.bf16.mxu0 0
        %5528 = vmatpush2.bf16.msra.mxu0 0
        %5529 = vmatprep.subr.bf16.mxu0 0
        %5530 = vmatpush2.bf16.msra.mxu0 0
        %5531 = vmatprep.subr.bf16.mxu0 0
        %5532 = vmatpush2.bf16.msra.mxu0 0
        %5533 = vmatprep.mubr.bf16.mxu0 0
        %5534 = vmatmul.mubr.bf16.gmra.mxu0 %v5493
        %v5535 = vpop.f32.mrf.mxu0
        %v5536 = vadd.f32 0.0, %v5535
        %v5537 = vpop.f32.mrf.mxu0
        %v5538 = vadd.f32 0.0, %v5537
        %v5539 = vpop.f32.mrf.mxu0
        %v5540 = vpop.f32.mrf.mxu0
        %5541 = vdwg.mxu0
        %v5542 = vadd.f32 %v5475, %v5536
        %v5543 = vadd.f32 %v5477, %v5538
        %s5544 = scalar_lea.vmem %s7, 12
        %v5545 = vld [vmem:[%s5544] sm:$0xf]
        %5546 = vrot.lane.b32.xlu0 %v5360, 1
        %v5547 = vpop.permute.xlu0 %5546
        %5548 = vrot.lane.b32.xlu0 %v5361, 1
        %v5549 = vpop.permute.xlu0 %5548
        %5550 = vrot.lane.b32.xlu0 %v5362, 1
        %v5551 = vpop.permute.xlu0 %5550
        %v5552 = vsel %vm2139, %v5547, %v5549
        %v5553 = vsel %vm2139, %v5549, %v5551
        %v5555 = vsel %vm1460, %v5545, 0
        %v5558 = vsel %vm467, %v5552, 0
        %v5561 = vsel %vm467, %v5553, 0
        %5563 = vmatprep.subr.bf16.mxu0 0
        %5564 = vmatpush1.bf16.msra.mxu0 0
        %5565 = vmatprep.subr.bf16.mxu0 0
        %5566 = vmatpush1.bf16.msra.mxu0 0
        %5567 = vmatprep.subr.bf16.mxu0 0
        %5568 = vmatpush1.bf16.msra.mxu0 0
        %5569 = vmatprep.subr.bf16.mxu0 0
        %5570 = vmatpush1.bf16.msra.mxu0 0
        %5571 = vmatprep.subr.bf16.mxu0 0
        %5572 = vmatpush1.bf16.msra.mxu0 0
        %5573 = vmatprep.subr.bf16.mxu0 0
        %5574 = vmatpush1.bf16.msra.mxu0 0
        %5575 = vmatprep.subr.bf16.mxu0 0
        %5576 = vmatpush1.bf16.msra.mxu0 0
        %5577 = vmatprep.subr.bf16.mxu0 %v5561
        %5578 = vmatpush1.bf16.msra.mxu0 %v5558
        %5579 = vmatprep.subr.bf16.mxu0 0
        %5580 = vmatpush2.bf16.msra.mxu0 0
        %5581 = vmatprep.subr.bf16.mxu0 0
        %5582 = vmatpush2.bf16.msra.mxu0 0
        %5583 = vmatprep.subr.bf16.mxu0 0
        %5584 = vmatpush2.bf16.msra.mxu0 0
        %5585 = vmatprep.subr.bf16.mxu0 0
        %5586 = vmatpush2.bf16.msra.mxu0 0
        %5587 = vmatprep.subr.bf16.mxu0 0
        %5588 = vmatpush2.bf16.msra.mxu0 0
        %5589 = vmatprep.subr.bf16.mxu0 0
        %5590 = vmatpush2.bf16.msra.mxu0 0
        %5591 = vmatprep.subr.bf16.mxu0 0
        %5592 = vmatpush2.bf16.msra.mxu0 0
        %5593 = vmatprep.subr.bf16.mxu0 0
        %5594 = vmatpush2.bf16.msra.mxu0 0
        %5595 = vmatprep.mubr.bf16.mxu0 0
        %5596 = vmatmul.mubr.bf16.gmra.mxu0 %v5555
        %v5597 = vpop.f32.mrf.mxu0
        %v5598 = vadd.f32 0.0, %v5597
        %v5599 = vpop.f32.mrf.mxu0
        %v5600 = vadd.f32 0.0, %v5599
        %v5601 = vpop.f32.mrf.mxu0
        %v5602 = vpop.f32.mrf.mxu0
        %5603 = vdwg.mxu0
        %v5604 = vadd.f32 %v5542, %v5598
        %v5605 = vadd.f32 %v5543, %v5600
        %v5606 = vld [vmem:[#allocation3 + $0x4] sm:$0xff]
        %s5607 = scalar_lea.vmem %s7, 16
        %v5608 = vld [vmem:[%s5607] sm:$0xf]
        %v5610 = vunpack.c.l.b16 %v5606
        %v5611 = vunpack.c.h.b16 %v5606
        %v5612 = vpack.c.b16 %v5610, %v5610
        %v5613 = vpack.c.b16 %v5611, %v5611
        %v5615 = vsel %vm1460, %v5608, 0
        %v5618 = vsel %vm467, %v5612, 0
        %v5621 = vsel %vm467, %v5613, 0
        %5623 = vmatprep.subr.bf16.mxu0 0
        %5624 = vmatpush1.bf16.msra.mxu0 0
        %5625 = vmatprep.subr.bf16.mxu0 0
        %5626 = vmatpush1.bf16.msra.mxu0 0
        %5627 = vmatprep.subr.bf16.mxu0 0
        %5628 = vmatpush1.bf16.msra.mxu0 0
        %5629 = vmatprep.subr.bf16.mxu0 0
        %5630 = vmatpush1.bf16.msra.mxu0 0
        %5631 = vmatprep.subr.bf16.mxu0 0
        %5632 = vmatpush1.bf16.msra.mxu0 0
        %5633 = vmatprep.subr.bf16.mxu0 0
        %5634 = vmatpush1.bf16.msra.mxu0 0
        %5635 = vmatprep.subr.bf16.mxu0 0
        %5636 = vmatpush1.bf16.msra.mxu0 0
        %5637 = vmatprep.subr.bf16.mxu0 %v5621
        %5638 = vmatpush1.bf16.msra.mxu0 %v5618
        %5639 = vmatprep.subr.bf16.mxu0 0
        %5640 = vmatpush2.bf16.msra.mxu0 0
        %5641 = vmatprep.subr.bf16.mxu0 0
        %5642 = vmatpush2.bf16.msra.mxu0 0
        %5643 = vmatprep.subr.bf16.mxu0 0
        %5644 = vmatpush2.bf16.msra.mxu0 0
        %5645 = vmatprep.subr.bf16.mxu0 0
        %5646 = vmatpush2.bf16.msra.mxu0 0
        %5647 = vmatprep.subr.bf16.mxu0 0
        %5648 = vmatpush2.bf16.msra.mxu0 0
        %5649 = vmatprep.subr.bf16.mxu0 0
        %5650 = vmatpush2.bf16.msra.mxu0 0
        %5651 = vmatprep.subr.bf16.mxu0 0
        %5652 = vmatpush2.bf16.msra.mxu0 0
        %5653 = vmatprep.subr.bf16.mxu0 0
        %5654 = vmatpush2.bf16.msra.mxu0 0
        %5655 = vmatprep.mubr.bf16.mxu0 0
        %5656 = vmatmul.mubr.bf16.gmra.mxu0 %v5615
        %v5657 = vpop.f32.mrf.mxu0
        %v5658 = vadd.f32 0.0, %v5657
        %v5659 = vpop.f32.mrf.mxu0
        %v5660 = vadd.f32 0.0, %v5659
        %v5661 = vpop.f32.mrf.mxu0
        %v5662 = vpop.f32.mrf.mxu0
        %5663 = vdwg.mxu0
        %v5664 = vadd.f32 %v5604, %v5658
        %v5665 = vadd.f32 %v5605, %v5660
        %v5666 = vld [vmem:[#allocation3 + $0x4] sm:$0xff]
        %v5667 = vld [vmem:[#allocation3 + $0xc] sm:$0xf]
        %s5668 = scalar_lea.vmem %s7, 20
        %v5669 = vld [vmem:[%s5668] sm:$0xf]
        %v5672 = vunpack.c.l.b16 %v5666
        %v5673 = vunpack.c.h.b16 %v5666
        %v5674 = vunpack.c.l.b16 %v5667
        %v5675 = vpack.c.b16 %v5672, %v5672
        %v5676 = vpack.c.b16 %v5673, %v5673
        %v5677 = vpack.c.b16 %v5674, %v5674
        %5678 = vrot.lane.b32.xlu0 %v5675, 127
        %v5679 = vpop.permute.xlu0 %5678
        %5680 = vrot.lane.b32.xlu0 %v5676, 127
        %v5681 = vpop.permute.xlu0 %5680
        %5682 = vrot.lane.b32.xlu0 %v5677, 127
        %v5683 = vpop.permute.xlu0 %5682
        %v5684 = vsel %vm2590, %v5679, %v5681
        %v5685 = vsel %vm2590, %v5681, %v5683
        %v5687 = vsel %vm1460, %v5669, 0
        %v5690 = vsel %vm467, %v5684, 0
        %v5693 = vsel %vm467, %v5685, 0
        %5695 = vmatprep.subr.bf16.mxu0 0
        %5696 = vmatpush1.bf16.msra.mxu0 0
        %5697 = vmatprep.subr.bf16.mxu0 0
        %5698 = vmatpush1.bf16.msra.mxu0 0
        %5699 = vmatprep.subr.bf16.mxu0 0
        %5700 = vmatpush1.bf16.msra.mxu0 0
        %5701 = vmatprep.subr.bf16.mxu0 0
        %5702 = vmatpush1.bf16.msra.mxu0 0
        %5703 = vmatprep.subr.bf16.mxu0 0
        %5704 = vmatpush1.bf16.msra.mxu0 0
        %5705 = vmatprep.subr.bf16.mxu0 0
        %5706 = vmatpush1.bf16.msra.mxu0 0
        %5707 = vmatprep.subr.bf16.mxu0 0
        %5708 = vmatpush1.bf16.msra.mxu0 0
        %5709 = vmatprep.subr.bf16.mxu0 %v5693
        %5710 = vmatpush1.bf16.msra.mxu0 %v5690
        %5711 = vmatprep.subr.bf16.mxu0 0
        %5712 = vmatpush2.bf16.msra.mxu0 0
        %5713 = vmatprep.subr.bf16.mxu0 0
        %5714 = vmatpush2.bf16.msra.mxu0 0
        %5715 = vmatprep.subr.bf16.mxu0 0
        %5716 = vmatpush2.bf16.msra.mxu0 0
        %5717 = vmatprep.subr.bf16.mxu0 0
        %5718 = vmatpush2.bf16.msra.mxu0 0
        %5719 = vmatprep.subr.bf16.mxu0 0
        %5720 = vmatpush2.bf16.msra.mxu0 0
        %5721 = vmatprep.subr.bf16.mxu0 0
        %5722 = vmatpush2.bf16.msra.mxu0 0
        %5723 = vmatprep.subr.bf16.mxu0 0
        %5724 = vmatpush2.bf16.msra.mxu0 0
        %5725 = vmatprep.subr.bf16.mxu0 0
        %5726 = vmatpush2.bf16.msra.mxu0 0
        %5727 = vmatprep.mubr.bf16.mxu0 0
        %5728 = vmatmul.mubr.bf16.gmra.mxu0 %v5687
        %v5729 = vpop.f32.mrf.mxu0
        %v5730 = vadd.f32 0.0, %v5729
        %v5731 = vpop.f32.mrf.mxu0
        %v5732 = vadd.f32 0.0, %v5731
        %v5733 = vpop.f32.mrf.mxu0
        %v5734 = vpop.f32.mrf.mxu0
        %5735 = vdwg.mxu0
        %v5736 = vadd.f32 %v5664, %v5730
        %v5737 = vadd.f32 %v5665, %v5732
        %s5738 = scalar_lea.vmem %s7, 24
        %v5739 = vld [vmem:[%s5738] sm:$0xf]
        %5740 = vrot.lane.b32.xlu0 %v5675, 113
        %v5741 = vpop.permute.xlu0 %5740
        %5742 = vrot.lane.b32.xlu0 %v5676, 113
        %v5743 = vpop.permute.xlu0 %5742
        %5744 = vrot.lane.b32.xlu0 %v5677, 113
        %v5745 = vpop.permute.xlu0 %5744
        %vm5746 = vcmask 924672
        %v5747 = vsel %vm5746, %v5741, %v5743
        %v5748 = vsel %vm5746, %v5743, %v5745
        %v5750 = vsel %vm1460, %v5739, 0
        %v5753 = vsel %vm467, %v5747, 0
        %v5756 = vsel %vm467, %v5748, 0
        %5758 = vmatprep.subr.bf16.mxu0 0
        %5759 = vmatpush1.bf16.msra.mxu0 0
        %5760 = vmatprep.subr.bf16.mxu0 0
        %5761 = vmatpush1.bf16.msra.mxu0 0
        %5762 = vmatprep.subr.bf16.mxu0 0
        %5763 = vmatpush1.bf16.msra.mxu0 0
        %5764 = vmatprep.subr.bf16.mxu0 0
        %5765 = vmatpush1.bf16.msra.mxu0 0
        %5766 = vmatprep.subr.bf16.mxu0 0
        %5767 = vmatpush1.bf16.msra.mxu0 0
        %5768 = vmatprep.subr.bf16.mxu0 0
        %5769 = vmatpush1.bf16.msra.mxu0 0
        %5770 = vmatprep.subr.bf16.mxu0 0
        %5771 = vmatpush1.bf16.msra.mxu0 0
        %5772 = vmatprep.subr.bf16.mxu0 %v5756
        %5773 = vmatpush1.bf16.msra.mxu0 %v5753
        %5774 = vmatprep.subr.bf16.mxu0 0
        %5775 = vmatpush2.bf16.msra.mxu0 0
        %5776 = vmatprep.subr.bf16.mxu0 0
        %5777 = vmatpush2.bf16.msra.mxu0 0
        %5778 = vmatprep.subr.bf16.mxu0 0
        %5779 = vmatpush2.bf16.msra.mxu0 0
        %5780 = vmatprep.subr.bf16.mxu0 0
        %5781 = vmatpush2.bf16.msra.mxu0 0
        %5782 = vmatprep.subr.bf16.mxu0 0
        %5783 = vmatpush2.bf16.msra.mxu0 0
        %5784 = vmatprep.subr.bf16.mxu0 0
        %5785 = vmatpush2.bf16.msra.mxu0 0
        %5786 = vmatprep.subr.bf16.mxu0 0
        %5787 = vmatpush2.bf16.msra.mxu0 0
        %5788 = vmatprep.subr.bf16.mxu0 0
        %5789 = vmatpush2.bf16.msra.mxu0 0
        %5790 = vmatprep.mubr.bf16.mxu0 0
        %5791 = vmatmul.mubr.bf16.gmra.mxu0 %v5750
        %v5792 = vpop.f32.mrf.mxu0
        %v5793 = vadd.f32 0.0, %v5792
        %v5794 = vpop.f32.mrf.mxu0
        %v5795 = vadd.f32 0.0, %v5794
        %v5796 = vpop.f32.mrf.mxu0
        %v5797 = vpop.f32.mrf.mxu0
        %5798 = vdwg.mxu0
        %v5799 = vadd.f32 %v5736, %v5793
        %v5800 = vadd.f32 %v5737, %v5795
        %s5801 = scalar_lea.vmem %s7, 28
        %v5802 = vld [vmem:[%s5801] sm:$0xf]
        %5803 = vrot.lane.b32.xlu0 %v5675, 112
        %v5804 = vpop.permute.xlu0 %5803
        %5805 = vrot.lane.b32.xlu0 %v5676, 112
        %v5806 = vpop.permute.xlu0 %5805
        %5807 = vrot.lane.b32.xlu0 %v5677, 112
        %v5808 = vpop.permute.xlu0 %5807
        %vm5809 = vcmask 916480
        %v5810 = vsel %vm5809, %v5804, %v5806
        %v5811 = vsel %vm5809, %v5806, %v5808
        %v5813 = vsel %vm1460, %v5802, 0
        %v5816 = vsel %vm467, %v5810, 0
        %v5819 = vsel %vm467, %v5811, 0
        %5821 = vmatprep.subr.bf16.mxu0 0
        %5822 = vmatpush1.bf16.msra.mxu0 0
        %5823 = vmatprep.subr.bf16.mxu0 0
        %5824 = vmatpush1.bf16.msra.mxu0 0
        %5825 = vmatprep.subr.bf16.mxu0 0
        %5826 = vmatpush1.bf16.msra.mxu0 0
        %5827 = vmatprep.subr.bf16.mxu0 0
        %5828 = vmatpush1.bf16.msra.mxu0 0
        %5829 = vmatprep.subr.bf16.mxu0 0
        %5830 = vmatpush1.bf16.msra.mxu0 0
        %5831 = vmatprep.subr.bf16.mxu0 0
        %5832 = vmatpush1.bf16.msra.mxu0 0
        %5833 = vmatprep.subr.bf16.mxu0 0
        %5834 = vmatpush1.bf16.msra.mxu0 0
        %5835 = vmatprep.subr.bf16.mxu0 %v5819
        %5836 = vmatpush1.bf16.msra.mxu0 %v5816
        %5837 = vmatprep.subr.bf16.mxu0 0
        %5838 = vmatpush2.bf16.msra.mxu0 0
        %5839 = vmatprep.subr.bf16.mxu0 0
        %5840 = vmatpush2.bf16.msra.mxu0 0
        %5841 = vmatprep.subr.bf16.mxu0 0
        %5842 = vmatpush2.bf16.msra.mxu0 0
        %5843 = vmatprep.subr.bf16.mxu0 0
        %5844 = vmatpush2.bf16.msra.mxu0 0
        %5845 = vmatprep.subr.bf16.mxu0 0
        %5846 = vmatpush2.bf16.msra.mxu0 0
        %5847 = vmatprep.subr.bf16.mxu0 0
        %5848 = vmatpush2.bf16.msra.mxu0 0
        %5849 = vmatprep.subr.bf16.mxu0 0
        %5850 = vmatpush2.bf16.msra.mxu0 0
        %5851 = vmatprep.subr.bf16.mxu0 0
        %5852 = vmatpush2.bf16.msra.mxu0 0
        %5853 = vmatprep.mubr.bf16.mxu0 0
        %5854 = vmatmul.mubr.bf16.gmra.mxu0 %v5813
        %v5855 = vpop.f32.mrf.mxu0
        %v5856 = vadd.f32 0.0, %v5855
        %v5857 = vpop.f32.mrf.mxu0
        %v5858 = vadd.f32 0.0, %v5857
        %v5859 = vpop.f32.mrf.mxu0
        %v5860 = vpop.f32.mrf.mxu0
        %5861 = vdwg.mxu0
        %v5862 = vadd.f32 %v5799, %v5856
        %v5863 = vadd.f32 %v5800, %v5858
        %s5864 = scalar_lea.vmem %s7, 32
        %v5865 = vld [vmem:[%s5864] sm:$0xf]
        %5866 = vrot.lane.b32.xlu0 %v5675, 111
        %v5867 = vpop.permute.xlu0 %5866
        %5868 = vrot.lane.b32.xlu0 %v5676, 111
        %v5869 = vpop.permute.xlu0 %5868
        %5870 = vrot.lane.b32.xlu0 %v5677, 111
        %v5871 = vpop.permute.xlu0 %5870
        %vm5872 = vcmask 908288
        %v5873 = vsel %vm5872, %v5867, %v5869
        %v5874 = vsel %vm5872, %v5869, %v5871
        %v5876 = vsel %vm1460, %v5865, 0
        %v5879 = vsel %vm467, %v5873, 0
        %v5882 = vsel %vm467, %v5874, 0
        %5884 = vmatprep.subr.bf16.mxu0 0
        %5885 = vmatpush1.bf16.msra.mxu0 0
        %5886 = vmatprep.subr.bf16.mxu0 0
        %5887 = vmatpush1.bf16.msra.mxu0 0
        %5888 = vmatprep.subr.bf16.mxu0 0
        %5889 = vmatpush1.bf16.msra.mxu0 0
        %5890 = vmatprep.subr.bf16.mxu0 0
        %5891 = vmatpush1.bf16.msra.mxu0 0
        %5892 = vmatprep.subr.bf16.mxu0 0
        %5893 = vmatpush1.bf16.msra.mxu0 0
        %5894 = vmatprep.subr.bf16.mxu0 0
        %5895 = vmatpush1.bf16.msra.mxu0 0
        %5896 = vmatprep.subr.bf16.mxu0 0
        %5897 = vmatpush1.bf16.msra.mxu0 0
        %5898 = vmatprep.subr.bf16.mxu0 %v5882
        %5899 = vmatpush1.bf16.msra.mxu0 %v5879
        %5900 = vmatprep.subr.bf16.mxu0 0
        %5901 = vmatpush2.bf16.msra.mxu0 0
        %5902 = vmatprep.subr.bf16.mxu0 0
        %5903 = vmatpush2.bf16.msra.mxu0 0
        %5904 = vmatprep.subr.bf16.mxu0 0
        %5905 = vmatpush2.bf16.msra.mxu0 0
        %5906 = vmatprep.subr.bf16.mxu0 0
        %5907 = vmatpush2.bf16.msra.mxu0 0
        %5908 = vmatprep.subr.bf16.mxu0 0
        %5909 = vmatpush2.bf16.msra.mxu0 0
        %5910 = vmatprep.subr.bf16.mxu0 0
        %5911 = vmatpush2.bf16.msra.mxu0 0
        %5912 = vmatprep.subr.bf16.mxu0 0
        %5913 = vmatpush2.bf16.msra.mxu0 0
        %5914 = vmatprep.subr.bf16.mxu0 0
        %5915 = vmatpush2.bf16.msra.mxu0 0
        %5916 = vmatprep.mubr.bf16.mxu0 0
        %5917 = vmatmul.mubr.bf16.gmra.mxu0 %v5876
        %v5918 = vpop.f32.mrf.mxu0
        %v5919 = vadd.f32 0.0, %v5918
        %v5920 = vpop.f32.mrf.mxu0
        %v5921 = vadd.f32 0.0, %v5920
        %v5922 = vpop.f32.mrf.mxu0
        %v5923 = vpop.f32.mrf.mxu0
        %5924 = vdwg.mxu0
        %v5925 = vadd.f32 %v5862, %v5919
        %v5926 = vadd.f32 %v5863, %v5921
        %v5927 = vld [vmem:[%s8] sm:$0xff]
        %5929 = vset.pattern.permute.xlu0 0
        %5930 = vperm.xlu0 %5929, %v5927
        %v5931 = vpop.permute.xlu0 %5930
        %v5933 = vadd.f32 %v5925, %v5931
        %v5934 = vadd.f32 %v5926, %v5931
        %v5935 = vmax.f32 %v5933, 0.0
        %v5936 = vmax.f32 %v5934, 0.0
        %v5938 = vlaneseq
        %v5939 = vshrl.u32 %v5938, 7
        %v5940 = vsub.s32 0, %v5939
        %v5941 = vrot.slane %v474, %v5940
        %v5942 = vlaneseq
        %v5943 = vshrl.u32 %v5942, 7
        %v5944 = vsub.s32 1, %v5943
        %v5945 = vrot.slane %v474, %v5944
        %v5948 = vmul.f32 %v5935, %v5941
        %v5949 = vmul.f32 %v5936, %v5945
        %v5950 = vpack.c.bf16 %v5948, %v5948
        %v5951 = vpack.c.bf16 %v5949, %v5949
        %v5954 = vunpack.c.l.b16 %v5950
        %v5955 = vunpack.c.l.b16 %v5951
        %v5956 = vpack.c.b16 %v5955, %v5954
        %5958 = vst [vmem:[#allocation4 + $0x4] sm:$0xff] %v5956
        %v5959 = vld [vmem:[#allocation4] sm:$0xff]
        %v5960 = vld [vmem:[#allocation4 + $0x8] sm:$0xf]
        %v5961 = vld [vmem:[%s9] sm:$0xf]
        %s5962 = scalar_lea.vmem %s9, 4
        %v5963 = vld [vmem:[%s5962] sm:$0xf]
        %v5966 = vunpack.c.l.b16 %v5959
        %v5967 = vunpack.c.h.b16 %v5959
        %v5968 = vunpack.c.l.b16 %v5960
        %v5969 = vpack.c.b16 %v5966, %v5966
        %v5970 = vpack.c.b16 %v5967, %v5967
        %v5971 = vpack.c.b16 %v5968, %v5968
        %5972 = vrot.lane.b32.xlu0 %v5969, 16
        %v5973 = vpop.permute.xlu0 %5972
        %5974 = vrot.lane.b32.xlu0 %v5970, 16
        %v5975 = vpop.permute.xlu0 %5974
        %5976 = vrot.lane.b32.xlu0 %v5971, 16
        %v5977 = vpop.permute.xlu0 %5976
        %v5978 = vsel %vm5369, %v5973, %v5975
        %v5979 = vsel %vm5369, %v5975, %v5977
        %v5981 = vsel %vm1460, %v5963, 0
        %v5984 = vsel %vm467, %v5978, 0
        %v5987 = vsel %vm467, %v5979, 0
        %5989 = vmatprep.subr.bf16.mxu0 0
        %5990 = vmatpush1.bf16.msra.mxu0 0
        %5991 = vmatprep.subr.bf16.mxu0 0
        %5992 = vmatpush1.bf16.msra.mxu0 0
        %5993 = vmatprep.subr.bf16.mxu0 0
        %5994 = vmatpush1.bf16.msra.mxu0 0
        %5995 = vmatprep.subr.bf16.mxu0 0
        %5996 = vmatpush1.bf16.msra.mxu0 0
        %5997 = vmatprep.subr.bf16.mxu0 0
        %5998 = vmatpush1.bf16.msra.mxu0 0
        %5999 = vmatprep.subr.bf16.mxu0 0
        %6000 = vmatpush1.bf16.msra.mxu0 0
        %6001 = vmatprep.subr.bf16.mxu0 0
        %6002 = vmatpush1.bf16.msra.mxu0 0
        %6003 = vmatprep.subr.bf16.mxu0 %v5987
        %6004 = vmatpush1.bf16.msra.mxu0 %v5984
        %6005 = vmatprep.subr.bf16.mxu0 0
        %6006 = vmatpush2.bf16.msra.mxu0 0
        %6007 = vmatprep.subr.bf16.mxu0 0
        %6008 = vmatpush2.bf16.msra.mxu0 0
        %6009 = vmatprep.subr.bf16.mxu0 0
        %6010 = vmatpush2.bf16.msra.mxu0 0
        %6011 = vmatprep.subr.bf16.mxu0 0
        %6012 = vmatpush2.bf16.msra.mxu0 0
        %6013 = vmatprep.subr.bf16.mxu0 0
        %6014 = vmatpush2.bf16.msra.mxu0 0
        %6015 = vmatprep.subr.bf16.mxu0 0
        %6016 = vmatpush2.bf16.msra.mxu0 0
        %6017 = vmatprep.subr.bf16.mxu0 0
        %6018 = vmatpush2.bf16.msra.mxu0 0
        %6019 = vmatprep.subr.bf16.mxu0 0
        %6020 = vmatpush2.bf16.msra.mxu0 0
        %6021 = vmatprep.mubr.bf16.mxu0 0
        %6022 = vmatmul.mubr.bf16.gmra.mxu0 %v5981
        %v6023 = vpop.f32.mrf.mxu0
        %v6024 = vadd.f32 0.0, %v6023
        %v6025 = vpop.f32.mrf.mxu0
        %v6026 = vadd.f32 0.0, %v6025
        %v6027 = vpop.f32.mrf.mxu0
        %v6028 = vpop.f32.mrf.mxu0
        %6029 = vdwg.mxu0
        %6030 = vrot.lane.b32.xlu0 %v5969, 17
        %v6031 = vpop.permute.xlu0 %6030
        %6032 = vrot.lane.b32.xlu0 %v5970, 17
        %v6033 = vpop.permute.xlu0 %6032
        %6034 = vrot.lane.b32.xlu0 %v5971, 17
        %v6035 = vpop.permute.xlu0 %6034
        %v6036 = vsel %vm5428, %v6031, %v6033
        %v6037 = vsel %vm5428, %v6033, %v6035
        %v6039 = vsel %vm1460, %v5961, 0
        %v6042 = vsel %vm467, %v6036, 0
        %v6045 = vsel %vm467, %v6037, 0
        %6047 = vmatprep.subr.bf16.mxu0 0
        %6048 = vmatpush1.bf16.msra.mxu0 0
        %6049 = vmatprep.subr.bf16.mxu0 0
        %6050 = vmatpush1.bf16.msra.mxu0 0
        %6051 = vmatprep.subr.bf16.mxu0 0
        %6052 = vmatpush1.bf16.msra.mxu0 0
        %6053 = vmatprep.subr.bf16.mxu0 0
        %6054 = vmatpush1.bf16.msra.mxu0 0
        %6055 = vmatprep.subr.bf16.mxu0 0
        %6056 = vmatpush1.bf16.msra.mxu0 0
        %6057 = vmatprep.subr.bf16.mxu0 0
        %6058 = vmatpush1.bf16.msra.mxu0 0
        %6059 = vmatprep.subr.bf16.mxu0 0
        %6060 = vmatpush1.bf16.msra.mxu0 0
        %6061 = vmatprep.subr.bf16.mxu0 %v6045
        %6062 = vmatpush1.bf16.msra.mxu0 %v6042
        %6063 = vmatprep.subr.bf16.mxu0 0
        %6064 = vmatpush2.bf16.msra.mxu0 0
        %6065 = vmatprep.subr.bf16.mxu0 0
        %6066 = vmatpush2.bf16.msra.mxu0 0
        %6067 = vmatprep.subr.bf16.mxu0 0
        %6068 = vmatpush2.bf16.msra.mxu0 0
        %6069 = vmatprep.subr.bf16.mxu0 0
        %6070 = vmatpush2.bf16.msra.mxu0 0
        %6071 = vmatprep.subr.bf16.mxu0 0
        %6072 = vmatpush2.bf16.msra.mxu0 0
        %6073 = vmatprep.subr.bf16.mxu0 0
        %6074 = vmatpush2.bf16.msra.mxu0 0
        %6075 = vmatprep.subr.bf16.mxu0 0
        %6076 = vmatpush2.bf16.msra.mxu0 0
        %6077 = vmatprep.subr.bf16.mxu0 0
        %6078 = vmatpush2.bf16.msra.mxu0 0
        %6079 = vmatprep.mubr.bf16.mxu0 0
        %6080 = vmatmul.mubr.bf16.gmra.mxu0 %v6039
        %v6081 = vpop.f32.mrf.mxu0
        %v6082 = vadd.f32 %v6024, %v6081
        %v6083 = vpop.f32.mrf.mxu0
        %v6084 = vadd.f32 %v6026, %v6083
        %v6085 = vpop.f32.mrf.mxu0
        %v6086 = vpop.f32.mrf.mxu0
        %6087 = vdwg.mxu0
        %s6088 = scalar_lea.vmem %s9, 8
        %v6089 = vld [vmem:[%s6088] sm:$0xf]
        %6090 = vrot.lane.b32.xlu0 %v5969, 15
        %v6091 = vpop.permute.xlu0 %6090
        %6092 = vrot.lane.b32.xlu0 %v5970, 15
        %v6093 = vpop.permute.xlu0 %6092
        %6094 = vrot.lane.b32.xlu0 %v5971, 15
        %v6095 = vpop.permute.xlu0 %6094
        %v6096 = vsel %vm5489, %v6091, %v6093
        %v6097 = vsel %vm5489, %v6093, %v6095
        %v6099 = vsel %vm1460, %v6089, 0
        %v6102 = vsel %vm467, %v6096, 0
        %v6105 = vsel %vm467, %v6097, 0
        %6107 = vmatprep.subr.bf16.mxu0 0
        %6108 = vmatpush1.bf16.msra.mxu0 0
        %6109 = vmatprep.subr.bf16.mxu0 0
        %6110 = vmatpush1.bf16.msra.mxu0 0
        %6111 = vmatprep.subr.bf16.mxu0 0
        %6112 = vmatpush1.bf16.msra.mxu0 0
        %6113 = vmatprep.subr.bf16.mxu0 0
        %6114 = vmatpush1.bf16.msra.mxu0 0
        %6115 = vmatprep.subr.bf16.mxu0 0
        %6116 = vmatpush1.bf16.msra.mxu0 0
        %6117 = vmatprep.subr.bf16.mxu0 0
        %6118 = vmatpush1.bf16.msra.mxu0 0
        %6119 = vmatprep.subr.bf16.mxu0 0
        %6120 = vmatpush1.bf16.msra.mxu0 0
        %6121 = vmatprep.subr.bf16.mxu0 %v6105
        %6122 = vmatpush1.bf16.msra.mxu0 %v6102
        %6123 = vmatprep.subr.bf16.mxu0 0
        %6124 = vmatpush2.bf16.msra.mxu0 0
        %6125 = vmatprep.subr.bf16.mxu0 0
        %6126 = vmatpush2.bf16.msra.mxu0 0
        %6127 = vmatprep.subr.bf16.mxu0 0
        %6128 = vmatpush2.bf16.msra.mxu0 0
        %6129 = vmatprep.subr.bf16.mxu0 0
        %6130 = vmatpush2.bf16.msra.mxu0 0
        %6131 = vmatprep.subr.bf16.mxu0 0
        %6132 = vmatpush2.bf16.msra.mxu0 0
        %6133 = vmatprep.subr.bf16.mxu0 0
        %6134 = vmatpush2.bf16.msra.mxu0 0
        %6135 = vmatprep.subr.bf16.mxu0 0
        %6136 = vmatpush2.bf16.msra.mxu0 0
        %6137 = vmatprep.subr.bf16.mxu0 0
        %6138 = vmatpush2.bf16.msra.mxu0 0
        %6139 = vmatprep.mubr.bf16.mxu0 0
        %6140 = vmatmul.mubr.bf16.gmra.mxu0 %v6099
        %v6141 = vpop.f32.mrf.mxu0
        %v6142 = vadd.f32 0.0, %v6141
        %v6143 = vpop.f32.mrf.mxu0
        %v6144 = vadd.f32 0.0, %v6143
        %v6145 = vpop.f32.mrf.mxu0
        %v6146 = vpop.f32.mrf.mxu0
        %6147 = vdwg.mxu0
        %v6148 = vadd.f32 %v6082, %v6142
        %v6149 = vadd.f32 %v6084, %v6144
        %s6150 = scalar_lea.vmem %s9, 12
        %v6151 = vld [vmem:[%s6150] sm:$0xf]
        %6152 = vrot.lane.b32.xlu0 %v5969, 1
        %v6153 = vpop.permute.xlu0 %6152
        %6154 = vrot.lane.b32.xlu0 %v5970, 1
        %v6155 = vpop.permute.xlu0 %6154
        %6156 = vrot.lane.b32.xlu0 %v5971, 1
        %v6157 = vpop.permute.xlu0 %6156
        %v6158 = vsel %vm2139, %v6153, %v6155
        %v6159 = vsel %vm2139, %v6155, %v6157
        %v6161 = vsel %vm1460, %v6151, 0
        %v6164 = vsel %vm467, %v6158, 0
        %v6167 = vsel %vm467, %v6159, 0
        %6169 = vmatprep.subr.bf16.mxu0 0
        %6170 = vmatpush1.bf16.msra.mxu0 0
        %6171 = vmatprep.subr.bf16.mxu0 0
        %6172 = vmatpush1.bf16.msra.mxu0 0
        %6173 = vmatprep.subr.bf16.mxu0 0
        %6174 = vmatpush1.bf16.msra.mxu0 0
        %6175 = vmatprep.subr.bf16.mxu0 0
        %6176 = vmatpush1.bf16.msra.mxu0 0
        %6177 = vmatprep.subr.bf16.mxu0 0
        %6178 = vmatpush1.bf16.msra.mxu0 0
        %6179 = vmatprep.subr.bf16.mxu0 0
        %6180 = vmatpush1.bf16.msra.mxu0 0
        %6181 = vmatprep.subr.bf16.mxu0 0
        %6182 = vmatpush1.bf16.msra.mxu0 0
        %6183 = vmatprep.subr.bf16.mxu0 %v6167
        %6184 = vmatpush1.bf16.msra.mxu0 %v6164
        %6185 = vmatprep.subr.bf16.mxu0 0
        %6186 = vmatpush2.bf16.msra.mxu0 0
        %6187 = vmatprep.subr.bf16.mxu0 0
        %6188 = vmatpush2.bf16.msra.mxu0 0
        %6189 = vmatprep.subr.bf16.mxu0 0
        %6190 = vmatpush2.bf16.msra.mxu0 0
        %6191 = vmatprep.subr.bf16.mxu0 0
        %6192 = vmatpush2.bf16.msra.mxu0 0
        %6193 = vmatprep.subr.bf16.mxu0 0
        %6194 = vmatpush2.bf16.msra.mxu0 0
        %6195 = vmatprep.subr.bf16.mxu0 0
        %6196 = vmatpush2.bf16.msra.mxu0 0
        %6197 = vmatprep.subr.bf16.mxu0 0
        %6198 = vmatpush2.bf16.msra.mxu0 0
        %6199 = vmatprep.subr.bf16.mxu0 0
        %6200 = vmatpush2.bf16.msra.mxu0 0
        %6201 = vmatprep.mubr.bf16.mxu0 0
        %6202 = vmatmul.mubr.bf16.gmra.mxu0 %v6161
        %v6203 = vpop.f32.mrf.mxu0
        %v6204 = vadd.f32 0.0, %v6203
        %v6205 = vpop.f32.mrf.mxu0
        %v6206 = vadd.f32 0.0, %v6205
        %v6207 = vpop.f32.mrf.mxu0
        %v6208 = vpop.f32.mrf.mxu0
        %6209 = vdwg.mxu0
        %v6210 = vadd.f32 %v6148, %v6204
        %v6211 = vadd.f32 %v6149, %v6206
        %v6212 = vld [vmem:[#allocation4 + $0x4] sm:$0xff]
        %s6213 = scalar_lea.vmem %s9, 16
        %v6214 = vld [vmem:[%s6213] sm:$0xf]
        %v6216 = vunpack.c.l.b16 %v6212
        %v6217 = vunpack.c.h.b16 %v6212
        %v6218 = vpack.c.b16 %v6216, %v6216
        %v6219 = vpack.c.b16 %v6217, %v6217
        %v6221 = vsel %vm1460, %v6214, 0
        %v6224 = vsel %vm467, %v6218, 0
        %v6227 = vsel %vm467, %v6219, 0
        %6229 = vmatprep.subr.bf16.mxu0 0
        %6230 = vmatpush1.bf16.msra.mxu0 0
        %6231 = vmatprep.subr.bf16.mxu0 0
        %6232 = vmatpush1.bf16.msra.mxu0 0
        %6233 = vmatprep.subr.bf16.mxu0 0
        %6234 = vmatpush1.bf16.msra.mxu0 0
        %6235 = vmatprep.subr.bf16.mxu0 0
        %6236 = vmatpush1.bf16.msra.mxu0 0
        %6237 = vmatprep.subr.bf16.mxu0 0
        %6238 = vmatpush1.bf16.msra.mxu0 0
        %6239 = vmatprep.subr.bf16.mxu0 0
        %6240 = vmatpush1.bf16.msra.mxu0 0
        %6241 = vmatprep.subr.bf16.mxu0 0
        %6242 = vmatpush1.bf16.msra.mxu0 0
        %6243 = vmatprep.subr.bf16.mxu0 %v6227
        %6244 = vmatpush1.bf16.msra.mxu0 %v6224
        %6245 = vmatprep.subr.bf16.mxu0 0
        %6246 = vmatpush2.bf16.msra.mxu0 0
        %6247 = vmatprep.subr.bf16.mxu0 0
        %6248 = vmatpush2.bf16.msra.mxu0 0
        %6249 = vmatprep.subr.bf16.mxu0 0
        %6250 = vmatpush2.bf16.msra.mxu0 0
        %6251 = vmatprep.subr.bf16.mxu0 0
        %6252 = vmatpush2.bf16.msra.mxu0 0
        %6253 = vmatprep.subr.bf16.mxu0 0
        %6254 = vmatpush2.bf16.msra.mxu0 0
        %6255 = vmatprep.subr.bf16.mxu0 0
        %6256 = vmatpush2.bf16.msra.mxu0 0
        %6257 = vmatprep.subr.bf16.mxu0 0
        %6258 = vmatpush2.bf16.msra.mxu0 0
        %6259 = vmatprep.subr.bf16.mxu0 0
        %6260 = vmatpush2.bf16.msra.mxu0 0
        %6261 = vmatprep.mubr.bf16.mxu0 0
        %6262 = vmatmul.mubr.bf16.gmra.mxu0 %v6221
        %v6263 = vpop.f32.mrf.mxu0
        %v6264 = vadd.f32 0.0, %v6263
        %v6265 = vpop.f32.mrf.mxu0
        %v6266 = vadd.f32 0.0, %v6265
        %v6267 = vpop.f32.mrf.mxu0
        %v6268 = vpop.f32.mrf.mxu0
        %6269 = vdwg.mxu0
        %v6270 = vadd.f32 %v6210, %v6264
        %v6271 = vadd.f32 %v6211, %v6266
        %v6272 = vld [vmem:[#allocation4 + $0x4] sm:$0xff]
        %v6273 = vld [vmem:[#allocation4 + $0xc] sm:$0xf]
        %s6274 = scalar_lea.vmem %s9, 20
        %v6275 = vld [vmem:[%s6274] sm:$0xf]
        %v6278 = vunpack.c.l.b16 %v6272
        %v6279 = vunpack.c.h.b16 %v6272
        %v6280 = vunpack.c.l.b16 %v6273
        %v6281 = vpack.c.b16 %v6278, %v6278
        %v6282 = vpack.c.b16 %v6279, %v6279
        %v6283 = vpack.c.b16 %v6280, %v6280
        %6284 = vrot.lane.b32.xlu0 %v6281, 127
        %v6285 = vpop.permute.xlu0 %6284
        %6286 = vrot.lane.b32.xlu0 %v6282, 127
        %v6287 = vpop.permute.xlu0 %6286
        %6288 = vrot.lane.b32.xlu0 %v6283, 127
        %v6289 = vpop.permute.xlu0 %6288
        %v6290 = vsel %vm2590, %v6285, %v6287
        %v6291 = vsel %vm2590, %v6287, %v6289
        %v6293 = vsel %vm1460, %v6275, 0
        %v6296 = vsel %vm467, %v6290, 0
        %v6299 = vsel %vm467, %v6291, 0
        %6301 = vmatprep.subr.bf16.mxu0 0
        %6302 = vmatpush1.bf16.msra.mxu0 0
        %6303 = vmatprep.subr.bf16.mxu0 0
        %6304 = vmatpush1.bf16.msra.mxu0 0
        %6305 = vmatprep.subr.bf16.mxu0 0
        %6306 = vmatpush1.bf16.msra.mxu0 0
        %6307 = vmatprep.subr.bf16.mxu0 0
        %6308 = vmatpush1.bf16.msra.mxu0 0
        %6309 = vmatprep.subr.bf16.mxu0 0
        %6310 = vmatpush1.bf16.msra.mxu0 0
        %6311 = vmatprep.subr.bf16.mxu0 0
        %6312 = vmatpush1.bf16.msra.mxu0 0
        %6313 = vmatprep.subr.bf16.mxu0 0
        %6314 = vmatpush1.bf16.msra.mxu0 0
        %6315 = vmatprep.subr.bf16.mxu0 %v6299
        %6316 = vmatpush1.bf16.msra.mxu0 %v6296
        %6317 = vmatprep.subr.bf16.mxu0 0
        %6318 = vmatpush2.bf16.msra.mxu0 0
        %6319 = vmatprep.subr.bf16.mxu0 0
        %6320 = vmatpush2.bf16.msra.mxu0 0
        %6321 = vmatprep.subr.bf16.mxu0 0
        %6322 = vmatpush2.bf16.msra.mxu0 0
        %6323 = vmatprep.subr.bf16.mxu0 0
        %6324 = vmatpush2.bf16.msra.mxu0 0
        %6325 = vmatprep.subr.bf16.mxu0 0
        %6326 = vmatpush2.bf16.msra.mxu0 0
        %6327 = vmatprep.subr.bf16.mxu0 0
        %6328 = vmatpush2.bf16.msra.mxu0 0
        %6329 = vmatprep.subr.bf16.mxu0 0
        %6330 = vmatpush2.bf16.msra.mxu0 0
        %6331 = vmatprep.subr.bf16.mxu0 0
        %6332 = vmatpush2.bf16.msra.mxu0 0
        %6333 = vmatprep.mubr.bf16.mxu0 0
        %6334 = vmatmul.mubr.bf16.gmra.mxu0 %v6293
        %v6335 = vpop.f32.mrf.mxu0
        %v6336 = vadd.f32 0.0, %v6335
        %v6337 = vpop.f32.mrf.mxu0
        %v6338 = vadd.f32 0.0, %v6337
        %v6339 = vpop.f32.mrf.mxu0
        %v6340 = vpop.f32.mrf.mxu0
        %6341 = vdwg.mxu0
        %v6342 = vadd.f32 %v6270, %v6336
        %v6343 = vadd.f32 %v6271, %v6338
        %s6344 = scalar_lea.vmem %s9, 24
        %v6345 = vld [vmem:[%s6344] sm:$0xf]
        %6346 = vrot.lane.b32.xlu0 %v6281, 113
        %v6347 = vpop.permute.xlu0 %6346
        %6348 = vrot.lane.b32.xlu0 %v6282, 113
        %v6349 = vpop.permute.xlu0 %6348
        %6350 = vrot.lane.b32.xlu0 %v6283, 113
        %v6351 = vpop.permute.xlu0 %6350
        %v6352 = vsel %vm5746, %v6347, %v6349
        %v6353 = vsel %vm5746, %v6349, %v6351
        %v6355 = vsel %vm1460, %v6345, 0
        %v6358 = vsel %vm467, %v6352, 0
        %v6361 = vsel %vm467, %v6353, 0
        %6363 = vmatprep.subr.bf16.mxu0 0
        %6364 = vmatpush1.bf16.msra.mxu0 0
        %6365 = vmatprep.subr.bf16.mxu0 0
        %6366 = vmatpush1.bf16.msra.mxu0 0
        %6367 = vmatprep.subr.bf16.mxu0 0
        %6368 = vmatpush1.bf16.msra.mxu0 0
        %6369 = vmatprep.subr.bf16.mxu0 0
        %6370 = vmatpush1.bf16.msra.mxu0 0
        %6371 = vmatprep.subr.bf16.mxu0 0
        %6372 = vmatpush1.bf16.msra.mxu0 0
        %6373 = vmatprep.subr.bf16.mxu0 0
        %6374 = vmatpush1.bf16.msra.mxu0 0
        %6375 = vmatprep.subr.bf16.mxu0 0
        %6376 = vmatpush1.bf16.msra.mxu0 0
        %6377 = vmatprep.subr.bf16.mxu0 %v6361
        %6378 = vmatpush1.bf16.msra.mxu0 %v6358
        %6379 = vmatprep.subr.bf16.mxu0 0
        %6380 = vmatpush2.bf16.msra.mxu0 0
        %6381 = vmatprep.subr.bf16.mxu0 0
        %6382 = vmatpush2.bf16.msra.mxu0 0
        %6383 = vmatprep.subr.bf16.mxu0 0
        %6384 = vmatpush2.bf16.msra.mxu0 0
        %6385 = vmatprep.subr.bf16.mxu0 0
        %6386 = vmatpush2.bf16.msra.mxu0 0
        %6387 = vmatprep.subr.bf16.mxu0 0
        %6388 = vmatpush2.bf16.msra.mxu0 0
        %6389 = vmatprep.subr.bf16.mxu0 0
        %6390 = vmatpush2.bf16.msra.mxu0 0
        %6391 = vmatprep.subr.bf16.mxu0 0
        %6392 = vmatpush2.bf16.msra.mxu0 0
        %6393 = vmatprep.subr.bf16.mxu0 0
        %6394 = vmatpush2.bf16.msra.mxu0 0
        %6395 = vmatprep.mubr.bf16.mxu0 0
        %6396 = vmatmul.mubr.bf16.gmra.mxu0 %v6355
        %v6397 = vpop.f32.mrf.mxu0
        %v6398 = vadd.f32 0.0, %v6397
        %v6399 = vpop.f32.mrf.mxu0
        %v6400 = vadd.f32 0.0, %v6399
        %v6401 = vpop.f32.mrf.mxu0
        %v6402 = vpop.f32.mrf.mxu0
        %6403 = vdwg.mxu0
        %v6404 = vadd.f32 %v6342, %v6398
        %v6405 = vadd.f32 %v6343, %v6400
        %s6406 = scalar_lea.vmem %s9, 28
        %v6407 = vld [vmem:[%s6406] sm:$0xf]
        %6408 = vrot.lane.b32.xlu0 %v6281, 112
        %v6409 = vpop.permute.xlu0 %6408
        %6410 = vrot.lane.b32.xlu0 %v6282, 112
        %v6411 = vpop.permute.xlu0 %6410
        %6412 = vrot.lane.b32.xlu0 %v6283, 112
        %v6413 = vpop.permute.xlu0 %6412
        %v6414 = vsel %vm5809, %v6409, %v6411
        %v6415 = vsel %vm5809, %v6411, %v6413
        %v6417 = vsel %vm1460, %v6407, 0
        %v6420 = vsel %vm467, %v6414, 0
        %v6423 = vsel %vm467, %v6415, 0
        %6425 = vmatprep.subr.bf16.mxu0 0
        %6426 = vmatpush1.bf16.msra.mxu0 0
        %6427 = vmatprep.subr.bf16.mxu0 0
        %6428 = vmatpush1.bf16.msra.mxu0 0
        %6429 = vmatprep.subr.bf16.mxu0 0
        %6430 = vmatpush1.bf16.msra.mxu0 0
        %6431 = vmatprep.subr.bf16.mxu0 0
        %6432 = vmatpush1.bf16.msra.mxu0 0
        %6433 = vmatprep.subr.bf16.mxu0 0
        %6434 = vmatpush1.bf16.msra.mxu0 0
        %6435 = vmatprep.subr.bf16.mxu0 0
        %6436 = vmatpush1.bf16.msra.mxu0 0
        %6437 = vmatprep.subr.bf16.mxu0 0
        %6438 = vmatpush1.bf16.msra.mxu0 0
        %6439 = vmatprep.subr.bf16.mxu0 %v6423
        %6440 = vmatpush1.bf16.msra.mxu0 %v6420
        %6441 = vmatprep.subr.bf16.mxu0 0
        %6442 = vmatpush2.bf16.msra.mxu0 0
        %6443 = vmatprep.subr.bf16.mxu0 0
        %6444 = vmatpush2.bf16.msra.mxu0 0
        %6445 = vmatprep.subr.bf16.mxu0 0
        %6446 = vmatpush2.bf16.msra.mxu0 0
        %6447 = vmatprep.subr.bf16.mxu0 0
        %6448 = vmatpush2.bf16.msra.mxu0 0
        %6449 = vmatprep.subr.bf16.mxu0 0
        %6450 = vmatpush2.bf16.msra.mxu0 0
        %6451 = vmatprep.subr.bf16.mxu0 0
        %6452 = vmatpush2.bf16.msra.mxu0 0
        %6453 = vmatprep.subr.bf16.mxu0 0
        %6454 = vmatpush2.bf16.msra.mxu0 0
        %6455 = vmatprep.subr.bf16.mxu0 0
        %6456 = vmatpush2.bf16.msra.mxu0 0
        %6457 = vmatprep.mubr.bf16.mxu0 0
        %6458 = vmatmul.mubr.bf16.gmra.mxu0 %v6417
        %v6459 = vpop.f32.mrf.mxu0
        %v6460 = vadd.f32 0.0, %v6459
        %v6461 = vpop.f32.mrf.mxu0
        %v6462 = vadd.f32 0.0, %v6461
        %v6463 = vpop.f32.mrf.mxu0
        %v6464 = vpop.f32.mrf.mxu0
        %6465 = vdwg.mxu0
        %v6466 = vadd.f32 %v6404, %v6460
        %v6467 = vadd.f32 %v6405, %v6462
        %s6468 = scalar_lea.vmem %s9, 32
        %v6469 = vld [vmem:[%s6468] sm:$0xf]
        %6470 = vrot.lane.b32.xlu0 %v6281, 111
        %v6471 = vpop.permute.xlu0 %6470
        %6472 = vrot.lane.b32.xlu0 %v6282, 111
        %v6473 = vpop.permute.xlu0 %6472
        %6474 = vrot.lane.b32.xlu0 %v6283, 111
        %v6475 = vpop.permute.xlu0 %6474
        %v6476 = vsel %vm5872, %v6471, %v6473
        %v6477 = vsel %vm5872, %v6473, %v6475
        %v6479 = vsel %vm1460, %v6469, 0
        %v6482 = vsel %vm467, %v6476, 0
        %v6485 = vsel %vm467, %v6477, 0
        %6487 = vmatprep.subr.bf16.mxu0 0
        %6488 = vmatpush1.bf16.msra.mxu0 0
        %6489 = vmatprep.subr.bf16.mxu0 0
        %6490 = vmatpush1.bf16.msra.mxu0 0
        %6491 = vmatprep.subr.bf16.mxu0 0
        %6492 = vmatpush1.bf16.msra.mxu0 0
        %6493 = vmatprep.subr.bf16.mxu0 0
        %6494 = vmatpush1.bf16.msra.mxu0 0
        %6495 = vmatprep.subr.bf16.mxu0 0
        %6496 = vmatpush1.bf16.msra.mxu0 0
        %6497 = vmatprep.subr.bf16.mxu0 0
        %6498 = vmatpush1.bf16.msra.mxu0 0
        %6499 = vmatprep.subr.bf16.mxu0 0
        %6500 = vmatpush1.bf16.msra.mxu0 0
        %6501 = vmatprep.subr.bf16.mxu0 %v6485
        %6502 = vmatpush1.bf16.msra.mxu0 %v6482
        %6503 = vmatprep.subr.bf16.mxu0 0
        %6504 = vmatpush2.bf16.msra.mxu0 0
        %6505 = vmatprep.subr.bf16.mxu0 0
        %6506 = vmatpush2.bf16.msra.mxu0 0
        %6507 = vmatprep.subr.bf16.mxu0 0
        %6508 = vmatpush2.bf16.msra.mxu0 0
        %6509 = vmatprep.subr.bf16.mxu0 0
        %6510 = vmatpush2.bf16.msra.mxu0 0
        %6511 = vmatprep.subr.bf16.mxu0 0
        %6512 = vmatpush2.bf16.msra.mxu0 0
        %6513 = vmatprep.subr.bf16.mxu0 0
        %6514 = vmatpush2.bf16.msra.mxu0 0
        %6515 = vmatprep.subr.bf16.mxu0 0
        %6516 = vmatpush2.bf16.msra.mxu0 0
        %6517 = vmatprep.subr.bf16.mxu0 0
        %6518 = vmatpush2.bf16.msra.mxu0 0
        %6519 = vmatprep.mubr.bf16.mxu0 0
        %6520 = vmatmul.mubr.bf16.gmra.mxu0 %v6479
        %v6521 = vpop.f32.mrf.mxu0
        %v6522 = vadd.f32 0.0, %v6521
        %v6523 = vpop.f32.mrf.mxu0
        %v6524 = vadd.f32 0.0, %v6523
        %v6525 = vpop.f32.mrf.mxu0
        %v6526 = vpop.f32.mrf.mxu0
        %6527 = vdwg.mxu0
        %v6528 = vadd.f32 %v6466, %v6522
        %v6529 = vadd.f32 %v6467, %v6524
        %v6530 = vld [vmem:[%s10] sm:$0xff]
        %6532 = vset.pattern.permute.xlu0 0
        %6533 = vperm.xlu0 %6532, %v6530
        %v6534 = vpop.permute.xlu0 %6533
        %v6536 = vadd.f32 %v6528, %v6534
        %v6537 = vadd.f32 %v6529, %v6534
        %v6538 = vmax.f32 %v6536, 0.0
        %v6539 = vmax.f32 %v6537, 0.0
        %v6540 = vmul.f32 %v6538, %v5941
        %v6541 = vmul.f32 %v6539, %v5945
        %v6542 = vpack.c.bf16 %v6540, %v6540
        %v6543 = vpack.c.bf16 %v6541, %v6541
        %v6546 = vunpack.c.l.b16 %v6542
        %v6547 = vunpack.c.l.b16 %v6543
        %v6548 = vpack.c.b16 %v6547, %v6546
        %6550 = vst [vmem:[#allocation4 + $0x4] sm:$0xff] %v6548
        %v6551 = vld [vmem:[#allocation4 + $0x4] sm:$0xff]
        %v6552 = vld [vmem:[#allocation4 + $0x4] sm:$0xff]
        %v6553 = vld [vmem:[#allocation4 + $0xc] sm:$0xf]
        %6556 = vrot.lane.b32.xlu0 %v6552, 127
        %v6557 = vpop.permute.xlu0 %6556
        %6558 = vrot.lane.b32.xlu0 %v6553, 127
        %v6559 = vpop.permute.xlu0 %6558
        %v6560 = vrot.slane %v6557, 4
        %v6561 = vrot.slane %v6559, 4
        %v6562 = vsel %vm1392, %v6560, %v6561
        %v6563 = vsel %vm2590, %v6557, %v6562
        %v6565 = vmax.bf16 %v6551, %v6563
        %v6567 = vmax.bf16 %v6552, %v6563
        %v6568 = vmax.bf16 %v6553, %v6559
        %6571 = vrot.lane.b32.xlu0 %v6567, 112
        %v6572 = vpop.permute.xlu0 %6571
        %6573 = vrot.lane.b32.xlu0 %v6568, 112
        %v6574 = vpop.permute.xlu0 %6573
        %v6575 = vrot.slane %v6572, 4
        %v6576 = vrot.slane %v6574, 4
        %v6577 = vsel %vm1392, %v6575, %v6576
        %v6578 = vsel %vm5809, %v6572, %v6577
        %v6580 = vmax.bf16 %v6565, %v6578
        %v6581 = vunpack.c.l.bf16 %v6580
        %v6582 = vunpack.c.h.bf16 %v6580
        %v6583 = vld [vmem:[%s13] sm:$0x1]
        %v6584 = vld [vmem:[%s12] sm:$0xff]
        %v6585 = vld [vmem:[%s12 + $0x8] sm:$0xff]
        %v6586 = vld [vmem:[%s12 + $0x10] sm:$0xff]
        %v6587 = vld [vmem:[%s12 + $0x18] sm:$0xff]
        %v6588 = vld [vmem:[%s12 + $0x20] sm:$0xff]
        %v6589 = vld [vmem:[%s12 + $0x28] sm:$0xff]
        %v6590 = vld [vmem:[%s12 + $0x30] sm:$0xff]
        %v6591 = vld [vmem:[%s12 + $0x38] sm:$0xff]
        %v6592 = vld [vmem:[%s12 + $0x40] sm:$0xff]
        %v6593 = vld [vmem:[%s12 + $0x48] sm:$0xff]
        %v6594 = vld [vmem:[%s12 + $0x50] sm:$0xff]
        %v6595 = vld [vmem:[%s12 + $0x58] sm:$0xff]
        %v6596 = vld [vmem:[%s12 + $0x60] sm:$0xff]
        %v6597 = vld [vmem:[%s12 + $0x68] sm:$0xff]
        %v6598 = vld [vmem:[%s12 + $0x70] sm:$0xff]
        %v6599 = vld [vmem:[%s12 + $0x78] sm:$0xff]
        %v6600 = vld [vmem:[%s12 + $0x80] sm:$0xff]
        %v6601 = vld [vmem:[%s12 + $0x88] sm:$0xff]
        %v6602 = vld [vmem:[%s12 + $0x90] sm:$0xff]
        %v6603 = vld [vmem:[%s12 + $0x98] sm:$0xff]
        %v6604 = vld [vmem:[%s12 + $0xa0] sm:$0xff]
        %v6605 = vld [vmem:[%s12 + $0xa8] sm:$0xff]
        %v6606 = vld [vmem:[%s12 + $0xb0] sm:$0xff]
        %v6607 = vld [vmem:[%s12 + $0xb8] sm:$0xff]
        %v6608 = vld [vmem:[%s12 + $0xc0] sm:$0xff]
        %v6609 = vld [vmem:[%s12 + $0xc8] sm:$0xff]
        %v6610 = vld [vmem:[%s12 + $0xd0] sm:$0xff]
        %v6611 = vld [vmem:[%s12 + $0xd8] sm:$0xff]
        %v6612 = vld [vmem:[%s12 + $0xe0] sm:$0xff]
        %v6613 = vld [vmem:[%s12 + $0xe8] sm:$0xff]
        %v6614 = vld [vmem:[%s12 + $0xf0] sm:$0xff]
        %v6615 = vld [vmem:[%s12 + $0xf8] sm:$0xff]
        %6616 = vmatprep.subr.mxu0 0.0
        %6617 = vmatpush1.msra.mxu0 %v6599
        %6618 = vmatprep.subr.mxu0 0.0
        %6619 = vmatpush1.msra.mxu0 %v6598
        %6620 = vmatprep.subr.mxu0 0.0
        %6621 = vmatpush1.msra.mxu0 %v6597
        %6622 = vmatprep.subr.mxu0 0.0
        %6623 = vmatpush1.msra.mxu0 %v6596
        %6624 = vmatprep.subr.mxu0 0.0
        %6625 = vmatpush1.msra.mxu0 %v6595
        %6626 = vmatprep.subr.mxu0 0.0
        %6627 = vmatpush1.msra.mxu0 %v6594
        %6628 = vmatprep.subr.mxu0 0.0
        %6629 = vmatpush1.msra.mxu0 %v6593
        %6630 = vmatprep.subr.mxu0 0.0
        %6631 = vmatpush1.msra.mxu0 %v6592
        %6632 = vmatprep.subr.mxu0 0.0
        %6633 = vmatpush1.msra.mxu0 %v6591
        %6634 = vmatprep.subr.mxu0 0.0
        %6635 = vmatpush1.msra.mxu0 %v6590
        %6636 = vmatprep.subr.mxu0 0.0
        %6637 = vmatpush1.msra.mxu0 %v6589
        %6638 = vmatprep.subr.mxu0 0.0
        %6639 = vmatpush1.msra.mxu0 %v6588
        %6640 = vmatprep.subr.mxu0 0.0
        %6641 = vmatpush1.msra.mxu0 %v6587
        %6642 = vmatprep.subr.mxu0 0.0
        %6643 = vmatpush1.msra.mxu0 %v6586
        %6644 = vmatprep.subr.mxu0 0.0
        %6645 = vmatpush1.msra.mxu0 %v6585
        %6646 = vmatprep.subr.mxu0 0.0
        %6647 = vmatpush1.msra.mxu0 %v6584
        %6648 = vmatprep.subr.mxu0 0.0
        %6649 = vmatpush2.msra.mxu0 %v6615
        %6650 = vmatprep.subr.mxu0 0.0
        %6651 = vmatpush2.msra.mxu0 %v6614
        %6652 = vmatprep.subr.mxu0 0.0
        %6653 = vmatpush2.msra.mxu0 %v6613
        %6654 = vmatprep.subr.mxu0 0.0
        %6655 = vmatpush2.msra.mxu0 %v6612
        %6656 = vmatprep.subr.mxu0 0.0
        %6657 = vmatpush2.msra.mxu0 %v6611
        %6658 = vmatprep.subr.mxu0 0.0
        %6659 = vmatpush2.msra.mxu0 %v6610
        %6660 = vmatprep.subr.mxu0 0.0
        %6661 = vmatpush2.msra.mxu0 %v6609
        %6662 = vmatprep.subr.mxu0 0.0
        %6663 = vmatpush2.msra.mxu0 %v6608
        %6664 = vmatprep.subr.mxu0 0.0
        %6665 = vmatpush2.msra.mxu0 %v6607
        %6666 = vmatprep.subr.mxu0 0.0
        %6667 = vmatpush2.msra.mxu0 %v6606
        %6668 = vmatprep.subr.mxu0 0.0
        %6669 = vmatpush2.msra.mxu0 %v6605
        %6670 = vmatprep.subr.mxu0 0.0
        %6671 = vmatpush2.msra.mxu0 %v6604
        %6672 = vmatprep.subr.mxu0 0.0
        %6673 = vmatpush2.msra.mxu0 %v6603
        %6674 = vmatprep.subr.mxu0 0.0
        %6675 = vmatpush2.msra.mxu0 %v6602
        %6676 = vmatprep.subr.mxu0 0.0
        %6677 = vmatpush2.msra.mxu0 %v6601
        %6678 = vmatprep.subr.mxu0 0.0
        %6679 = vmatpush2.msra.mxu0 %v6600
        %6680 = vmatprep.mubr.f32.mxu0 %v6582
        %6681 = vmatmul.mubr.f32.gmra.mxu0 %v6581
        %v6682 = vpop.f32.mrf.mxu0
        %v6683 = vadd.f32 0.0, %v6682
        %v6684 = vpop.f32.mrf.mxu0
        %6685 = vdwg.mxu0
        %v6686 = vadd.f32 %v6583, %v6683
        %s6687 = scalar_lea.vmem %s12, 256
        %v6688 = vld [vmem:[%s6687] sm:$0xff]
        %v6689 = vld [vmem:[%s6687 + $0x8] sm:$0xff]
        %v6690 = vld [vmem:[%s6687 + $0x10] sm:$0xff]
        %v6691 = vld [vmem:[%s6687 + $0x18] sm:$0xff]
        %v6692 = vld [vmem:[%s6687 + $0x20] sm:$0xff]
        %v6693 = vld [vmem:[%s6687 + $0x28] sm:$0xff]
        %v6694 = vld [vmem:[%s6687 + $0x30] sm:$0xff]
        %v6695 = vld [vmem:[%s6687 + $0x38] sm:$0xff]
        %v6696 = vld [vmem:[%s6687 + $0x40] sm:$0xff]
        %v6697 = vld [vmem:[%s6687 + $0x48] sm:$0xff]
        %v6698 = vld [vmem:[%s6687 + $0x50] sm:$0xff]
        %v6699 = vld [vmem:[%s6687 + $0x58] sm:$0xff]
        %v6700 = vld [vmem:[%s6687 + $0x60] sm:$0xff]
        %v6701 = vld [vmem:[%s6687 + $0x68] sm:$0xff]
        %v6702 = vld [vmem:[%s6687 + $0x70] sm:$0xff]
        %v6703 = vld [vmem:[%s6687 + $0x78] sm:$0xff]
        %v6704 = vld [vmem:[%s6687 + $0x80] sm:$0xff]
        %v6705 = vld [vmem:[%s6687 + $0x88] sm:$0xff]
        %v6706 = vld [vmem:[%s6687 + $0x90] sm:$0xff]
        %v6707 = vld [vmem:[%s6687 + $0x98] sm:$0xff]
        %v6708 = vld [vmem:[%s6687 + $0xa0] sm:$0xff]
        %v6709 = vld [vmem:[%s6687 + $0xa8] sm:$0xff]
        %v6710 = vld [vmem:[%s6687 + $0xb0] sm:$0xff]
        %v6711 = vld [vmem:[%s6687 + $0xb8] sm:$0xff]
        %v6712 = vld [vmem:[%s6687 + $0xc0] sm:$0xff]
        %v6713 = vld [vmem:[%s6687 + $0xc8] sm:$0xff]
        %v6714 = vld [vmem:[%s6687 + $0xd0] sm:$0xff]
        %v6715 = vld [vmem:[%s6687 + $0xd8] sm:$0xff]
        %v6716 = vld [vmem:[%s6687 + $0xe0] sm:$0xff]
        %v6717 = vld [vmem:[%s6687 + $0xe8] sm:$0xff]
        %v6718 = vld [vmem:[%s6687 + $0xf0] sm:$0xff]
        %v6719 = vld [vmem:[%s6687 + $0xf8] sm:$0xff]
        %v6722 = vrot.slane %v6581, 1
        %v6723 = vrot.slane %v6582, 1
        %6726 = vmatprep.subr.mxu0 0.0
        %6727 = vmatpush1.msra.mxu0 %v6703
        %6728 = vmatprep.subr.mxu0 0.0
        %6729 = vmatpush1.msra.mxu0 %v6702
        %6730 = vmatprep.subr.mxu0 0.0
        %6731 = vmatpush1.msra.mxu0 %v6701
        %6732 = vmatprep.subr.mxu0 0.0
        %6733 = vmatpush1.msra.mxu0 %v6700
        %6734 = vmatprep.subr.mxu0 0.0
        %6735 = vmatpush1.msra.mxu0 %v6699
        %6736 = vmatprep.subr.mxu0 0.0
        %6737 = vmatpush1.msra.mxu0 %v6698
        %6738 = vmatprep.subr.mxu0 0.0
        %6739 = vmatpush1.msra.mxu0 %v6697
        %6740 = vmatprep.subr.mxu0 0.0
        %6741 = vmatpush1.msra.mxu0 %v6696
        %6742 = vmatprep.subr.mxu0 0.0
        %6743 = vmatpush1.msra.mxu0 %v6695
        %6744 = vmatprep.subr.mxu0 0.0
        %6745 = vmatpush1.msra.mxu0 %v6694
        %6746 = vmatprep.subr.mxu0 0.0
        %6747 = vmatpush1.msra.mxu0 %v6693
        %6748 = vmatprep.subr.mxu0 0.0
        %6749 = vmatpush1.msra.mxu0 %v6692
        %6750 = vmatprep.subr.mxu0 0.0
        %6751 = vmatpush1.msra.mxu0 %v6691
        %6752 = vmatprep.subr.mxu0 0.0
        %6753 = vmatpush1.msra.mxu0 %v6690
        %6754 = vmatprep.subr.mxu0 0.0
        %6755 = vmatpush1.msra.mxu0 %v6689
        %6756 = vmatprep.subr.mxu0 0.0
        %6757 = vmatpush1.msra.mxu0 %v6688
        %6758 = vmatprep.subr.mxu0 0.0
        %6759 = vmatpush2.msra.mxu0 %v6719
        %6760 = vmatprep.subr.mxu0 0.0
        %6761 = vmatpush2.msra.mxu0 %v6718
        %6762 = vmatprep.subr.mxu0 0.0
        %6763 = vmatpush2.msra.mxu0 %v6717
        %6764 = vmatprep.subr.mxu0 0.0
        %6765 = vmatpush2.msra.mxu0 %v6716
        %6766 = vmatprep.subr.mxu0 0.0
        %6767 = vmatpush2.msra.mxu0 %v6715
        %6768 = vmatprep.subr.mxu0 0.0
        %6769 = vmatpush2.msra.mxu0 %v6714
        %6770 = vmatprep.subr.mxu0 0.0
        %6771 = vmatpush2.msra.mxu0 %v6713
        %6772 = vmatprep.subr.mxu0 0.0
        %6773 = vmatpush2.msra.mxu0 %v6712
        %6774 = vmatprep.subr.mxu0 0.0
        %6775 = vmatpush2.msra.mxu0 %v6711
        %6776 = vmatprep.subr.mxu0 0.0
        %6777 = vmatpush2.msra.mxu0 %v6710
        %6778 = vmatprep.subr.mxu0 0.0
        %6779 = vmatpush2.msra.mxu0 %v6709
        %6780 = vmatprep.subr.mxu0 0.0
        %6781 = vmatpush2.msra.mxu0 %v6708
        %6782 = vmatprep.subr.mxu0 0.0
        %6783 = vmatpush2.msra.mxu0 %v6707
        %6784 = vmatprep.subr.mxu0 0.0
        %6785 = vmatpush2.msra.mxu0 %v6706
        %6786 = vmatprep.subr.mxu0 0.0
        %6787 = vmatpush2.msra.mxu0 %v6705
        %6788 = vmatprep.subr.mxu0 0.0
        %6789 = vmatpush2.msra.mxu0 %v6704
        %6790 = vmatprep.mubr.f32.mxu0 %v6723
        %6791 = vmatmul.mubr.f32.gmra.mxu0 %v6722
        %v6792 = vpop.f32.mrf.mxu0
        %v6793 = vadd.f32 0.0, %v6792
        %v6794 = vpop.f32.mrf.mxu0
        %6795 = vdwg.mxu0
        %v6796 = vadd.f32 %v6686, %v6793
        %s6797 = scalar_lea.vmem %s12, 512
        %v6798 = vld [vmem:[%s6797] sm:$0xff]
        %v6799 = vld [vmem:[%s6797 + $0x8] sm:$0xff]
        %v6800 = vld [vmem:[%s6797 + $0x10] sm:$0xff]
        %v6801 = vld [vmem:[%s6797 + $0x18] sm:$0xff]
        %v6802 = vld [vmem:[%s6797 + $0x20] sm:$0xff]
        %v6803 = vld [vmem:[%s6797 + $0x28] sm:$0xff]
        %v6804 = vld [vmem:[%s6797 + $0x30] sm:$0xff]
        %v6805 = vld [vmem:[%s6797 + $0x38] sm:$0xff]
        %v6806 = vld [vmem:[%s6797 + $0x40] sm:$0xff]
        %v6807 = vld [vmem:[%s6797 + $0x48] sm:$0xff]
        %v6808 = vld [vmem:[%s6797 + $0x50] sm:$0xff]
        %v6809 = vld [vmem:[%s6797 + $0x58] sm:$0xff]
        %v6810 = vld [vmem:[%s6797 + $0x60] sm:$0xff]
        %v6811 = vld [vmem:[%s6797 + $0x68] sm:$0xff]
        %v6812 = vld [vmem:[%s6797 + $0x70] sm:$0xff]
        %v6813 = vld [vmem:[%s6797 + $0x78] sm:$0xff]
        %v6814 = vld [vmem:[%s6797 + $0x80] sm:$0xff]
        %v6815 = vld [vmem:[%s6797 + $0x88] sm:$0xff]
        %v6816 = vld [vmem:[%s6797 + $0x90] sm:$0xff]
        %v6817 = vld [vmem:[%s6797 + $0x98] sm:$0xff]
        %v6818 = vld [vmem:[%s6797 + $0xa0] sm:$0xff]
        %v6819 = vld [vmem:[%s6797 + $0xa8] sm:$0xff]
        %v6820 = vld [vmem:[%s6797 + $0xb0] sm:$0xff]
        %v6821 = vld [vmem:[%s6797 + $0xb8] sm:$0xff]
        %v6822 = vld [vmem:[%s6797 + $0xc0] sm:$0xff]
        %v6823 = vld [vmem:[%s6797 + $0xc8] sm:$0xff]
        %v6824 = vld [vmem:[%s6797 + $0xd0] sm:$0xff]
        %v6825 = vld [vmem:[%s6797 + $0xd8] sm:$0xff]
        %v6826 = vld [vmem:[%s6797 + $0xe0] sm:$0xff]
        %v6827 = vld [vmem:[%s6797 + $0xe8] sm:$0xff]
        %v6828 = vld [vmem:[%s6797 + $0xf0] sm:$0xff]
        %v6829 = vld [vmem:[%s6797 + $0xf8] sm:$0xff]
        %v6830 = vrot.slane %v6581, 2
        %v6831 = vrot.slane %v6582, 2
        %6834 = vmatprep.subr.mxu0 0.0
        %6835 = vmatpush1.msra.mxu0 %v6813
        %6836 = vmatprep.subr.mxu0 0.0
        %6837 = vmatpush1.msra.mxu0 %v6812
        %6838 = vmatprep.subr.mxu0 0.0
        %6839 = vmatpush1.msra.mxu0 %v6811
        %6840 = vmatprep.subr.mxu0 0.0
        %6841 = vmatpush1.msra.mxu0 %v6810
        %6842 = vmatprep.subr.mxu0 0.0
        %6843 = vmatpush1.msra.mxu0 %v6809
        %6844 = vmatprep.subr.mxu0 0.0
        %6845 = vmatpush1.msra.mxu0 %v6808
        %6846 = vmatprep.subr.mxu0 0.0
        %6847 = vmatpush1.msra.mxu0 %v6807
        %6848 = vmatprep.subr.mxu0 0.0
        %6849 = vmatpush1.msra.mxu0 %v6806
        %6850 = vmatprep.subr.mxu0 0.0
        %6851 = vmatpush1.msra.mxu0 %v6805
        %6852 = vmatprep.subr.mxu0 0.0
        %6853 = vmatpush1.msra.mxu0 %v6804
        %6854 = vmatprep.subr.mxu0 0.0
        %6855 = vmatpush1.msra.mxu0 %v6803
        %6856 = vmatprep.subr.mxu0 0.0
        %6857 = vmatpush1.msra.mxu0 %v6802
        %6858 = vmatprep.subr.mxu0 0.0
        %6859 = vmatpush1.msra.mxu0 %v6801
        %6860 = vmatprep.subr.mxu0 0.0
        %6861 = vmatpush1.msra.mxu0 %v6800
        %6862 = vmatprep.subr.mxu0 0.0
        %6863 = vmatpush1.msra.mxu0 %v6799
        %6864 = vmatprep.subr.mxu0 0.0
        %6865 = vmatpush1.msra.mxu0 %v6798
        %6866 = vmatprep.subr.mxu0 0.0
        %6867 = vmatpush2.msra.mxu0 %v6829
        %6868 = vmatprep.subr.mxu0 0.0
        %6869 = vmatpush2.msra.mxu0 %v6828
        %6870 = vmatprep.subr.mxu0 0.0
        %6871 = vmatpush2.msra.mxu0 %v6827
        %6872 = vmatprep.subr.mxu0 0.0
        %6873 = vmatpush2.msra.mxu0 %v6826
        %6874 = vmatprep.subr.mxu0 0.0
        %6875 = vmatpush2.msra.mxu0 %v6825
        %6876 = vmatprep.subr.mxu0 0.0
        %6877 = vmatpush2.msra.mxu0 %v6824
        %6878 = vmatprep.subr.mxu0 0.0
        %6879 = vmatpush2.msra.mxu0 %v6823
        %6880 = vmatprep.subr.mxu0 0.0
        %6881 = vmatpush2.msra.mxu0 %v6822
        %6882 = vmatprep.subr.mxu0 0.0
        %6883 = vmatpush2.msra.mxu0 %v6821
        %6884 = vmatprep.subr.mxu0 0.0
        %6885 = vmatpush2.msra.mxu0 %v6820
        %6886 = vmatprep.subr.mxu0 0.0
        %6887 = vmatpush2.msra.mxu0 %v6819
        %6888 = vmatprep.subr.mxu0 0.0
        %6889 = vmatpush2.msra.mxu0 %v6818
        %6890 = vmatprep.subr.mxu0 0.0
        %6891 = vmatpush2.msra.mxu0 %v6817
        %6892 = vmatprep.subr.mxu0 0.0
        %6893 = vmatpush2.msra.mxu0 %v6816
        %6894 = vmatprep.subr.mxu0 0.0
        %6895 = vmatpush2.msra.mxu0 %v6815
        %6896 = vmatprep.subr.mxu0 0.0
        %6897 = vmatpush2.msra.mxu0 %v6814
        %6898 = vmatprep.mubr.f32.mxu0 %v6831
        %6899 = vmatmul.mubr.f32.gmra.mxu0 %v6830
        %v6900 = vpop.f32.mrf.mxu0
        %v6901 = vadd.f32 0.0, %v6900
        %v6902 = vpop.f32.mrf.mxu0
        %6903 = vdwg.mxu0
        %v6904 = vadd.f32 %v6796, %v6901
        %s6905 = scalar_lea.vmem %s12, 768
        %v6906 = vld [vmem:[%s6905] sm:$0xff]
        %v6907 = vld [vmem:[%s6905 + $0x8] sm:$0xff]
        %v6908 = vld [vmem:[%s6905 + $0x10] sm:$0xff]
        %v6909 = vld [vmem:[%s6905 + $0x18] sm:$0xff]
        %v6910 = vld [vmem:[%s6905 + $0x20] sm:$0xff]
        %v6911 = vld [vmem:[%s6905 + $0x28] sm:$0xff]
        %v6912 = vld [vmem:[%s6905 + $0x30] sm:$0xff]
        %v6913 = vld [vmem:[%s6905 + $0x38] sm:$0xff]
        %v6914 = vld [vmem:[%s6905 + $0x40] sm:$0xff]
        %v6915 = vld [vmem:[%s6905 + $0x48] sm:$0xff]
        %v6916 = vld [vmem:[%s6905 + $0x50] sm:$0xff]
        %v6917 = vld [vmem:[%s6905 + $0x58] sm:$0xff]
        %v6918 = vld [vmem:[%s6905 + $0x60] sm:$0xff]
        %v6919 = vld [vmem:[%s6905 + $0x68] sm:$0xff]
        %v6920 = vld [vmem:[%s6905 + $0x70] sm:$0xff]
        %v6921 = vld [vmem:[%s6905 + $0x78] sm:$0xff]
        %v6922 = vld [vmem:[%s6905 + $0x80] sm:$0xff]
        %v6923 = vld [vmem:[%s6905 + $0x88] sm:$0xff]
        %v6924 = vld [vmem:[%s6905 + $0x90] sm:$0xff]
        %v6925 = vld [vmem:[%s6905 + $0x98] sm:$0xff]
        %v6926 = vld [vmem:[%s6905 + $0xa0] sm:$0xff]
        %v6927 = vld [vmem:[%s6905 + $0xa8] sm:$0xff]
        %v6928 = vld [vmem:[%s6905 + $0xb0] sm:$0xff]
        %v6929 = vld [vmem:[%s6905 + $0xb8] sm:$0xff]
        %v6930 = vld [vmem:[%s6905 + $0xc0] sm:$0xff]
        %v6931 = vld [vmem:[%s6905 + $0xc8] sm:$0xff]
        %v6932 = vld [vmem:[%s6905 + $0xd0] sm:$0xff]
        %v6933 = vld [vmem:[%s6905 + $0xd8] sm:$0xff]
        %v6934 = vld [vmem:[%s6905 + $0xe0] sm:$0xff]
        %v6935 = vld [vmem:[%s6905 + $0xe8] sm:$0xff]
        %v6936 = vld [vmem:[%s6905 + $0xf0] sm:$0xff]
        %v6937 = vld [vmem:[%s6905 + $0xf8] sm:$0xff]
        %v6938 = vrot.slane %v6581, 3
        %v6939 = vrot.slane %v6582, 3
        %6942 = vmatprep.subr.mxu0 0.0
        %6943 = vmatpush1.msra.mxu0 %v6921
        %6944 = vmatprep.subr.mxu0 0.0
        %6945 = vmatpush1.msra.mxu0 %v6920
        %6946 = vmatprep.subr.mxu0 0.0
        %6947 = vmatpush1.msra.mxu0 %v6919
        %6948 = vmatprep.subr.mxu0 0.0
        %6949 = vmatpush1.msra.mxu0 %v6918
        %6950 = vmatprep.subr.mxu0 0.0
        %6951 = vmatpush1.msra.mxu0 %v6917
        %6952 = vmatprep.subr.mxu0 0.0
        %6953 = vmatpush1.msra.mxu0 %v6916
        %6954 = vmatprep.subr.mxu0 0.0
        %6955 = vmatpush1.msra.mxu0 %v6915
        %6956 = vmatprep.subr.mxu0 0.0
        %6957 = vmatpush1.msra.mxu0 %v6914
        %6958 = vmatprep.subr.mxu0 0.0
        %6959 = vmatpush1.msra.mxu0 %v6913
        %6960 = vmatprep.subr.mxu0 0.0
        %6961 = vmatpush1.msra.mxu0 %v6912
        %6962 = vmatprep.subr.mxu0 0.0
        %6963 = vmatpush1.msra.mxu0 %v6911
        %6964 = vmatprep.subr.mxu0 0.0
        %6965 = vmatpush1.msra.mxu0 %v6910
        %6966 = vmatprep.subr.mxu0 0.0
        %6967 = vmatpush1.msra.mxu0 %v6909
        %6968 = vmatprep.subr.mxu0 0.0
        %6969 = vmatpush1.msra.mxu0 %v6908
        %6970 = vmatprep.subr.mxu0 0.0
        %6971 = vmatpush1.msra.mxu0 %v6907
        %6972 = vmatprep.subr.mxu0 0.0
        %6973 = vmatpush1.msra.mxu0 %v6906
        %6974 = vmatprep.subr.mxu0 0.0
        %6975 = vmatpush2.msra.mxu0 %v6937
        %6976 = vmatprep.subr.mxu0 0.0
        %6977 = vmatpush2.msra.mxu0 %v6936
        %6978 = vmatprep.subr.mxu0 0.0
        %6979 = vmatpush2.msra.mxu0 %v6935
        %6980 = vmatprep.subr.mxu0 0.0
        %6981 = vmatpush2.msra.mxu0 %v6934
        %6982 = vmatprep.subr.mxu0 0.0
        %6983 = vmatpush2.msra.mxu0 %v6933
        %6984 = vmatprep.subr.mxu0 0.0
        %6985 = vmatpush2.msra.mxu0 %v6932
        %6986 = vmatprep.subr.mxu0 0.0
        %6987 = vmatpush2.msra.mxu0 %v6931
        %6988 = vmatprep.subr.mxu0 0.0
        %6989 = vmatpush2.msra.mxu0 %v6930
        %6990 = vmatprep.subr.mxu0 0.0
        %6991 = vmatpush2.msra.mxu0 %v6929
        %6992 = vmatprep.subr.mxu0 0.0
        %6993 = vmatpush2.msra.mxu0 %v6928
        %6994 = vmatprep.subr.mxu0 0.0
        %6995 = vmatpush2.msra.mxu0 %v6927
        %6996 = vmatprep.subr.mxu0 0.0
        %6997 = vmatpush2.msra.mxu0 %v6926
        %6998 = vmatprep.subr.mxu0 0.0
        %6999 = vmatpush2.msra.mxu0 %v6925
        %7000 = vmatprep.subr.mxu0 0.0
        %7001 = vmatpush2.msra.mxu0 %v6924
        %7002 = vmatprep.subr.mxu0 0.0
        %7003 = vmatpush2.msra.mxu0 %v6923
        %7004 = vmatprep.subr.mxu0 0.0
        %7005 = vmatpush2.msra.mxu0 %v6922
        %7006 = vmatprep.mubr.f32.mxu0 %v6939
        %7007 = vmatmul.mubr.f32.gmra.mxu0 %v6938
        %v7008 = vpop.f32.mrf.mxu0
        %v7009 = vadd.f32 0.0, %v7008
        %v7010 = vpop.f32.mrf.mxu0
        %7011 = vdwg.mxu0
        %v7012 = vadd.f32 %v6904, %v7009
        %s7013 = scalar_lea.vmem %s12, 1024
        %v7014 = vld [vmem:[%s7013] sm:$0xff]
        %v7015 = vld [vmem:[%s7013 + $0x8] sm:$0xff]
        %v7016 = vld [vmem:[%s7013 + $0x10] sm:$0xff]
        %v7017 = vld [vmem:[%s7013 + $0x18] sm:$0xff]
        %v7018 = vld [vmem:[%s7013 + $0x20] sm:$0xff]
        %v7019 = vld [vmem:[%s7013 + $0x28] sm:$0xff]
        %v7020 = vld [vmem:[%s7013 + $0x30] sm:$0xff]
        %v7021 = vld [vmem:[%s7013 + $0x38] sm:$0xff]
        %v7022 = vld [vmem:[%s7013 + $0x40] sm:$0xff]
        %v7023 = vld [vmem:[%s7013 + $0x48] sm:$0xff]
        %v7024 = vld [vmem:[%s7013 + $0x50] sm:$0xff]
        %v7025 = vld [vmem:[%s7013 + $0x58] sm:$0xff]
        %v7026 = vld [vmem:[%s7013 + $0x60] sm:$0xff]
        %v7027 = vld [vmem:[%s7013 + $0x68] sm:$0xff]
        %v7028 = vld [vmem:[%s7013 + $0x70] sm:$0xff]
        %v7029 = vld [vmem:[%s7013 + $0x78] sm:$0xff]
        %v7030 = vld [vmem:[%s7013 + $0x80] sm:$0xff]
        %v7031 = vld [vmem:[%s7013 + $0x88] sm:$0xff]
        %v7032 = vld [vmem:[%s7013 + $0x90] sm:$0xff]
        %v7033 = vld [vmem:[%s7013 + $0x98] sm:$0xff]
        %v7034 = vld [vmem:[%s7013 + $0xa0] sm:$0xff]
        %v7035 = vld [vmem:[%s7013 + $0xa8] sm:$0xff]
        %v7036 = vld [vmem:[%s7013 + $0xb0] sm:$0xff]
        %v7037 = vld [vmem:[%s7013 + $0xb8] sm:$0xff]
        %v7038 = vld [vmem:[%s7013 + $0xc0] sm:$0xff]
        %v7039 = vld [vmem:[%s7013 + $0xc8] sm:$0xff]
        %v7040 = vld [vmem:[%s7013 + $0xd0] sm:$0xff]
        %v7041 = vld [vmem:[%s7013 + $0xd8] sm:$0xff]
        %v7042 = vld [vmem:[%s7013 + $0xe0] sm:$0xff]
        %v7043 = vld [vmem:[%s7013 + $0xe8] sm:$0xff]
        %v7044 = vld [vmem:[%s7013 + $0xf0] sm:$0xff]
        %v7045 = vld [vmem:[%s7013 + $0xf8] sm:$0xff]
        %v7046 = vrot.slane %v6581, 4
        %v7047 = vrot.slane %v6582, 4
        %7050 = vmatprep.subr.mxu0 0.0
        %7051 = vmatpush1.msra.mxu0 %v7029
        %7052 = vmatprep.subr.mxu0 0.0
        %7053 = vmatpush1.msra.mxu0 %v7028
        %7054 = vmatprep.subr.mxu0 0.0
        %7055 = vmatpush1.msra.mxu0 %v7027
        %7056 = vmatprep.subr.mxu0 0.0
        %7057 = vmatpush1.msra.mxu0 %v7026
        %7058 = vmatprep.subr.mxu0 0.0
        %7059 = vmatpush1.msra.mxu0 %v7025
        %7060 = vmatprep.subr.mxu0 0.0
        %7061 = vmatpush1.msra.mxu0 %v7024
        %7062 = vmatprep.subr.mxu0 0.0
        %7063 = vmatpush1.msra.mxu0 %v7023
        %7064 = vmatprep.subr.mxu0 0.0
        %7065 = vmatpush1.msra.mxu0 %v7022
        %7066 = vmatprep.subr.mxu0 0.0
        %7067 = vmatpush1.msra.mxu0 %v7021
        %7068 = vmatprep.subr.mxu0 0.0
        %7069 = vmatpush1.msra.mxu0 %v7020
        %7070 = vmatprep.subr.mxu0 0.0
        %7071 = vmatpush1.msra.mxu0 %v7019
        %7072 = vmatprep.subr.mxu0 0.0
        %7073 = vmatpush1.msra.mxu0 %v7018
        %7074 = vmatprep.subr.mxu0 0.0
        %7075 = vmatpush1.msra.mxu0 %v7017
        %7076 = vmatprep.subr.mxu0 0.0
        %7077 = vmatpush1.msra.mxu0 %v7016
        %7078 = vmatprep.subr.mxu0 0.0
        %7079 = vmatpush1.msra.mxu0 %v7015
        %7080 = vmatprep.subr.mxu0 0.0
        %7081 = vmatpush1.msra.mxu0 %v7014
        %7082 = vmatprep.subr.mxu0 0.0
        %7083 = vmatpush2.msra.mxu0 %v7045
        %7084 = vmatprep.subr.mxu0 0.0
        %7085 = vmatpush2.msra.mxu0 %v7044
        %7086 = vmatprep.subr.mxu0 0.0
        %7087 = vmatpush2.msra.mxu0 %v7043
        %7088 = vmatprep.subr.mxu0 0.0
        %7089 = vmatpush2.msra.mxu0 %v7042
        %7090 = vmatprep.subr.mxu0 0.0
        %7091 = vmatpush2.msra.mxu0 %v7041
        %7092 = vmatprep.subr.mxu0 0.0
        %7093 = vmatpush2.msra.mxu0 %v7040
        %7094 = vmatprep.subr.mxu0 0.0
        %7095 = vmatpush2.msra.mxu0 %v7039
        %7096 = vmatprep.subr.mxu0 0.0
        %7097 = vmatpush2.msra.mxu0 %v7038
        %7098 = vmatprep.subr.mxu0 0.0
        %7099 = vmatpush2.msra.mxu0 %v7037
        %7100 = vmatprep.subr.mxu0 0.0
        %7101 = vmatpush2.msra.mxu0 %v7036
        %7102 = vmatprep.subr.mxu0 0.0
        %7103 = vmatpush2.msra.mxu0 %v7035
        %7104 = vmatprep.subr.mxu0 0.0
        %7105 = vmatpush2.msra.mxu0 %v7034
        %7106 = vmatprep.subr.mxu0 0.0
        %7107 = vmatpush2.msra.mxu0 %v7033
        %7108 = vmatprep.subr.mxu0 0.0
        %7109 = vmatpush2.msra.mxu0 %v7032
        %7110 = vmatprep.subr.mxu0 0.0
        %7111 = vmatpush2.msra.mxu0 %v7031
        %7112 = vmatprep.subr.mxu0 0.0
        %7113 = vmatpush2.msra.mxu0 %v7030
        %7114 = vmatprep.mubr.f32.mxu0 %v7047
        %7115 = vmatmul.mubr.f32.gmra.mxu0 %v7046
        %v7116 = vpop.f32.mrf.mxu0
        %v7117 = vadd.f32 0.0, %v7116
        %v7118 = vpop.f32.mrf.mxu0
        %7119 = vdwg.mxu0
        %v7120 = vadd.f32 %v7012, %v7117
        %s7121 = scalar_lea.vmem %s12, 1280
        %v7122 = vld [vmem:[%s7121] sm:$0xff]
        %v7123 = vld [vmem:[%s7121 + $0x8] sm:$0xff]
        %v7124 = vld [vmem:[%s7121 + $0x10] sm:$0xff]
        %v7125 = vld [vmem:[%s7121 + $0x18] sm:$0xff]
        %v7126 = vld [vmem:[%s7121 + $0x20] sm:$0xff]
        %v7127 = vld [vmem:[%s7121 + $0x28] sm:$0xff]
        %v7128 = vld [vmem:[%s7121 + $0x30] sm:$0xff]
        %v7129 = vld [vmem:[%s7121 + $0x38] sm:$0xff]
        %v7130 = vld [vmem:[%s7121 + $0x40] sm:$0xff]
        %v7131 = vld [vmem:[%s7121 + $0x48] sm:$0xff]
        %v7132 = vld [vmem:[%s7121 + $0x50] sm:$0xff]
        %v7133 = vld [vmem:[%s7121 + $0x58] sm:$0xff]
        %v7134 = vld [vmem:[%s7121 + $0x60] sm:$0xff]
        %v7135 = vld [vmem:[%s7121 + $0x68] sm:$0xff]
        %v7136 = vld [vmem:[%s7121 + $0x70] sm:$0xff]
        %v7137 = vld [vmem:[%s7121 + $0x78] sm:$0xff]
        %v7138 = vld [vmem:[%s7121 + $0x80] sm:$0xff]
        %v7139 = vld [vmem:[%s7121 + $0x88] sm:$0xff]
        %v7140 = vld [vmem:[%s7121 + $0x90] sm:$0xff]
        %v7141 = vld [vmem:[%s7121 + $0x98] sm:$0xff]
        %v7142 = vld [vmem:[%s7121 + $0xa0] sm:$0xff]
        %v7143 = vld [vmem:[%s7121 + $0xa8] sm:$0xff]
        %v7144 = vld [vmem:[%s7121 + $0xb0] sm:$0xff]
        %v7145 = vld [vmem:[%s7121 + $0xb8] sm:$0xff]
        %v7146 = vld [vmem:[%s7121 + $0xc0] sm:$0xff]
        %v7147 = vld [vmem:[%s7121 + $0xc8] sm:$0xff]
        %v7148 = vld [vmem:[%s7121 + $0xd0] sm:$0xff]
        %v7149 = vld [vmem:[%s7121 + $0xd8] sm:$0xff]
        %v7150 = vld [vmem:[%s7121 + $0xe0] sm:$0xff]
        %v7151 = vld [vmem:[%s7121 + $0xe8] sm:$0xff]
        %v7152 = vld [vmem:[%s7121 + $0xf0] sm:$0xff]
        %v7153 = vld [vmem:[%s7121 + $0xf8] sm:$0xff]
        %v7154 = vrot.slane %v6581, 5
        %v7155 = vrot.slane %v6582, 5
        %7158 = vmatprep.subr.mxu0 0.0
        %7159 = vmatpush1.msra.mxu0 %v7137
        %7160 = vmatprep.subr.mxu0 0.0
        %7161 = vmatpush1.msra.mxu0 %v7136
        %7162 = vmatprep.subr.mxu0 0.0
        %7163 = vmatpush1.msra.mxu0 %v7135
        %7164 = vmatprep.subr.mxu0 0.0
        %7165 = vmatpush1.msra.mxu0 %v7134
        %7166 = vmatprep.subr.mxu0 0.0
        %7167 = vmatpush1.msra.mxu0 %v7133
        %7168 = vmatprep.subr.mxu0 0.0
        %7169 = vmatpush1.msra.mxu0 %v7132
        %7170 = vmatprep.subr.mxu0 0.0
        %7171 = vmatpush1.msra.mxu0 %v7131
        %7172 = vmatprep.subr.mxu0 0.0
        %7173 = vmatpush1.msra.mxu0 %v7130
        %7174 = vmatprep.subr.mxu0 0.0
        %7175 = vmatpush1.msra.mxu0 %v7129
        %7176 = vmatprep.subr.mxu0 0.0
        %7177 = vmatpush1.msra.mxu0 %v7128
        %7178 = vmatprep.subr.mxu0 0.0
        %7179 = vmatpush1.msra.mxu0 %v7127
        %7180 = vmatprep.subr.mxu0 0.0
        %7181 = vmatpush1.msra.mxu0 %v7126
        %7182 = vmatprep.subr.mxu0 0.0
        %7183 = vmatpush1.msra.mxu0 %v7125
        %7184 = vmatprep.subr.mxu0 0.0
        %7185 = vmatpush1.msra.mxu0 %v7124
        %7186 = vmatprep.subr.mxu0 0.0
        %7187 = vmatpush1.msra.mxu0 %v7123
        %7188 = vmatprep.subr.mxu0 0.0
        %7189 = vmatpush1.msra.mxu0 %v7122
        %7190 = vmatprep.subr.mxu0 0.0
        %7191 = vmatpush2.msra.mxu0 %v7153
        %7192 = vmatprep.subr.mxu0 0.0
        %7193 = vmatpush2.msra.mxu0 %v7152
        %7194 = vmatprep.subr.mxu0 0.0
        %7195 = vmatpush2.msra.mxu0 %v7151
        %7196 = vmatprep.subr.mxu0 0.0
        %7197 = vmatpush2.msra.mxu0 %v7150
        %7198 = vmatprep.subr.mxu0 0.0
        %7199 = vmatpush2.msra.mxu0 %v7149
        %7200 = vmatprep.subr.mxu0 0.0
        %7201 = vmatpush2.msra.mxu0 %v7148
        %7202 = vmatprep.subr.mxu0 0.0
        %7203 = vmatpush2.msra.mxu0 %v7147
        %7204 = vmatprep.subr.mxu0 0.0
        %7205 = vmatpush2.msra.mxu0 %v7146
        %7206 = vmatprep.subr.mxu0 0.0
        %7207 = vmatpush2.msra.mxu0 %v7145
        %7208 = vmatprep.subr.mxu0 0.0
        %7209 = vmatpush2.msra.mxu0 %v7144
        %7210 = vmatprep.subr.mxu0 0.0
        %7211 = vmatpush2.msra.mxu0 %v7143
        %7212 = vmatprep.subr.mxu0 0.0
        %7213 = vmatpush2.msra.mxu0 %v7142
        %7214 = vmatprep.subr.mxu0 0.0
        %7215 = vmatpush2.msra.mxu0 %v7141
        %7216 = vmatprep.subr.mxu0 0.0
        %7217 = vmatpush2.msra.mxu0 %v7140
        %7218 = vmatprep.subr.mxu0 0.0
        %7219 = vmatpush2.msra.mxu0 %v7139
        %7220 = vmatprep.subr.mxu0 0.0
        %7221 = vmatpush2.msra.mxu0 %v7138
        %7222 = vmatprep.mubr.f32.mxu0 %v7155
        %7223 = vmatmul.mubr.f32.gmra.mxu0 %v7154
        %v7224 = vpop.f32.mrf.mxu0
        %v7225 = vadd.f32 0.0, %v7224
        %v7226 = vpop.f32.mrf.mxu0
        %7227 = vdwg.mxu0
        %v7228 = vadd.f32 %v7120, %v7225
        %s7229 = scalar_lea.vmem %s12, 1536
        %v7230 = vld [vmem:[%s7229] sm:$0xff]
        %v7231 = vld [vmem:[%s7229 + $0x8] sm:$0xff]
        %v7232 = vld [vmem:[%s7229 + $0x10] sm:$0xff]
        %v7233 = vld [vmem:[%s7229 + $0x18] sm:$0xff]
        %v7234 = vld [vmem:[%s7229 + $0x20] sm:$0xff]
        %v7235 = vld [vmem:[%s7229 + $0x28] sm:$0xff]
        %v7236 = vld [vmem:[%s7229 + $0x30] sm:$0xff]
        %v7237 = vld [vmem:[%s7229 + $0x38] sm:$0xff]
        %v7238 = vld [vmem:[%s7229 + $0x40] sm:$0xff]
        %v7239 = vld [vmem:[%s7229 + $0x48] sm:$0xff]
        %v7240 = vld [vmem:[%s7229 + $0x50] sm:$0xff]
        %v7241 = vld [vmem:[%s7229 + $0x58] sm:$0xff]
        %v7242 = vld [vmem:[%s7229 + $0x60] sm:$0xff]
        %v7243 = vld [vmem:[%s7229 + $0x68] sm:$0xff]
        %v7244 = vld [vmem:[%s7229 + $0x70] sm:$0xff]
        %v7245 = vld [vmem:[%s7229 + $0x78] sm:$0xff]
        %v7246 = vld [vmem:[%s7229 + $0x80] sm:$0xff]
        %v7247 = vld [vmem:[%s7229 + $0x88] sm:$0xff]
        %v7248 = vld [vmem:[%s7229 + $0x90] sm:$0xff]
        %v7249 = vld [vmem:[%s7229 + $0x98] sm:$0xff]
        %v7250 = vld [vmem:[%s7229 + $0xa0] sm:$0xff]
        %v7251 = vld [vmem:[%s7229 + $0xa8] sm:$0xff]
        %v7252 = vld [vmem:[%s7229 + $0xb0] sm:$0xff]
        %v7253 = vld [vmem:[%s7229 + $0xb8] sm:$0xff]
        %v7254 = vld [vmem:[%s7229 + $0xc0] sm:$0xff]
        %v7255 = vld [vmem:[%s7229 + $0xc8] sm:$0xff]
        %v7256 = vld [vmem:[%s7229 + $0xd0] sm:$0xff]
        %v7257 = vld [vmem:[%s7229 + $0xd8] sm:$0xff]
        %v7258 = vld [vmem:[%s7229 + $0xe0] sm:$0xff]
        %v7259 = vld [vmem:[%s7229 + $0xe8] sm:$0xff]
        %v7260 = vld [vmem:[%s7229 + $0xf0] sm:$0xff]
        %v7261 = vld [vmem:[%s7229 + $0xf8] sm:$0xff]
        %v7262 = vrot.slane %v6581, 6
        %v7263 = vrot.slane %v6582, 6
        %7266 = vmatprep.subr.mxu0 0.0
        %7267 = vmatpush1.msra.mxu0 %v7245
        %7268 = vmatprep.subr.mxu0 0.0
        %7269 = vmatpush1.msra.mxu0 %v7244
        %7270 = vmatprep.subr.mxu0 0.0
        %7271 = vmatpush1.msra.mxu0 %v7243
        %7272 = vmatprep.subr.mxu0 0.0
        %7273 = vmatpush1.msra.mxu0 %v7242
        %7274 = vmatprep.subr.mxu0 0.0
        %7275 = vmatpush1.msra.mxu0 %v7241
        %7276 = vmatprep.subr.mxu0 0.0
        %7277 = vmatpush1.msra.mxu0 %v7240
        %7278 = vmatprep.subr.mxu0 0.0
        %7279 = vmatpush1.msra.mxu0 %v7239
        %7280 = vmatprep.subr.mxu0 0.0
        %7281 = vmatpush1.msra.mxu0 %v7238
        %7282 = vmatprep.subr.mxu0 0.0
        %7283 = vmatpush1.msra.mxu0 %v7237
        %7284 = vmatprep.subr.mxu0 0.0
        %7285 = vmatpush1.msra.mxu0 %v7236
        %7286 = vmatprep.subr.mxu0 0.0
        %7287 = vmatpush1.msra.mxu0 %v7235
        %7288 = vmatprep.subr.mxu0 0.0
        %7289 = vmatpush1.msra.mxu0 %v7234
        %7290 = vmatprep.subr.mxu0 0.0
        %7291 = vmatpush1.msra.mxu0 %v7233
        %7292 = vmatprep.subr.mxu0 0.0
        %7293 = vmatpush1.msra.mxu0 %v7232
        %7294 = vmatprep.subr.mxu0 0.0
        %7295 = vmatpush1.msra.mxu0 %v7231
        %7296 = vmatprep.subr.mxu0 0.0
        %7297 = vmatpush1.msra.mxu0 %v7230
        %7298 = vmatprep.subr.mxu0 0.0
        %7299 = vmatpush2.msra.mxu0 %v7261
        %7300 = vmatprep.subr.mxu0 0.0
        %7301 = vmatpush2.msra.mxu0 %v7260
        %7302 = vmatprep.subr.mxu0 0.0
        %7303 = vmatpush2.msra.mxu0 %v7259
        %7304 = vmatprep.subr.mxu0 0.0
        %7305 = vmatpush2.msra.mxu0 %v7258
        %7306 = vmatprep.subr.mxu0 0.0
        %7307 = vmatpush2.msra.mxu0 %v7257
        %7308 = vmatprep.subr.mxu0 0.0
        %7309 = vmatpush2.msra.mxu0 %v7256
        %7310 = vmatprep.subr.mxu0 0.0
        %7311 = vmatpush2.msra.mxu0 %v7255
        %7312 = vmatprep.subr.mxu0 0.0
        %7313 = vmatpush2.msra.mxu0 %v7254
        %7314 = vmatprep.subr.mxu0 0.0
        %7315 = vmatpush2.msra.mxu0 %v7253
        %7316 = vmatprep.subr.mxu0 0.0
        %7317 = vmatpush2.msra.mxu0 %v7252
        %7318 = vmatprep.subr.mxu0 0.0
        %7319 = vmatpush2.msra.mxu0 %v7251
        %7320 = vmatprep.subr.mxu0 0.0
        %7321 = vmatpush2.msra.mxu0 %v7250
        %7322 = vmatprep.subr.mxu0 0.0
        %7323 = vmatpush2.msra.mxu0 %v7249
        %7324 = vmatprep.subr.mxu0 0.0
        %7325 = vmatpush2.msra.mxu0 %v7248
        %7326 = vmatprep.subr.mxu0 0.0
        %7327 = vmatpush2.msra.mxu0 %v7247
        %7328 = vmatprep.subr.mxu0 0.0
        %7329 = vmatpush2.msra.mxu0 %v7246
        %7330 = vmatprep.mubr.f32.mxu0 %v7263
        %7331 = vmatmul.mubr.f32.gmra.mxu0 %v7262
        %v7332 = vpop.f32.mrf.mxu0
        %v7333 = vadd.f32 0.0, %v7332
        %v7334 = vpop.f32.mrf.mxu0
        %7335 = vdwg.mxu0
        %v7336 = vadd.f32 %v7228, %v7333
        %s7337 = scalar_lea.vmem %s12, 1792
        %v7338 = vld [vmem:[%s7337] sm:$0xff]
        %v7339 = vld [vmem:[%s7337 + $0x8] sm:$0xff]
        %v7340 = vld [vmem:[%s7337 + $0x10] sm:$0xff]
        %v7341 = vld [vmem:[%s7337 + $0x18] sm:$0xff]
        %v7342 = vld [vmem:[%s7337 + $0x20] sm:$0xff]
        %v7343 = vld [vmem:[%s7337 + $0x28] sm:$0xff]
        %v7344 = vld [vmem:[%s7337 + $0x30] sm:$0xff]
        %v7345 = vld [vmem:[%s7337 + $0x38] sm:$0xff]
        %v7346 = vld [vmem:[%s7337 + $0x40] sm:$0xff]
        %v7347 = vld [vmem:[%s7337 + $0x48] sm:$0xff]
        %v7348 = vld [vmem:[%s7337 + $0x50] sm:$0xff]
        %v7349 = vld [vmem:[%s7337 + $0x58] sm:$0xff]
        %v7350 = vld [vmem:[%s7337 + $0x60] sm:$0xff]
        %v7351 = vld [vmem:[%s7337 + $0x68] sm:$0xff]
        %v7352 = vld [vmem:[%s7337 + $0x70] sm:$0xff]
        %v7353 = vld [vmem:[%s7337 + $0x78] sm:$0xff]
        %v7354 = vld [vmem:[%s7337 + $0x80] sm:$0xff]
        %v7355 = vld [vmem:[%s7337 + $0x88] sm:$0xff]
        %v7356 = vld [vmem:[%s7337 + $0x90] sm:$0xff]
        %v7357 = vld [vmem:[%s7337 + $0x98] sm:$0xff]
        %v7358 = vld [vmem:[%s7337 + $0xa0] sm:$0xff]
        %v7359 = vld [vmem:[%s7337 + $0xa8] sm:$0xff]
        %v7360 = vld [vmem:[%s7337 + $0xb0] sm:$0xff]
        %v7361 = vld [vmem:[%s7337 + $0xb8] sm:$0xff]
        %v7362 = vld [vmem:[%s7337 + $0xc0] sm:$0xff]
        %v7363 = vld [vmem:[%s7337 + $0xc8] sm:$0xff]
        %v7364 = vld [vmem:[%s7337 + $0xd0] sm:$0xff]
        %v7365 = vld [vmem:[%s7337 + $0xd8] sm:$0xff]
        %v7366 = vld [vmem:[%s7337 + $0xe0] sm:$0xff]
        %v7367 = vld [vmem:[%s7337 + $0xe8] sm:$0xff]
        %v7368 = vld [vmem:[%s7337 + $0xf0] sm:$0xff]
        %v7369 = vld [vmem:[%s7337 + $0xf8] sm:$0xff]
        %v7370 = vrot.slane %v6581, 7
        %v7371 = vrot.slane %v6582, 7
        %7374 = vmatprep.subr.mxu0 0.0
        %7375 = vmatpush1.msra.mxu0 %v7353
        %7376 = vmatprep.subr.mxu0 0.0
        %7377 = vmatpush1.msra.mxu0 %v7352
        %7378 = vmatprep.subr.mxu0 0.0
        %7379 = vmatpush1.msra.mxu0 %v7351
        %7380 = vmatprep.subr.mxu0 0.0
        %7381 = vmatpush1.msra.mxu0 %v7350
        %7382 = vmatprep.subr.mxu0 0.0
        %7383 = vmatpush1.msra.mxu0 %v7349
        %7384 = vmatprep.subr.mxu0 0.0
        %7385 = vmatpush1.msra.mxu0 %v7348
        %7386 = vmatprep.subr.mxu0 0.0
        %7387 = vmatpush1.msra.mxu0 %v7347
        %7388 = vmatprep.subr.mxu0 0.0
        %7389 = vmatpush1.msra.mxu0 %v7346
        %7390 = vmatprep.subr.mxu0 0.0
        %7391 = vmatpush1.msra.mxu0 %v7345
        %7392 = vmatprep.subr.mxu0 0.0
        %7393 = vmatpush1.msra.mxu0 %v7344
        %7394 = vmatprep.subr.mxu0 0.0
        %7395 = vmatpush1.msra.mxu0 %v7343
        %7396 = vmatprep.subr.mxu0 0.0
        %7397 = vmatpush1.msra.mxu0 %v7342
        %7398 = vmatprep.subr.mxu0 0.0
        %7399 = vmatpush1.msra.mxu0 %v7341
        %7400 = vmatprep.subr.mxu0 0.0
        %7401 = vmatpush1.msra.mxu0 %v7340
        %7402 = vmatprep.subr.mxu0 0.0
        %7403 = vmatpush1.msra.mxu0 %v7339
        %7404 = vmatprep.subr.mxu0 0.0
        %7405 = vmatpush1.msra.mxu0 %v7338
        %7406 = vmatprep.subr.mxu0 0.0
        %7407 = vmatpush2.msra.mxu0 %v7369
        %7408 = vmatprep.subr.mxu0 0.0
        %7409 = vmatpush2.msra.mxu0 %v7368
        %7410 = vmatprep.subr.mxu0 0.0
        %7411 = vmatpush2.msra.mxu0 %v7367
        %7412 = vmatprep.subr.mxu0 0.0
        %7413 = vmatpush2.msra.mxu0 %v7366
        %7414 = vmatprep.subr.mxu0 0.0
        %7415 = vmatpush2.msra.mxu0 %v7365
        %7416 = vmatprep.subr.mxu0 0.0
        %7417 = vmatpush2.msra.mxu0 %v7364
        %7418 = vmatprep.subr.mxu0 0.0
        %7419 = vmatpush2.msra.mxu0 %v7363
        %7420 = vmatprep.subr.mxu0 0.0
        %7421 = vmatpush2.msra.mxu0 %v7362
        %7422 = vmatprep.subr.mxu0 0.0
        %7423 = vmatpush2.msra.mxu0 %v7361
        %7424 = vmatprep.subr.mxu0 0.0
        %7425 = vmatpush2.msra.mxu0 %v7360
        %7426 = vmatprep.subr.mxu0 0.0
        %7427 = vmatpush2.msra.mxu0 %v7359
        %7428 = vmatprep.subr.mxu0 0.0
        %7429 = vmatpush2.msra.mxu0 %v7358
        %7430 = vmatprep.subr.mxu0 0.0
        %7431 = vmatpush2.msra.mxu0 %v7357
        %7432 = vmatprep.subr.mxu0 0.0
        %7433 = vmatpush2.msra.mxu0 %v7356
        %7434 = vmatprep.subr.mxu0 0.0
        %7435 = vmatpush2.msra.mxu0 %v7355
        %7436 = vmatprep.subr.mxu0 0.0
        %7437 = vmatpush2.msra.mxu0 %v7354
        %7438 = vmatprep.mubr.f32.mxu0 %v7371
        %7439 = vmatmul.mubr.f32.gmra.mxu0 %v7370
        %v7440 = vpop.f32.mrf.mxu0
        %v7441 = vadd.f32 0.0, %v7440
        %v7442 = vpop.f32.mrf.mxu0
        %7443 = vdwg.mxu0
        %v7444 = vadd.f32 %v7336, %v7441
        %vm7445 = vcmask 73728
        %7446 = vst.msk [vmem:[%s457] sm:$0x1] %vm7445, %v7444
        %s7447 = sand.u32 %s335, 1
        %s7448 = scalar_lea.sflag [#allocation6], %s7447
        %s7449 = sand.u32 %s335, 1
        %s7450 = scalar_lea.vmem [#allocation5], %s7449
        // Predicated region
        $region77: #{fashion_mnist_model_v2.1} parent=75 // pred_check
          %p7451 = pneg %p345
        $region78: #{fashion_mnist_model_v2.1} parent=75 // pred_check_branch
          %7453 = sbr.rel (%p7451) target = $region80
        $region79: #{fashion_mnist_model_v2.1} parent=75 // pred_region
          %s7455 = ssub.s32 16, 16
          %7456 = vsyncadd %s7448, %s7455
          %s7457 = smul.addr %s28, 16
          %s7458 = scalar_lea.hbm %s14, %s7457
          %s7460 = sshll.u32 %s7450, 4
          %s7461 = int_to_ptr.vmem [resolvable:$true] %s7460
          %7463 = dma.vmem_to_hbm [thread:$0]  %s7461, 16, %s7458, %s7448
        $region80: #{fashion_mnist_model_v2.1} parent=75 // pred_fallthru
          _
      $region76: #{fashion_mnist_model_v2.1} parent=5 // pred_fallthru
        _
      %p7464 = scmp.le.s32.totalorder 2, %s23
      // Predicated region
      $region81: #{fashion_mnist_model_v2.1} parent=5 // pred_check
        %p7465 = pneg %p7464
      $region82: #{fashion_mnist_model_v2.1} parent=5 // pred_check_branch
        %7467 = sbr.rel (%p7465) target = $region84
      $region83: #{fashion_mnist_model_v2.1} parent=5 // pred_region
        %s7468 = ssub.s32 %s23, 2
        // Predicated region
        $region85: #{fashion_mnist_model_v2.1} parent=83 // pred_check
          %p7469 = pneg %p351
        $region86: #{fashion_mnist_model_v2.1} parent=83 // pred_check_branch
          %7471 = sbr.rel (%p7469) target = $region88
        $region87: #{fashion_mnist_model_v2.1} parent=83 // pred_region
          %s7472 = sand.u32 %s336, 1
          %s7473 = scalar_lea.sflag [#allocation6], %s7472
          %s7474 = sand.u32 %s336, 1
          %s7475 = scalar_lea.vmem [#allocation5], %s7474
          %7476 = dma.done %s7473, 16
        $region88: #{fashion_mnist_model_v2.1} parent=83 // pred_fallthru
          _
      $region84: #{fashion_mnist_model_v2.1} parent=5 // pred_fallthru
        _
    $region6: #{fashion_mnist_model_v2.1} parent=1 // loop_footer
      %s27 = sadd.s32 1, %s23
    $region7: #{fashion_mnist_model_v2.1} parent=1 // loop_footer_branch
      %22 = sbr.rel target = $region3
    $region8: #{fashion_mnist_model_v2.1} parent=1 // loop_exit
      _
    %7477 = vsyncpa [#allocation6], 1
    %s7478 = scalar_lea.sflag [#allocation6], 1
    %7479 = vsyncpa %s7478, 1

</llo_original>
